<compile_context>
chip_gen: v5e
topology: v5e:2x2
jax: 0.10.0
libtpu: 0.0.40
codegen_flags: <defaults>
</compile_context>

<pallas_src>
import functools

import jax
import jax.numpy as jnp
from jax import lax
from jax.experimental import pallas as pl
from jax.experimental.pallas import tpu as pltpu

# Network geometry implied by the PyTorch module (fc1.in_features == 1024
# forces a 28x28 single-channel input).
KH = KW = 5
H = W = 28
C1_OUT = 32
C2_OUT = 64
P1 = 12            # pooled spatial after conv1  (28 -> 24 -> 12)
P2 = 4             # pooled spatial after conv2  (12 ->  8 ->  4)
FC1_OUT = 512


def _round_up(x, m):
    return ((x + m - 1) // m) * m


# ----------------------------- fused Pallas kernel -----------------------------

def _cnn_mnist_kernel(x_ref, m1_ref, s1_ref, b1_ref, m2_ref, s2_ref, b2_ref,
                      wfc1_ref, bfc1_ref, wfc2_ref, bfc2_ref, out_ref):
    """Whole CNNMnist forward for one image (grid step).

    x_ref   : (1, 1, 28, 28) f32   input image
    m1_ref  : (2, 5, 28, 384) bf16 conv1 banded matrices, [q, kh]; lanes = pw*32+co
    s1_ref  : (2, 12, 24) f32      even/odd row selection (vertical 2x2 pool)
    b1_ref  : (1, 384) f32         conv1 bias broadcast over pw
    m2_ref  : (2, 5, 384, 256) bf16 conv2 banded matrices; lanes = pw2*64+co
    s2_ref  : (2, 4, 8) f32
    b2_ref  : (1, 256) f32
    wfc1_ref: (4, 256, 512) bf16   fc1 weights split per activation row ph2
    bfc1_ref: (1, 512) f32
    wfc2_ref: (512, 128) bf16      fc2 weights, lane-padded num_classes
    bfc2_ref: (1, 128) f32
    out_ref : (1, 8, 128) f32      logits broadcast over 8 sublanes (lane-dense store)
    """
    f32 = jnp.float32
    bf16 = jnp.bfloat16

    # ---------------- conv1 (5x5, 1->32) + 2x2 maxpool + relu ----------------
    # For horizontal pool phase q (ow = 2*pw + q):
    #   Y_q[oh, pw*32 + co] = sum_kh x[oh+kh, :] @ m1[q, kh]
    y0 = None
    y1 = None
    for kh in range(KH):
        xs = x_ref[0, 0, kh:kh + 2 * P1, :].astype(bf16)                 # (24, 28)
        t0 = jnp.dot(xs, m1_ref[0, kh], preferred_element_type=f32)      # (24, 384)
        t1 = jnp.dot(xs, m1_ref[1, kh], preferred_element_type=f32)
        y0 = t0 if y0 is None else y0 + t0
        y1 = t1 if y1 is None else y1 + t1
    cmax = jnp.maximum(y0, y1)                                           # (24, 384)
    # Vertical pool: exact 0/1 selection matmuls (even/odd conv rows) + max.
    r_e = jnp.dot(s1_ref[0], cmax, preferred_element_type=f32)           # (12, 384)
    r_o = jnp.dot(s1_ref[1], cmax, preferred_element_type=f32)
    act1 = jnp.maximum(jnp.maximum(r_e, r_o) + b1_ref[...], 0.0)         # (12, 384)

    # ---------------- conv2 (5x5, 32->64) + 2x2 maxpool + relu ----------------
    y0 = None
    y1 = None
    for kh in range(KH):
        a = act1[kh:kh + 2 * P2, :].astype(bf16)                         # (8, 384)
        t0 = jnp.dot(a, m2_ref[0, kh], preferred_element_type=f32)       # (8, 256)
        t1 = jnp.dot(a, m2_ref[1, kh], preferred_element_type=f32)
        y0 = t0 if y0 is None else y0 + t0
        y1 = t1 if y1 is None else y1 + t1
    cmax2 = jnp.maximum(y0, y1)                                          # (8, 256)
    r_e = jnp.dot(s2_ref[0], cmax2, preferred_element_type=f32)          # (4, 256)
    r_o = jnp.dot(s2_ref[1], cmax2, preferred_element_type=f32)
    act2 = jnp.maximum(jnp.maximum(r_e, r_o) + b2_ref[...], 0.0)         # (4, 256)

    # ---------------- fc1 (1024 -> 512) + relu ----------------
    # PyTorch NCHW flatten is folded into wfc1 (one matrix per act2 row ph2).
    h = None
    for ph in range(P2):
        a = act2[ph:ph + 1, :].astype(bf16)                              # (1, 256)
        t = jnp.dot(a, wfc1_ref[ph], preferred_element_type=f32)         # (1, 512)
        h = t if h is None else h + t
    h = jnp.maximum(h + bfc1_ref[...], 0.0)                              # (1, 512)

    # ---------------- fc2 (512 -> num_classes, lane-padded) ----------------
    o = jnp.dot(h.astype(bf16), wfc2_ref[...], preferred_element_type=f32)
    o = o + bfc2_ref[...]                                                # (1, 128)
    out_ref[0] = jnp.broadcast_to(o, (8, o.shape[-1]))


# ----------------------------- one-time weight prep -----------------------------

def _conv_band(w_oihw, in_w, out_w, q):
    """Banded matmul operand for a conv row-offset with horizontal pool phase q.

    Returns (KH, in_w*Cin, out_w*Cout) with
      out[kh, w_in*Cin + ci, pw*Cout + co] =
        w[co, ci, kh, w_in - (2*pw + q)]  if 0 <= w_in - (2*pw + q) < KW else 0.
    """
    wk = jnp.transpose(w_oihw, (2, 3, 1, 0))                  # (KH, KW, Cin, Cout)
    kh_, kw_, cin, cout = wk.shape
    kw = jnp.arange(in_w)[:, None] - (2 * jnp.arange(out_w)[None, :] + q)
    valid = (kw >= 0) & (kw < kw_)
    m = wk[:, jnp.clip(kw, 0, kw_ - 1)]                       # (KH, in_w, out_w, Cin, Cout)
    m = m * valid[None, :, :, None, None].astype(m.dtype)
    m = jnp.transpose(m, (0, 1, 3, 2, 4))                     # (KH, in_w, Cin, out_w, Cout)
    return m.reshape(kh_, in_w * cin, out_w * cout)


def _row_select(n_out, parity):
    cols = jnp.arange(2 * n_out)[None, :]
    rows = jnp.arange(n_out)[:, None]
    return (cols == 2 * rows + parity).astype(jnp.float32)


def prepare_params(params):
    """One-time repack of PyTorch-layout parameters into kernel operands."""
    w1, b1, w2, b2, fw1, fb1, fw2, fb2 = params
    num_classes = fw2.shape[0]
    ncp = _round_up(num_classes, 128)

    m1 = jnp.stack([_conv_band(w1, W, P1, 0),
                    _conv_band(w1, W, P1, 1)]).astype(jnp.bfloat16)     # (2,5,28,384)
    m2 = jnp.stack([_conv_band(w2, P1, P2, 0),
                    _conv_band(w2, P1, P2, 1)]).astype(jnp.bfloat16)    # (2,5,384,256)
    s1 = jnp.stack([_row_select(P1, 0), _row_select(P1, 1)])            # (2,12,24)
    s2 = jnp.stack([_row_select(P2, 0), _row_select(P2, 1)])            # (2,4,8)
    b1v = jnp.tile(b1, P1).reshape(1, P1 * C1_OUT).astype(jnp.float32)  # lane = pw*32+co
    b2v = jnp.tile(b2, P2).reshape(1, P2 * C2_OUT).astype(jnp.float32)  # lane = pw2*64+co

    # fc1: PyTorch flattens NCHW (co, ph2, pw2); our act2 lanes are pw2*64 + co.
    f = fw1.reshape(FC1_OUT, C2_OUT, P2, P2).transpose(2, 3, 1, 0)      # (ph2, pw2, co, n)
    wfc1 = f.reshape(P2, P2 * C2_OUT, FC1_OUT).astype(jnp.bfloat16)     # (4,256,512)
    bfc1 = fb1.reshape(1, FC1_OUT).astype(jnp.float32)

    wfc2 = jnp.pad(fw2.T, ((0, 0), (0, ncp - num_classes))).astype(jnp.bfloat16)
    bfc2 = jnp.pad(fb2, (0, ncp - num_classes)).reshape(1, ncp).astype(jnp.float32)

    return (m1, s1, b1v, m2, s2, b2v, wfc1, bfc1, wfc2, bfc2)


# ----------------------------- forward wrapper -----------------------------

def cnn_mnist_forward(x_nchw, prepared, *, num_classes):
    m1, s1, b1v, m2, s2, b2v, wfc1, bfc1, wfc2, bfc2 = prepared
    B = x_nchw.shape[0]
    assert x_nchw.shape[1:] == (1, H, W), x_nchw.shape
    ncp = wfc2.shape[1]

    def full(a):
        n = a.ndim
        return pl.BlockSpec(a.shape, lambda i, n=n: (0,) * n)

    out3 = pl.pallas_call(
        _cnn_mnist_kernel,
        out_shape=jax.ShapeDtypeStruct((B, 8, ncp), jnp.float32),
        grid_spec=pl.GridSpec(
            grid=(B,),
            in_specs=[
                pl.BlockSpec((1, 1, H, W), lambda i: (i, 0, 0, 0)),
                full(m1), full(s1), full(b1v),
                full(m2), full(s2), full(b2v),
                full(wfc1), full(bfc1), full(wfc2), full(bfc2),
            ],
            out_specs=pl.BlockSpec((1, 8, ncp), lambda i: (i, 0, 0)),
        ),
        compiler_params=pltpu.CompilerParams(
            dimension_semantics=("parallel",),
            vmem_limit_bytes=32 * 1024 * 1024),
    )(x_nchw, m1, s1, b1v, m2, s2, b2v, wfc1, bfc1, wfc2, bfc2)
    return out3[:, 0, :num_classes]


# ----------------------------- params & reference -----------------------------

def init_params(key, num_classes=10):
    ks = jax.random.split(key, 8)

    def u(k, shape, fan_in):
        bound = 1.0 / jnp.sqrt(jnp.float32(fan_in))
        return jax.random.uniform(k, shape, jnp.float32, -bound, bound)

    w1 = u(ks[0], (32, 1, 5, 5), 1 * 5 * 5)
    b1 = u(ks[1], (32,), 1 * 5 * 5)
    w2 = u(ks[2], (64, 32, 5, 5), 32 * 5 * 5)
    b2 = u(ks[3], (64,), 32 * 5 * 5)
    fw1 = u(ks[4], (512, 1024), 1024)
    fb1 = u(ks[5], (512,), 1024)
    fw2 = u(ks[6], (num_classes, 512), 512)
    fb2 = u(ks[7], (num_classes,), 512)
    return (w1, b1, w2, b2, fw1, fb1, fw2, fb2)


def ref_forward(x, params, matmul_dtype=jnp.float32):
    """Pure-JAX reference matching the PyTorch forward (NCHW)."""
    w1, b1, w2, b2, fw1, fb1, fw2, fb2 = params
    dn = ('NCHW', 'OIHW', 'NCHW')

    def conv(v, w, b):
        y = lax.conv_general_dilated(
            v.astype(matmul_dtype), w.astype(matmul_dtype), (1, 1), 'VALID',
            dimension_numbers=dn, preferred_element_type=jnp.float32)
        return y + b[None, :, None, None]

    def pool_relu(y):
        y = lax.reduce_window(y, -jnp.inf, lax.max,
                              (1, 1, 2, 2), (1, 1, 2, 2), 'VALID')
        return jnp.maximum(y, 0.0)

    def linear(v, w, b):
        return jnp.dot(v.astype(matmul_dtype), w.T.astype(matmul_dtype),
                       preferred_element_type=jnp.float32) + b

    y = pool_relu(conv(x, w1, b1))
    y = pool_relu(conv(y, w2, b2))
    y = y.reshape(x.shape[0], -1)
    y = jnp.maximum(linear(y, fw1, fb1), 0.0)
    return linear(y, fw2, fb2)


# ----------------------------------- main -----------------------------------

if __name__ == "__main__":
    key = jax.random.PRNGKey(0)
    kx, kp = jax.random.split(key)

    # MNIST-shaped input (28x28 required by fc1.in_features == 1024).
    B, num_classes = 2, 10
    x = jax.random.normal(kx, (B, 1, 28, 28), jnp.float32)
    params = init_params(kp, num_classes=num_classes)

    # One-time weight repack, hoisted out of the per-call forward path.
    prepared = jax.block_until_ready(prepare_params(params))

    fwd = jax.jit(functools.partial(cnn_mnist_forward, num_classes=num_classes))
    out = jax.block_until_ready(fwd(x, prepared))
    assert out.shape == (B, num_classes), out.shape

    # Tight-ish check vs a reference using bf16-operand / f32-accum numerics,
    # loose check vs the full-f32 PyTorch-equivalent reference.
    ref_bf = jax.block_until_ready(ref_forward(x, params, jnp.bfloat16))
    ref_f32 = jax.block_until_ready(ref_forward(x, params, jnp.float32))
    assert jnp.allclose(out, ref_bf, atol=2e-2, rtol=2e-2), \
        float(jnp.max(jnp.abs(out - ref_bf)))
    assert jnp.allclose(out, ref_f32, atol=6e-2, rtol=6e-2), \
        float(jnp.max(jnp.abs(out - ref_f32)))

    print("KERNEL_OK")
</pallas_src>

<mosaic_0001>
module attributes {stable_mosaic.version = 11 : i64} {
  func.func @_cnn_mnist_kernel(%arg0: i32, %arg1: memref<1x1x28x28xf32, #tpu.memory_space<vmem>>, %arg2: memref<2x5x28x384xbf16, #tpu.memory_space<vmem>>, %arg3: memref<2x12x24xf32, #tpu.memory_space<vmem>>, %arg4: memref<1x384xf32, #tpu.memory_space<vmem>>, %arg5: memref<2x5x384x256xbf16, #tpu.memory_space<vmem>>, %arg6: memref<2x4x8xf32, #tpu.memory_space<vmem>>, %arg7: memref<1x256xf32, #tpu.memory_space<vmem>>, %arg8: memref<4x256x512xbf16, #tpu.memory_space<vmem>>, %arg9: memref<1x512xf32, #tpu.memory_space<vmem>>, %arg10: memref<512x128xbf16, #tpu.memory_space<vmem>>, %arg11: memref<1x128xf32, #tpu.memory_space<vmem>>, %arg12: memref<1x8x128xf32, #tpu.memory_space<vmem>>) attributes {dimension_semantics = [#tpu.dimension_semantics<parallel>], iteration_bounds = array<i64: 2>, scalar_prefetch = 0 : i64, scratch_operands = 0 : i64, tpu.core_type = #tpu.core_type<tc>, window_params = [{transform_indices = @transform_0, window_bounds = array<i64: 1, 1, 28, 28>}, {pipeline_mode = #tpu.pipeline_mode<synchronous>, transform_indices = @transform_1, window_bounds = array<i64: 2, 5, 28, 384>}, {pipeline_mode = #tpu.pipeline_mode<synchronous>, transform_indices = @transform_2, window_bounds = array<i64: 2, 12, 24>}, {pipeline_mode = #tpu.pipeline_mode<synchronous>, transform_indices = @transform_3, window_bounds = array<i64: 1, 384>}, {pipeline_mode = #tpu.pipeline_mode<synchronous>, transform_indices = @transform_4, window_bounds = array<i64: 2, 5, 384, 256>}, {pipeline_mode = #tpu.pipeline_mode<synchronous>, transform_indices = @transform_5, window_bounds = array<i64: 2, 4, 8>}, {pipeline_mode = #tpu.pipeline_mode<synchronous>, transform_indices = @transform_6, window_bounds = array<i64: 1, 256>}, {pipeline_mode = #tpu.pipeline_mode<synchronous>, transform_indices = @transform_7, window_bounds = array<i64: 4, 256, 512>}, {pipeline_mode = #tpu.pipeline_mode<synchronous>, transform_indices = @transform_8, window_bounds = array<i64: 1, 512>}, {pipeline_mode = #tpu.pipeline_mode<synchronous>, transform_indices = @transform_9, window_bounds = array<i64: 512, 128>}, {pipeline_mode = #tpu.pipeline_mode<synchronous>, transform_indices = @transform_10, window_bounds = array<i64: 1, 128>}, {transform_indices = @transform_11, window_bounds = array<i64: 1, 8, 128>}]} {
    %c0 = arith.constant 0 : index
    %c0_0 = arith.constant 0 : index
    %c0_1 = arith.constant 0 : index
    %c0_2 = arith.constant 0 : index
    %0 = vector.load %arg1[%c0, %c0_0, %c0_1, %c0_2] : memref<1x1x28x28xf32, #tpu.memory_space<vmem>>, vector<1x1x24x28xf32>
    %1 = vector.shape_cast %0 : vector<1x1x24x28xf32> to vector<24x28xf32>
    %2 = arith.truncf %1 : vector<24x28xf32> to vector<24x28xbf16>
    %c0_3 = arith.constant 0 : index
    %c0_4 = arith.constant 0 : index
    %c0_5 = arith.constant 0 : index
    %c0_6 = arith.constant 0 : index
    %3 = vector.load %arg2[%c0_3, %c0_4, %c0_5, %c0_6] : memref<2x5x28x384xbf16, #tpu.memory_space<vmem>>, vector<1x1x28x384xbf16>
    %4 = vector.shape_cast %3 : vector<1x1x28x384xbf16> to vector<28x384xbf16>
    %cst = arith.constant dense<0.000000e+00> : vector<24x384xf32>
    %5 = tpu.matmul %2, %4, %cst {dimension_numbers = #tpu.dot_dimension_numbers<[1], [0], [0], [1], [0, 0, 1, 1], [], []>} : vector<24x28xbf16>, vector<28x384xbf16>, vector<24x384xf32> -> vector<24x384xf32>
    %c1 = arith.constant 1 : index
    %c0_7 = arith.constant 0 : index
    %c0_8 = arith.constant 0 : index
    %c0_9 = arith.constant 0 : index
    %6 = vector.load %arg2[%c1, %c0_7, %c0_8, %c0_9] : memref<2x5x28x384xbf16, #tpu.memory_space<vmem>>, vector<1x1x28x384xbf16>
    %7 = vector.shape_cast %6 : vector<1x1x28x384xbf16> to vector<28x384xbf16>
    %cst_10 = arith.constant dense<0.000000e+00> : vector<24x384xf32>
    %8 = tpu.matmul %2, %7, %cst_10 {dimension_numbers = #tpu.dot_dimension_numbers<[1], [0], [0], [1], [0, 0, 1, 1], [], []>} : vector<24x28xbf16>, vector<28x384xbf16>, vector<24x384xf32> -> vector<24x384xf32>
    %c0_11 = arith.constant 0 : index
    %c0_12 = arith.constant 0 : index
    %c1_13 = arith.constant 1 : index
    %c0_14 = arith.constant 0 : index
    %9 = vector.load %arg1[%c0_11, %c0_12, %c1_13, %c0_14] : memref<1x1x28x28xf32, #tpu.memory_space<vmem>>, vector<1x1x24x28xf32>
    %10 = vector.shape_cast %9 : vector<1x1x24x28xf32> to vector<24x28xf32>
    %11 = arith.truncf %10 : vector<24x28xf32> to vector<24x28xbf16>
    %c0_15 = arith.constant 0 : index
    %c1_16 = arith.constant 1 : index
    %c0_17 = arith.constant 0 : index
    %c0_18 = arith.constant 0 : index
    %12 = vector.load %arg2[%c0_15, %c1_16, %c0_17, %c0_18] : memref<2x5x28x384xbf16, #tpu.memory_space<vmem>>, vector<1x1x28x384xbf16>
    %13 = vector.shape_cast %12 : vector<1x1x28x384xbf16> to vector<28x384xbf16>
    %cst_19 = arith.constant dense<0.000000e+00> : vector<24x384xf32>
    %14 = tpu.matmul %11, %13, %cst_19 {dimension_numbers = #tpu.dot_dimension_numbers<[1], [0], [0], [1], [0, 0, 1, 1], [], []>} : vector<24x28xbf16>, vector<28x384xbf16>, vector<24x384xf32> -> vector<24x384xf32>
    %c1_20 = arith.constant 1 : index
    %c1_21 = arith.constant 1 : index
    %c0_22 = arith.constant 0 : index
    %c0_23 = arith.constant 0 : index
    %15 = vector.load %arg2[%c1_20, %c1_21, %c0_22, %c0_23] : memref<2x5x28x384xbf16, #tpu.memory_space<vmem>>, vector<1x1x28x384xbf16>
    %16 = vector.shape_cast %15 : vector<1x1x28x384xbf16> to vector<28x384xbf16>
    %cst_24 = arith.constant dense<0.000000e+00> : vector<24x384xf32>
    %17 = tpu.matmul %11, %16, %cst_24 {dimension_numbers = #tpu.dot_dimension_numbers<[1], [0], [0], [1], [0, 0, 1, 1], [], []>} : vector<24x28xbf16>, vector<28x384xbf16>, vector<24x384xf32> -> vector<24x384xf32>
    %18 = arith.addf %5, %14 : vector<24x384xf32>
    %19 = arith.addf %8, %17 : vector<24x384xf32>
    %c0_25 = arith.constant 0 : index
    %c0_26 = arith.constant 0 : index
    %c2 = arith.constant 2 : index
    %c0_27 = arith.constant 0 : index
    %20 = vector.load %arg1[%c0_25, %c0_26, %c2, %c0_27] : memref<1x1x28x28xf32, #tpu.memory_space<vmem>>, vector<1x1x24x28xf32>
    %21 = vector.shape_cast %20 : vector<1x1x24x28xf32> to vector<24x28xf32>
    %22 = arith.truncf %21 : vector<24x28xf32> to vector<24x28xbf16>
    %c0_28 = arith.constant 0 : index
    %c2_29 = arith.constant 2 : index
    %c0_30 = arith.constant 0 : index
    %c0_31 = arith.constant 0 : index
    %23 = vector.load %arg2[%c0_28, %c2_29, %c0_30, %c0_31] : memref<2x5x28x384xbf16, #tpu.memory_space<vmem>>, vector<1x1x28x384xbf16>
    %24 = vector.shape_cast %23 : vector<1x1x28x384xbf16> to vector<28x384xbf16>
    %cst_32 = arith.constant dense<0.000000e+00> : vector<24x384xf32>
    %25 = tpu.matmul %22, %24, %cst_32 {dimension_numbers = #tpu.dot_dimension_numbers<[1], [0], [0], [1], [0, 0, 1, 1], [], []>} : vector<24x28xbf16>, vector<28x384xbf16>, vector<24x384xf32> -> vector<24x384xf32>
    %c1_33 = arith.constant 1 : index
    %c2_34 = arith.constant 2 : index
    %c0_35 = arith.constant 0 : index
    %c0_36 = arith.constant 0 : index
    %26 = vector.load %arg2[%c1_33, %c2_34, %c0_35, %c0_36] : memref<2x5x28x384xbf16, #tpu.memory_space<vmem>>, vector<1x1x28x384xbf16>
    %27 = vector.shape_cast %26 : vector<1x1x28x384xbf16> to vector<28x384xbf16>
    %cst_37 = arith.constant dense<0.000000e+00> : vector<24x384xf32>
    %28 = tpu.matmul %22, %27, %cst_37 {dimension_numbers = #tpu.dot_dimension_numbers<[1], [0], [0], [1], [0, 0, 1, 1], [], []>} : vector<24x28xbf16>, vector<28x384xbf16>, vector<24x384xf32> -> vector<24x384xf32>
    %29 = arith.addf %18, %25 : vector<24x384xf32>
    %30 = arith.addf %19, %28 : vector<24x384xf32>
    %c0_38 = arith.constant 0 : index
    %c0_39 = arith.constant 0 : index
    %c3 = arith.constant 3 : index
    %c0_40 = arith.constant 0 : index
    %31 = vector.load %arg1[%c0_38, %c0_39, %c3, %c0_40] : memref<1x1x28x28xf32, #tpu.memory_space<vmem>>, vector<1x1x24x28xf32>
    %32 = vector.shape_cast %31 : vector<1x1x24x28xf32> to vector<24x28xf32>
    %33 = arith.truncf %32 : vector<24x28xf32> to vector<24x28xbf16>
    %c0_41 = arith.constant 0 : index
    %c3_42 = arith.constant 3 : index
    %c0_43 = arith.constant 0 : index
    %c0_44 = arith.constant 0 : index
    %34 = vector.load %arg2[%c0_41, %c3_42, %c0_43, %c0_44] : memref<2x5x28x384xbf16, #tpu.memory_space<vmem>>, vector<1x1x28x384xbf16>
    %35 = vector.shape_cast %34 : vector<1x1x28x384xbf16> to vector<28x384xbf16>
    %cst_45 = arith.constant dense<0.000000e+00> : vector<24x384xf32>
    %36 = tpu.matmul %33, %35, %cst_45 {dimension_numbers = #tpu.dot_dimension_numbers<[1], [0], [0], [1], [0, 0, 1, 1], [], []>} : vector<24x28xbf16>, vector<28x384xbf16>, vector<24x384xf32> -> vector<24x384xf32>
    %c1_46 = arith.constant 1 : index
    %c3_47 = arith.constant 3 : index
    %c0_48 = arith.constant 0 : index
    %c0_49 = arith.constant 0 : index
    %37 = vector.load %arg2[%c1_46, %c3_47, %c0_48, %c0_49] : memref<2x5x28x384xbf16, #tpu.memory_space<vmem>>, vector<1x1x28x384xbf16>
    %38 = vector.shape_cast %37 : vector<1x1x28x384xbf16> to vector<28x384xbf16>
    %cst_50 = arith.constant dense<0.000000e+00> : vector<24x384xf32>
    %39 = tpu.matmul %33, %38, %cst_50 {dimension_numbers = #tpu.dot_dimension_numbers<[1], [0], [0], [1], [0, 0, 1, 1], [], []>} : vector<24x28xbf16>, vector<28x384xbf16>, vector<24x384xf32> -> vector<24x384xf32>
    %40 = arith.addf %29, %36 : vector<24x384xf32>
    %41 = arith.addf %30, %39 : vector<24x384xf32>
    %c0_51 = arith.constant 0 : index
    %c0_52 = arith.constant 0 : index
    %c4 = arith.constant 4 : index
    %c0_53 = arith.constant 0 : index
    %42 = vector.load %arg1[%c0_51, %c0_52, %c4, %c0_53] : memref<1x1x28x28xf32, #tpu.memory_space<vmem>>, vector<1x1x24x28xf32>
    %43 = vector.shape_cast %42 : vector<1x1x24x28xf32> to vector<24x28xf32>
    %44 = arith.truncf %43 : vector<24x28xf32> to vector<24x28xbf16>
    %c0_54 = arith.constant 0 : index
    %c4_55 = arith.constant 4 : index
    %c0_56 = arith.constant 0 : index
    %c0_57 = arith.constant 0 : index
    %45 = vector.load %arg2[%c0_54, %c4_55, %c0_56, %c0_57] : memref<2x5x28x384xbf16, #tpu.memory_space<vmem>>, vector<1x1x28x384xbf16>
    %46 = vector.shape_cast %45 : vector<1x1x28x384xbf16> to vector<28x384xbf16>
    %cst_58 = arith.constant dense<0.000000e+00> : vector<24x384xf32>
    %47 = tpu.matmul %44, %46, %cst_58 {dimension_numbers = #tpu.dot_dimension_numbers<[1], [0], [0], [1], [0, 0, 1, 1], [], []>} : vector<24x28xbf16>, vector<28x384xbf16>, vector<24x384xf32> -> vector<24x384xf32>
    %c1_59 = arith.constant 1 : index
    %c4_60 = arith.constant 4 : index
    %c0_61 = arith.constant 0 : index
    %c0_62 = arith.constant 0 : index
    %48 = vector.load %arg2[%c1_59, %c4_60, %c0_61, %c0_62] : memref<2x5x28x384xbf16, #tpu.memory_space<vmem>>, vector<1x1x28x384xbf16>
    %49 = vector.shape_cast %48 : vector<1x1x28x384xbf16> to vector<28x384xbf16>
    %cst_63 = arith.constant dense<0.000000e+00> : vector<24x384xf32>
    %50 = tpu.matmul %44, %49, %cst_63 {dimension_numbers = #tpu.dot_dimension_numbers<[1], [0], [0], [1], [0, 0, 1, 1], [], []>} : vector<24x28xbf16>, vector<28x384xbf16>, vector<24x384xf32> -> vector<24x384xf32>
    %51 = arith.addf %40, %47 : vector<24x384xf32>
    %52 = arith.addf %41, %50 : vector<24x384xf32>
    %53 = arith.maximumf %51, %52 : vector<24x384xf32>
    %c0_64 = arith.constant 0 : index
    %c0_65 = arith.constant 0 : index
    %c0_66 = arith.constant 0 : index
    %54 = vector.load %arg3[%c0_64, %c0_65, %c0_66] : memref<2x12x24xf32, #tpu.memory_space<vmem>>, vector<1x12x24xf32>
    %55 = vector.shape_cast %54 : vector<1x12x24xf32> to vector<12x24xf32>
    %cst_67 = arith.constant dense<0.000000e+00> : vector<12x384xf32>
    %56 = tpu.matmul %55, %53, %cst_67 {dimension_numbers = #tpu.dot_dimension_numbers<[1], [0], [0], [1], [0, 0, 1, 1], [], []>} : vector<12x24xf32>, vector<24x384xf32>, vector<12x384xf32> -> vector<12x384xf32>
    %c1_68 = arith.constant 1 : index
    %c0_69 = arith.constant 0 : index
    %c0_70 = arith.constant 0 : index
    %57 = vector.load %arg3[%c1_68, %c0_69, %c0_70] : memref<2x12x24xf32, #tpu.memory_space<vmem>>, vector<1x12x24xf32>
    %58 = vector.shape_cast %57 : vector<1x12x24xf32> to vector<12x24xf32>
    %cst_71 = arith.constant dense<0.000000e+00> : vector<12x384xf32>
    %59 = tpu.matmul %58, %53, %cst_71 {dimension_numbers = #tpu.dot_dimension_numbers<[1], [0], [0], [1], [0, 0, 1, 1], [], []>} : vector<12x24xf32>, vector<24x384xf32>, vector<12x384xf32> -> vector<12x384xf32>
    %60 = arith.maximumf %56, %59 : vector<12x384xf32>
    %c0_72 = arith.constant 0 : index
    %c0_73 = arith.constant 0 : index
    %61 = vector.load %arg4[%c0_72, %c0_73] : memref<1x384xf32, #tpu.memory_space<vmem>>, vector<1x384xf32>
    %62 = vector.broadcast %61 : vector<1x384xf32> to vector<12x384xf32>
    %63 = arith.addf %60, %62 : vector<12x384xf32>
    %cst_74 = arith.constant 0.000000e+00 : f32
    %64 = vector.broadcast %cst_74 : f32 to vector<12x384xf32>
    %65 = arith.maximumf %63, %64 : vector<12x384xf32>
    %66 = vector.extract_strided_slice %65 {offsets = [0, 0], sizes = [8, 384], strides = [1, 1]} : vector<12x384xf32> to vector<8x384xf32>
    %67 = arith.truncf %66 : vector<8x384xf32> to vector<8x384xbf16>
    %c0_75 = arith.constant 0 : index
    %c0_76 = arith.constant 0 : index
    %c0_77 = arith.constant 0 : index
    %c0_78 = arith.constant 0 : index
    %68 = vector.load %arg5[%c0_75, %c0_76, %c0_77, %c0_78] : memref<2x5x384x256xbf16, #tpu.memory_space<vmem>>, vector<1x1x384x256xbf16>
    %69 = vector.shape_cast %68 : vector<1x1x384x256xbf16> to vector<384x256xbf16>
    %cst_79 = arith.constant dense<0.000000e+00> : vector<8x256xf32>
    %70 = tpu.matmul %67, %69, %cst_79 {dimension_numbers = #tpu.dot_dimension_numbers<[1], [0], [0], [1], [0, 0, 1, 1], [], []>} : vector<8x384xbf16>, vector<384x256xbf16>, vector<8x256xf32> -> vector<8x256xf32>
    %c1_80 = arith.constant 1 : index
    %c0_81 = arith.constant 0 : index
    %c0_82 = arith.constant 0 : index
    %c0_83 = arith.constant 0 : index
    %71 = vector.load %arg5[%c1_80, %c0_81, %c0_82, %c0_83] : memref<2x5x384x256xbf16, #tpu.memory_space<vmem>>, vector<1x1x384x256xbf16>
    %72 = vector.shape_cast %71 : vector<1x1x384x256xbf16> to vector<384x256xbf16>
    %cst_84 = arith.constant dense<0.000000e+00> : vector<8x256xf32>
    %73 = tpu.matmul %67, %72, %cst_84 {dimension_numbers = #tpu.dot_dimension_numbers<[1], [0], [0], [1], [0, 0, 1, 1], [], []>} : vector<8x384xbf16>, vector<384x256xbf16>, vector<8x256xf32> -> vector<8x256xf32>
    %74 = vector.extract_strided_slice %65 {offsets = [1, 0], sizes = [8, 384], strides = [1, 1]} : vector<12x384xf32> to vector<8x384xf32>
    %75 = arith.truncf %74 : vector<8x384xf32> to vector<8x384xbf16>
    %c0_85 = arith.constant 0 : index
    %c1_86 = arith.constant 1 : index
    %c0_87 = arith.constant 0 : index
    %c0_88 = arith.constant 0 : index
    %76 = vector.load %arg5[%c0_85, %c1_86, %c0_87, %c0_88] : memref<2x5x384x256xbf16, #tpu.memory_space<vmem>>, vector<1x1x384x256xbf16>
    %77 = vector.shape_cast %76 : vector<1x1x384x256xbf16> to vector<384x256xbf16>
    %cst_89 = arith.constant dense<0.000000e+00> : vector<8x256xf32>
    %78 = tpu.matmul %75, %77, %cst_89 {dimension_numbers = #tpu.dot_dimension_numbers<[1], [0], [0], [1], [0, 0, 1, 1], [], []>} : vector<8x384xbf16>, vector<384x256xbf16>, vector<8x256xf32> -> vector<8x256xf32>
    %c1_90 = arith.constant 1 : index
    %c1_91 = arith.constant 1 : index
    %c0_92 = arith.constant 0 : index
    %c0_93 = arith.constant 0 : index
    %79 = vector.load %arg5[%c1_90, %c1_91, %c0_92, %c0_93] : memref<2x5x384x256xbf16, #tpu.memory_space<vmem>>, vector<1x1x384x256xbf16>
    %80 = vector.shape_cast %79 : vector<1x1x384x256xbf16> to vector<384x256xbf16>
    %cst_94 = arith.constant dense<0.000000e+00> : vector<8x256xf32>
    %81 = tpu.matmul %75, %80, %cst_94 {dimension_numbers = #tpu.dot_dimension_numbers<[1], [0], [0], [1], [0, 0, 1, 1], [], []>} : vector<8x384xbf16>, vector<384x256xbf16>, vector<8x256xf32> -> vector<8x256xf32>
    %82 = arith.addf %70, %78 : vector<8x256xf32>
    %83 = arith.addf %73, %81 : vector<8x256xf32>
    %84 = vector.extract_strided_slice %65 {offsets = [2, 0], sizes = [8, 384], strides = [1, 1]} : vector<12x384xf32> to vector<8x384xf32>
    %85 = arith.truncf %84 : vector<8x384xf32> to vector<8x384xbf16>
    %c0_95 = arith.constant 0 : index
    %c2_96 = arith.constant 2 : index
    %c0_97 = arith.constant 0 : index
    %c0_98 = arith.constant 0 : index
    %86 = vector.load %arg5[%c0_95, %c2_96, %c0_97, %c0_98] : memref<2x5x384x256xbf16, #tpu.memory_space<vmem>>, vector<1x1x384x256xbf16>
    %87 = vector.shape_cast %86 : vector<1x1x384x256xbf16> to vector<384x256xbf16>
    %cst_99 = arith.constant dense<0.000000e+00> : vector<8x256xf32>
    %88 = tpu.matmul %85, %87, %cst_99 {dimension_numbers = #tpu.dot_dimension_numbers<[1], [0], [0], [1], [0, 0, 1, 1], [], []>} : vector<8x384xbf16>, vector<384x256xbf16>, vector<8x256xf32> -> vector<8x256xf32>
    %c1_100 = arith.constant 1 : index
    %c2_101 = arith.constant 2 : index
    %c0_102 = arith.constant 0 : index
    %c0_103 = arith.constant 0 : index
    %89 = vector.load %arg5[%c1_100, %c2_101, %c0_102, %c0_103] : memref<2x5x384x256xbf16, #tpu.memory_space<vmem>>, vector<1x1x384x256xbf16>
    %90 = vector.shape_cast %89 : vector<1x1x384x256xbf16> to vector<384x256xbf16>
    %cst_104 = arith.constant dense<0.000000e+00> : vector<8x256xf32>
    %91 = tpu.matmul %85, %90, %cst_104 {dimension_numbers = #tpu.dot_dimension_numbers<[1], [0], [0], [1], [0, 0, 1, 1], [], []>} : vector<8x384xbf16>, vector<384x256xbf16>, vector<8x256xf32> -> vector<8x256xf32>
    %92 = arith.addf %82, %88 : vector<8x256xf32>
    %93 = arith.addf %83, %91 : vector<8x256xf32>
    %94 = vector.extract_strided_slice %65 {offsets = [3, 0], sizes = [8, 384], strides = [1, 1]} : vector<12x384xf32> to vector<8x384xf32>
    %95 = arith.truncf %94 : vector<8x384xf32> to vector<8x384xbf16>
    %c0_105 = arith.constant 0 : index
    %c3_106 = arith.constant 3 : index
    %c0_107 = arith.constant 0 : index
    %c0_108 = arith.constant 0 : index
    %96 = vector.load %arg5[%c0_105, %c3_106, %c0_107, %c0_108] : memref<2x5x384x256xbf16, #tpu.memory_space<vmem>>, vector<1x1x384x256xbf16>
    %97 = vector.shape_cast %96 : vector<1x1x384x256xbf16> to vector<384x256xbf16>
    %cst_109 = arith.constant dense<0.000000e+00> : vector<8x256xf32>
    %98 = tpu.matmul %95, %97, %cst_109 {dimension_numbers = #tpu.dot_dimension_numbers<[1], [0], [0], [1], [0, 0, 1, 1], [], []>} : vector<8x384xbf16>, vector<384x256xbf16>, vector<8x256xf32> -> vector<8x256xf32>
    %c1_110 = arith.constant 1 : index
    %c3_111 = arith.constant 3 : index
    %c0_112 = arith.constant 0 : index
    %c0_113 = arith.constant 0 : index
    %99 = vector.load %arg5[%c1_110, %c3_111, %c0_112, %c0_113] : memref<2x5x384x256xbf16, #tpu.memory_space<vmem>>, vector<1x1x384x256xbf16>
    %100 = vector.shape_cast %99 : vector<1x1x384x256xbf16> to vector<384x256xbf16>
    %cst_114 = arith.constant dense<0.000000e+00> : vector<8x256xf32>
    %101 = tpu.matmul %95, %100, %cst_114 {dimension_numbers = #tpu.dot_dimension_numbers<[1], [0], [0], [1], [0, 0, 1, 1], [], []>} : vector<8x384xbf16>, vector<384x256xbf16>, vector<8x256xf32> -> vector<8x256xf32>
    %102 = arith.addf %92, %98 : vector<8x256xf32>
    %103 = arith.addf %93, %101 : vector<8x256xf32>
    %104 = vector.extract_strided_slice %65 {offsets = [4, 0], sizes = [8, 384], strides = [1, 1]} : vector<12x384xf32> to vector<8x384xf32>
    %105 = arith.truncf %104 : vector<8x384xf32> to vector<8x384xbf16>
    %c0_115 = arith.constant 0 : index
    %c4_116 = arith.constant 4 : index
    %c0_117 = arith.constant 0 : index
    %c0_118 = arith.constant 0 : index
    %106 = vector.load %arg5[%c0_115, %c4_116, %c0_117, %c0_118] : memref<2x5x384x256xbf16, #tpu.memory_space<vmem>>, vector<1x1x384x256xbf16>
    %107 = vector.shape_cast %106 : vector<1x1x384x256xbf16> to vector<384x256xbf16>
    %cst_119 = arith.constant dense<0.000000e+00> : vector<8x256xf32>
    %108 = tpu.matmul %105, %107, %cst_119 {dimension_numbers = #tpu.dot_dimension_numbers<[1], [0], [0], [1], [0, 0, 1, 1], [], []>} : vector<8x384xbf16>, vector<384x256xbf16>, vector<8x256xf32> -> vector<8x256xf32>
    %c1_120 = arith.constant 1 : index
    %c4_121 = arith.constant 4 : index
    %c0_122 = arith.constant 0 : index
    %c0_123 = arith.constant 0 : index
    %109 = vector.load %arg5[%c1_120, %c4_121, %c0_122, %c0_123] : memref<2x5x384x256xbf16, #tpu.memory_space<vmem>>, vector<1x1x384x256xbf16>
    %110 = vector.shape_cast %109 : vector<1x1x384x256xbf16> to vector<384x256xbf16>
    %cst_124 = arith.constant dense<0.000000e+00> : vector<8x256xf32>
    %111 = tpu.matmul %105, %110, %cst_124 {dimension_numbers = #tpu.dot_dimension_numbers<[1], [0], [0], [1], [0, 0, 1, 1], [], []>} : vector<8x384xbf16>, vector<384x256xbf16>, vector<8x256xf32> -> vector<8x256xf32>
    %112 = arith.addf %102, %108 : vector<8x256xf32>
    %113 = arith.addf %103, %111 : vector<8x256xf32>
    %114 = arith.maximumf %112, %113 : vector<8x256xf32>
    %c0_125 = arith.constant 0 : index
    %c0_126 = arith.constant 0 : index
    %c0_127 = arith.constant 0 : index
    %115 = vector.load %arg6[%c0_125, %c0_126, %c0_127] : memref<2x4x8xf32, #tpu.memory_space<vmem>>, vector<1x4x8xf32>
    %116 = vector.shape_cast %115 : vector<1x4x8xf32> to vector<4x8xf32>
    %cst_128 = arith.constant dense<0.000000e+00> : vector<4x256xf32>
    %117 = tpu.matmul %116, %114, %cst_128 {dimension_numbers = #tpu.dot_dimension_numbers<[1], [0], [0], [1], [0, 0, 1, 1], [], []>} : vector<4x8xf32>, vector<8x256xf32>, vector<4x256xf32> -> vector<4x256xf32>
    %c1_129 = arith.constant 1 : index
    %c0_130 = arith.constant 0 : index
    %c0_131 = arith.constant 0 : index
    %118 = vector.load %arg6[%c1_129, %c0_130, %c0_131] : memref<2x4x8xf32, #tpu.memory_space<vmem>>, vector<1x4x8xf32>
    %119 = vector.shape_cast %118 : vector<1x4x8xf32> to vector<4x8xf32>
    %cst_132 = arith.constant dense<0.000000e+00> : vector<4x256xf32>
    %120 = tpu.matmul %119, %114, %cst_132 {dimension_numbers = #tpu.dot_dimension_numbers<[1], [0], [0], [1], [0, 0, 1, 1], [], []>} : vector<4x8xf32>, vector<8x256xf32>, vector<4x256xf32> -> vector<4x256xf32>
    %121 = arith.maximumf %117, %120 : vector<4x256xf32>
    %c0_133 = arith.constant 0 : index
    %c0_134 = arith.constant 0 : index
    %122 = vector.load %arg7[%c0_133, %c0_134] : memref<1x256xf32, #tpu.memory_space<vmem>>, vector<1x256xf32>
    %123 = vector.broadcast %122 : vector<1x256xf32> to vector<4x256xf32>
    %124 = arith.addf %121, %123 : vector<4x256xf32>
    %cst_135 = arith.constant 0.000000e+00 : f32
    %125 = vector.broadcast %cst_135 : f32 to vector<4x256xf32>
    %126 = arith.maximumf %124, %125 : vector<4x256xf32>
    %127 = vector.extract_strided_slice %126 {offsets = [0, 0], sizes = [1, 256], strides = [1, 1]} : vector<4x256xf32> to vector<1x256xf32>
    %128 = arith.truncf %127 : vector<1x256xf32> to vector<1x256xbf16>
    %c0_136 = arith.constant 0 : index
    %c0_137 = arith.constant 0 : index
    %c0_138 = arith.constant 0 : index
    %129 = vector.load %arg8[%c0_136, %c0_137, %c0_138] : memref<4x256x512xbf16, #tpu.memory_space<vmem>>, vector<1x256x512xbf16>
    %130 = vector.shape_cast %129 : vector<1x256x512xbf16> to vector<256x512xbf16>
    %cst_139 = arith.constant dense<0.000000e+00> : vector<1x512xf32>
    %131 = tpu.matmul %128, %130, %cst_139 {dimension_numbers = #tpu.dot_dimension_numbers<[1], [0], [0], [1], [0, 0, 1, 1], [], []>} : vector<1x256xbf16>, vector<256x512xbf16>, vector<1x512xf32> -> vector<1x512xf32>
    %132 = vector.extract_strided_slice %126 {offsets = [1, 0], sizes = [1, 256], strides = [1, 1]} : vector<4x256xf32> to vector<1x256xf32>
    %133 = arith.truncf %132 : vector<1x256xf32> to vector<1x256xbf16>
    %c1_140 = arith.constant 1 : index
    %c0_141 = arith.constant 0 : index
    %c0_142 = arith.constant 0 : index
    %134 = vector.load %arg8[%c1_140, %c0_141, %c0_142] : memref<4x256x512xbf16, #tpu.memory_space<vmem>>, vector<1x256x512xbf16>
    %135 = vector.shape_cast %134 : vector<1x256x512xbf16> to vector<256x512xbf16>
    %cst_143 = arith.constant dense<0.000000e+00> : vector<1x512xf32>
    %136 = tpu.matmul %133, %135, %cst_143 {dimension_numbers = #tpu.dot_dimension_numbers<[1], [0], [0], [1], [0, 0, 1, 1], [], []>} : vector<1x256xbf16>, vector<256x512xbf16>, vector<1x512xf32> -> vector<1x512xf32>
    %137 = arith.addf %131, %136 : vector<1x512xf32>
    %138 = vector.extract_strided_slice %126 {offsets = [2, 0], sizes = [1, 256], strides = [1, 1]} : vector<4x256xf32> to vector<1x256xf32>
    %139 = arith.truncf %138 : vector<1x256xf32> to vector<1x256xbf16>
    %c2_144 = arith.constant 2 : index
    %c0_145 = arith.constant 0 : index
    %c0_146 = arith.constant 0 : index
    %140 = vector.load %arg8[%c2_144, %c0_145, %c0_146] : memref<4x256x512xbf16, #tpu.memory_space<vmem>>, vector<1x256x512xbf16>
    %141 = vector.shape_cast %140 : vector<1x256x512xbf16> to vector<256x512xbf16>
    %cst_147 = arith.constant dense<0.000000e+00> : vector<1x512xf32>
    %142 = tpu.matmul %139, %141, %cst_147 {dimension_numbers = #tpu.dot_dimension_numbers<[1], [0], [0], [1], [0, 0, 1, 1], [], []>} : vector<1x256xbf16>, vector<256x512xbf16>, vector<1x512xf32> -> vector<1x512xf32>
    %143 = arith.addf %137, %142 : vector<1x512xf32>
    %144 = vector.extract_strided_slice %126 {offsets = [3, 0], sizes = [1, 256], strides = [1, 1]} : vector<4x256xf32> to vector<1x256xf32>
    %145 = arith.truncf %144 : vector<1x256xf32> to vector<1x256xbf16>
    %c3_148 = arith.constant 3 : index
    %c0_149 = arith.constant 0 : index
    %c0_150 = arith.constant 0 : index
    %146 = vector.load %arg8[%c3_148, %c0_149, %c0_150] : memref<4x256x512xbf16, #tpu.memory_space<vmem>>, vector<1x256x512xbf16>
    %147 = vector.shape_cast %146 : vector<1x256x512xbf16> to vector<256x512xbf16>
    %cst_151 = arith.constant dense<0.000000e+00> : vector<1x512xf32>
    %148 = tpu.matmul %145, %147, %cst_151 {dimension_numbers = #tpu.dot_dimension_numbers<[1], [0], [0], [1], [0, 0, 1, 1], [], []>} : vector<1x256xbf16>, vector<256x512xbf16>, vector<1x512xf32> -> vector<1x512xf32>
    %149 = arith.addf %143, %148 : vector<1x512xf32>
    %c0_152 = arith.constant 0 : index
    %c0_153 = arith.constant 0 : index
    %150 = vector.load %arg9[%c0_152, %c0_153] : memref<1x512xf32, #tpu.memory_space<vmem>>, vector<1x512xf32>
    %151 = arith.addf %149, %150 : vector<1x512xf32>
    %cst_154 = arith.constant 0.000000e+00 : f32
    %152 = vector.broadcast %cst_154 : f32 to vector<1x512xf32>
    %153 = arith.maximumf %151, %152 : vector<1x512xf32>
    %154 = arith.truncf %153 : vector<1x512xf32> to vector<1x512xbf16>
    %c0_155 = arith.constant 0 : index
    %c0_156 = arith.constant 0 : index
    %155 = vector.load %arg10[%c0_155, %c0_156] : memref<512x128xbf16, #tpu.memory_space<vmem>>, vector<512x128xbf16>
    %cst_157 = arith.constant dense<0.000000e+00> : vector<1x128xf32>
    %156 = tpu.matmul %154, %155, %cst_157 {dimension_numbers = #tpu.dot_dimension_numbers<[1], [0], [0], [1], [0, 0, 1, 1], [], []>} : vector<1x512xbf16>, vector<512x128xbf16>, vector<1x128xf32> -> vector<1x128xf32>
    %c0_158 = arith.constant 0 : index
    %c0_159 = arith.constant 0 : index
    %157 = vector.load %arg11[%c0_158, %c0_159] : memref<1x128xf32, #tpu.memory_space<vmem>>, vector<1x128xf32>
    %158 = arith.addf %156, %157 : vector<1x128xf32>
    %159 = vector.shape_cast %158 : vector<1x128xf32> to vector<1x128xf32>
    %160 = vector.broadcast %159 : vector<1x128xf32> to vector<8x128xf32>
    %c0_160 = arith.constant 0 : index
    %c0_161 = arith.constant 0 : index
    %c0_162 = arith.constant 0 : index
    %161 = vector.load %arg12[%c0_160, %c0_161, %c0_162] : memref<1x8x128xf32, #tpu.memory_space<vmem>>, vector<1x8x128xf32>
    %162 = vector.shape_cast %161 : vector<1x8x128xf32> to vector<8x128xf32>
    %163 = vector.shape_cast %160 : vector<8x128xf32> to vector<1x8x128xf32>
    tpu.vector_store %arg12[%c0_160, %c0_161, %c0_162], %163 {strides = array<i32>} : memref<1x8x128xf32, #tpu.memory_space<vmem>>, vector<1x8x128xf32>,
    return
  }
  func.func @transform_0(%arg0: i32) -> (i32, i32, i32, i32) {
    %c0_i32 = arith.constant 0 : i32
    %c0_i32_0 = arith.constant 0 : i32
    %c0_i32_1 = arith.constant 0 : i32
    %c0_i32_2 = arith.constant 0 : i32
    return %arg0, %c0_i32, %c0_i32_0, %c0_i32_1 : i32, i32, i32, i32
  }
  func.func @transform_1(%arg0: i32) -> (i32, i32, i32, i32) {
    %c0_i32 = arith.constant 0 : i32
    %c0_i32_0 = arith.constant 0 : i32
    %c0_i32_1 = arith.constant 0 : i32
    %c0_i32_2 = arith.constant 0 : i32
    %c0_i32_3 = arith.constant 0 : i32
    return %c0_i32, %c0_i32_0, %c0_i32_1, %c0_i32_2 : i32, i32, i32, i32
  }
  func.func @transform_2(%arg0: i32) -> (i32, i32, i32) {
    %c0_i32 = arith.constant 0 : i32
    %c0_i32_0 = arith.constant 0 : i32
    %c0_i32_1 = arith.constant 0 : i32
    %c0_i32_2 = arith.constant 0 : i32
    return %c0_i32, %c0_i32_0, %c0_i32_1 : i32, i32, i32
  }
  func.func @transform_3(%arg0: i32) -> (i32, i32) {
    %c0_i32 = arith.constant 0 : i32
    %c0_i32_0 = arith.constant 0 : i32
    %c0_i32_1 = arith.constant 0 : i32
    return %c0_i32, %c0_i32_0 : i32, i32
  }
  func.func @transform_4(%arg0: i32) -> (i32, i32, i32, i32) {
    %c0_i32 = arith.constant 0 : i32
    %c0_i32_0 = arith.constant 0 : i32
    %c0_i32_1 = arith.constant 0 : i32
    %c0_i32_2 = arith.constant 0 : i32
    %c0_i32_3 = arith.constant 0 : i32
    return %c0_i32, %c0_i32_0, %c0_i32_1, %c0_i32_2 : i32, i32, i32, i32
  }
  func.func @transform_5(%arg0: i32) -> (i32, i32, i32) {
    %c0_i32 = arith.constant 0 : i32
    %c0_i32_0 = arith.constant 0 : i32
    %c0_i32_1 = arith.constant 0 : i32
    %c0_i32_2 = arith.constant 0 : i32
    return %c0_i32, %c0_i32_0, %c0_i32_1 : i32, i32, i32
  }
  func.func @transform_6(%arg0: i32) -> (i32, i32) {
    %c0_i32 = arith.constant 0 : i32
    %c0_i32_0 = arith.constant 0 : i32
    %c0_i32_1 = arith.constant 0 : i32
    return %c0_i32, %c0_i32_0 : i32, i32
  }
  func.func @transform_7(%arg0: i32) -> (i32, i32, i32) {
    %c0_i32 = arith.constant 0 : i32
    %c0_i32_0 = arith.constant 0 : i32
    %c0_i32_1 = arith.constant 0 : i32
    %c0_i32_2 = arith.constant 0 : i32
    return %c0_i32, %c0_i32_0, %c0_i32_1 : i32, i32, i32
  }
  func.func @transform_8(%arg0: i32) -> (i32, i32) {
    %c0_i32 = arith.constant 0 : i32
    %c0_i32_0 = arith.constant 0 : i32
    %c0_i32_1 = arith.constant 0 : i32
    return %c0_i32, %c0_i32_0 : i32, i32
  }
  func.func @transform_9(%arg0: i32) -> (i32, i32) {
    %c0_i32 = arith.constant 0 : i32
    %c0_i32_0 = arith.constant 0 : i32
    %c0_i32_1 = arith.constant 0 : i32
    return %c0_i32, %c0_i32_0 : i32, i32
  }
  func.func @transform_10(%arg0: i32) -> (i32, i32) {
    %c0_i32 = arith.constant 0 : i32
    %c0_i32_0 = arith.constant 0 : i32
    %c0_i32_1 = arith.constant 0 : i32
    return %c0_i32, %c0_i32_0 : i32, i32
  }
  func.func @transform_11(%arg0: i32) -> (i32, i32, i32) {
    %c0_i32 = arith.constant 0 : i32
    %c0_i32_0 = arith.constant 0 : i32
    %c0_i32_1 = arith.constant 0 : i32
    return %arg0, %c0_i32, %c0_i32_0 : i32, i32, i32
  }
}

</mosaic_0001>

<llo_original>
// kernel: cnn_mnist_forward.1
$region0: #{cnn_mnist_forward.1}
  #allocation0 [shape = 'u32[]', space=smem, size = 0x4, offset = 0x4, fixed_abs, tag = 'smem constant byte address 0x4 - core index']
  #allocation1 [shape = 'u32[72,128]{1,0:T(1,128)}', space=vmem, size = 0x9000, scoped, tag = 'internal scratch']
  %s0 = inlined_call_operand.vmem [shape: f32[2,1,28,28], index: 0, kind: input, shape index: {}]
  %s1 = inlined_call_operand.vmem [shape: bf16[2,5,28,384], index: 1, kind: input, shape index: {}]
  %s2 = inlined_call_operand.vmem [shape: f32[2,12,24], index: 2, kind: input, shape index: {}]
  %s3 = inlined_call_operand.hbm [shape: f32[1,384], index: 3, kind: input, shape index: {}]
  %s4 = inlined_call_operand.hbm [shape: bf16[2,5,384,256], index: 4, kind: input, shape index: {}]
  %s5 = inlined_call_operand.hbm [shape: f32[2,4,8], index: 5, kind: input, shape index: {}]
  %s6 = inlined_call_operand.hbm [shape: f32[1,256], index: 6, kind: input, shape index: {}]
  %s7 = inlined_call_operand.hbm [shape: bf16[4,256,512], index: 7, kind: input, shape index: {}]
  %s8 = inlined_call_operand.hbm [shape: f32[1,512], index: 8, kind: input, shape index: {}]
  %s9 = inlined_call_operand.hbm [shape: bf16[512,128], index: 9, kind: input, shape index: {}]
  %s10 = inlined_call_operand.hbm [shape: f32[1,128], index: 10, kind: input, shape index: {}]
  %s11 = inlined_call_operand.vmem [shape: f32[2,8,128], index: 11, kind: output, shape index: {}]
  %s12 = sld [smem:[#allocation0]]
  $region109: #{cnn_mnist_forward.1} parent=0
    _
  %s14 = ssub.s32 1, %s12
  %s15 = scalar_select 0, %s14, %s12
  $region1: #{cnn_mnist_forward.1} parent=0
    #allocation2 [shape = 'u8[1536]{0}', space=vmem, size = 0x800, scoped, tag = 'input window, operand 3, single buffered']
    #allocation3 [shape = 's32[2]{0}', space=sflag, size = 0x8, scoped, tag = 'scoped memory for cnn_mnist_forward.1']
    #allocation4 [shape = 'u8[1966080]{0}', space=vmem, size = 0x1e0000, scoped, tag = 'input window, operand 4, single buffered']
    #allocation5 [shape = 's32[1]{0}', space=sflag, size = 0x4, scoped, tag = 'scoped memory for cnn_mnist_forward.1']
    #allocation6 [shape = 'u8[4096]{0}', space=vmem, size = 0x1000, scoped, tag = 'input window, operand 5, single buffered']
    #allocation7 [shape = 'u8[1024]{0}', space=vmem, size = 0x400, scoped, tag = 'input window, operand 6, single buffered']
    #allocation8 [shape = 's32[1]{0}', space=sflag, size = 0x4, scoped, tag = 'scoped memory for cnn_mnist_forward.1']
    #allocation9 [shape = 'u8[1048576]{0}', space=vmem, size = 0x100000, scoped, tag = 'input window, operand 7, single buffered']
    #allocation10 [shape = 'u8[2048]{0}', space=vmem, size = 0x800, scoped, tag = 'input window, operand 8, single buffered']
    #allocation11 [shape = 's32[1]{0}', space=sflag, size = 0x4, scoped, tag = 'scoped memory for cnn_mnist_forward.1']
    #allocation12 [shape = 'u8[131072]{0}', space=vmem, size = 0x20000, scoped, tag = 'input window, operand 9, single buffered']
    #allocation13 [shape = 'u8[512]{0}', space=vmem, size = 0x400, scoped, tag = 'input window, operand 10, single buffered']
    #allocation14 [shape = 's32[1]{0}', space=sflag, size = 0x4, scoped, tag = 'scoped memory for cnn_mnist_forward.1']
    %16 = vsyncpa [#allocation3], 0
    %17 = vsyncpa [#allocation5], 0
    %18 = vsyncpa [#allocation8], 0
    %19 = vsyncpa [#allocation11], 0
    %20 = vsyncpa [#allocation14], 0
    loop: start=0, step=1, limit=4
    $region2: #{cnn_mnist_forward.1} parent=1 // loop_pre_header
      _
    $region3: #{cnn_mnist_forward.1} parent=1 // loop_header
      %s22 = sphi 0, %s26
      %p23 = scmp.ge.s32.totalorder %s22, 4
      %s32 = sphi 0, %s34
      %s35 = sphi 0, %s32
      %s36 = sphi 0, %s35
      %s52 = sphi 0, %s36
      %s56 = sphi 0, %s56
      %s58 = sphi 0, %s56
      %s59 = sphi 0, %s58
      %s73 = sphi 0, %s59
      %s77 = sphi 0, %s77
      %s79 = sphi 0, %s77
      %s80 = sphi 0, %s79
      %s94 = sphi 0, %s80
      %s98 = sphi 0, %s98
      %s100 = sphi 0, %s98
      %s101 = sphi 0, %s100
      %s115 = sphi 0, %s101
      %s119 = sphi 0, %s119
      %s121 = sphi 0, %s119
      %s122 = sphi 0, %s121
      %s136 = sphi 0, %s122
      %s140 = sphi 0, %s140
      %s142 = sphi 0, %s140
      %s143 = sphi 0, %s142
      %s157 = sphi 0, %s143
      %s161 = sphi 0, %s161
      %s163 = sphi 0, %s161
      %s164 = sphi 0, %s163
      %s178 = sphi 0, %s164
      %s182 = sphi 0, %s182
      %s184 = sphi 0, %s182
      %s185 = sphi 0, %s184
      %s199 = sphi 0, %s185
      %s203 = sphi 0, %s203
      %s205 = sphi 0, %s203
      %s206 = sphi 0, %s205
      %s220 = sphi 0, %s206
      %s224 = sphi 0, %s224
      %s226 = sphi 0, %s224
      %s227 = sphi 0, %s226
      %s241 = sphi 0, %s227
      %s245 = sphi 0, %s245
      %s247 = sphi 0, %s245
      %s248 = sphi 0, %s247
      %s262 = sphi 0, %s248
      %s268 = sphi 0, %s270
      %s271 = sphi 0, %s268
      %s272 = sphi 0, %s271
      %s288 = sphi 0, %s272
    $region4: #{cnn_mnist_forward.1} parent=1 // loop_header_branch
      %25 = sbr.rel (%p23) target = $region8
    $region5: #{cnn_mnist_forward.1} parent=1 // loop_body
      %s27 = ssub.s32 %s22, 1
      %s28 = ssub.s32 %s22, 2
      %s29 = sadd.s32 %s22, 1
      %s30 = ssub.s32 %s22, %s29
      %p31 = scmp.eq.s32.totalorder %s30, 0
      %s33 = sadd.s32 %s32, 1
      %s34 = scalar_select %p31, %s32, %s33
      %p37 = pneg %p31
      %p38 = scmp.eq.s32.totalorder %s22, 1
      %p39 = por %p37, %p38
      %p40 = scmp.ne.s32.totalorder %s32, %s35
      %p41 = scmp.eq.s32.totalorder %s22, 0
      %p42 = por %p40, %p41
      %p43 = scmp.ne.s32.totalorder %s32, %s35
      %p44 = scmp.eq.s32.totalorder %s27, 1
      %p45 = por %p43, %p44
      %p46 = scmp.ne.s32.totalorder %s35, %s36
      %p47 = scmp.eq.s32.totalorder %s27, 0
      %p48 = por %p46, %p47
      %p49 = scmp.ne.s32.totalorder %s35, %s36
      %p50 = scmp.eq.s32.totalorder %s28, 1
      %p51 = por %p49, %p50
      %p53 = scmp.ne.s32.totalorder %s36, %s52
      %p54 = scmp.eq.s32.totalorder %s28, 0
      %p55 = por %p53, %p54
      %s57 = sadd.s32 %s56, 1
      %p60 = scmp.eq.s32.totalorder %s22, 1
      %p61 = scmp.ne.s32.totalorder %s56, %s58
      %p62 = scmp.eq.s32.totalorder %s22, 0
      %p63 = por %p61, %p62
      %p64 = scmp.ne.s32.totalorder %s56, %s58
      %p65 = scmp.eq.s32.totalorder %s27, 1
      %p66 = por %p64, %p65
      %p67 = scmp.ne.s32.totalorder %s58, %s59
      %p68 = scmp.eq.s32.totalorder %s27, 0
      %p69 = por %p67, %p68
      %p70 = scmp.ne.s32.totalorder %s58, %s59
      %p71 = scmp.eq.s32.totalorder %s28, 1
      %p72 = por %p70, %p71
      %p74 = scmp.ne.s32.totalorder %s59, %s73
      %p75 = scmp.eq.s32.totalorder %s28, 0
      %p76 = por %p74, %p75
      %s78 = sadd.s32 %s77, 1
      %p81 = scmp.eq.s32.totalorder %s22, 1
      %p82 = scmp.ne.s32.totalorder %s77, %s79
      %p83 = scmp.eq.s32.totalorder %s22, 0
      %p84 = por %p82, %p83
      %p85 = scmp.ne.s32.totalorder %s77, %s79
      %p86 = scmp.eq.s32.totalorder %s27, 1
      %p87 = por %p85, %p86
      %p88 = scmp.ne.s32.totalorder %s79, %s80
      %p89 = scmp.eq.s32.totalorder %s27, 0
      %p90 = por %p88, %p89
      %p91 = scmp.ne.s32.totalorder %s79, %s80
      %p92 = scmp.eq.s32.totalorder %s28, 1
      %p93 = por %p91, %p92
      %p95 = scmp.ne.s32.totalorder %s80, %s94
      %p96 = scmp.eq.s32.totalorder %s28, 0
      %p97 = por %p95, %p96
      %s99 = sadd.s32 %s98, 1
      %p102 = scmp.eq.s32.totalorder %s22, 1
      %p103 = scmp.ne.s32.totalorder %s98, %s100
      %p104 = scmp.eq.s32.totalorder %s22, 0
      %p105 = por %p103, %p104
      %p106 = scmp.ne.s32.totalorder %s98, %s100
      %p107 = scmp.eq.s32.totalorder %s27, 1
      %p108 = por %p106, %p107
      %p109 = scmp.ne.s32.totalorder %s100, %s101
      %p110 = scmp.eq.s32.totalorder %s27, 0
      %p111 = por %p109, %p110
      %p112 = scmp.ne.s32.totalorder %s100, %s101
      %p113 = scmp.eq.s32.totalorder %s28, 1
      %p114 = por %p112, %p113
      %p116 = scmp.ne.s32.totalorder %s101, %s115
      %p117 = scmp.eq.s32.totalorder %s28, 0
      %p118 = por %p116, %p117
      %s120 = sadd.s32 %s119, 1
      %p123 = scmp.eq.s32.totalorder %s22, 1
      %p124 = scmp.ne.s32.totalorder %s119, %s121
      %p125 = scmp.eq.s32.totalorder %s22, 0
      %p126 = por %p124, %p125
      %p127 = scmp.ne.s32.totalorder %s119, %s121
      %p128 = scmp.eq.s32.totalorder %s27, 1
      %p129 = por %p127, %p128
      %p130 = scmp.ne.s32.totalorder %s121, %s122
      %p131 = scmp.eq.s32.totalorder %s27, 0
      %p132 = por %p130, %p131
      %p133 = scmp.ne.s32.totalorder %s121, %s122
      %p134 = scmp.eq.s32.totalorder %s28, 1
      %p135 = por %p133, %p134
      %p137 = scmp.ne.s32.totalorder %s122, %s136
      %p138 = scmp.eq.s32.totalorder %s28, 0
      %p139 = por %p137, %p138
      %s141 = sadd.s32 %s140, 1
      %p144 = scmp.eq.s32.totalorder %s22, 1
      %p145 = scmp.ne.s32.totalorder %s140, %s142
      %p146 = scmp.eq.s32.totalorder %s22, 0
      %p147 = por %p145, %p146
      %p148 = scmp.ne.s32.totalorder %s140, %s142
      %p149 = scmp.eq.s32.totalorder %s27, 1
      %p150 = por %p148, %p149
      %p151 = scmp.ne.s32.totalorder %s142, %s143
      %p152 = scmp.eq.s32.totalorder %s27, 0
      %p153 = por %p151, %p152
      %p154 = scmp.ne.s32.totalorder %s142, %s143
      %p155 = scmp.eq.s32.totalorder %s28, 1
      %p156 = por %p154, %p155
      %p158 = scmp.ne.s32.totalorder %s143, %s157
      %p159 = scmp.eq.s32.totalorder %s28, 0
      %p160 = por %p158, %p159
      %s162 = sadd.s32 %s161, 1
      %p165 = scmp.eq.s32.totalorder %s22, 1
      %p166 = scmp.ne.s32.totalorder %s161, %s163
      %p167 = scmp.eq.s32.totalorder %s22, 0
      %p168 = por %p166, %p167
      %p169 = scmp.ne.s32.totalorder %s161, %s163
      %p170 = scmp.eq.s32.totalorder %s27, 1
      %p171 = por %p169, %p170
      %p172 = scmp.ne.s32.totalorder %s163, %s164
      %p173 = scmp.eq.s32.totalorder %s27, 0
      %p174 = por %p172, %p173
      %p175 = scmp.ne.s32.totalorder %s163, %s164
      %p176 = scmp.eq.s32.totalorder %s28, 1
      %p177 = por %p175, %p176
      %p179 = scmp.ne.s32.totalorder %s164, %s178
      %p180 = scmp.eq.s32.totalorder %s28, 0
      %p181 = por %p179, %p180
      %s183 = sadd.s32 %s182, 1
      %p186 = scmp.eq.s32.totalorder %s22, 1
      %p187 = scmp.ne.s32.totalorder %s182, %s184
      %p188 = scmp.eq.s32.totalorder %s22, 0
      %p189 = por %p187, %p188
      %p190 = scmp.ne.s32.totalorder %s182, %s184
      %p191 = scmp.eq.s32.totalorder %s27, 1
      %p192 = por %p190, %p191
      %p193 = scmp.ne.s32.totalorder %s184, %s185
      %p194 = scmp.eq.s32.totalorder %s27, 0
      %p195 = por %p193, %p194
      %p196 = scmp.ne.s32.totalorder %s184, %s185
      %p197 = scmp.eq.s32.totalorder %s28, 1
      %p198 = por %p196, %p197
      %p200 = scmp.ne.s32.totalorder %s185, %s199
      %p201 = scmp.eq.s32.totalorder %s28, 0
      %p202 = por %p200, %p201
      %s204 = sadd.s32 %s203, 1
      %p207 = scmp.eq.s32.totalorder %s22, 1
      %p208 = scmp.ne.s32.totalorder %s203, %s205
      %p209 = scmp.eq.s32.totalorder %s22, 0
      %p210 = por %p208, %p209
      %p211 = scmp.ne.s32.totalorder %s203, %s205
      %p212 = scmp.eq.s32.totalorder %s27, 1
      %p213 = por %p211, %p212
      %p214 = scmp.ne.s32.totalorder %s205, %s206
      %p215 = scmp.eq.s32.totalorder %s27, 0
      %p216 = por %p214, %p215
      %p217 = scmp.ne.s32.totalorder %s205, %s206
      %p218 = scmp.eq.s32.totalorder %s28, 1
      %p219 = por %p217, %p218
      %p221 = scmp.ne.s32.totalorder %s206, %s220
      %p222 = scmp.eq.s32.totalorder %s28, 0
      %p223 = por %p221, %p222
      %s225 = sadd.s32 %s224, 1
      %p228 = scmp.eq.s32.totalorder %s22, 1
      %p229 = scmp.ne.s32.totalorder %s224, %s226
      %p230 = scmp.eq.s32.totalorder %s22, 0
      %p231 = por %p229, %p230
      %p232 = scmp.ne.s32.totalorder %s224, %s226
      %p233 = scmp.eq.s32.totalorder %s27, 1
      %p234 = por %p232, %p233
      %p235 = scmp.ne.s32.totalorder %s226, %s227
      %p236 = scmp.eq.s32.totalorder %s27, 0
      %p237 = por %p235, %p236
      %p238 = scmp.ne.s32.totalorder %s226, %s227
      %p239 = scmp.eq.s32.totalorder %s28, 1
      %p240 = por %p238, %p239
      %p242 = scmp.ne.s32.totalorder %s227, %s241
      %p243 = scmp.eq.s32.totalorder %s28, 0
      %p244 = por %p242, %p243
      %s246 = sadd.s32 %s245, 1
      %p249 = scmp.eq.s32.totalorder %s22, 1
      %p250 = scmp.ne.s32.totalorder %s245, %s247
      %p251 = scmp.eq.s32.totalorder %s22, 0
      %p252 = por %p250, %p251
      %p253 = scmp.ne.s32.totalorder %s245, %s247
      %p254 = scmp.eq.s32.totalorder %s27, 1
      %p255 = por %p253, %p254
      %p256 = scmp.ne.s32.totalorder %s247, %s248
      %p257 = scmp.eq.s32.totalorder %s27, 0
      %p258 = por %p256, %p257
      %p259 = scmp.ne.s32.totalorder %s247, %s248
      %p260 = scmp.eq.s32.totalorder %s28, 1
      %p261 = por %p259, %p260
      %p263 = scmp.ne.s32.totalorder %s248, %s262
      %p264 = scmp.eq.s32.totalorder %s28, 0
      %p265 = por %p263, %p264
      %s266 = ssub.s32 %s22, %s29
      %p267 = scmp.eq.s32.totalorder %s266, 0
      %s269 = sadd.s32 %s268, 1
      %s270 = scalar_select %p267, %s268, %s269
      %p273 = pneg %p267
      %p274 = scmp.eq.s32.totalorder %s22, 1
      %p275 = por %p273, %p274
      %p276 = scmp.ne.s32.totalorder %s268, %s271
      %p277 = scmp.eq.s32.totalorder %s22, 0
      %p278 = por %p276, %p277
      %p279 = scmp.ne.s32.totalorder %s268, %s271
      %p280 = scmp.eq.s32.totalorder %s27, 1
      %p281 = por %p279, %p280
      %p282 = scmp.ne.s32.totalorder %s271, %s272
      %p283 = scmp.eq.s32.totalorder %s27, 0
      %p284 = por %p282, %p283
      %p285 = scmp.ne.s32.totalorder %s271, %s272
      %p286 = scmp.eq.s32.totalorder %s28, 1
      %p287 = por %p285, %p286
      %p289 = scmp.ne.s32.totalorder %s272, %s288
      %p290 = scmp.eq.s32.totalorder %s28, 0
      %p291 = por %p289, %p290
      %p292 = scmp.le.s32.totalorder 1, %s22
      %p293 = scmp.lt.s32.totalorder %s22, 3
      %p294 = pnand %p292, %p293
      %p295 = pneg %p294
      // Predicated region
      $region9: #{cnn_mnist_forward.1} parent=5 // pred_check
        _
      $region10: #{cnn_mnist_forward.1} parent=5 // pred_check_branch
        %297 = sbr.rel (%p294) target = $region12
      $region11: #{cnn_mnist_forward.1} parent=5 // pred_region
        %s298 = ssub.s32 %s22, 1
        // Predicated region
        $region13: #{cnn_mnist_forward.1} parent=11 // pred_check
          %p299 = pneg %p69
        $region14: #{cnn_mnist_forward.1} parent=11 // pred_check_branch
          %301 = sbr.rel (%p299) target = $region16
        $region15: #{cnn_mnist_forward.1} parent=11 // pred_region
          _
        $region16: #{cnn_mnist_forward.1} parent=11 // pred_fallthru
          _
        // Predicated region
        $region17: #{cnn_mnist_forward.1} parent=11 // pred_check
          %p302 = pneg %p90
        $region18: #{cnn_mnist_forward.1} parent=11 // pred_check_branch
          %304 = sbr.rel (%p302) target = $region20
        $region19: #{cnn_mnist_forward.1} parent=11 // pred_region
          _
        $region20: #{cnn_mnist_forward.1} parent=11 // pred_fallthru
          _
        // Predicated region
        $region21: #{cnn_mnist_forward.1} parent=11 // pred_check
          %p305 = pneg %p111
        $region22: #{cnn_mnist_forward.1} parent=11 // pred_check_branch
          %307 = sbr.rel (%p305) target = $region24
        $region23: #{cnn_mnist_forward.1} parent=11 // pred_region
          %309 = vsyncadd [#allocation3], 0
          %s311 = sshll.u32 %s3, 4
          %s312 = int_to_ptr.hbm [resolvable:$true] %s311
          %s313 = sshll.u32 [#allocation2], 4
          %s314 = int_to_ptr.vmem [resolvable:$true] %s313
          %316 = dma.hbm_to_vmem [thread:$0]  %s312, 48, %s314, [#allocation3]
        $region24: #{cnn_mnist_forward.1} parent=11 // pred_fallthru
          _
        // Predicated region
        $region25: #{cnn_mnist_forward.1} parent=11 // pred_check
          %p317 = pneg %p132
        $region26: #{cnn_mnist_forward.1} parent=11 // pred_check_branch
          %319 = sbr.rel (%p317) target = $region28
        $region27: #{cnn_mnist_forward.1} parent=11 // pred_region
          %321 = vsyncadd [#allocation5], 0
          %s322 = sshll.u32 %s4, 4
          %s323 = int_to_ptr.hbm [resolvable:$true] %s322
          %s324 = sshll.u32 [#allocation4], 4
          %s325 = int_to_ptr.vmem [resolvable:$true] %s324
          %330 = dma.hbm_to_vmem [thread:$0]  %s323, 61440, %s325, [#allocation5], 128, 128, 8
        $region28: #{cnn_mnist_forward.1} parent=11 // pred_fallthru
          _
        // Predicated region
        $region29: #{cnn_mnist_forward.1} parent=11 // pred_check
          %p331 = pneg %p153
        $region30: #{cnn_mnist_forward.1} parent=11 // pred_check_branch
          %333 = sbr.rel (%p331) target = $region32
        $region31: #{cnn_mnist_forward.1} parent=11 // pred_region
          %335 = vsyncadd [#allocation5], 0
          %s336 = sshll.u32 %s5, 4
          %s337 = int_to_ptr.hbm [resolvable:$true] %s336
          %s338 = sshll.u32 [#allocation6], 4
          %s339 = int_to_ptr.vmem [resolvable:$true] %s338
          %344 = dma.hbm_to_vmem [thread:$0]  %s337, 128, %s339, [#allocation5], 64, 64, 4
        $region32: #{cnn_mnist_forward.1} parent=11 // pred_fallthru
          _
        // Predicated region
        $region33: #{cnn_mnist_forward.1} parent=11 // pred_check
          %p345 = pneg %p174
        $region34: #{cnn_mnist_forward.1} parent=11 // pred_check_branch
          %347 = sbr.rel (%p345) target = $region36
        $region35: #{cnn_mnist_forward.1} parent=11 // pred_region
          %349 = vsyncadd [#allocation8], 0
          %s351 = sshll.u32 %s6, 4
          %s352 = int_to_ptr.hbm [resolvable:$true] %s351
          %s353 = sshll.u32 [#allocation7], 4
          %s354 = int_to_ptr.vmem [resolvable:$true] %s353
          %356 = dma.hbm_to_vmem [thread:$0]  %s352, 32, %s354, [#allocation8]
        $region36: #{cnn_mnist_forward.1} parent=11 // pred_fallthru
          _
        // Predicated region
        $region37: #{cnn_mnist_forward.1} parent=11 // pred_check
          %p357 = pneg %p195
        $region38: #{cnn_mnist_forward.1} parent=11 // pred_check_branch
          %359 = sbr.rel (%p357) target = $region40
        $region39: #{cnn_mnist_forward.1} parent=11 // pred_region
          %361 = vsyncadd [#allocation8], 0
          %s362 = sshll.u32 %s7, 4
          %s363 = int_to_ptr.hbm [resolvable:$true] %s362
          %s364 = sshll.u32 [#allocation9], 4
          %s365 = int_to_ptr.vmem [resolvable:$true] %s364
          %370 = dma.hbm_to_vmem [thread:$0]  %s363, 32768, %s365, [#allocation8], 256, 256, 16
        $region40: #{cnn_mnist_forward.1} parent=11 // pred_fallthru
          _
        // Predicated region
        $region41: #{cnn_mnist_forward.1} parent=11 // pred_check
          %p371 = pneg %p216
        $region42: #{cnn_mnist_forward.1} parent=11 // pred_check_branch
          %373 = sbr.rel (%p371) target = $region44
        $region43: #{cnn_mnist_forward.1} parent=11 // pred_region
          %375 = vsyncadd [#allocation11], 0
          %s377 = sshll.u32 %s8, 4
          %s378 = int_to_ptr.hbm [resolvable:$true] %s377
          %s379 = sshll.u32 [#allocation10], 4
          %s380 = int_to_ptr.vmem [resolvable:$true] %s379
          %382 = dma.hbm_to_vmem [thread:$0]  %s378, 64, %s380, [#allocation11]
        $region44: #{cnn_mnist_forward.1} parent=11 // pred_fallthru
          _
        // Predicated region
        $region45: #{cnn_mnist_forward.1} parent=11 // pred_check
          %p383 = pneg %p237
        $region46: #{cnn_mnist_forward.1} parent=11 // pred_check_branch
          %385 = sbr.rel (%p383) target = $region48
        $region47: #{cnn_mnist_forward.1} parent=11 // pred_region
          %387 = vsyncadd [#allocation11], 0
          %s388 = sshll.u32 %s9, 4
          %s389 = int_to_ptr.hbm [resolvable:$true] %s388
          %s390 = sshll.u32 [#allocation12], 4
          %s391 = int_to_ptr.vmem [resolvable:$true] %s390
          %396 = dma.hbm_to_vmem [thread:$0]  %s389, 4096, %s391, [#allocation11], 64, 64, 4
        $region48: #{cnn_mnist_forward.1} parent=11 // pred_fallthru
          _
        // Predicated region
        $region49: #{cnn_mnist_forward.1} parent=11 // pred_check
          %p397 = pneg %p258
        $region50: #{cnn_mnist_forward.1} parent=11 // pred_check_branch
          %399 = sbr.rel (%p397) target = $region52
        $region51: #{cnn_mnist_forward.1} parent=11 // pred_region
          %401 = vsyncadd [#allocation14], 0
          %s403 = sshll.u32 %s10, 4
          %s404 = int_to_ptr.hbm [resolvable:$true] %s403
          %s405 = sshll.u32 [#allocation13], 4
          %s406 = int_to_ptr.vmem [resolvable:$true] %s405
          %408 = dma.hbm_to_vmem [thread:$0]  %s404, 16, %s406, [#allocation14]
        $region52: #{cnn_mnist_forward.1} parent=11 // pred_fallthru
          _
      $region12: #{cnn_mnist_forward.1} parent=5 // pred_fallthru
        _
      %p409 = scmp.lt.s32.totalorder %s22, 2
      // Predicated region
      $region53: #{cnn_mnist_forward.1} parent=5 // pred_check
        %p410 = pneg %p409
      $region54: #{cnn_mnist_forward.1} parent=5 // pred_check_branch
        %412 = sbr.rel (%p410) target = $region56
      $region55: #{cnn_mnist_forward.1} parent=5 // pred_region
        // Predicated region
        $region57: #{cnn_mnist_forward.1} parent=55 // pred_check
          %p413 = pneg %p42
        $region58: #{cnn_mnist_forward.1} parent=55 // pred_check_branch
          %415 = sbr.rel (%p413) target = $region60
        $region59: #{cnn_mnist_forward.1} parent=55 // pred_region
          %p416 = scmp.lt.s32.totalorder %s22, 1
          %s417 = scalar_select %p416, %s22, 1
          %s418 = smul.addr %s417, 4
          %s419 = smul.addr %s418, 8
          %s420 = scalar_lea.vmem %s0, %s419
        $region60: #{cnn_mnist_forward.1} parent=55 // pred_fallthru
          _
      $region56: #{cnn_mnist_forward.1} parent=5 // pred_fallthru
        _
      %p421 = scmp.le.s32.totalorder 1, %s22
      %p422 = scmp.lt.s32.totalorder %s22, 3
      %p423 = pnand %p421, %p422
      %p424 = pneg %p423
      // Predicated region
      $region61: #{cnn_mnist_forward.1} parent=5 // pred_check
        _
      $region62: #{cnn_mnist_forward.1} parent=5 // pred_check_branch
        %426 = sbr.rel (%p423) target = $region64
      $region63: #{cnn_mnist_forward.1} parent=5 // pred_region
        %s427 = ssub.s32 %s22, 1
        // Predicated region
        $region65: #{cnn_mnist_forward.1} parent=63 // pred_check
          %p428 = pneg %p111
        $region66: #{cnn_mnist_forward.1} parent=63 // pred_check_branch
          %430 = sbr.rel (%p428) target = $region68
        $region67: #{cnn_mnist_forward.1} parent=63 // pred_region
          %432 = dma.done [#allocation3], 48
        $region68: #{cnn_mnist_forward.1} parent=63 // pred_fallthru
          _
        // Predicated region
        $region69: #{cnn_mnist_forward.1} parent=63 // pred_check
          %p433 = pneg %p132
        $region70: #{cnn_mnist_forward.1} parent=63 // pred_check_branch
          %435 = sbr.rel (%p433) target = $region72
        $region71: #{cnn_mnist_forward.1} parent=63 // pred_region
          %437 = dma.done [#allocation5], 61440
        $region72: #{cnn_mnist_forward.1} parent=63 // pred_fallthru
          _
        // Predicated region
        $region73: #{cnn_mnist_forward.1} parent=63 // pred_check
          %p438 = pneg %p153
        $region74: #{cnn_mnist_forward.1} parent=63 // pred_check_branch
          %440 = sbr.rel (%p438) target = $region76
        $region75: #{cnn_mnist_forward.1} parent=63 // pred_region
          %442 = dma.done [#allocation5], 128
        $region76: #{cnn_mnist_forward.1} parent=63 // pred_fallthru
          _
        // Predicated region
        $region77: #{cnn_mnist_forward.1} parent=63 // pred_check
          %p443 = pneg %p174
        $region78: #{cnn_mnist_forward.1} parent=63 // pred_check_branch
          %445 = sbr.rel (%p443) target = $region80
        $region79: #{cnn_mnist_forward.1} parent=63 // pred_region
          %447 = dma.done [#allocation8], 32
        $region80: #{cnn_mnist_forward.1} parent=63 // pred_fallthru
          _
        // Predicated region
        $region81: #{cnn_mnist_forward.1} parent=63 // pred_check
          %p448 = pneg %p195
        $region82: #{cnn_mnist_forward.1} parent=63 // pred_check_branch
          %450 = sbr.rel (%p448) target = $region84
        $region83: #{cnn_mnist_forward.1} parent=63 // pred_region
          %452 = dma.done [#allocation8], 32768
        $region84: #{cnn_mnist_forward.1} parent=63 // pred_fallthru
          _
        // Predicated region
        $region85: #{cnn_mnist_forward.1} parent=63 // pred_check
          %p453 = pneg %p216
        $region86: #{cnn_mnist_forward.1} parent=63 // pred_check_branch
          %455 = sbr.rel (%p453) target = $region88
        $region87: #{cnn_mnist_forward.1} parent=63 // pred_region
          %457 = dma.done [#allocation11], 64
        $region88: #{cnn_mnist_forward.1} parent=63 // pred_fallthru
          _
        // Predicated region
        $region89: #{cnn_mnist_forward.1} parent=63 // pred_check
          %p458 = pneg %p237
        $region90: #{cnn_mnist_forward.1} parent=63 // pred_check_branch
          %460 = sbr.rel (%p458) target = $region92
        $region91: #{cnn_mnist_forward.1} parent=63 // pred_region
          %462 = dma.done [#allocation11], 4096
        $region92: #{cnn_mnist_forward.1} parent=63 // pred_fallthru
          _
        // Predicated region
        $region93: #{cnn_mnist_forward.1} parent=63 // pred_check
          %p463 = pneg %p258
        $region94: #{cnn_mnist_forward.1} parent=63 // pred_check_branch
          %465 = sbr.rel (%p463) target = $region96
        $region95: #{cnn_mnist_forward.1} parent=63 // pred_region
          %467 = dma.done [#allocation14], 16
        $region96: #{cnn_mnist_forward.1} parent=63 // pred_fallthru
          _
        %p468 = scmp.lt.s32.totalorder %s27, 1
        %s469 = scalar_select %p468, %s27, 1
        %s470 = smul.addr %s469, 4
        %s471 = smul.addr %s470, 8
        %s472 = scalar_lea.vmem %s0, %s471
        %p473 = pneg %p48
        %p474 = pneg %p45
        %p475 = pneg %p69
        %p476 = pneg %p66
        %p477 = pneg %p90
        %p478 = pneg %p87
        %p479 = pneg %p111
        %p480 = pneg %p108
        %p481 = pneg %p132
        %p482 = pneg %p129
        %p483 = pneg %p153
        %p484 = pneg %p150
        %p485 = pneg %p174
        %p486 = pneg %p171
        %p487 = pneg %p195
        %p488 = pneg %p192
        %p489 = pneg %p216
        %p490 = pneg %p213
        %p491 = pneg %p237
        %p492 = pneg %p234
        %p493 = pneg %p258
        %p494 = pneg %p255
        %p495 = pneg %p284
        %p496 = pneg %p281
        %p497 = scmp.lt.s32.totalorder %s27, 1
        %s498 = scalar_select %p497, %s27, 1
        %s499 = smul.addr %s498, 8
        %s500 = scalar_lea.vmem %s11, %s499
        %p501 = scmp.lt.s32.totalorder %s27, 1
        %s502 = scalar_select %p501, %s27, 1
        %s503 = smul.addr %s502, 4
        %s504 = smul.addr %s503, 8
        %s505 = scalar_lea.vmem %s0, %s504
        %p506 = scmp.lt.s32.totalorder %s27, 1
        %s507 = scalar_select %p506, %s27, 1
        %s508 = smul.addr %s507, 8
        %s509 = scalar_lea.vmem %s11, %s508
        %v511 = vld [vmem:[%s505] sm:$0xff]
        %v512 = vld [vmem:[%s505 + $0x8] sm:$0xff]
        %v513 = vld [vmem:[%s505 + $0x10] sm:$0xff]
        %v514 = vpack.c.bf16 %v512, %v511
        %v515 = vpack.c.bf16 %v513, %v513
        %v516 = vld [vmem:[%s1] sm:$0xff]
        %v517 = vld [vmem:[%s1 + $0x8] sm:$0xf]
        %v518 = vld [vmem:[%s1 + $0xc] sm:$0xff]
        %v519 = vld [vmem:[%s1 + $0x14] sm:$0xf]
        %v520 = vld [vmem:[%s1 + $0x18] sm:$0xff]
        %v521 = vld [vmem:[%s1 + $0x20] sm:$0xf]
        %v522 = vld [vmem:[%s1 + $0x24] sm:$0x33]
        %v523 = vld [vmem:[%s1 + $0x2c] sm:$0x3]
        %s524 = scalar_lea.vmem %s1, 240
        %v525 = vld [vmem:[%s524] sm:$0xff]
        %v526 = vld [vmem:[%s524 + $0x8] sm:$0xf]
        %v527 = vld [vmem:[%s524 + $0xc] sm:$0xff]
        %v528 = vld [vmem:[%s524 + $0x14] sm:$0xf]
        %v529 = vld [vmem:[%s524 + $0x18] sm:$0xff]
        %v530 = vld [vmem:[%s524 + $0x20] sm:$0xf]
        %v531 = vld [vmem:[%s524 + $0x24] sm:$0x33]
        %v532 = vld [vmem:[%s524 + $0x2c] sm:$0x3]
        %v533 = vld [vmem:[%s505 + $0x1] sm:$0xff]
        %v534 = vld [vmem:[%s505 + $0x9] sm:$0xff]
        %v535 = vld [vmem:[%s505 + $0x11] sm:$0xff]
        %v536 = vpack.c.bf16 %v534, %v533
        %v537 = vpack.c.bf16 %v535, %v535
        %s538 = scalar_lea.vmem %s1, 48
        %v539 = vld [vmem:[%s538] sm:$0xff]
        %v540 = vld [vmem:[%s538 + $0x8] sm:$0xf]
        %v541 = vld [vmem:[%s538 + $0xc] sm:$0xff]
        %v542 = vld [vmem:[%s538 + $0x14] sm:$0xf]
        %v543 = vld [vmem:[%s538 + $0x18] sm:$0xff]
        %v544 = vld [vmem:[%s538 + $0x20] sm:$0xf]
        %v545 = vld [vmem:[%s538 + $0x24] sm:$0x33]
        %v546 = vld [vmem:[%s538 + $0x2c] sm:$0x3]
        %v555 = vunpack.c.l.b16 %v539
        %v556 = vunpack.c.h.b16 %v539
        %v557 = vunpack.c.l.b16 %v540
        %v558 = vunpack.c.l.b16 %v541
        %v559 = vunpack.c.h.b16 %v541
        %v560 = vunpack.c.l.b16 %v542
        %v561 = vunpack.c.l.b16 %v543
        %v562 = vunpack.c.h.b16 %v543
        %v563 = vunpack.c.l.b16 %v544
        %v564 = vunpack.c.l.b16 %v545
        %v565 = vunpack.c.h.b16 %v545
        %v566 = vunpack.c.l.b16 %v546
        %v567 = vpack.c.b16 %v558, %v555
        %v568 = vpack.c.b16 %v559, %v556
        %v569 = vpack.c.b16 %v560, %v557
        %v570 = vpack.c.b16 %v564, %v561
        %v571 = vpack.c.b16 %v565, %v562
        %v572 = vpack.c.b16 %v566, %v563
        %vm576 = vcmask 228352
        %v578 = vsel %vm576, %v536, 0
        %v581 = vsel %vm576, %v537, 0
        %vm583 = vcmask 1045504
        %v585 = vsel %vm583, %v570, 0
        %v588 = vsel %vm583, %v571, 0
        %v591 = vsel %vm583, %v572, 0
        %593 = vmatpush.bf16.msra.mxu0 0
        %594 = vmatpush.bf16.msra.mxu0 0
        %595 = vmatpush.bf16.msra.mxu0 0
        %596 = vmatpush.bf16.msra.mxu0 0
        %597 = vmatpush.bf16.msra.mxu0 0
        %598 = vmatpush.bf16.msra.mxu0 0
        %599 = vmatpush.bf16.msra.mxu0 %v585
        %600 = vmatpush.bf16.msra.mxu0 %v567
        %601 = vmatmul.bf16.gmra.mxu0 %v578
        %v602 = vpop.f32.mrf.mxu0
        %v603 = vadd.f32 0.0, %v602
        %v604 = vpop.f32.mrf.mxu0
        %v605 = vadd.f32 0.0, %v604
        %606 = vmatmul.bf16.gmra.mxu0 %v581
        %v607 = vpop.f32.mrf.mxu0
        %v608 = vadd.f32 0.0, %v607
        %v609 = vpop.f32.mrf.mxu0
        %610 = vdwg.mxu0
        %611 = vmatpush.bf16.msra.mxu0 0
        %612 = vmatpush.bf16.msra.mxu0 0
        %613 = vmatpush.bf16.msra.mxu0 0
        %614 = vmatpush.bf16.msra.mxu0 0
        %615 = vmatpush.bf16.msra.mxu0 0
        %616 = vmatpush.bf16.msra.mxu0 0
        %617 = vmatpush.bf16.msra.mxu0 %v588
        %618 = vmatpush.bf16.msra.mxu0 %v568
        %619 = vmatmul.bf16.gmra.mxu0 %v578
        %v620 = vpop.f32.mrf.mxu0
        %v621 = vadd.f32 0.0, %v620
        %v622 = vpop.f32.mrf.mxu0
        %v623 = vadd.f32 0.0, %v622
        %624 = vmatmul.bf16.gmra.mxu0 %v581
        %v625 = vpop.f32.mrf.mxu0
        %v626 = vadd.f32 0.0, %v625
        %v627 = vpop.f32.mrf.mxu0
        %628 = vdwg.mxu0
        %629 = vmatpush.bf16.msra.mxu0 0
        %630 = vmatpush.bf16.msra.mxu0 0
        %631 = vmatpush.bf16.msra.mxu0 0
        %632 = vmatpush.bf16.msra.mxu0 0
        %633 = vmatpush.bf16.msra.mxu0 0
        %634 = vmatpush.bf16.msra.mxu0 0
        %635 = vmatpush.bf16.msra.mxu0 %v591
        %636 = vmatpush.bf16.msra.mxu0 %v569
        %637 = vmatmul.bf16.gmra.mxu0 %v578
        %v638 = vpop.f32.mrf.mxu0
        %v639 = vadd.f32 0.0, %v638
        %v640 = vpop.f32.mrf.mxu0
        %v641 = vadd.f32 0.0, %v640
        %642 = vmatmul.bf16.gmra.mxu0 %v581
        %v643 = vpop.f32.mrf.mxu0
        %v644 = vadd.f32 0.0, %v643
        %v645 = vpop.f32.mrf.mxu0
        %646 = vdwg.mxu0
        %s647 = scalar_lea.vmem %s1, 288
        %v648 = vld [vmem:[%s647] sm:$0xff]
        %v649 = vld [vmem:[%s647 + $0x8] sm:$0xf]
        %v650 = vld [vmem:[%s647 + $0xc] sm:$0xff]
        %v651 = vld [vmem:[%s647 + $0x14] sm:$0xf]
        %v652 = vld [vmem:[%s647 + $0x18] sm:$0xff]
        %v653 = vld [vmem:[%s647 + $0x20] sm:$0xf]
        %v654 = vld [vmem:[%s647 + $0x24] sm:$0x33]
        %v655 = vld [vmem:[%s647 + $0x2c] sm:$0x3]
        %v664 = vunpack.c.l.b16 %v648
        %v665 = vunpack.c.h.b16 %v648
        %v666 = vunpack.c.l.b16 %v649
        %v667 = vunpack.c.l.b16 %v650
        %v668 = vunpack.c.h.b16 %v650
        %v669 = vunpack.c.l.b16 %v651
        %v670 = vunpack.c.l.b16 %v652
        %v671 = vunpack.c.h.b16 %v652
        %v672 = vunpack.c.l.b16 %v653
        %v673 = vunpack.c.l.b16 %v654
        %v674 = vunpack.c.h.b16 %v654
        %v675 = vunpack.c.l.b16 %v655
        %v676 = vpack.c.b16 %v667, %v664
        %v677 = vpack.c.b16 %v668, %v665
        %v678 = vpack.c.b16 %v669, %v666
        %v679 = vpack.c.b16 %v673, %v670
        %v680 = vpack.c.b16 %v674, %v671
        %v681 = vpack.c.b16 %v675, %v672
        %v686 = vsel %vm583, %v679, 0
        %v689 = vsel %vm583, %v680, 0
        %v692 = vsel %vm583, %v681, 0
        %694 = vmatpush.bf16.msra.mxu0 0
        %695 = vmatpush.bf16.msra.mxu0 0
        %696 = vmatpush.bf16.msra.mxu0 0
        %697 = vmatpush.bf16.msra.mxu0 0
        %698 = vmatpush.bf16.msra.mxu0 0
        %699 = vmatpush.bf16.msra.mxu0 0
        %700 = vmatpush.bf16.msra.mxu0 %v686
        %701 = vmatpush.bf16.msra.mxu0 %v676
        %702 = vmatmul.bf16.gmra.mxu0 %v578
        %v703 = vpop.f32.mrf.mxu0
        %v704 = vadd.f32 0.0, %v703
        %v705 = vpop.f32.mrf.mxu0
        %v706 = vadd.f32 0.0, %v705
        %707 = vmatmul.bf16.gmra.mxu0 %v581
        %v708 = vpop.f32.mrf.mxu0
        %v709 = vadd.f32 0.0, %v708
        %v710 = vpop.f32.mrf.mxu0
        %711 = vdwg.mxu0
        %712 = vmatpush.bf16.msra.mxu0 0
        %713 = vmatpush.bf16.msra.mxu0 0
        %714 = vmatpush.bf16.msra.mxu0 0
        %715 = vmatpush.bf16.msra.mxu0 0
        %716 = vmatpush.bf16.msra.mxu0 0
        %717 = vmatpush.bf16.msra.mxu0 0
        %718 = vmatpush.bf16.msra.mxu0 %v689
        %719 = vmatpush.bf16.msra.mxu0 %v677
        %720 = vmatmul.bf16.gmra.mxu0 %v578
        %v721 = vpop.f32.mrf.mxu0
        %v722 = vadd.f32 0.0, %v721
        %v723 = vpop.f32.mrf.mxu0
        %v724 = vadd.f32 0.0, %v723
        %725 = vmatmul.bf16.gmra.mxu0 %v581
        %v726 = vpop.f32.mrf.mxu0
        %v727 = vadd.f32 0.0, %v726
        %v728 = vpop.f32.mrf.mxu0
        %729 = vdwg.mxu0
        %730 = vmatpush.bf16.msra.mxu0 0
        %731 = vmatpush.bf16.msra.mxu0 0
        %732 = vmatpush.bf16.msra.mxu0 0
        %733 = vmatpush.bf16.msra.mxu0 0
        %734 = vmatpush.bf16.msra.mxu0 0
        %735 = vmatpush.bf16.msra.mxu0 0
        %736 = vmatpush.bf16.msra.mxu0 %v692
        %737 = vmatpush.bf16.msra.mxu0 %v678
        %738 = vmatmul.bf16.gmra.mxu0 %v578
        %v739 = vpop.f32.mrf.mxu0
        %v740 = vadd.f32 0.0, %v739
        %v741 = vpop.f32.mrf.mxu0
        %v742 = vadd.f32 0.0, %v741
        %743 = vmatmul.bf16.gmra.mxu0 %v581
        %v744 = vpop.f32.mrf.mxu0
        %v745 = vadd.f32 0.0, %v744
        %v746 = vpop.f32.mrf.mxu0
        %747 = vdwg.mxu0
        %v756 = vunpack.c.l.b16 %v516
        %v757 = vunpack.c.h.b16 %v516
        %v758 = vunpack.c.l.b16 %v517
        %v759 = vunpack.c.l.b16 %v518
        %v760 = vunpack.c.h.b16 %v518
        %v761 = vunpack.c.l.b16 %v519
        %v762 = vunpack.c.l.b16 %v520
        %v763 = vunpack.c.h.b16 %v520
        %v764 = vunpack.c.l.b16 %v521
        %v765 = vunpack.c.l.b16 %v522
        %v766 = vunpack.c.h.b16 %v522
        %v767 = vunpack.c.l.b16 %v523
        %v768 = vpack.c.b16 %v759, %v756
        %v769 = vpack.c.b16 %v760, %v757
        %v770 = vpack.c.b16 %v761, %v758
        %v771 = vpack.c.b16 %v765, %v762
        %v772 = vpack.c.b16 %v766, %v763
        %v773 = vpack.c.b16 %v767, %v764
        %v778 = vsel %vm576, %v514, 0
        %v781 = vsel %vm576, %v515, 0
        %v784 = vsel %vm583, %v771, 0
        %v787 = vsel %vm583, %v772, 0
        %v790 = vsel %vm583, %v773, 0
        %792 = vmatpush.bf16.msra.mxu0 0
        %793 = vmatpush.bf16.msra.mxu0 0
        %794 = vmatpush.bf16.msra.mxu0 0
        %795 = vmatpush.bf16.msra.mxu0 0
        %796 = vmatpush.bf16.msra.mxu0 0
        %797 = vmatpush.bf16.msra.mxu0 0
        %798 = vmatpush.bf16.msra.mxu0 %v784
        %799 = vmatpush.bf16.msra.mxu0 %v768
        %800 = vmatmul.bf16.gmra.mxu0 %v778
        %v801 = vpop.f32.mrf.mxu0
        %v802 = vadd.f32 %v603, %v801
        %v803 = vpop.f32.mrf.mxu0
        %v804 = vadd.f32 %v605, %v803
        %805 = vmatmul.bf16.gmra.mxu0 %v781
        %v806 = vpop.f32.mrf.mxu0
        %v807 = vadd.f32 %v608, %v806
        %v808 = vpop.f32.mrf.mxu0
        %809 = vdwg.mxu0
        %810 = vmatpush.bf16.msra.mxu0 0
        %811 = vmatpush.bf16.msra.mxu0 0
        %812 = vmatpush.bf16.msra.mxu0 0
        %813 = vmatpush.bf16.msra.mxu0 0
        %814 = vmatpush.bf16.msra.mxu0 0
        %815 = vmatpush.bf16.msra.mxu0 0
        %816 = vmatpush.bf16.msra.mxu0 %v787
        %817 = vmatpush.bf16.msra.mxu0 %v769
        %818 = vmatmul.bf16.gmra.mxu0 %v778
        %v819 = vpop.f32.mrf.mxu0
        %v820 = vadd.f32 %v621, %v819
        %v821 = vpop.f32.mrf.mxu0
        %v822 = vadd.f32 %v623, %v821
        %823 = vmatmul.bf16.gmra.mxu0 %v781
        %v824 = vpop.f32.mrf.mxu0
        %v825 = vadd.f32 %v626, %v824
        %v826 = vpop.f32.mrf.mxu0
        %827 = vdwg.mxu0
        %828 = vmatpush.bf16.msra.mxu0 0
        %829 = vmatpush.bf16.msra.mxu0 0
        %830 = vmatpush.bf16.msra.mxu0 0
        %831 = vmatpush.bf16.msra.mxu0 0
        %832 = vmatpush.bf16.msra.mxu0 0
        %833 = vmatpush.bf16.msra.mxu0 0
        %834 = vmatpush.bf16.msra.mxu0 %v790
        %835 = vmatpush.bf16.msra.mxu0 %v770
        %836 = vmatmul.bf16.gmra.mxu0 %v778
        %v837 = vpop.f32.mrf.mxu0
        %v838 = vadd.f32 %v639, %v837
        %v839 = vpop.f32.mrf.mxu0
        %v840 = vadd.f32 %v641, %v839
        %841 = vmatmul.bf16.gmra.mxu0 %v781
        %v842 = vpop.f32.mrf.mxu0
        %v843 = vadd.f32 %v644, %v842
        %v844 = vpop.f32.mrf.mxu0
        %845 = vdwg.mxu0
        %v854 = vunpack.c.l.b16 %v525
        %v855 = vunpack.c.h.b16 %v525
        %v856 = vunpack.c.l.b16 %v526
        %v857 = vunpack.c.l.b16 %v527
        %v858 = vunpack.c.h.b16 %v527
        %v859 = vunpack.c.l.b16 %v528
        %v860 = vunpack.c.l.b16 %v529
        %v861 = vunpack.c.h.b16 %v529
        %v862 = vunpack.c.l.b16 %v530
        %v863 = vunpack.c.l.b16 %v531
        %v864 = vunpack.c.h.b16 %v531
        %v865 = vunpack.c.l.b16 %v532
        %v866 = vpack.c.b16 %v857, %v854
        %v867 = vpack.c.b16 %v858, %v855
        %v868 = vpack.c.b16 %v859, %v856
        %v869 = vpack.c.b16 %v863, %v860
        %v870 = vpack.c.b16 %v864, %v861
        %v871 = vpack.c.b16 %v865, %v862
        %v876 = vsel %vm583, %v869, 0
        %v879 = vsel %vm583, %v870, 0
        %v882 = vsel %vm583, %v871, 0
        %884 = vmatpush.bf16.msra.mxu0 0
        %885 = vmatpush.bf16.msra.mxu0 0
        %886 = vmatpush.bf16.msra.mxu0 0
        %887 = vmatpush.bf16.msra.mxu0 0
        %888 = vmatpush.bf16.msra.mxu0 0
        %889 = vmatpush.bf16.msra.mxu0 0
        %890 = vmatpush.bf16.msra.mxu0 %v876
        %891 = vmatpush.bf16.msra.mxu0 %v866
        %892 = vmatmul.bf16.gmra.mxu0 %v778
        %v893 = vpop.f32.mrf.mxu0
        %v894 = vadd.f32 %v704, %v893
        %v895 = vpop.f32.mrf.mxu0
        %v896 = vadd.f32 %v706, %v895
        %897 = vmatmul.bf16.gmra.mxu0 %v781
        %v898 = vpop.f32.mrf.mxu0
        %v899 = vadd.f32 %v709, %v898
        %v900 = vpop.f32.mrf.mxu0
        %901 = vdwg.mxu0
        %902 = vmatpush.bf16.msra.mxu0 0
        %903 = vmatpush.bf16.msra.mxu0 0
        %904 = vmatpush.bf16.msra.mxu0 0
        %905 = vmatpush.bf16.msra.mxu0 0
        %906 = vmatpush.bf16.msra.mxu0 0
        %907 = vmatpush.bf16.msra.mxu0 0
        %908 = vmatpush.bf16.msra.mxu0 %v879
        %909 = vmatpush.bf16.msra.mxu0 %v867
        %910 = vmatmul.bf16.gmra.mxu0 %v778
        %v911 = vpop.f32.mrf.mxu0
        %v912 = vadd.f32 %v722, %v911
        %v913 = vpop.f32.mrf.mxu0
        %v914 = vadd.f32 %v724, %v913
        %915 = vmatmul.bf16.gmra.mxu0 %v781
        %v916 = vpop.f32.mrf.mxu0
        %v917 = vadd.f32 %v727, %v916
        %v918 = vpop.f32.mrf.mxu0
        %919 = vdwg.mxu0
        %920 = vmatpush.bf16.msra.mxu0 0
        %921 = vmatpush.bf16.msra.mxu0 0
        %922 = vmatpush.bf16.msra.mxu0 0
        %923 = vmatpush.bf16.msra.mxu0 0
        %924 = vmatpush.bf16.msra.mxu0 0
        %925 = vmatpush.bf16.msra.mxu0 0
        %926 = vmatpush.bf16.msra.mxu0 %v882
        %927 = vmatpush.bf16.msra.mxu0 %v868
        %928 = vmatmul.bf16.gmra.mxu0 %v778
        %v929 = vpop.f32.mrf.mxu0
        %v930 = vadd.f32 %v740, %v929
        %v931 = vpop.f32.mrf.mxu0
        %v932 = vadd.f32 %v742, %v931
        %933 = vmatmul.bf16.gmra.mxu0 %v781
        %v934 = vpop.f32.mrf.mxu0
        %v935 = vadd.f32 %v745, %v934
        %v936 = vpop.f32.mrf.mxu0
        %937 = vdwg.mxu0
        %v938 = vld [vmem:[%s505 + $0x2] sm:$0xff]
        %v939 = vld [vmem:[%s505 + $0xa] sm:$0xff]
        %v940 = vld [vmem:[%s505 + $0x12] sm:$0xff]
        %v941 = vpack.c.bf16 %v939, %v938
        %v942 = vpack.c.bf16 %v940, %v940
        %s943 = scalar_lea.vmem %s1, 96
        %v944 = vld [vmem:[%s943] sm:$0xff]
        %v945 = vld [vmem:[%s943 + $0x8] sm:$0xf]
        %v946 = vld [vmem:[%s943 + $0xc] sm:$0xff]
        %v947 = vld [vmem:[%s943 + $0x14] sm:$0xf]
        %v948 = vld [vmem:[%s943 + $0x18] sm:$0xff]
        %v949 = vld [vmem:[%s943 + $0x20] sm:$0xf]
        %v950 = vld [vmem:[%s943 + $0x24] sm:$0x33]
        %v951 = vld [vmem:[%s943 + $0x2c] sm:$0x3]
        %v960 = vunpack.c.l.b16 %v944
        %v961 = vunpack.c.h.b16 %v944
        %v962 = vunpack.c.l.b16 %v945
        %v963 = vunpack.c.l.b16 %v946
        %v964 = vunpack.c.h.b16 %v946
        %v965 = vunpack.c.l.b16 %v947
        %v966 = vunpack.c.l.b16 %v948
        %v967 = vunpack.c.h.b16 %v948
        %v968 = vunpack.c.l.b16 %v949
        %v969 = vunpack.c.l.b16 %v950
        %v970 = vunpack.c.h.b16 %v950
        %v971 = vunpack.c.l.b16 %v951
        %v972 = vpack.c.b16 %v963, %v960
        %v973 = vpack.c.b16 %v964, %v961
        %v974 = vpack.c.b16 %v965, %v962
        %v975 = vpack.c.b16 %v969, %v966
        %v976 = vpack.c.b16 %v970, %v967
        %v977 = vpack.c.b16 %v971, %v968
        %v982 = vsel %vm576, %v941, 0
        %v985 = vsel %vm576, %v942, 0
        %v988 = vsel %vm583, %v975, 0
        %v991 = vsel %vm583, %v976, 0
        %v994 = vsel %vm583, %v977, 0
        %996 = vmatpush.bf16.msra.mxu0 0
        %997 = vmatpush.bf16.msra.mxu0 0
        %998 = vmatpush.bf16.msra.mxu0 0
        %999 = vmatpush.bf16.msra.mxu0 0
        %1000 = vmatpush.bf16.msra.mxu0 0
        %1001 = vmatpush.bf16.msra.mxu0 0
        %1002 = vmatpush.bf16.msra.mxu0 %v988
        %1003 = vmatpush.bf16.msra.mxu0 %v972
        %1004 = vmatmul.bf16.gmra.mxu0 %v982
        %v1005 = vpop.f32.mrf.mxu0
        %v1006 = vadd.f32 0.0, %v1005
        %v1007 = vpop.f32.mrf.mxu0
        %v1008 = vadd.f32 0.0, %v1007
        %1009 = vmatmul.bf16.gmra.mxu0 %v985
        %v1010 = vpop.f32.mrf.mxu0
        %v1011 = vadd.f32 0.0, %v1010
        %v1012 = vpop.f32.mrf.mxu0
        %1013 = vdwg.mxu0
        %1014 = vmatpush.bf16.msra.mxu0 0
        %1015 = vmatpush.bf16.msra.mxu0 0
        %1016 = vmatpush.bf16.msra.mxu0 0
        %1017 = vmatpush.bf16.msra.mxu0 0
        %1018 = vmatpush.bf16.msra.mxu0 0
        %1019 = vmatpush.bf16.msra.mxu0 0
        %1020 = vmatpush.bf16.msra.mxu0 %v991
        %1021 = vmatpush.bf16.msra.mxu0 %v973
        %1022 = vmatmul.bf16.gmra.mxu0 %v982
        %v1023 = vpop.f32.mrf.mxu0
        %v1024 = vadd.f32 0.0, %v1023
        %v1025 = vpop.f32.mrf.mxu0
        %v1026 = vadd.f32 0.0, %v1025
        %1027 = vmatmul.bf16.gmra.mxu0 %v985
        %v1028 = vpop.f32.mrf.mxu0
        %v1029 = vadd.f32 0.0, %v1028
        %v1030 = vpop.f32.mrf.mxu0
        %1031 = vdwg.mxu0
        %1032 = vmatpush.bf16.msra.mxu0 0
        %1033 = vmatpush.bf16.msra.mxu0 0
        %1034 = vmatpush.bf16.msra.mxu0 0
        %1035 = vmatpush.bf16.msra.mxu0 0
        %1036 = vmatpush.bf16.msra.mxu0 0
        %1037 = vmatpush.bf16.msra.mxu0 0
        %1038 = vmatpush.bf16.msra.mxu0 %v994
        %1039 = vmatpush.bf16.msra.mxu0 %v974
        %1040 = vmatmul.bf16.gmra.mxu0 %v982
        %v1041 = vpop.f32.mrf.mxu0
        %v1042 = vadd.f32 0.0, %v1041
        %v1043 = vpop.f32.mrf.mxu0
        %v1044 = vadd.f32 0.0, %v1043
        %1045 = vmatmul.bf16.gmra.mxu0 %v985
        %v1046 = vpop.f32.mrf.mxu0
        %v1047 = vadd.f32 0.0, %v1046
        %v1048 = vpop.f32.mrf.mxu0
        %1049 = vdwg.mxu0
        %s1050 = scalar_lea.vmem %s1, 336
        %v1051 = vld [vmem:[%s1050] sm:$0xff]
        %v1052 = vld [vmem:[%s1050 + $0x8] sm:$0xf]
        %v1053 = vld [vmem:[%s1050 + $0xc] sm:$0xff]
        %v1054 = vld [vmem:[%s1050 + $0x14] sm:$0xf]
        %v1055 = vld [vmem:[%s1050 + $0x18] sm:$0xff]
        %v1056 = vld [vmem:[%s1050 + $0x20] sm:$0xf]
        %v1057 = vld [vmem:[%s1050 + $0x24] sm:$0x33]
        %v1058 = vld [vmem:[%s1050 + $0x2c] sm:$0x3]
        %v1067 = vunpack.c.l.b16 %v1051
        %v1068 = vunpack.c.h.b16 %v1051
        %v1069 = vunpack.c.l.b16 %v1052
        %v1070 = vunpack.c.l.b16 %v1053
        %v1071 = vunpack.c.h.b16 %v1053
        %v1072 = vunpack.c.l.b16 %v1054
        %v1073 = vunpack.c.l.b16 %v1055
        %v1074 = vunpack.c.h.b16 %v1055
        %v1075 = vunpack.c.l.b16 %v1056
        %v1076 = vunpack.c.l.b16 %v1057
        %v1077 = vunpack.c.h.b16 %v1057
        %v1078 = vunpack.c.l.b16 %v1058
        %v1079 = vpack.c.b16 %v1070, %v1067
        %v1080 = vpack.c.b16 %v1071, %v1068
        %v1081 = vpack.c.b16 %v1072, %v1069
        %v1082 = vpack.c.b16 %v1076, %v1073
        %v1083 = vpack.c.b16 %v1077, %v1074
        %v1084 = vpack.c.b16 %v1078, %v1075
        %v1089 = vsel %vm583, %v1082, 0
        %v1092 = vsel %vm583, %v1083, 0
        %v1095 = vsel %vm583, %v1084, 0
        %1097 = vmatpush.bf16.msra.mxu0 0
        %1098 = vmatpush.bf16.msra.mxu0 0
        %1099 = vmatpush.bf16.msra.mxu0 0
        %1100 = vmatpush.bf16.msra.mxu0 0
        %1101 = vmatpush.bf16.msra.mxu0 0
        %1102 = vmatpush.bf16.msra.mxu0 0
        %1103 = vmatpush.bf16.msra.mxu0 %v1089
        %1104 = vmatpush.bf16.msra.mxu0 %v1079
        %1105 = vmatmul.bf16.gmra.mxu0 %v982
        %v1106 = vpop.f32.mrf.mxu0
        %v1107 = vadd.f32 0.0, %v1106
        %v1108 = vpop.f32.mrf.mxu0
        %v1109 = vadd.f32 0.0, %v1108
        %1110 = vmatmul.bf16.gmra.mxu0 %v985
        %v1111 = vpop.f32.mrf.mxu0
        %v1112 = vadd.f32 0.0, %v1111
        %v1113 = vpop.f32.mrf.mxu0
        %1114 = vdwg.mxu0
        %1115 = vmatpush.bf16.msra.mxu0 0
        %1116 = vmatpush.bf16.msra.mxu0 0
        %1117 = vmatpush.bf16.msra.mxu0 0
        %1118 = vmatpush.bf16.msra.mxu0 0
        %1119 = vmatpush.bf16.msra.mxu0 0
        %1120 = vmatpush.bf16.msra.mxu0 0
        %1121 = vmatpush.bf16.msra.mxu0 %v1092
        %1122 = vmatpush.bf16.msra.mxu0 %v1080
        %1123 = vmatmul.bf16.gmra.mxu0 %v982
        %v1124 = vpop.f32.mrf.mxu0
        %v1125 = vadd.f32 0.0, %v1124
        %v1126 = vpop.f32.mrf.mxu0
        %v1127 = vadd.f32 0.0, %v1126
        %1128 = vmatmul.bf16.gmra.mxu0 %v985
        %v1129 = vpop.f32.mrf.mxu0
        %v1130 = vadd.f32 0.0, %v1129
        %v1131 = vpop.f32.mrf.mxu0
        %1132 = vdwg.mxu0
        %1133 = vmatpush.bf16.msra.mxu0 0
        %1134 = vmatpush.bf16.msra.mxu0 0
        %1135 = vmatpush.bf16.msra.mxu0 0
        %1136 = vmatpush.bf16.msra.mxu0 0
        %1137 = vmatpush.bf16.msra.mxu0 0
        %1138 = vmatpush.bf16.msra.mxu0 0
        %1139 = vmatpush.bf16.msra.mxu0 %v1095
        %1140 = vmatpush.bf16.msra.mxu0 %v1081
        %1141 = vmatmul.bf16.gmra.mxu0 %v982
        %v1142 = vpop.f32.mrf.mxu0
        %v1143 = vadd.f32 0.0, %v1142
        %v1144 = vpop.f32.mrf.mxu0
        %v1145 = vadd.f32 0.0, %v1144
        %1146 = vmatmul.bf16.gmra.mxu0 %v985
        %v1147 = vpop.f32.mrf.mxu0
        %v1148 = vadd.f32 0.0, %v1147
        %v1149 = vpop.f32.mrf.mxu0
        %1150 = vdwg.mxu0
        %v1151 = vadd.f32 %v802, %v1006
        %v1152 = vadd.f32 %v820, %v1024
        %v1153 = vadd.f32 %v838, %v1042
        %v1154 = vadd.f32 %v804, %v1008
        %v1155 = vadd.f32 %v822, %v1026
        %v1156 = vadd.f32 %v840, %v1044
        %v1157 = vadd.f32 %v807, %v1011
        %v1158 = vadd.f32 %v825, %v1029
        %v1159 = vadd.f32 %v843, %v1047
        %v1160 = vadd.f32 %v894, %v1107
        %v1161 = vadd.f32 %v912, %v1125
        %v1162 = vadd.f32 %v930, %v1143
        %v1163 = vadd.f32 %v896, %v1109
        %v1164 = vadd.f32 %v914, %v1127
        %v1165 = vadd.f32 %v932, %v1145
        %v1166 = vadd.f32 %v899, %v1112
        %v1167 = vadd.f32 %v917, %v1130
        %v1168 = vadd.f32 %v935, %v1148
        %v1169 = vld [vmem:[%s505 + $0x3] sm:$0xff]
        %v1170 = vld [vmem:[%s505 + $0xb] sm:$0xff]
        %v1171 = vld [vmem:[%s505 + $0x13] sm:$0xff]
        %v1172 = vpack.c.bf16 %v1170, %v1169
        %v1173 = vpack.c.bf16 %v1171, %v1171
        %s1174 = scalar_lea.vmem %s1, 144
        %v1175 = vld [vmem:[%s1174] sm:$0xff]
        %v1176 = vld [vmem:[%s1174 + $0x8] sm:$0xf]
        %v1177 = vld [vmem:[%s1174 + $0xc] sm:$0xff]
        %v1178 = vld [vmem:[%s1174 + $0x14] sm:$0xf]
        %v1179 = vld [vmem:[%s1174 + $0x18] sm:$0xff]
        %v1180 = vld [vmem:[%s1174 + $0x20] sm:$0xf]
        %v1181 = vld [vmem:[%s1174 + $0x24] sm:$0x33]
        %v1182 = vld [vmem:[%s1174 + $0x2c] sm:$0x3]
        %v1191 = vunpack.c.l.b16 %v1175
        %v1192 = vunpack.c.h.b16 %v1175
        %v1193 = vunpack.c.l.b16 %v1176
        %v1194 = vunpack.c.l.b16 %v1177
        %v1195 = vunpack.c.h.b16 %v1177
        %v1196 = vunpack.c.l.b16 %v1178
        %v1197 = vunpack.c.l.b16 %v1179
        %v1198 = vunpack.c.h.b16 %v1179
        %v1199 = vunpack.c.l.b16 %v1180
        %v1200 = vunpack.c.l.b16 %v1181
        %v1201 = vunpack.c.h.b16 %v1181
        %v1202 = vunpack.c.l.b16 %v1182
        %v1203 = vpack.c.b16 %v1194, %v1191
        %v1204 = vpack.c.b16 %v1195, %v1192
        %v1205 = vpack.c.b16 %v1196, %v1193
        %v1206 = vpack.c.b16 %v1200, %v1197
        %v1207 = vpack.c.b16 %v1201, %v1198
        %v1208 = vpack.c.b16 %v1202, %v1199
        %v1213 = vsel %vm576, %v1172, 0
        %v1216 = vsel %vm576, %v1173, 0
        %v1219 = vsel %vm583, %v1206, 0
        %v1222 = vsel %vm583, %v1207, 0
        %v1225 = vsel %vm583, %v1208, 0
        %1227 = vmatpush.bf16.msra.mxu0 0
        %1228 = vmatpush.bf16.msra.mxu0 0
        %1229 = vmatpush.bf16.msra.mxu0 0
        %1230 = vmatpush.bf16.msra.mxu0 0
        %1231 = vmatpush.bf16.msra.mxu0 0
        %1232 = vmatpush.bf16.msra.mxu0 0
        %1233 = vmatpush.bf16.msra.mxu0 %v1219
        %1234 = vmatpush.bf16.msra.mxu0 %v1203
        %1235 = vmatmul.bf16.gmra.mxu0 %v1213
        %v1236 = vpop.f32.mrf.mxu0
        %v1237 = vadd.f32 0.0, %v1236
        %v1238 = vpop.f32.mrf.mxu0
        %v1239 = vadd.f32 0.0, %v1238
        %1240 = vmatmul.bf16.gmra.mxu0 %v1216
        %v1241 = vpop.f32.mrf.mxu0
        %v1242 = vadd.f32 0.0, %v1241
        %v1243 = vpop.f32.mrf.mxu0
        %1244 = vdwg.mxu0
        %1245 = vmatpush.bf16.msra.mxu0 0
        %1246 = vmatpush.bf16.msra.mxu0 0
        %1247 = vmatpush.bf16.msra.mxu0 0
        %1248 = vmatpush.bf16.msra.mxu0 0
        %1249 = vmatpush.bf16.msra.mxu0 0
        %1250 = vmatpush.bf16.msra.mxu0 0
        %1251 = vmatpush.bf16.msra.mxu0 %v1222
        %1252 = vmatpush.bf16.msra.mxu0 %v1204
        %1253 = vmatmul.bf16.gmra.mxu0 %v1213
        %v1254 = vpop.f32.mrf.mxu0
        %v1255 = vadd.f32 0.0, %v1254
        %v1256 = vpop.f32.mrf.mxu0
        %v1257 = vadd.f32 0.0, %v1256
        %1258 = vmatmul.bf16.gmra.mxu0 %v1216
        %v1259 = vpop.f32.mrf.mxu0
        %v1260 = vadd.f32 0.0, %v1259
        %v1261 = vpop.f32.mrf.mxu0
        %1262 = vdwg.mxu0
        %1263 = vmatpush.bf16.msra.mxu0 0
        %1264 = vmatpush.bf16.msra.mxu0 0
        %1265 = vmatpush.bf16.msra.mxu0 0
        %1266 = vmatpush.bf16.msra.mxu0 0
        %1267 = vmatpush.bf16.msra.mxu0 0
        %1268 = vmatpush.bf16.msra.mxu0 0
        %1269 = vmatpush.bf16.msra.mxu0 %v1225
        %1270 = vmatpush.bf16.msra.mxu0 %v1205
        %1271 = vmatmul.bf16.gmra.mxu0 %v1213
        %v1272 = vpop.f32.mrf.mxu0
        %v1273 = vadd.f32 0.0, %v1272
        %v1274 = vpop.f32.mrf.mxu0
        %v1275 = vadd.f32 0.0, %v1274
        %1276 = vmatmul.bf16.gmra.mxu0 %v1216
        %v1277 = vpop.f32.mrf.mxu0
        %v1278 = vadd.f32 0.0, %v1277
        %v1279 = vpop.f32.mrf.mxu0
        %1280 = vdwg.mxu0
        %s1281 = scalar_lea.vmem %s1, 384
        %v1282 = vld [vmem:[%s1281] sm:$0xff]
        %v1283 = vld [vmem:[%s1281 + $0x8] sm:$0xf]
        %v1284 = vld [vmem:[%s1281 + $0xc] sm:$0xff]
        %v1285 = vld [vmem:[%s1281 + $0x14] sm:$0xf]
        %v1286 = vld [vmem:[%s1281 + $0x18] sm:$0xff]
        %v1287 = vld [vmem:[%s1281 + $0x20] sm:$0xf]
        %v1288 = vld [vmem:[%s1281 + $0x24] sm:$0x33]
        %v1289 = vld [vmem:[%s1281 + $0x2c] sm:$0x3]
        %v1298 = vunpack.c.l.b16 %v1282
        %v1299 = vunpack.c.h.b16 %v1282
        %v1300 = vunpack.c.l.b16 %v1283
        %v1301 = vunpack.c.l.b16 %v1284
        %v1302 = vunpack.c.h.b16 %v1284
        %v1303 = vunpack.c.l.b16 %v1285
        %v1304 = vunpack.c.l.b16 %v1286
        %v1305 = vunpack.c.h.b16 %v1286
        %v1306 = vunpack.c.l.b16 %v1287
        %v1307 = vunpack.c.l.b16 %v1288
        %v1308 = vunpack.c.h.b16 %v1288
        %v1309 = vunpack.c.l.b16 %v1289
        %v1310 = vpack.c.b16 %v1301, %v1298
        %v1311 = vpack.c.b16 %v1302, %v1299
        %v1312 = vpack.c.b16 %v1303, %v1300
        %v1313 = vpack.c.b16 %v1307, %v1304
        %v1314 = vpack.c.b16 %v1308, %v1305
        %v1315 = vpack.c.b16 %v1309, %v1306
        %v1320 = vsel %vm583, %v1313, 0
        %v1323 = vsel %vm583, %v1314, 0
        %v1326 = vsel %vm583, %v1315, 0
        %1328 = vmatpush.bf16.msra.mxu0 0
        %1329 = vmatpush.bf16.msra.mxu0 0
        %1330 = vmatpush.bf16.msra.mxu0 0
        %1331 = vmatpush.bf16.msra.mxu0 0
        %1332 = vmatpush.bf16.msra.mxu0 0
        %1333 = vmatpush.bf16.msra.mxu0 0
        %1334 = vmatpush.bf16.msra.mxu0 %v1320
        %1335 = vmatpush.bf16.msra.mxu0 %v1310
        %1336 = vmatmul.bf16.gmra.mxu0 %v1213
        %v1337 = vpop.f32.mrf.mxu0
        %v1338 = vadd.f32 0.0, %v1337
        %v1339 = vpop.f32.mrf.mxu0
        %v1340 = vadd.f32 0.0, %v1339
        %1341 = vmatmul.bf16.gmra.mxu0 %v1216
        %v1342 = vpop.f32.mrf.mxu0
        %v1343 = vadd.f32 0.0, %v1342
        %v1344 = vpop.f32.mrf.mxu0
        %1345 = vdwg.mxu0
        %1346 = vmatpush.bf16.msra.mxu0 0
        %1347 = vmatpush.bf16.msra.mxu0 0
        %1348 = vmatpush.bf16.msra.mxu0 0
        %1349 = vmatpush.bf16.msra.mxu0 0
        %1350 = vmatpush.bf16.msra.mxu0 0
        %1351 = vmatpush.bf16.msra.mxu0 0
        %1352 = vmatpush.bf16.msra.mxu0 %v1323
        %1353 = vmatpush.bf16.msra.mxu0 %v1311
        %1354 = vmatmul.bf16.gmra.mxu0 %v1213
        %v1355 = vpop.f32.mrf.mxu0
        %v1356 = vadd.f32 0.0, %v1355
        %v1357 = vpop.f32.mrf.mxu0
        %v1358 = vadd.f32 0.0, %v1357
        %1359 = vmatmul.bf16.gmra.mxu0 %v1216
        %v1360 = vpop.f32.mrf.mxu0
        %v1361 = vadd.f32 0.0, %v1360
        %v1362 = vpop.f32.mrf.mxu0
        %1363 = vdwg.mxu0
        %1364 = vmatpush.bf16.msra.mxu0 0
        %1365 = vmatpush.bf16.msra.mxu0 0
        %1366 = vmatpush.bf16.msra.mxu0 0
        %1367 = vmatpush.bf16.msra.mxu0 0
        %1368 = vmatpush.bf16.msra.mxu0 0
        %1369 = vmatpush.bf16.msra.mxu0 0
        %1370 = vmatpush.bf16.msra.mxu0 %v1326
        %1371 = vmatpush.bf16.msra.mxu0 %v1312
        %1372 = vmatmul.bf16.gmra.mxu0 %v1213
        %v1373 = vpop.f32.mrf.mxu0
        %v1374 = vadd.f32 0.0, %v1373
        %v1375 = vpop.f32.mrf.mxu0
        %v1376 = vadd.f32 0.0, %v1375
        %1377 = vmatmul.bf16.gmra.mxu0 %v1216
        %v1378 = vpop.f32.mrf.mxu0
        %v1379 = vadd.f32 0.0, %v1378
        %v1380 = vpop.f32.mrf.mxu0
        %1381 = vdwg.mxu0
        %v1382 = vadd.f32 %v1151, %v1237
        %v1383 = vadd.f32 %v1152, %v1255
        %v1384 = vadd.f32 %v1153, %v1273
        %v1385 = vadd.f32 %v1154, %v1239
        %v1386 = vadd.f32 %v1155, %v1257
        %v1387 = vadd.f32 %v1156, %v1275
        %v1388 = vadd.f32 %v1157, %v1242
        %v1389 = vadd.f32 %v1158, %v1260
        %v1390 = vadd.f32 %v1159, %v1278
        %v1391 = vadd.f32 %v1160, %v1338
        %v1392 = vadd.f32 %v1161, %v1356
        %v1393 = vadd.f32 %v1162, %v1374
        %v1394 = vadd.f32 %v1163, %v1340
        %v1395 = vadd.f32 %v1164, %v1358
        %v1396 = vadd.f32 %v1165, %v1376
        %v1397 = vadd.f32 %v1166, %v1343
        %v1398 = vadd.f32 %v1167, %v1361
        %v1399 = vadd.f32 %v1168, %v1379
        %v1400 = vld [vmem:[%s505 + $0x4] sm:$0xff]
        %v1401 = vld [vmem:[%s505 + $0xc] sm:$0xff]
        %v1402 = vld [vmem:[%s505 + $0x14] sm:$0xff]
        %v1403 = vpack.c.bf16 %v1401, %v1400
        %v1404 = vpack.c.bf16 %v1402, %v1402
        %s1405 = scalar_lea.vmem %s1, 192
        %v1406 = vld [vmem:[%s1405] sm:$0xff]
        %v1407 = vld [vmem:[%s1405 + $0x8] sm:$0xf]
        %v1408 = vld [vmem:[%s1405 + $0xc] sm:$0xff]
        %v1409 = vld [vmem:[%s1405 + $0x14] sm:$0xf]
        %v1410 = vld [vmem:[%s1405 + $0x18] sm:$0xff]
        %v1411 = vld [vmem:[%s1405 + $0x20] sm:$0xf]
        %v1412 = vld [vmem:[%s1405 + $0x24] sm:$0x33]
        %v1413 = vld [vmem:[%s1405 + $0x2c] sm:$0x3]
        %v1422 = vunpack.c.l.b16 %v1406
        %v1423 = vunpack.c.h.b16 %v1406
        %v1424 = vunpack.c.l.b16 %v1407
        %v1425 = vunpack.c.l.b16 %v1408
        %v1426 = vunpack.c.h.b16 %v1408
        %v1427 = vunpack.c.l.b16 %v1409
        %v1428 = vunpack.c.l.b16 %v1410
        %v1429 = vunpack.c.h.b16 %v1410
        %v1430 = vunpack.c.l.b16 %v1411
        %v1431 = vunpack.c.l.b16 %v1412
        %v1432 = vunpack.c.h.b16 %v1412
        %v1433 = vunpack.c.l.b16 %v1413
        %v1434 = vpack.c.b16 %v1425, %v1422
        %v1435 = vpack.c.b16 %v1426, %v1423
        %v1436 = vpack.c.b16 %v1427, %v1424
        %v1437 = vpack.c.b16 %v1431, %v1428
        %v1438 = vpack.c.b16 %v1432, %v1429
        %v1439 = vpack.c.b16 %v1433, %v1430
        %v1444 = vsel %vm576, %v1403, 0
        %v1447 = vsel %vm576, %v1404, 0
        %v1450 = vsel %vm583, %v1437, 0
        %v1453 = vsel %vm583, %v1438, 0
        %v1456 = vsel %vm583, %v1439, 0
        %1458 = vmatpush.bf16.msra.mxu0 0
        %1459 = vmatpush.bf16.msra.mxu0 0
        %1460 = vmatpush.bf16.msra.mxu0 0
        %1461 = vmatpush.bf16.msra.mxu0 0
        %1462 = vmatpush.bf16.msra.mxu0 0
        %1463 = vmatpush.bf16.msra.mxu0 0
        %1464 = vmatpush.bf16.msra.mxu0 %v1450
        %1465 = vmatpush.bf16.msra.mxu0 %v1434
        %1466 = vmatmul.bf16.gmra.mxu0 %v1444
        %v1467 = vpop.f32.mrf.mxu0
        %v1468 = vadd.f32 0.0, %v1467
        %v1469 = vpop.f32.mrf.mxu0
        %v1470 = vadd.f32 0.0, %v1469
        %1471 = vmatmul.bf16.gmra.mxu0 %v1447
        %v1472 = vpop.f32.mrf.mxu0
        %v1473 = vadd.f32 0.0, %v1472
        %v1474 = vpop.f32.mrf.mxu0
        %1475 = vdwg.mxu0
        %1476 = vmatpush.bf16.msra.mxu0 0
        %1477 = vmatpush.bf16.msra.mxu0 0
        %1478 = vmatpush.bf16.msra.mxu0 0
        %1479 = vmatpush.bf16.msra.mxu0 0
        %1480 = vmatpush.bf16.msra.mxu0 0
        %1481 = vmatpush.bf16.msra.mxu0 0
        %1482 = vmatpush.bf16.msra.mxu0 %v1453
        %1483 = vmatpush.bf16.msra.mxu0 %v1435
        %1484 = vmatmul.bf16.gmra.mxu0 %v1444
        %v1485 = vpop.f32.mrf.mxu0
        %v1486 = vadd.f32 0.0, %v1485
        %v1487 = vpop.f32.mrf.mxu0
        %v1488 = vadd.f32 0.0, %v1487
        %1489 = vmatmul.bf16.gmra.mxu0 %v1447
        %v1490 = vpop.f32.mrf.mxu0
        %v1491 = vadd.f32 0.0, %v1490
        %v1492 = vpop.f32.mrf.mxu0
        %1493 = vdwg.mxu0
        %1494 = vmatpush.bf16.msra.mxu0 0
        %1495 = vmatpush.bf16.msra.mxu0 0
        %1496 = vmatpush.bf16.msra.mxu0 0
        %1497 = vmatpush.bf16.msra.mxu0 0
        %1498 = vmatpush.bf16.msra.mxu0 0
        %1499 = vmatpush.bf16.msra.mxu0 0
        %1500 = vmatpush.bf16.msra.mxu0 %v1456
        %1501 = vmatpush.bf16.msra.mxu0 %v1436
        %1502 = vmatmul.bf16.gmra.mxu0 %v1444
        %v1503 = vpop.f32.mrf.mxu0
        %v1504 = vadd.f32 0.0, %v1503
        %v1505 = vpop.f32.mrf.mxu0
        %v1506 = vadd.f32 0.0, %v1505
        %1507 = vmatmul.bf16.gmra.mxu0 %v1447
        %v1508 = vpop.f32.mrf.mxu0
        %v1509 = vadd.f32 0.0, %v1508
        %v1510 = vpop.f32.mrf.mxu0
        %1511 = vdwg.mxu0
        %s1512 = scalar_lea.vmem %s1, 432
        %v1513 = vld [vmem:[%s1512] sm:$0xff]
        %v1514 = vld [vmem:[%s1512 + $0x8] sm:$0xf]
        %v1515 = vld [vmem:[%s1512 + $0xc] sm:$0xff]
        %v1516 = vld [vmem:[%s1512 + $0x14] sm:$0xf]
        %v1517 = vld [vmem:[%s1512 + $0x18] sm:$0xff]
        %v1518 = vld [vmem:[%s1512 + $0x20] sm:$0xf]
        %v1519 = vld [vmem:[%s1512 + $0x24] sm:$0x33]
        %v1520 = vld [vmem:[%s1512 + $0x2c] sm:$0x3]
        %v1529 = vunpack.c.l.b16 %v1513
        %v1530 = vunpack.c.h.b16 %v1513
        %v1531 = vunpack.c.l.b16 %v1514
        %v1532 = vunpack.c.l.b16 %v1515
        %v1533 = vunpack.c.h.b16 %v1515
        %v1534 = vunpack.c.l.b16 %v1516
        %v1535 = vunpack.c.l.b16 %v1517
        %v1536 = vunpack.c.h.b16 %v1517
        %v1537 = vunpack.c.l.b16 %v1518
        %v1538 = vunpack.c.l.b16 %v1519
        %v1539 = vunpack.c.h.b16 %v1519
        %v1540 = vunpack.c.l.b16 %v1520
        %v1541 = vpack.c.b16 %v1532, %v1529
        %v1542 = vpack.c.b16 %v1533, %v1530
        %v1543 = vpack.c.b16 %v1534, %v1531
        %v1544 = vpack.c.b16 %v1538, %v1535
        %v1545 = vpack.c.b16 %v1539, %v1536
        %v1546 = vpack.c.b16 %v1540, %v1537
        %v1551 = vsel %vm583, %v1544, 0
        %v1554 = vsel %vm583, %v1545, 0
        %v1557 = vsel %vm583, %v1546, 0
        %1559 = vmatpush.bf16.msra.mxu0 0
        %1560 = vmatpush.bf16.msra.mxu0 0
        %1561 = vmatpush.bf16.msra.mxu0 0
        %1562 = vmatpush.bf16.msra.mxu0 0
        %1563 = vmatpush.bf16.msra.mxu0 0
        %1564 = vmatpush.bf16.msra.mxu0 0
        %1565 = vmatpush.bf16.msra.mxu0 %v1551
        %1566 = vmatpush.bf16.msra.mxu0 %v1541
        %1567 = vmatmul.bf16.gmra.mxu0 %v1444
        %v1568 = vpop.f32.mrf.mxu0
        %v1569 = vadd.f32 0.0, %v1568
        %v1570 = vpop.f32.mrf.mxu0
        %v1571 = vadd.f32 0.0, %v1570
        %1572 = vmatmul.bf16.gmra.mxu0 %v1447
        %v1573 = vpop.f32.mrf.mxu0
        %v1574 = vadd.f32 0.0, %v1573
        %v1575 = vpop.f32.mrf.mxu0
        %1576 = vdwg.mxu0
        %1577 = vmatpush.bf16.msra.mxu0 0
        %1578 = vmatpush.bf16.msra.mxu0 0
        %1579 = vmatpush.bf16.msra.mxu0 0
        %1580 = vmatpush.bf16.msra.mxu0 0
        %1581 = vmatpush.bf16.msra.mxu0 0
        %1582 = vmatpush.bf16.msra.mxu0 0
        %1583 = vmatpush.bf16.msra.mxu0 %v1554
        %1584 = vmatpush.bf16.msra.mxu0 %v1542
        %1585 = vmatmul.bf16.gmra.mxu0 %v1444
        %v1586 = vpop.f32.mrf.mxu0
        %v1587 = vadd.f32 0.0, %v1586
        %v1588 = vpop.f32.mrf.mxu0
        %v1589 = vadd.f32 0.0, %v1588
        %1590 = vmatmul.bf16.gmra.mxu0 %v1447
        %v1591 = vpop.f32.mrf.mxu0
        %v1592 = vadd.f32 0.0, %v1591
        %v1593 = vpop.f32.mrf.mxu0
        %1594 = vdwg.mxu0
        %1595 = vmatpush.bf16.msra.mxu0 0
        %1596 = vmatpush.bf16.msra.mxu0 0
        %1597 = vmatpush.bf16.msra.mxu0 0
        %1598 = vmatpush.bf16.msra.mxu0 0
        %1599 = vmatpush.bf16.msra.mxu0 0
        %1600 = vmatpush.bf16.msra.mxu0 0
        %1601 = vmatpush.bf16.msra.mxu0 %v1557
        %1602 = vmatpush.bf16.msra.mxu0 %v1543
        %1603 = vmatmul.bf16.gmra.mxu0 %v1444
        %v1604 = vpop.f32.mrf.mxu0
        %v1605 = vadd.f32 0.0, %v1604
        %v1606 = vpop.f32.mrf.mxu0
        %v1607 = vadd.f32 0.0, %v1606
        %1608 = vmatmul.bf16.gmra.mxu0 %v1447
        %v1609 = vpop.f32.mrf.mxu0
        %v1610 = vadd.f32 0.0, %v1609
        %v1611 = vpop.f32.mrf.mxu0
        %1612 = vdwg.mxu0
        %v1613 = vadd.f32 %v1382, %v1468
        %v1614 = vadd.f32 %v1383, %v1486
        %v1615 = vadd.f32 %v1384, %v1504
        %v1616 = vadd.f32 %v1385, %v1470
        %v1617 = vadd.f32 %v1386, %v1488
        %v1618 = vadd.f32 %v1387, %v1506
        %v1619 = vadd.f32 %v1388, %v1473
        %v1620 = vadd.f32 %v1389, %v1491
        %v1621 = vadd.f32 %v1390, %v1509
        %v1622 = vadd.f32 %v1391, %v1569
        %v1623 = vadd.f32 %v1392, %v1587
        %v1624 = vadd.f32 %v1393, %v1605
        %v1625 = vadd.f32 %v1394, %v1571
        %v1626 = vadd.f32 %v1395, %v1589
        %v1627 = vadd.f32 %v1396, %v1607
        %v1628 = vadd.f32 %v1397, %v1574
        %v1629 = vadd.f32 %v1398, %v1592
        %v1630 = vadd.f32 %v1399, %v1610
        %v1631 = vmax.f32 %v1613, %v1622
        %v1632 = vmax.f32 %v1614, %v1623
        %v1633 = vmax.f32 %v1615, %v1624
        %v1634 = vmax.f32 %v1616, %v1625
        %v1635 = vmax.f32 %v1617, %v1626
        %v1636 = vmax.f32 %v1618, %v1627
        %v1637 = vmax.f32 %v1619, %v1628
        %v1638 = vmax.f32 %v1620, %v1629
        %v1639 = vmax.f32 %v1621, %v1630
        %v1640 = vld [vmem:[%s2] sm:$0xff]
        %v1641 = vld [vmem:[%s2 + $0x8] sm:$0xf]
        %vm1642 = vcmask 195584
        %v1644 = vsel %vm1642, %v1640, 0
        %v1647 = vsel %vm1642, %v1641, 0
        %1649 = vmatpush.msra.mxu0 0.0
        %1650 = vmatpush.msra.mxu0 0.0
        %1651 = vmatpush.msra.mxu0 0.0
        %1652 = vmatpush.msra.mxu0 0.0
        %1653 = vmatpush.msra.mxu0 0.0
        %1654 = vmatpush.msra.mxu0 0.0
        %1655 = vmatpush.msra.mxu0 0.0
        %1656 = vmatpush.msra.mxu0 0.0
        %1657 = vmatpush.msra.mxu0 0.0
        %1658 = vmatpush.msra.mxu0 0.0
        %1659 = vmatpush.msra.mxu0 0.0
        %1660 = vmatpush.msra.mxu0 0.0
        %1661 = vmatpush.msra.mxu0 0.0
        %1662 = vmatpush.msra.mxu0 %v1637
        %1663 = vmatpush.msra.mxu0 %v1634
        %1664 = vmatpush.msra.mxu0 %v1631
        %1665 = vmatmul.f32.gmra.mxu0 %v1644
        %v1666 = vpop.f32.mrf.mxu0
        %v1667 = vadd.f32 0.0, %v1666
        %1668 = vmatmul.f32.gmra.mxu0 %v1647
        %v1669 = vpop.f32.mrf.mxu0
        %v1670 = vadd.f32 0.0, %v1669
        %1671 = vdwg.mxu0
        %1672 = vmatpush.msra.mxu0 0.0
        %1673 = vmatpush.msra.mxu0 0.0
        %1674 = vmatpush.msra.mxu0 0.0
        %1675 = vmatpush.msra.mxu0 0.0
        %1676 = vmatpush.msra.mxu0 0.0
        %1677 = vmatpush.msra.mxu0 0.0
        %1678 = vmatpush.msra.mxu0 0.0
        %1679 = vmatpush.msra.mxu0 0.0
        %1680 = vmatpush.msra.mxu0 0.0
        %1681 = vmatpush.msra.mxu0 0.0
        %1682 = vmatpush.msra.mxu0 0.0
        %1683 = vmatpush.msra.mxu0 0.0
        %1684 = vmatpush.msra.mxu0 0.0
        %1685 = vmatpush.msra.mxu0 %v1638
        %1686 = vmatpush.msra.mxu0 %v1635
        %1687 = vmatpush.msra.mxu0 %v1632
        %1688 = vmatmul.f32.gmra.mxu0 %v1644
        %v1689 = vpop.f32.mrf.mxu0
        %v1690 = vadd.f32 0.0, %v1689
        %1691 = vmatmul.f32.gmra.mxu0 %v1647
        %v1692 = vpop.f32.mrf.mxu0
        %v1693 = vadd.f32 0.0, %v1692
        %1694 = vdwg.mxu0
        %1695 = vmatpush.msra.mxu0 0.0
        %1696 = vmatpush.msra.mxu0 0.0
        %1697 = vmatpush.msra.mxu0 0.0
        %1698 = vmatpush.msra.mxu0 0.0
        %1699 = vmatpush.msra.mxu0 0.0
        %1700 = vmatpush.msra.mxu0 0.0
        %1701 = vmatpush.msra.mxu0 0.0
        %1702 = vmatpush.msra.mxu0 0.0
        %1703 = vmatpush.msra.mxu0 0.0
        %1704 = vmatpush.msra.mxu0 0.0
        %1705 = vmatpush.msra.mxu0 0.0
        %1706 = vmatpush.msra.mxu0 0.0
        %1707 = vmatpush.msra.mxu0 0.0
        %1708 = vmatpush.msra.mxu0 %v1639
        %1709 = vmatpush.msra.mxu0 %v1636
        %1710 = vmatpush.msra.mxu0 %v1633
        %1711 = vmatmul.f32.gmra.mxu0 %v1644
        %v1712 = vpop.f32.mrf.mxu0
        %v1713 = vadd.f32 0.0, %v1712
        %1714 = vmatmul.f32.gmra.mxu0 %v1647
        %v1715 = vpop.f32.mrf.mxu0
        %v1716 = vadd.f32 0.0, %v1715
        %1717 = vdwg.mxu0
        %s1718 = scalar_lea.vmem %s2, 16
        %v1719 = vld [vmem:[%s1718] sm:$0xff]
        %v1720 = vld [vmem:[%s1718 + $0x8] sm:$0xf]
        %v1722 = vsel %vm1642, %v1719, 0
        %v1725 = vsel %vm1642, %v1720, 0
        %1727 = vmatpush.msra.mxu0 0.0
        %1728 = vmatpush.msra.mxu0 0.0
        %1729 = vmatpush.msra.mxu0 0.0
        %1730 = vmatpush.msra.mxu0 0.0
        %1731 = vmatpush.msra.mxu0 0.0
        %1732 = vmatpush.msra.mxu0 0.0
        %1733 = vmatpush.msra.mxu0 0.0
        %1734 = vmatpush.msra.mxu0 0.0
        %1735 = vmatpush.msra.mxu0 0.0
        %1736 = vmatpush.msra.mxu0 0.0
        %1737 = vmatpush.msra.mxu0 0.0
        %1738 = vmatpush.msra.mxu0 0.0
        %1739 = vmatpush.msra.mxu0 0.0
        %1740 = vmatpush.msra.mxu0 %v1637
        %1741 = vmatpush.msra.mxu0 %v1634
        %1742 = vmatpush.msra.mxu0 %v1631
        %1743 = vmatmul.f32.gmra.mxu0 %v1722
        %v1744 = vpop.f32.mrf.mxu0
        %v1745 = vadd.f32 0.0, %v1744
        %1746 = vmatmul.f32.gmra.mxu0 %v1725
        %v1747 = vpop.f32.mrf.mxu0
        %v1748 = vadd.f32 0.0, %v1747
        %1749 = vdwg.mxu0
        %1750 = vmatpush.msra.mxu0 0.0
        %1751 = vmatpush.msra.mxu0 0.0
        %1752 = vmatpush.msra.mxu0 0.0
        %1753 = vmatpush.msra.mxu0 0.0
        %1754 = vmatpush.msra.mxu0 0.0
        %1755 = vmatpush.msra.mxu0 0.0
        %1756 = vmatpush.msra.mxu0 0.0
        %1757 = vmatpush.msra.mxu0 0.0
        %1758 = vmatpush.msra.mxu0 0.0
        %1759 = vmatpush.msra.mxu0 0.0
        %1760 = vmatpush.msra.mxu0 0.0
        %1761 = vmatpush.msra.mxu0 0.0
        %1762 = vmatpush.msra.mxu0 0.0
        %1763 = vmatpush.msra.mxu0 %v1638
        %1764 = vmatpush.msra.mxu0 %v1635
        %1765 = vmatpush.msra.mxu0 %v1632
        %1766 = vmatmul.f32.gmra.mxu0 %v1722
        %v1767 = vpop.f32.mrf.mxu0
        %v1768 = vadd.f32 0.0, %v1767
        %1769 = vmatmul.f32.gmra.mxu0 %v1725
        %v1770 = vpop.f32.mrf.mxu0
        %v1771 = vadd.f32 0.0, %v1770
        %1772 = vdwg.mxu0
        %1773 = vmatpush.msra.mxu0 0.0
        %1774 = vmatpush.msra.mxu0 0.0
        %1775 = vmatpush.msra.mxu0 0.0
        %1776 = vmatpush.msra.mxu0 0.0
        %1777 = vmatpush.msra.mxu0 0.0
        %1778 = vmatpush.msra.mxu0 0.0
        %1779 = vmatpush.msra.mxu0 0.0
        %1780 = vmatpush.msra.mxu0 0.0
        %1781 = vmatpush.msra.mxu0 0.0
        %1782 = vmatpush.msra.mxu0 0.0
        %1783 = vmatpush.msra.mxu0 0.0
        %1784 = vmatpush.msra.mxu0 0.0
        %1785 = vmatpush.msra.mxu0 0.0
        %1786 = vmatpush.msra.mxu0 %v1639
        %1787 = vmatpush.msra.mxu0 %v1636
        %1788 = vmatpush.msra.mxu0 %v1633
        %1789 = vmatmul.f32.gmra.mxu0 %v1722
        %v1790 = vpop.f32.mrf.mxu0
        %v1791 = vadd.f32 0.0, %v1790
        %1792 = vmatmul.f32.gmra.mxu0 %v1725
        %v1793 = vpop.f32.mrf.mxu0
        %v1794 = vadd.f32 0.0, %v1793
        %1795 = vdwg.mxu0
        %v1796 = vmax.f32 %v1667, %v1745
        %v1797 = vmax.f32 %v1690, %v1768
        %v1798 = vmax.f32 %v1713, %v1791
        %v1799 = vmax.f32 %v1670, %v1748
        %v1800 = vmax.f32 %v1693, %v1771
        %v1801 = vmax.f32 %v1716, %v1794
        %v1802 = vld [vmem:[#allocation2] sm:$0x7]
        %v1804 = vperm.slane %v1802, 0
        %v1805 = vperm.slane %v1802, 1
        %v1806 = vperm.slane %v1802, 2
        %v1810 = vadd.f32 %v1796, %v1804
        %v1811 = vadd.f32 %v1797, %v1805
        %v1812 = vadd.f32 %v1798, %v1806
        %v1813 = vadd.f32 %v1799, %v1804
        %v1814 = vadd.f32 %v1800, %v1805
        %v1815 = vadd.f32 %v1801, %v1806
        %v1816 = vmax.f32 %v1810, 0.0
        %v1817 = vmax.f32 %v1811, 0.0
        %v1818 = vmax.f32 %v1812, 0.0
        %v1819 = vmax.f32 %v1813, 0.0
        %v1820 = vmax.f32 %v1814, 0.0
        %v1821 = vmax.f32 %v1815, 0.0
        %v1822 = vpack.c.bf16 %v1816, %v1816
        %v1823 = vpack.c.bf16 %v1817, %v1817
        %v1824 = vpack.c.bf16 %v1818, %v1818
        %v1825 = vld [vmem:[#allocation4] sm:$0xff]
        %v1826 = vld [vmem:[#allocation4 + $0x8] sm:$0xff]
        %v1827 = vld [vmem:[#allocation4 + $0x10] sm:$0xff]
        %v1828 = vld [vmem:[#allocation4 + $0x18] sm:$0xff]
        %v1829 = vld [vmem:[#allocation4 + $0x20] sm:$0xff]
        %v1830 = vld [vmem:[#allocation4 + $0x28] sm:$0xff]
        %v1831 = vld [vmem:[#allocation4 + $0x30] sm:$0xff]
        %v1832 = vld [vmem:[#allocation4 + $0x38] sm:$0xff]
        %v1833 = vld [vmem:[#allocation4 + $0x40] sm:$0xff]
        %v1834 = vld [vmem:[#allocation4 + $0x48] sm:$0xff]
        %v1835 = vld [vmem:[#allocation4 + $0x50] sm:$0xff]
        %v1836 = vld [vmem:[#allocation4 + $0x58] sm:$0xff]
        %v1837 = vld [vmem:[#allocation4 + $0x60] sm:$0xff]
        %v1838 = vld [vmem:[#allocation4 + $0x68] sm:$0xff]
        %v1839 = vld [vmem:[#allocation4 + $0x70] sm:$0xff]
        %v1840 = vld [vmem:[#allocation4 + $0x78] sm:$0xff]
        %v1841 = vld [vmem:[#allocation4 + $0x80] sm:$0xff]
        %v1842 = vld [vmem:[#allocation4 + $0x88] sm:$0xff]
        %v1843 = vld [vmem:[#allocation4 + $0x90] sm:$0xff]
        %v1844 = vld [vmem:[#allocation4 + $0x98] sm:$0xff]
        %v1845 = vld [vmem:[#allocation4 + $0xa0] sm:$0xff]
        %v1846 = vld [vmem:[#allocation4 + $0xa8] sm:$0xff]
        %v1847 = vld [vmem:[#allocation4 + $0xb0] sm:$0xff]
        %v1848 = vld [vmem:[#allocation4 + $0xb8] sm:$0xff]
        %v1849 = vld [vmem:[#allocation4 + $0xc0] sm:$0xff]
        %v1850 = vld [vmem:[#allocation4 + $0xc8] sm:$0xff]
        %v1851 = vld [vmem:[#allocation4 + $0xd0] sm:$0xff]
        %v1852 = vld [vmem:[#allocation4 + $0xd8] sm:$0xff]
        %v1853 = vld [vmem:[#allocation4 + $0xe0] sm:$0xff]
        %v1854 = vld [vmem:[#allocation4 + $0xe8] sm:$0xff]
        %v1855 = vld [vmem:[#allocation4 + $0xf0] sm:$0xff]
        %v1856 = vld [vmem:[#allocation4 + $0xf8] sm:$0xff]
        %v1857 = vld [vmem:[#allocation4 + $0x100] sm:$0xff]
        %v1858 = vld [vmem:[#allocation4 + $0x108] sm:$0xff]
        %v1859 = vld [vmem:[#allocation4 + $0x110] sm:$0xff]
        %v1860 = vld [vmem:[#allocation4 + $0x118] sm:$0xff]
        %v1861 = vld [vmem:[#allocation4 + $0x120] sm:$0xff]
        %v1862 = vld [vmem:[#allocation4 + $0x128] sm:$0xff]
        %v1863 = vld [vmem:[#allocation4 + $0x130] sm:$0xff]
        %v1864 = vld [vmem:[#allocation4 + $0x138] sm:$0xff]
        %v1865 = vld [vmem:[#allocation4 + $0x140] sm:$0xff]
        %v1866 = vld [vmem:[#allocation4 + $0x148] sm:$0xff]
        %v1867 = vld [vmem:[#allocation4 + $0x150] sm:$0xff]
        %v1868 = vld [vmem:[#allocation4 + $0x158] sm:$0xff]
        %v1869 = vld [vmem:[#allocation4 + $0x160] sm:$0xff]
        %v1870 = vld [vmem:[#allocation4 + $0x168] sm:$0xff]
        %v1871 = vld [vmem:[#allocation4 + $0x170] sm:$0xff]
        %v1872 = vld [vmem:[#allocation4 + $0x178] sm:$0xff]
        %s1873 = scalar_lea.vmem [#allocation4], 1920
        %v1874 = vld [vmem:[%s1873] sm:$0xff]
        %v1875 = vld [vmem:[%s1873 + $0x8] sm:$0xff]
        %v1876 = vld [vmem:[%s1873 + $0x10] sm:$0xff]
        %v1877 = vld [vmem:[%s1873 + $0x18] sm:$0xff]
        %v1878 = vld [vmem:[%s1873 + $0x20] sm:$0xff]
        %v1879 = vld [vmem:[%s1873 + $0x28] sm:$0xff]
        %v1880 = vld [vmem:[%s1873 + $0x30] sm:$0xff]
        %v1881 = vld [vmem:[%s1873 + $0x38] sm:$0xff]
        %v1882 = vld [vmem:[%s1873 + $0x40] sm:$0xff]
        %v1883 = vld [vmem:[%s1873 + $0x48] sm:$0xff]
        %v1884 = vld [vmem:[%s1873 + $0x50] sm:$0xff]
        %v1885 = vld [vmem:[%s1873 + $0x58] sm:$0xff]
        %v1886 = vld [vmem:[%s1873 + $0x60] sm:$0xff]
        %v1887 = vld [vmem:[%s1873 + $0x68] sm:$0xff]
        %v1888 = vld [vmem:[%s1873 + $0x70] sm:$0xff]
        %v1889 = vld [vmem:[%s1873 + $0x78] sm:$0xff]
        %v1890 = vld [vmem:[%s1873 + $0x80] sm:$0xff]
        %v1891 = vld [vmem:[%s1873 + $0x88] sm:$0xff]
        %v1892 = vld [vmem:[%s1873 + $0x90] sm:$0xff]
        %v1893 = vld [vmem:[%s1873 + $0x98] sm:$0xff]
        %v1894 = vld [vmem:[%s1873 + $0xa0] sm:$0xff]
        %v1895 = vld [vmem:[%s1873 + $0xa8] sm:$0xff]
        %v1896 = vld [vmem:[%s1873 + $0xb0] sm:$0xff]
        %v1897 = vld [vmem:[%s1873 + $0xb8] sm:$0xff]
        %v1898 = vld [vmem:[%s1873 + $0xc0] sm:$0xff]
        %v1899 = vld [vmem:[%s1873 + $0xc8] sm:$0xff]
        %v1900 = vld [vmem:[%s1873 + $0xd0] sm:$0xff]
        %v1901 = vld [vmem:[%s1873 + $0xd8] sm:$0xff]
        %v1902 = vld [vmem:[%s1873 + $0xe0] sm:$0xff]
        %v1903 = vld [vmem:[%s1873 + $0xe8] sm:$0xff]
        %v1904 = vld [vmem:[%s1873 + $0xf0] sm:$0xff]
        %v1905 = vld [vmem:[%s1873 + $0xf8] sm:$0xff]
        %v1906 = vld [vmem:[%s1873 + $0x100] sm:$0xff]
        %v1907 = vld [vmem:[%s1873 + $0x108] sm:$0xff]
        %v1908 = vld [vmem:[%s1873 + $0x110] sm:$0xff]
        %v1909 = vld [vmem:[%s1873 + $0x118] sm:$0xff]
        %v1910 = vld [vmem:[%s1873 + $0x120] sm:$0xff]
        %v1911 = vld [vmem:[%s1873 + $0x128] sm:$0xff]
        %v1912 = vld [vmem:[%s1873 + $0x130] sm:$0xff]
        %v1913 = vld [vmem:[%s1873 + $0x138] sm:$0xff]
        %v1914 = vld [vmem:[%s1873 + $0x140] sm:$0xff]
        %v1915 = vld [vmem:[%s1873 + $0x148] sm:$0xff]
        %v1916 = vld [vmem:[%s1873 + $0x150] sm:$0xff]
        %v1917 = vld [vmem:[%s1873 + $0x158] sm:$0xff]
        %v1918 = vld [vmem:[%s1873 + $0x160] sm:$0xff]
        %v1919 = vld [vmem:[%s1873 + $0x168] sm:$0xff]
        %v1920 = vld [vmem:[%s1873 + $0x170] sm:$0xff]
        %v1921 = vld [vmem:[%s1873 + $0x178] sm:$0xff]
        %v1922 = vpack.c.bf16 %v1819, %v1816
        %v1923 = vpack.c.bf16 %v1820, %v1817
        %v1924 = vpack.c.bf16 %v1821, %v1818
        %s1925 = scalar_lea.vmem [#allocation4], 384
        %v1926 = vld [vmem:[%s1925] sm:$0xff]
        %v1927 = vld [vmem:[%s1925 + $0x8] sm:$0xff]
        %v1928 = vld [vmem:[%s1925 + $0x10] sm:$0xff]
        %v1929 = vld [vmem:[%s1925 + $0x18] sm:$0xff]
        %v1930 = vld [vmem:[%s1925 + $0x20] sm:$0xff]
        %v1931 = vld [vmem:[%s1925 + $0x28] sm:$0xff]
        %v1932 = vld [vmem:[%s1925 + $0x30] sm:$0xff]
        %v1933 = vld [vmem:[%s1925 + $0x38] sm:$0xff]
        %v1934 = vld [vmem:[%s1925 + $0x40] sm:$0xff]
        %v1935 = vld [vmem:[%s1925 + $0x48] sm:$0xff]
        %v1936 = vld [vmem:[%s1925 + $0x50] sm:$0xff]
        %v1937 = vld [vmem:[%s1925 + $0x58] sm:$0xff]
        %v1938 = vld [vmem:[%s1925 + $0x60] sm:$0xff]
        %v1939 = vld [vmem:[%s1925 + $0x68] sm:$0xff]
        %v1940 = vld [vmem:[%s1925 + $0x70] sm:$0xff]
        %v1941 = vld [vmem:[%s1925 + $0x78] sm:$0xff]
        %v1942 = vld [vmem:[%s1925 + $0x80] sm:$0xff]
        %v1943 = vld [vmem:[%s1925 + $0x88] sm:$0xff]
        %v1944 = vld [vmem:[%s1925 + $0x90] sm:$0xff]
        %v1945 = vld [vmem:[%s1925 + $0x98] sm:$0xff]
        %v1946 = vld [vmem:[%s1925 + $0xa0] sm:$0xff]
        %v1947 = vld [vmem:[%s1925 + $0xa8] sm:$0xff]
        %v1948 = vld [vmem:[%s1925 + $0xb0] sm:$0xff]
        %v1949 = vld [vmem:[%s1925 + $0xb8] sm:$0xff]
        %v1950 = vld [vmem:[%s1925 + $0xc0] sm:$0xff]
        %v1951 = vld [vmem:[%s1925 + $0xc8] sm:$0xff]
        %v1952 = vld [vmem:[%s1925 + $0xd0] sm:$0xff]
        %v1953 = vld [vmem:[%s1925 + $0xd8] sm:$0xff]
        %v1954 = vld [vmem:[%s1925 + $0xe0] sm:$0xff]
        %v1955 = vld [vmem:[%s1925 + $0xe8] sm:$0xff]
        %v1956 = vld [vmem:[%s1925 + $0xf0] sm:$0xff]
        %v1957 = vld [vmem:[%s1925 + $0xf8] sm:$0xff]
        %v1958 = vld [vmem:[%s1925 + $0x100] sm:$0xff]
        %v1959 = vld [vmem:[%s1925 + $0x108] sm:$0xff]
        %v1960 = vld [vmem:[%s1925 + $0x110] sm:$0xff]
        %v1961 = vld [vmem:[%s1925 + $0x118] sm:$0xff]
        %v1962 = vld [vmem:[%s1925 + $0x120] sm:$0xff]
        %v1963 = vld [vmem:[%s1925 + $0x128] sm:$0xff]
        %v1964 = vld [vmem:[%s1925 + $0x130] sm:$0xff]
        %v1965 = vld [vmem:[%s1925 + $0x138] sm:$0xff]
        %v1966 = vld [vmem:[%s1925 + $0x140] sm:$0xff]
        %v1967 = vld [vmem:[%s1925 + $0x148] sm:$0xff]
        %v1968 = vld [vmem:[%s1925 + $0x150] sm:$0xff]
        %v1969 = vld [vmem:[%s1925 + $0x158] sm:$0xff]
        %v1970 = vld [vmem:[%s1925 + $0x160] sm:$0xff]
        %v1971 = vld [vmem:[%s1925 + $0x168] sm:$0xff]
        %v1972 = vld [vmem:[%s1925 + $0x170] sm:$0xff]
        %v1973 = vld [vmem:[%s1925 + $0x178] sm:$0xff]
        %v1975 = vshrl.u32 %v1922, 16
        %v1977 = vshll.u32 %v1922, 16
        %v1979 = vrot.slane %v1977, 1
        %v1980 = vor.u32 %v1975, %v1979
        %v1982 = vshrl.u32 %v1923, 16
        %v1984 = vshll.u32 %v1923, 16
        %v1986 = vrot.slane %v1984, 1
        %v1987 = vor.u32 %v1982, %v1986
        %v1989 = vshrl.u32 %v1924, 16
        %v1991 = vshll.u32 %v1924, 16
        %v1993 = vrot.slane %v1991, 1
        %v1994 = vor.u32 %v1989, %v1993
        %v2046 = vunpack.c.l.b16 %v1926
        %v2047 = vunpack.c.h.b16 %v1926
        %v2048 = vunpack.c.l.b16 %v1927
        %v2049 = vunpack.c.h.b16 %v1927
        %v2050 = vunpack.c.l.b16 %v1928
        %v2051 = vunpack.c.h.b16 %v1928
        %v2052 = vunpack.c.l.b16 %v1929
        %v2053 = vunpack.c.h.b16 %v1929
        %v2054 = vunpack.c.l.b16 %v1930
        %v2055 = vunpack.c.h.b16 %v1930
        %v2056 = vunpack.c.l.b16 %v1931
        %v2057 = vunpack.c.h.b16 %v1931
        %v2058 = vunpack.c.l.b16 %v1932
        %v2059 = vunpack.c.h.b16 %v1932
        %v2060 = vunpack.c.l.b16 %v1933
        %v2061 = vunpack.c.h.b16 %v1933
        %v2062 = vunpack.c.l.b16 %v1934
        %v2063 = vunpack.c.h.b16 %v1934
        %v2064 = vunpack.c.l.b16 %v1935
        %v2065 = vunpack.c.h.b16 %v1935
        %v2066 = vunpack.c.l.b16 %v1936
        %v2067 = vunpack.c.h.b16 %v1936
        %v2068 = vunpack.c.l.b16 %v1937
        %v2069 = vunpack.c.h.b16 %v1937
        %v2070 = vunpack.c.l.b16 %v1938
        %v2071 = vunpack.c.h.b16 %v1938
        %v2072 = vunpack.c.l.b16 %v1939
        %v2073 = vunpack.c.h.b16 %v1939
        %v2074 = vunpack.c.l.b16 %v1940
        %v2075 = vunpack.c.h.b16 %v1940
        %v2076 = vunpack.c.l.b16 %v1941
        %v2077 = vunpack.c.h.b16 %v1941
        %v2078 = vunpack.c.l.b16 %v1942
        %v2079 = vunpack.c.h.b16 %v1942
        %v2080 = vunpack.c.l.b16 %v1943
        %v2081 = vunpack.c.h.b16 %v1943
        %v2082 = vunpack.c.l.b16 %v1944
        %v2083 = vunpack.c.h.b16 %v1944
        %v2084 = vunpack.c.l.b16 %v1945
        %v2085 = vunpack.c.h.b16 %v1945
        %v2086 = vunpack.c.l.b16 %v1946
        %v2087 = vunpack.c.h.b16 %v1946
        %v2088 = vunpack.c.l.b16 %v1947
        %v2089 = vunpack.c.h.b16 %v1947
        %v2090 = vunpack.c.l.b16 %v1948
        %v2091 = vunpack.c.h.b16 %v1948
        %v2092 = vunpack.c.l.b16 %v1949
        %v2093 = vunpack.c.h.b16 %v1949
        %v2094 = vunpack.c.l.b16 %v1950
        %v2095 = vunpack.c.h.b16 %v1950
        %v2096 = vunpack.c.l.b16 %v1951
        %v2097 = vunpack.c.h.b16 %v1951
        %v2098 = vunpack.c.l.b16 %v1952
        %v2099 = vunpack.c.h.b16 %v1952
        %v2100 = vunpack.c.l.b16 %v1953
        %v2101 = vunpack.c.h.b16 %v1953
        %v2102 = vunpack.c.l.b16 %v1954
        %v2103 = vunpack.c.h.b16 %v1954
        %v2104 = vunpack.c.l.b16 %v1955
        %v2105 = vunpack.c.h.b16 %v1955
        %v2106 = vunpack.c.l.b16 %v1956
        %v2107 = vunpack.c.h.b16 %v1956
        %v2108 = vunpack.c.l.b16 %v1957
        %v2109 = vunpack.c.h.b16 %v1957
        %v2110 = vunpack.c.l.b16 %v1958
        %v2111 = vunpack.c.h.b16 %v1958
        %v2112 = vunpack.c.l.b16 %v1959
        %v2113 = vunpack.c.h.b16 %v1959
        %v2114 = vunpack.c.l.b16 %v1960
        %v2115 = vunpack.c.h.b16 %v1960
        %v2116 = vunpack.c.l.b16 %v1961
        %v2117 = vunpack.c.h.b16 %v1961
        %v2118 = vunpack.c.l.b16 %v1962
        %v2119 = vunpack.c.h.b16 %v1962
        %v2120 = vunpack.c.l.b16 %v1963
        %v2121 = vunpack.c.h.b16 %v1963
        %v2122 = vunpack.c.l.b16 %v1964
        %v2123 = vunpack.c.h.b16 %v1964
        %v2124 = vunpack.c.l.b16 %v1965
        %v2125 = vunpack.c.h.b16 %v1965
        %v2126 = vunpack.c.l.b16 %v1966
        %v2127 = vunpack.c.h.b16 %v1966
        %v2128 = vunpack.c.l.b16 %v1967
        %v2129 = vunpack.c.h.b16 %v1967
        %v2130 = vunpack.c.l.b16 %v1968
        %v2131 = vunpack.c.h.b16 %v1968
        %v2132 = vunpack.c.l.b16 %v1969
        %v2133 = vunpack.c.h.b16 %v1969
        %v2134 = vunpack.c.l.b16 %v1970
        %v2135 = vunpack.c.h.b16 %v1970
        %v2136 = vunpack.c.l.b16 %v1971
        %v2137 = vunpack.c.h.b16 %v1971
        %v2138 = vunpack.c.l.b16 %v1972
        %v2139 = vunpack.c.h.b16 %v1972
        %v2140 = vunpack.c.l.b16 %v1973
        %v2141 = vunpack.c.h.b16 %v1973
        %v2142 = vpack.c.b16 %v2048, %v2046
        %v2143 = vpack.c.b16 %v2049, %v2047
        %v2144 = vpack.c.b16 %v2052, %v2050
        %v2145 = vpack.c.b16 %v2053, %v2051
        %v2146 = vpack.c.b16 %v2056, %v2054
        %v2147 = vpack.c.b16 %v2057, %v2055
        %v2148 = vpack.c.b16 %v2060, %v2058
        %v2149 = vpack.c.b16 %v2061, %v2059
        %v2150 = vpack.c.b16 %v2064, %v2062
        %v2151 = vpack.c.b16 %v2065, %v2063
        %v2152 = vpack.c.b16 %v2068, %v2066
        %v2153 = vpack.c.b16 %v2069, %v2067
        %v2154 = vpack.c.b16 %v2072, %v2070
        %v2155 = vpack.c.b16 %v2073, %v2071
        %v2156 = vpack.c.b16 %v2076, %v2074
        %v2157 = vpack.c.b16 %v2077, %v2075
        %v2158 = vpack.c.b16 %v2080, %v2078
        %v2159 = vpack.c.b16 %v2081, %v2079
        %v2160 = vpack.c.b16 %v2084, %v2082
        %v2161 = vpack.c.b16 %v2085, %v2083
        %v2162 = vpack.c.b16 %v2088, %v2086
        %v2163 = vpack.c.b16 %v2089, %v2087
        %v2164 = vpack.c.b16 %v2092, %v2090
        %v2165 = vpack.c.b16 %v2093, %v2091
        %v2166 = vpack.c.b16 %v2096, %v2094
        %v2167 = vpack.c.b16 %v2097, %v2095
        %v2168 = vpack.c.b16 %v2100, %v2098
        %v2169 = vpack.c.b16 %v2101, %v2099
        %v2170 = vpack.c.b16 %v2104, %v2102
        %v2171 = vpack.c.b16 %v2105, %v2103
        %v2172 = vpack.c.b16 %v2108, %v2106
        %v2173 = vpack.c.b16 %v2109, %v2107
        %v2174 = vpack.c.b16 %v2112, %v2110
        %v2175 = vpack.c.b16 %v2113, %v2111
        %v2176 = vpack.c.b16 %v2116, %v2114
        %v2177 = vpack.c.b16 %v2117, %v2115
        %v2178 = vpack.c.b16 %v2120, %v2118
        %v2179 = vpack.c.b16 %v2121, %v2119
        %v2180 = vpack.c.b16 %v2124, %v2122
        %v2181 = vpack.c.b16 %v2125, %v2123
        %v2182 = vpack.c.b16 %v2128, %v2126
        %v2183 = vpack.c.b16 %v2129, %v2127
        %v2184 = vpack.c.b16 %v2132, %v2130
        %v2185 = vpack.c.b16 %v2133, %v2131
        %v2186 = vpack.c.b16 %v2136, %v2134
        %v2187 = vpack.c.b16 %v2137, %v2135
        %v2188 = vpack.c.b16 %v2140, %v2138
        %v2189 = vpack.c.b16 %v2141, %v2139
        %2238 = vmatpush.bf16.msra.mxu0 %v2156
        %2239 = vmatpush.bf16.msra.mxu0 %v2154
        %2240 = vmatpush.bf16.msra.mxu0 %v2152
        %2241 = vmatpush.bf16.msra.mxu0 %v2150
        %2242 = vmatpush.bf16.msra.mxu0 %v2148
        %2243 = vmatpush.bf16.msra.mxu0 %v2146
        %2244 = vmatpush.bf16.msra.mxu0 %v2144
        %2245 = vmatpush.bf16.msra.mxu0 %v2142
        %2246 = vmatmul.bf16.gmra.mxu0 %v1980
        %v2247 = vpop.f32.mrf.mxu0
        %v2248 = vadd.f32 0.0, %v2247
        %v2249 = vpop.f32.mrf.mxu0
        %2250 = vdwg.mxu0
        %2251 = vmatpush.bf16.msra.mxu0 %v2172
        %2252 = vmatpush.bf16.msra.mxu0 %v2170
        %2253 = vmatpush.bf16.msra.mxu0 %v2168
        %2254 = vmatpush.bf16.msra.mxu0 %v2166
        %2255 = vmatpush.bf16.msra.mxu0 %v2164
        %2256 = vmatpush.bf16.msra.mxu0 %v2162
        %2257 = vmatpush.bf16.msra.mxu0 %v2160
        %2258 = vmatpush.bf16.msra.mxu0 %v2158
        %2259 = vmatmul.bf16.gmra.mxu0 %v1987
        %v2260 = vpop.f32.mrf.mxu0
        %v2261 = vadd.f32 %v2248, %v2260
        %v2262 = vpop.f32.mrf.mxu0
        %2263 = vdwg.mxu0
        %2264 = vmatpush.bf16.msra.mxu0 %v2188
        %2265 = vmatpush.bf16.msra.mxu0 %v2186
        %2266 = vmatpush.bf16.msra.mxu0 %v2184
        %2267 = vmatpush.bf16.msra.mxu0 %v2182
        %2268 = vmatpush.bf16.msra.mxu0 %v2180
        %2269 = vmatpush.bf16.msra.mxu0 %v2178
        %2270 = vmatpush.bf16.msra.mxu0 %v2176
        %2271 = vmatpush.bf16.msra.mxu0 %v2174
        %2272 = vmatmul.bf16.gmra.mxu0 %v1994
        %v2273 = vpop.f32.mrf.mxu0
        %v2274 = vadd.f32 %v2261, %v2273
        %v2275 = vpop.f32.mrf.mxu0
        %2276 = vdwg.mxu0
        %2277 = vmatpush.bf16.msra.mxu0 %v2157
        %2278 = vmatpush.bf16.msra.mxu0 %v2155
        %2279 = vmatpush.bf16.msra.mxu0 %v2153
        %2280 = vmatpush.bf16.msra.mxu0 %v2151
        %2281 = vmatpush.bf16.msra.mxu0 %v2149
        %2282 = vmatpush.bf16.msra.mxu0 %v2147
        %2283 = vmatpush.bf16.msra.mxu0 %v2145
        %2284 = vmatpush.bf16.msra.mxu0 %v2143
        %2285 = vmatmul.bf16.gmra.mxu0 %v1980
        %v2286 = vpop.f32.mrf.mxu0
        %v2287 = vadd.f32 0.0, %v2286
        %v2288 = vpop.f32.mrf.mxu0
        %2289 = vdwg.mxu0
        %2290 = vmatpush.bf16.msra.mxu0 %v2173
        %2291 = vmatpush.bf16.msra.mxu0 %v2171
        %2292 = vmatpush.bf16.msra.mxu0 %v2169
        %2293 = vmatpush.bf16.msra.mxu0 %v2167
        %2294 = vmatpush.bf16.msra.mxu0 %v2165
        %2295 = vmatpush.bf16.msra.mxu0 %v2163
        %2296 = vmatpush.bf16.msra.mxu0 %v2161
        %2297 = vmatpush.bf16.msra.mxu0 %v2159
        %2298 = vmatmul.bf16.gmra.mxu0 %v1987
        %v2299 = vpop.f32.mrf.mxu0
        %v2300 = vadd.f32 %v2287, %v2299
        %v2301 = vpop.f32.mrf.mxu0
        %2302 = vdwg.mxu0
        %2303 = vmatpush.bf16.msra.mxu0 %v2189
        %2304 = vmatpush.bf16.msra.mxu0 %v2187
        %2305 = vmatpush.bf16.msra.mxu0 %v2185
        %2306 = vmatpush.bf16.msra.mxu0 %v2183
        %2307 = vmatpush.bf16.msra.mxu0 %v2181
        %2308 = vmatpush.bf16.msra.mxu0 %v2179
        %2309 = vmatpush.bf16.msra.mxu0 %v2177
        %2310 = vmatpush.bf16.msra.mxu0 %v2175
        %2311 = vmatmul.bf16.gmra.mxu0 %v1994
        %v2312 = vpop.f32.mrf.mxu0
        %v2313 = vadd.f32 %v2300, %v2312
        %v2314 = vpop.f32.mrf.mxu0
        %2315 = vdwg.mxu0
        %s2316 = scalar_lea.vmem [#allocation4], 2304
        %v2317 = vld [vmem:[%s2316] sm:$0xff]
        %v2318 = vld [vmem:[%s2316 + $0x8] sm:$0xff]
        %v2319 = vld [vmem:[%s2316 + $0x10] sm:$0xff]
        %v2320 = vld [vmem:[%s2316 + $0x18] sm:$0xff]
        %v2321 = vld [vmem:[%s2316 + $0x20] sm:$0xff]
        %v2322 = vld [vmem:[%s2316 + $0x28] sm:$0xff]
        %v2323 = vld [vmem:[%s2316 + $0x30] sm:$0xff]
        %v2324 = vld [vmem:[%s2316 + $0x38] sm:$0xff]
        %v2325 = vld [vmem:[%s2316 + $0x40] sm:$0xff]
        %v2326 = vld [vmem:[%s2316 + $0x48] sm:$0xff]
        %v2327 = vld [vmem:[%s2316 + $0x50] sm:$0xff]
        %v2328 = vld [vmem:[%s2316 + $0x58] sm:$0xff]
        %v2329 = vld [vmem:[%s2316 + $0x60] sm:$0xff]
        %v2330 = vld [vmem:[%s2316 + $0x68] sm:$0xff]
        %v2331 = vld [vmem:[%s2316 + $0x70] sm:$0xff]
        %v2332 = vld [vmem:[%s2316 + $0x78] sm:$0xff]
        %v2333 = vld [vmem:[%s2316 + $0x80] sm:$0xff]
        %v2334 = vld [vmem:[%s2316 + $0x88] sm:$0xff]
        %v2335 = vld [vmem:[%s2316 + $0x90] sm:$0xff]
        %v2336 = vld [vmem:[%s2316 + $0x98] sm:$0xff]
        %v2337 = vld [vmem:[%s2316 + $0xa0] sm:$0xff]
        %v2338 = vld [vmem:[%s2316 + $0xa8] sm:$0xff]
        %v2339 = vld [vmem:[%s2316 + $0xb0] sm:$0xff]
        %v2340 = vld [vmem:[%s2316 + $0xb8] sm:$0xff]
        %v2341 = vld [vmem:[%s2316 + $0xc0] sm:$0xff]
        %v2342 = vld [vmem:[%s2316 + $0xc8] sm:$0xff]
        %v2343 = vld [vmem:[%s2316 + $0xd0] sm:$0xff]
        %v2344 = vld [vmem:[%s2316 + $0xd8] sm:$0xff]
        %v2345 = vld [vmem:[%s2316 + $0xe0] sm:$0xff]
        %v2346 = vld [vmem:[%s2316 + $0xe8] sm:$0xff]
        %v2347 = vld [vmem:[%s2316 + $0xf0] sm:$0xff]
        %v2348 = vld [vmem:[%s2316 + $0xf8] sm:$0xff]
        %v2349 = vld [vmem:[%s2316 + $0x100] sm:$0xff]
        %v2350 = vld [vmem:[%s2316 + $0x108] sm:$0xff]
        %v2351 = vld [vmem:[%s2316 + $0x110] sm:$0xff]
        %v2352 = vld [vmem:[%s2316 + $0x118] sm:$0xff]
        %v2353 = vld [vmem:[%s2316 + $0x120] sm:$0xff]
        %v2354 = vld [vmem:[%s2316 + $0x128] sm:$0xff]
        %v2355 = vld [vmem:[%s2316 + $0x130] sm:$0xff]
        %v2356 = vld [vmem:[%s2316 + $0x138] sm:$0xff]
        %v2357 = vld [vmem:[%s2316 + $0x140] sm:$0xff]
        %v2358 = vld [vmem:[%s2316 + $0x148] sm:$0xff]
        %v2359 = vld [vmem:[%s2316 + $0x150] sm:$0xff]
        %v2360 = vld [vmem:[%s2316 + $0x158] sm:$0xff]
        %v2361 = vld [vmem:[%s2316 + $0x160] sm:$0xff]
        %v2362 = vld [vmem:[%s2316 + $0x168] sm:$0xff]
        %v2363 = vld [vmem:[%s2316 + $0x170] sm:$0xff]
        %v2364 = vld [vmem:[%s2316 + $0x178] sm:$0xff]
        %v2413 = vunpack.c.l.b16 %v2317
        %v2414 = vunpack.c.h.b16 %v2317
        %v2415 = vunpack.c.l.b16 %v2318
        %v2416 = vunpack.c.h.b16 %v2318
        %v2417 = vunpack.c.l.b16 %v2319
        %v2418 = vunpack.c.h.b16 %v2319
        %v2419 = vunpack.c.l.b16 %v2320
        %v2420 = vunpack.c.h.b16 %v2320
        %v2421 = vunpack.c.l.b16 %v2321
        %v2422 = vunpack.c.h.b16 %v2321
        %v2423 = vunpack.c.l.b16 %v2322
        %v2424 = vunpack.c.h.b16 %v2322
        %v2425 = vunpack.c.l.b16 %v2323
        %v2426 = vunpack.c.h.b16 %v2323
        %v2427 = vunpack.c.l.b16 %v2324
        %v2428 = vunpack.c.h.b16 %v2324
        %v2429 = vunpack.c.l.b16 %v2325
        %v2430 = vunpack.c.h.b16 %v2325
        %v2431 = vunpack.c.l.b16 %v2326
        %v2432 = vunpack.c.h.b16 %v2326
        %v2433 = vunpack.c.l.b16 %v2327
        %v2434 = vunpack.c.h.b16 %v2327
        %v2435 = vunpack.c.l.b16 %v2328
        %v2436 = vunpack.c.h.b16 %v2328
        %v2437 = vunpack.c.l.b16 %v2329
        %v2438 = vunpack.c.h.b16 %v2329
        %v2439 = vunpack.c.l.b16 %v2330
        %v2440 = vunpack.c.h.b16 %v2330
        %v2441 = vunpack.c.l.b16 %v2331
        %v2442 = vunpack.c.h.b16 %v2331
        %v2443 = vunpack.c.l.b16 %v2332
        %v2444 = vunpack.c.h.b16 %v2332
        %v2445 = vunpack.c.l.b16 %v2333
        %v2446 = vunpack.c.h.b16 %v2333
        %v2447 = vunpack.c.l.b16 %v2334
        %v2448 = vunpack.c.h.b16 %v2334
        %v2449 = vunpack.c.l.b16 %v2335
        %v2450 = vunpack.c.h.b16 %v2335
        %v2451 = vunpack.c.l.b16 %v2336
        %v2452 = vunpack.c.h.b16 %v2336
        %v2453 = vunpack.c.l.b16 %v2337
        %v2454 = vunpack.c.h.b16 %v2337
        %v2455 = vunpack.c.l.b16 %v2338
        %v2456 = vunpack.c.h.b16 %v2338
        %v2457 = vunpack.c.l.b16 %v2339
        %v2458 = vunpack.c.h.b16 %v2339
        %v2459 = vunpack.c.l.b16 %v2340
        %v2460 = vunpack.c.h.b16 %v2340
        %v2461 = vunpack.c.l.b16 %v2341
        %v2462 = vunpack.c.h.b16 %v2341
        %v2463 = vunpack.c.l.b16 %v2342
        %v2464 = vunpack.c.h.b16 %v2342
        %v2465 = vunpack.c.l.b16 %v2343
        %v2466 = vunpack.c.h.b16 %v2343
        %v2467 = vunpack.c.l.b16 %v2344
        %v2468 = vunpack.c.h.b16 %v2344
        %v2469 = vunpack.c.l.b16 %v2345
        %v2470 = vunpack.c.h.b16 %v2345
        %v2471 = vunpack.c.l.b16 %v2346
        %v2472 = vunpack.c.h.b16 %v2346
        %v2473 = vunpack.c.l.b16 %v2347
        %v2474 = vunpack.c.h.b16 %v2347
        %v2475 = vunpack.c.l.b16 %v2348
        %v2476 = vunpack.c.h.b16 %v2348
        %v2477 = vunpack.c.l.b16 %v2349
        %v2478 = vunpack.c.h.b16 %v2349
        %v2479 = vunpack.c.l.b16 %v2350
        %v2480 = vunpack.c.h.b16 %v2350
        %v2481 = vunpack.c.l.b16 %v2351
        %v2482 = vunpack.c.h.b16 %v2351
        %v2483 = vunpack.c.l.b16 %v2352
        %v2484 = vunpack.c.h.b16 %v2352
        %v2485 = vunpack.c.l.b16 %v2353
        %v2486 = vunpack.c.h.b16 %v2353
        %v2487 = vunpack.c.l.b16 %v2354
        %v2488 = vunpack.c.h.b16 %v2354
        %v2489 = vunpack.c.l.b16 %v2355
        %v2490 = vunpack.c.h.b16 %v2355
        %v2491 = vunpack.c.l.b16 %v2356
        %v2492 = vunpack.c.h.b16 %v2356
        %v2493 = vunpack.c.l.b16 %v2357
        %v2494 = vunpack.c.h.b16 %v2357
        %v2495 = vunpack.c.l.b16 %v2358
        %v2496 = vunpack.c.h.b16 %v2358
        %v2497 = vunpack.c.l.b16 %v2359
        %v2498 = vunpack.c.h.b16 %v2359
        %v2499 = vunpack.c.l.b16 %v2360
        %v2500 = vunpack.c.h.b16 %v2360
        %v2501 = vunpack.c.l.b16 %v2361
        %v2502 = vunpack.c.h.b16 %v2361
        %v2503 = vunpack.c.l.b16 %v2362
        %v2504 = vunpack.c.h.b16 %v2362
        %v2505 = vunpack.c.l.b16 %v2363
        %v2506 = vunpack.c.h.b16 %v2363
        %v2507 = vunpack.c.l.b16 %v2364
        %v2508 = vunpack.c.h.b16 %v2364
        %v2509 = vpack.c.b16 %v2415, %v2413
        %v2510 = vpack.c.b16 %v2416, %v2414
        %v2511 = vpack.c.b16 %v2419, %v2417
        %v2512 = vpack.c.b16 %v2420, %v2418
        %v2513 = vpack.c.b16 %v2423, %v2421
        %v2514 = vpack.c.b16 %v2424, %v2422
        %v2515 = vpack.c.b16 %v2427, %v2425
        %v2516 = vpack.c.b16 %v2428, %v2426
        %v2517 = vpack.c.b16 %v2431, %v2429
        %v2518 = vpack.c.b16 %v2432, %v2430
        %v2519 = vpack.c.b16 %v2435, %v2433
        %v2520 = vpack.c.b16 %v2436, %v2434
        %v2521 = vpack.c.b16 %v2439, %v2437
        %v2522 = vpack.c.b16 %v2440, %v2438
        %v2523 = vpack.c.b16 %v2443, %v2441
        %v2524 = vpack.c.b16 %v2444, %v2442
        %v2525 = vpack.c.b16 %v2447, %v2445
        %v2526 = vpack.c.b16 %v2448, %v2446
        %v2527 = vpack.c.b16 %v2451, %v2449
        %v2528 = vpack.c.b16 %v2452, %v2450
        %v2529 = vpack.c.b16 %v2455, %v2453
        %v2530 = vpack.c.b16 %v2456, %v2454
        %v2531 = vpack.c.b16 %v2459, %v2457
        %v2532 = vpack.c.b16 %v2460, %v2458
        %v2533 = vpack.c.b16 %v2463, %v2461
        %v2534 = vpack.c.b16 %v2464, %v2462
        %v2535 = vpack.c.b16 %v2467, %v2465
        %v2536 = vpack.c.b16 %v2468, %v2466
        %v2537 = vpack.c.b16 %v2471, %v2469
        %v2538 = vpack.c.b16 %v2472, %v2470
        %v2539 = vpack.c.b16 %v2475, %v2473
        %v2540 = vpack.c.b16 %v2476, %v2474
        %v2541 = vpack.c.b16 %v2479, %v2477
        %v2542 = vpack.c.b16 %v2480, %v2478
        %v2543 = vpack.c.b16 %v2483, %v2481
        %v2544 = vpack.c.b16 %v2484, %v2482
        %v2545 = vpack.c.b16 %v2487, %v2485
        %v2546 = vpack.c.b16 %v2488, %v2486
        %v2547 = vpack.c.b16 %v2491, %v2489
        %v2548 = vpack.c.b16 %v2492, %v2490
        %v2549 = vpack.c.b16 %v2495, %v2493
        %v2550 = vpack.c.b16 %v2496, %v2494
        %v2551 = vpack.c.b16 %v2499, %v2497
        %v2552 = vpack.c.b16 %v2500, %v2498
        %v2553 = vpack.c.b16 %v2503, %v2501
        %v2554 = vpack.c.b16 %v2504, %v2502
        %v2555 = vpack.c.b16 %v2507, %v2505
        %v2556 = vpack.c.b16 %v2508, %v2506
        %2605 = vmatpush.bf16.msra.mxu0 %v2523
        %2606 = vmatpush.bf16.msra.mxu0 %v2521
        %2607 = vmatpush.bf16.msra.mxu0 %v2519
        %2608 = vmatpush.bf16.msra.mxu0 %v2517
        %2609 = vmatpush.bf16.msra.mxu0 %v2515
        %2610 = vmatpush.bf16.msra.mxu0 %v2513
        %2611 = vmatpush.bf16.msra.mxu0 %v2511
        %2612 = vmatpush.bf16.msra.mxu0 %v2509
        %2613 = vmatmul.bf16.gmra.mxu0 %v1980
        %v2614 = vpop.f32.mrf.mxu0
        %v2615 = vadd.f32 0.0, %v2614
        %v2616 = vpop.f32.mrf.mxu0
        %2617 = vdwg.mxu0
        %2618 = vmatpush.bf16.msra.mxu0 %v2539
        %2619 = vmatpush.bf16.msra.mxu0 %v2537
        %2620 = vmatpush.bf16.msra.mxu0 %v2535
        %2621 = vmatpush.bf16.msra.mxu0 %v2533
        %2622 = vmatpush.bf16.msra.mxu0 %v2531
        %2623 = vmatpush.bf16.msra.mxu0 %v2529
        %2624 = vmatpush.bf16.msra.mxu0 %v2527
        %2625 = vmatpush.bf16.msra.mxu0 %v2525
        %2626 = vmatmul.bf16.gmra.mxu0 %v1987
        %v2627 = vpop.f32.mrf.mxu0
        %v2628 = vadd.f32 %v2615, %v2627
        %v2629 = vpop.f32.mrf.mxu0
        %2630 = vdwg.mxu0
        %2631 = vmatpush.bf16.msra.mxu0 %v2555
        %2632 = vmatpush.bf16.msra.mxu0 %v2553
        %2633 = vmatpush.bf16.msra.mxu0 %v2551
        %2634 = vmatpush.bf16.msra.mxu0 %v2549
        %2635 = vmatpush.bf16.msra.mxu0 %v2547
        %2636 = vmatpush.bf16.msra.mxu0 %v2545
        %2637 = vmatpush.bf16.msra.mxu0 %v2543
        %2638 = vmatpush.bf16.msra.mxu0 %v2541
        %2639 = vmatmul.bf16.gmra.mxu0 %v1994
        %v2640 = vpop.f32.mrf.mxu0
        %v2641 = vadd.f32 %v2628, %v2640
        %v2642 = vpop.f32.mrf.mxu0
        %2643 = vdwg.mxu0
        %2644 = vmatpush.bf16.msra.mxu0 %v2524
        %2645 = vmatpush.bf16.msra.mxu0 %v2522
        %2646 = vmatpush.bf16.msra.mxu0 %v2520
        %2647 = vmatpush.bf16.msra.mxu0 %v2518
        %2648 = vmatpush.bf16.msra.mxu0 %v2516
        %2649 = vmatpush.bf16.msra.mxu0 %v2514
        %2650 = vmatpush.bf16.msra.mxu0 %v2512
        %2651 = vmatpush.bf16.msra.mxu0 %v2510
        %2652 = vmatmul.bf16.gmra.mxu0 %v1980
        %v2653 = vpop.f32.mrf.mxu0
        %v2654 = vadd.f32 0.0, %v2653
        %v2655 = vpop.f32.mrf.mxu0
        %2656 = vdwg.mxu0
        %2657 = vmatpush.bf16.msra.mxu0 %v2540
        %2658 = vmatpush.bf16.msra.mxu0 %v2538
        %2659 = vmatpush.bf16.msra.mxu0 %v2536
        %2660 = vmatpush.bf16.msra.mxu0 %v2534
        %2661 = vmatpush.bf16.msra.mxu0 %v2532
        %2662 = vmatpush.bf16.msra.mxu0 %v2530
        %2663 = vmatpush.bf16.msra.mxu0 %v2528
        %2664 = vmatpush.bf16.msra.mxu0 %v2526
        %2665 = vmatmul.bf16.gmra.mxu0 %v1987
        %v2666 = vpop.f32.mrf.mxu0
        %v2667 = vadd.f32 %v2654, %v2666
        %v2668 = vpop.f32.mrf.mxu0
        %2669 = vdwg.mxu0
        %2670 = vmatpush.bf16.msra.mxu0 %v2556
        %2671 = vmatpush.bf16.msra.mxu0 %v2554
        %2672 = vmatpush.bf16.msra.mxu0 %v2552
        %2673 = vmatpush.bf16.msra.mxu0 %v2550
        %2674 = vmatpush.bf16.msra.mxu0 %v2548
        %2675 = vmatpush.bf16.msra.mxu0 %v2546
        %2676 = vmatpush.bf16.msra.mxu0 %v2544
        %2677 = vmatpush.bf16.msra.mxu0 %v2542
        %2678 = vmatmul.bf16.gmra.mxu0 %v1994
        %v2679 = vpop.f32.mrf.mxu0
        %v2680 = vadd.f32 %v2667, %v2679
        %v2681 = vpop.f32.mrf.mxu0
        %2682 = vdwg.mxu0
        %v2731 = vunpack.c.l.b16 %v1825
        %v2732 = vunpack.c.h.b16 %v1825
        %v2733 = vunpack.c.l.b16 %v1826
        %v2734 = vunpack.c.h.b16 %v1826
        %v2735 = vunpack.c.l.b16 %v1827
        %v2736 = vunpack.c.h.b16 %v1827
        %v2737 = vunpack.c.l.b16 %v1828
        %v2738 = vunpack.c.h.b16 %v1828
        %v2739 = vunpack.c.l.b16 %v1829
        %v2740 = vunpack.c.h.b16 %v1829
        %v2741 = vunpack.c.l.b16 %v1830
        %v2742 = vunpack.c.h.b16 %v1830
        %v2743 = vunpack.c.l.b16 %v1831
        %v2744 = vunpack.c.h.b16 %v1831
        %v2745 = vunpack.c.l.b16 %v1832
        %v2746 = vunpack.c.h.b16 %v1832
        %v2747 = vunpack.c.l.b16 %v1833
        %v2748 = vunpack.c.h.b16 %v1833
        %v2749 = vunpack.c.l.b16 %v1834
        %v2750 = vunpack.c.h.b16 %v1834
        %v2751 = vunpack.c.l.b16 %v1835
        %v2752 = vunpack.c.h.b16 %v1835
        %v2753 = vunpack.c.l.b16 %v1836
        %v2754 = vunpack.c.h.b16 %v1836
        %v2755 = vunpack.c.l.b16 %v1837
        %v2756 = vunpack.c.h.b16 %v1837
        %v2757 = vunpack.c.l.b16 %v1838
        %v2758 = vunpack.c.h.b16 %v1838
        %v2759 = vunpack.c.l.b16 %v1839
        %v2760 = vunpack.c.h.b16 %v1839
        %v2761 = vunpack.c.l.b16 %v1840
        %v2762 = vunpack.c.h.b16 %v1840
        %v2763 = vunpack.c.l.b16 %v1841
        %v2764 = vunpack.c.h.b16 %v1841
        %v2765 = vunpack.c.l.b16 %v1842
        %v2766 = vunpack.c.h.b16 %v1842
        %v2767 = vunpack.c.l.b16 %v1843
        %v2768 = vunpack.c.h.b16 %v1843
        %v2769 = vunpack.c.l.b16 %v1844
        %v2770 = vunpack.c.h.b16 %v1844
        %v2771 = vunpack.c.l.b16 %v1845
        %v2772 = vunpack.c.h.b16 %v1845
        %v2773 = vunpack.c.l.b16 %v1846
        %v2774 = vunpack.c.h.b16 %v1846
        %v2775 = vunpack.c.l.b16 %v1847
        %v2776 = vunpack.c.h.b16 %v1847
        %v2777 = vunpack.c.l.b16 %v1848
        %v2778 = vunpack.c.h.b16 %v1848
        %v2779 = vunpack.c.l.b16 %v1849
        %v2780 = vunpack.c.h.b16 %v1849
        %v2781 = vunpack.c.l.b16 %v1850
        %v2782 = vunpack.c.h.b16 %v1850
        %v2783 = vunpack.c.l.b16 %v1851
        %v2784 = vunpack.c.h.b16 %v1851
        %v2785 = vunpack.c.l.b16 %v1852
        %v2786 = vunpack.c.h.b16 %v1852
        %v2787 = vunpack.c.l.b16 %v1853
        %v2788 = vunpack.c.h.b16 %v1853
        %v2789 = vunpack.c.l.b16 %v1854
        %v2790 = vunpack.c.h.b16 %v1854
        %v2791 = vunpack.c.l.b16 %v1855
        %v2792 = vunpack.c.h.b16 %v1855
        %v2793 = vunpack.c.l.b16 %v1856
        %v2794 = vunpack.c.h.b16 %v1856
        %v2795 = vunpack.c.l.b16 %v1857
        %v2796 = vunpack.c.h.b16 %v1857
        %v2797 = vunpack.c.l.b16 %v1858
        %v2798 = vunpack.c.h.b16 %v1858
        %v2799 = vunpack.c.l.b16 %v1859
        %v2800 = vunpack.c.h.b16 %v1859
        %v2801 = vunpack.c.l.b16 %v1860
        %v2802 = vunpack.c.h.b16 %v1860
        %v2803 = vunpack.c.l.b16 %v1861
        %v2804 = vunpack.c.h.b16 %v1861
        %v2805 = vunpack.c.l.b16 %v1862
        %v2806 = vunpack.c.h.b16 %v1862
        %v2807 = vunpack.c.l.b16 %v1863
        %v2808 = vunpack.c.h.b16 %v1863
        %v2809 = vunpack.c.l.b16 %v1864
        %v2810 = vunpack.c.h.b16 %v1864
        %v2811 = vunpack.c.l.b16 %v1865
        %v2812 = vunpack.c.h.b16 %v1865
        %v2813 = vunpack.c.l.b16 %v1866
        %v2814 = vunpack.c.h.b16 %v1866
        %v2815 = vunpack.c.l.b16 %v1867
        %v2816 = vunpack.c.h.b16 %v1867
        %v2817 = vunpack.c.l.b16 %v1868
        %v2818 = vunpack.c.h.b16 %v1868
        %v2819 = vunpack.c.l.b16 %v1869
        %v2820 = vunpack.c.h.b16 %v1869
        %v2821 = vunpack.c.l.b16 %v1870
        %v2822 = vunpack.c.h.b16 %v1870
        %v2823 = vunpack.c.l.b16 %v1871
        %v2824 = vunpack.c.h.b16 %v1871
        %v2825 = vunpack.c.l.b16 %v1872
        %v2826 = vunpack.c.h.b16 %v1872
        %v2827 = vpack.c.b16 %v2733, %v2731
        %v2828 = vpack.c.b16 %v2734, %v2732
        %v2829 = vpack.c.b16 %v2737, %v2735
        %v2830 = vpack.c.b16 %v2738, %v2736
        %v2831 = vpack.c.b16 %v2741, %v2739
        %v2832 = vpack.c.b16 %v2742, %v2740
        %v2833 = vpack.c.b16 %v2745, %v2743
        %v2834 = vpack.c.b16 %v2746, %v2744
        %v2835 = vpack.c.b16 %v2749, %v2747
        %v2836 = vpack.c.b16 %v2750, %v2748
        %v2837 = vpack.c.b16 %v2753, %v2751
        %v2838 = vpack.c.b16 %v2754, %v2752
        %v2839 = vpack.c.b16 %v2757, %v2755
        %v2840 = vpack.c.b16 %v2758, %v2756
        %v2841 = vpack.c.b16 %v2761, %v2759
        %v2842 = vpack.c.b16 %v2762, %v2760
        %v2843 = vpack.c.b16 %v2765, %v2763
        %v2844 = vpack.c.b16 %v2766, %v2764
        %v2845 = vpack.c.b16 %v2769, %v2767
        %v2846 = vpack.c.b16 %v2770, %v2768
        %v2847 = vpack.c.b16 %v2773, %v2771
        %v2848 = vpack.c.b16 %v2774, %v2772
        %v2849 = vpack.c.b16 %v2777, %v2775
        %v2850 = vpack.c.b16 %v2778, %v2776
        %v2851 = vpack.c.b16 %v2781, %v2779
        %v2852 = vpack.c.b16 %v2782, %v2780
        %v2853 = vpack.c.b16 %v2785, %v2783
        %v2854 = vpack.c.b16 %v2786, %v2784
        %v2855 = vpack.c.b16 %v2789, %v2787
        %v2856 = vpack.c.b16 %v2790, %v2788
        %v2857 = vpack.c.b16 %v2793, %v2791
        %v2858 = vpack.c.b16 %v2794, %v2792
        %v2859 = vpack.c.b16 %v2797, %v2795
        %v2860 = vpack.c.b16 %v2798, %v2796
        %v2861 = vpack.c.b16 %v2801, %v2799
        %v2862 = vpack.c.b16 %v2802, %v2800
        %v2863 = vpack.c.b16 %v2805, %v2803
        %v2864 = vpack.c.b16 %v2806, %v2804
        %v2865 = vpack.c.b16 %v2809, %v2807
        %v2866 = vpack.c.b16 %v2810, %v2808
        %v2867 = vpack.c.b16 %v2813, %v2811
        %v2868 = vpack.c.b16 %v2814, %v2812
        %v2869 = vpack.c.b16 %v2817, %v2815
        %v2870 = vpack.c.b16 %v2818, %v2816
        %v2871 = vpack.c.b16 %v2821, %v2819
        %v2872 = vpack.c.b16 %v2822, %v2820
        %v2873 = vpack.c.b16 %v2825, %v2823
        %v2874 = vpack.c.b16 %v2826, %v2824
        %2923 = vmatpush.bf16.msra.mxu0 %v2841
        %2924 = vmatpush.bf16.msra.mxu0 %v2839
        %2925 = vmatpush.bf16.msra.mxu0 %v2837
        %2926 = vmatpush.bf16.msra.mxu0 %v2835
        %2927 = vmatpush.bf16.msra.mxu0 %v2833
        %2928 = vmatpush.bf16.msra.mxu0 %v2831
        %2929 = vmatpush.bf16.msra.mxu0 %v2829
        %2930 = vmatpush.bf16.msra.mxu0 %v2827
        %2931 = vmatmul.bf16.gmra.mxu0 %v1822
        %v2932 = vpop.f32.mrf.mxu0
        %v2933 = vadd.f32 %v2274, %v2932
        %v2934 = vpop.f32.mrf.mxu0
        %2935 = vdwg.mxu0
        %2936 = vmatpush.bf16.msra.mxu0 %v2857
        %2937 = vmatpush.bf16.msra.mxu0 %v2855
        %2938 = vmatpush.bf16.msra.mxu0 %v2853
        %2939 = vmatpush.bf16.msra.mxu0 %v2851
        %2940 = vmatpush.bf16.msra.mxu0 %v2849
        %2941 = vmatpush.bf16.msra.mxu0 %v2847
        %2942 = vmatpush.bf16.msra.mxu0 %v2845
        %2943 = vmatpush.bf16.msra.mxu0 %v2843
        %2944 = vmatmul.bf16.gmra.mxu0 %v1823
        %v2945 = vpop.f32.mrf.mxu0
        %v2946 = vadd.f32 %v2933, %v2945
        %v2947 = vpop.f32.mrf.mxu0
        %2948 = vdwg.mxu0
        %2949 = vmatpush.bf16.msra.mxu0 %v2873
        %2950 = vmatpush.bf16.msra.mxu0 %v2871
        %2951 = vmatpush.bf16.msra.mxu0 %v2869
        %2952 = vmatpush.bf16.msra.mxu0 %v2867
        %2953 = vmatpush.bf16.msra.mxu0 %v2865
        %2954 = vmatpush.bf16.msra.mxu0 %v2863
        %2955 = vmatpush.bf16.msra.mxu0 %v2861
        %2956 = vmatpush.bf16.msra.mxu0 %v2859
        %2957 = vmatmul.bf16.gmra.mxu0 %v1824
        %v2958 = vpop.f32.mrf.mxu0
        %v2959 = vadd.f32 %v2946, %v2958
        %v2960 = vpop.f32.mrf.mxu0
        %2961 = vdwg.mxu0
        %2962 = vmatpush.bf16.msra.mxu0 %v2842
        %2963 = vmatpush.bf16.msra.mxu0 %v2840
        %2964 = vmatpush.bf16.msra.mxu0 %v2838
        %2965 = vmatpush.bf16.msra.mxu0 %v2836
        %2966 = vmatpush.bf16.msra.mxu0 %v2834
        %2967 = vmatpush.bf16.msra.mxu0 %v2832
        %2968 = vmatpush.bf16.msra.mxu0 %v2830
        %2969 = vmatpush.bf16.msra.mxu0 %v2828
        %2970 = vmatmul.bf16.gmra.mxu0 %v1822
        %v2971 = vpop.f32.mrf.mxu0
        %v2972 = vadd.f32 %v2313, %v2971
        %v2973 = vpop.f32.mrf.mxu0
        %2974 = vdwg.mxu0
        %2975 = vmatpush.bf16.msra.mxu0 %v2858
        %2976 = vmatpush.bf16.msra.mxu0 %v2856
        %2977 = vmatpush.bf16.msra.mxu0 %v2854
        %2978 = vmatpush.bf16.msra.mxu0 %v2852
        %2979 = vmatpush.bf16.msra.mxu0 %v2850
        %2980 = vmatpush.bf16.msra.mxu0 %v2848
        %2981 = vmatpush.bf16.msra.mxu0 %v2846
        %2982 = vmatpush.bf16.msra.mxu0 %v2844
        %2983 = vmatmul.bf16.gmra.mxu0 %v1823
        %v2984 = vpop.f32.mrf.mxu0
        %v2985 = vadd.f32 %v2972, %v2984
        %v2986 = vpop.f32.mrf.mxu0
        %2987 = vdwg.mxu0
        %2988 = vmatpush.bf16.msra.mxu0 %v2874
        %2989 = vmatpush.bf16.msra.mxu0 %v2872
        %2990 = vmatpush.bf16.msra.mxu0 %v2870
        %2991 = vmatpush.bf16.msra.mxu0 %v2868
        %2992 = vmatpush.bf16.msra.mxu0 %v2866
        %2993 = vmatpush.bf16.msra.mxu0 %v2864
        %2994 = vmatpush.bf16.msra.mxu0 %v2862
        %2995 = vmatpush.bf16.msra.mxu0 %v2860
        %2996 = vmatmul.bf16.gmra.mxu0 %v1824
        %v2997 = vpop.f32.mrf.mxu0
        %v2998 = vadd.f32 %v2985, %v2997
        %v2999 = vpop.f32.mrf.mxu0
        %3000 = vdwg.mxu0
        %v3049 = vunpack.c.l.b16 %v1874
        %v3050 = vunpack.c.h.b16 %v1874
        %v3051 = vunpack.c.l.b16 %v1875
        %v3052 = vunpack.c.h.b16 %v1875
        %v3053 = vunpack.c.l.b16 %v1876
        %v3054 = vunpack.c.h.b16 %v1876
        %v3055 = vunpack.c.l.b16 %v1877
        %v3056 = vunpack.c.h.b16 %v1877
        %v3057 = vunpack.c.l.b16 %v1878
        %v3058 = vunpack.c.h.b16 %v1878
        %v3059 = vunpack.c.l.b16 %v1879
        %v3060 = vunpack.c.h.b16 %v1879
        %v3061 = vunpack.c.l.b16 %v1880
        %v3062 = vunpack.c.h.b16 %v1880
        %v3063 = vunpack.c.l.b16 %v1881
        %v3064 = vunpack.c.h.b16 %v1881
        %v3065 = vunpack.c.l.b16 %v1882
        %v3066 = vunpack.c.h.b16 %v1882
        %v3067 = vunpack.c.l.b16 %v1883
        %v3068 = vunpack.c.h.b16 %v1883
        %v3069 = vunpack.c.l.b16 %v1884
        %v3070 = vunpack.c.h.b16 %v1884
        %v3071 = vunpack.c.l.b16 %v1885
        %v3072 = vunpack.c.h.b16 %v1885
        %v3073 = vunpack.c.l.b16 %v1886
        %v3074 = vunpack.c.h.b16 %v1886
        %v3075 = vunpack.c.l.b16 %v1887
        %v3076 = vunpack.c.h.b16 %v1887
        %v3077 = vunpack.c.l.b16 %v1888
        %v3078 = vunpack.c.h.b16 %v1888
        %v3079 = vunpack.c.l.b16 %v1889
        %v3080 = vunpack.c.h.b16 %v1889
        %v3081 = vunpack.c.l.b16 %v1890
        %v3082 = vunpack.c.h.b16 %v1890
        %v3083 = vunpack.c.l.b16 %v1891
        %v3084 = vunpack.c.h.b16 %v1891
        %v3085 = vunpack.c.l.b16 %v1892
        %v3086 = vunpack.c.h.b16 %v1892
        %v3087 = vunpack.c.l.b16 %v1893
        %v3088 = vunpack.c.h.b16 %v1893
        %v3089 = vunpack.c.l.b16 %v1894
        %v3090 = vunpack.c.h.b16 %v1894
        %v3091 = vunpack.c.l.b16 %v1895
        %v3092 = vunpack.c.h.b16 %v1895
        %v3093 = vunpack.c.l.b16 %v1896
        %v3094 = vunpack.c.h.b16 %v1896
        %v3095 = vunpack.c.l.b16 %v1897
        %v3096 = vunpack.c.h.b16 %v1897
        %v3097 = vunpack.c.l.b16 %v1898
        %v3098 = vunpack.c.h.b16 %v1898
        %v3099 = vunpack.c.l.b16 %v1899
        %v3100 = vunpack.c.h.b16 %v1899
        %v3101 = vunpack.c.l.b16 %v1900
        %v3102 = vunpack.c.h.b16 %v1900
        %v3103 = vunpack.c.l.b16 %v1901
        %v3104 = vunpack.c.h.b16 %v1901
        %v3105 = vunpack.c.l.b16 %v1902
        %v3106 = vunpack.c.h.b16 %v1902
        %v3107 = vunpack.c.l.b16 %v1903
        %v3108 = vunpack.c.h.b16 %v1903
        %v3109 = vunpack.c.l.b16 %v1904
        %v3110 = vunpack.c.h.b16 %v1904
        %v3111 = vunpack.c.l.b16 %v1905
        %v3112 = vunpack.c.h.b16 %v1905
        %v3113 = vunpack.c.l.b16 %v1906
        %v3114 = vunpack.c.h.b16 %v1906
        %v3115 = vunpack.c.l.b16 %v1907
        %v3116 = vunpack.c.h.b16 %v1907
        %v3117 = vunpack.c.l.b16 %v1908
        %v3118 = vunpack.c.h.b16 %v1908
        %v3119 = vunpack.c.l.b16 %v1909
        %v3120 = vunpack.c.h.b16 %v1909
        %v3121 = vunpack.c.l.b16 %v1910
        %v3122 = vunpack.c.h.b16 %v1910
        %v3123 = vunpack.c.l.b16 %v1911
        %v3124 = vunpack.c.h.b16 %v1911
        %v3125 = vunpack.c.l.b16 %v1912
        %v3126 = vunpack.c.h.b16 %v1912
        %v3127 = vunpack.c.l.b16 %v1913
        %v3128 = vunpack.c.h.b16 %v1913
        %v3129 = vunpack.c.l.b16 %v1914
        %v3130 = vunpack.c.h.b16 %v1914
        %v3131 = vunpack.c.l.b16 %v1915
        %v3132 = vunpack.c.h.b16 %v1915
        %v3133 = vunpack.c.l.b16 %v1916
        %v3134 = vunpack.c.h.b16 %v1916
        %v3135 = vunpack.c.l.b16 %v1917
        %v3136 = vunpack.c.h.b16 %v1917
        %v3137 = vunpack.c.l.b16 %v1918
        %v3138 = vunpack.c.h.b16 %v1918
        %v3139 = vunpack.c.l.b16 %v1919
        %v3140 = vunpack.c.h.b16 %v1919
        %v3141 = vunpack.c.l.b16 %v1920
        %v3142 = vunpack.c.h.b16 %v1920
        %v3143 = vunpack.c.l.b16 %v1921
        %v3144 = vunpack.c.h.b16 %v1921
        %v3145 = vpack.c.b16 %v3051, %v3049
        %v3146 = vpack.c.b16 %v3052, %v3050
        %v3147 = vpack.c.b16 %v3055, %v3053
        %v3148 = vpack.c.b16 %v3056, %v3054
        %v3149 = vpack.c.b16 %v3059, %v3057
        %v3150 = vpack.c.b16 %v3060, %v3058
        %v3151 = vpack.c.b16 %v3063, %v3061
        %v3152 = vpack.c.b16 %v3064, %v3062
        %v3153 = vpack.c.b16 %v3067, %v3065
        %v3154 = vpack.c.b16 %v3068, %v3066
        %v3155 = vpack.c.b16 %v3071, %v3069
        %v3156 = vpack.c.b16 %v3072, %v3070
        %v3157 = vpack.c.b16 %v3075, %v3073
        %v3158 = vpack.c.b16 %v3076, %v3074
        %v3159 = vpack.c.b16 %v3079, %v3077
        %v3160 = vpack.c.b16 %v3080, %v3078
        %v3161 = vpack.c.b16 %v3083, %v3081
        %v3162 = vpack.c.b16 %v3084, %v3082
        %v3163 = vpack.c.b16 %v3087, %v3085
        %v3164 = vpack.c.b16 %v3088, %v3086
        %v3165 = vpack.c.b16 %v3091, %v3089
        %v3166 = vpack.c.b16 %v3092, %v3090
        %v3167 = vpack.c.b16 %v3095, %v3093
        %v3168 = vpack.c.b16 %v3096, %v3094
        %v3169 = vpack.c.b16 %v3099, %v3097
        %v3170 = vpack.c.b16 %v3100, %v3098
        %v3171 = vpack.c.b16 %v3103, %v3101
        %v3172 = vpack.c.b16 %v3104, %v3102
        %v3173 = vpack.c.b16 %v3107, %v3105
        %v3174 = vpack.c.b16 %v3108, %v3106
        %v3175 = vpack.c.b16 %v3111, %v3109
        %v3176 = vpack.c.b16 %v3112, %v3110
        %v3177 = vpack.c.b16 %v3115, %v3113
        %v3178 = vpack.c.b16 %v3116, %v3114
        %v3179 = vpack.c.b16 %v3119, %v3117
        %v3180 = vpack.c.b16 %v3120, %v3118
        %v3181 = vpack.c.b16 %v3123, %v3121
        %v3182 = vpack.c.b16 %v3124, %v3122
        %v3183 = vpack.c.b16 %v3127, %v3125
        %v3184 = vpack.c.b16 %v3128, %v3126
        %v3185 = vpack.c.b16 %v3131, %v3129
        %v3186 = vpack.c.b16 %v3132, %v3130
        %v3187 = vpack.c.b16 %v3135, %v3133
        %v3188 = vpack.c.b16 %v3136, %v3134
        %v3189 = vpack.c.b16 %v3139, %v3137
        %v3190 = vpack.c.b16 %v3140, %v3138
        %v3191 = vpack.c.b16 %v3143, %v3141
        %v3192 = vpack.c.b16 %v3144, %v3142
        %3241 = vmatpush.bf16.msra.mxu0 %v3159
        %3242 = vmatpush.bf16.msra.mxu0 %v3157
        %3243 = vmatpush.bf16.msra.mxu0 %v3155
        %3244 = vmatpush.bf16.msra.mxu0 %v3153
        %3245 = vmatpush.bf16.msra.mxu0 %v3151
        %3246 = vmatpush.bf16.msra.mxu0 %v3149
        %3247 = vmatpush.bf16.msra.mxu0 %v3147
        %3248 = vmatpush.bf16.msra.mxu0 %v3145
        %3249 = vmatmul.bf16.gmra.mxu0 %v1822
        %v3250 = vpop.f32.mrf.mxu0
        %v3251 = vadd.f32 %v2641, %v3250
        %v3252 = vpop.f32.mrf.mxu0
        %3253 = vdwg.mxu0
        %3254 = vmatpush.bf16.msra.mxu0 %v3175
        %3255 = vmatpush.bf16.msra.mxu0 %v3173
        %3256 = vmatpush.bf16.msra.mxu0 %v3171
        %3257 = vmatpush.bf16.msra.mxu0 %v3169
        %3258 = vmatpush.bf16.msra.mxu0 %v3167
        %3259 = vmatpush.bf16.msra.mxu0 %v3165
        %3260 = vmatpush.bf16.msra.mxu0 %v3163
        %3261 = vmatpush.bf16.msra.mxu0 %v3161
        %3262 = vmatmul.bf16.gmra.mxu0 %v1823
        %v3263 = vpop.f32.mrf.mxu0
        %v3264 = vadd.f32 %v3251, %v3263
        %v3265 = vpop.f32.mrf.mxu0
        %3266 = vdwg.mxu0
        %3267 = vmatpush.bf16.msra.mxu0 %v3191
        %3268 = vmatpush.bf16.msra.mxu0 %v3189
        %3269 = vmatpush.bf16.msra.mxu0 %v3187
        %3270 = vmatpush.bf16.msra.mxu0 %v3185
        %3271 = vmatpush.bf16.msra.mxu0 %v3183
        %3272 = vmatpush.bf16.msra.mxu0 %v3181
        %3273 = vmatpush.bf16.msra.mxu0 %v3179
        %3274 = vmatpush.bf16.msra.mxu0 %v3177
        %3275 = vmatmul.bf16.gmra.mxu0 %v1824
        %v3276 = vpop.f32.mrf.mxu0
        %v3277 = vadd.f32 %v3264, %v3276
        %v3278 = vpop.f32.mrf.mxu0
        %3279 = vdwg.mxu0
        %3280 = vmatpush.bf16.msra.mxu0 %v3160
        %3281 = vmatpush.bf16.msra.mxu0 %v3158
        %3282 = vmatpush.bf16.msra.mxu0 %v3156
        %3283 = vmatpush.bf16.msra.mxu0 %v3154
        %3284 = vmatpush.bf16.msra.mxu0 %v3152
        %3285 = vmatpush.bf16.msra.mxu0 %v3150
        %3286 = vmatpush.bf16.msra.mxu0 %v3148
        %3287 = vmatpush.bf16.msra.mxu0 %v3146
        %3288 = vmatmul.bf16.gmra.mxu0 %v1822
        %v3289 = vpop.f32.mrf.mxu0
        %v3290 = vadd.f32 %v2680, %v3289
        %v3291 = vpop.f32.mrf.mxu0
        %3292 = vdwg.mxu0
        %3293 = vmatpush.bf16.msra.mxu0 %v3176
        %3294 = vmatpush.bf16.msra.mxu0 %v3174
        %3295 = vmatpush.bf16.msra.mxu0 %v3172
        %3296 = vmatpush.bf16.msra.mxu0 %v3170
        %3297 = vmatpush.bf16.msra.mxu0 %v3168
        %3298 = vmatpush.bf16.msra.mxu0 %v3166
        %3299 = vmatpush.bf16.msra.mxu0 %v3164
        %3300 = vmatpush.bf16.msra.mxu0 %v3162
        %3301 = vmatmul.bf16.gmra.mxu0 %v1823
        %v3302 = vpop.f32.mrf.mxu0
        %v3303 = vadd.f32 %v3290, %v3302
        %v3304 = vpop.f32.mrf.mxu0
        %3305 = vdwg.mxu0
        %3306 = vmatpush.bf16.msra.mxu0 %v3192
        %3307 = vmatpush.bf16.msra.mxu0 %v3190
        %3308 = vmatpush.bf16.msra.mxu0 %v3188
        %3309 = vmatpush.bf16.msra.mxu0 %v3186
        %3310 = vmatpush.bf16.msra.mxu0 %v3184
        %3311 = vmatpush.bf16.msra.mxu0 %v3182
        %3312 = vmatpush.bf16.msra.mxu0 %v3180
        %3313 = vmatpush.bf16.msra.mxu0 %v3178
        %3314 = vmatmul.bf16.gmra.mxu0 %v1824
        %v3315 = vpop.f32.mrf.mxu0
        %v3316 = vadd.f32 %v3303, %v3315
        %v3317 = vpop.f32.mrf.mxu0
        %3318 = vdwg.mxu0
        %s3319 = scalar_lea.vmem [#allocation4], 768
        %v3320 = vld [vmem:[%s3319] sm:$0xff]
        %v3321 = vld [vmem:[%s3319 + $0x8] sm:$0xff]
        %v3322 = vld [vmem:[%s3319 + $0x10] sm:$0xff]
        %v3323 = vld [vmem:[%s3319 + $0x18] sm:$0xff]
        %v3324 = vld [vmem:[%s3319 + $0x20] sm:$0xff]
        %v3325 = vld [vmem:[%s3319 + $0x28] sm:$0xff]
        %v3326 = vld [vmem:[%s3319 + $0x30] sm:$0xff]
        %v3327 = vld [vmem:[%s3319 + $0x38] sm:$0xff]
        %v3328 = vld [vmem:[%s3319 + $0x40] sm:$0xff]
        %v3329 = vld [vmem:[%s3319 + $0x48] sm:$0xff]
        %v3330 = vld [vmem:[%s3319 + $0x50] sm:$0xff]
        %v3331 = vld [vmem:[%s3319 + $0x58] sm:$0xff]
        %v3332 = vld [vmem:[%s3319 + $0x60] sm:$0xff]
        %v3333 = vld [vmem:[%s3319 + $0x68] sm:$0xff]
        %v3334 = vld [vmem:[%s3319 + $0x70] sm:$0xff]
        %v3335 = vld [vmem:[%s3319 + $0x78] sm:$0xff]
        %v3336 = vld [vmem:[%s3319 + $0x80] sm:$0xff]
        %v3337 = vld [vmem:[%s3319 + $0x88] sm:$0xff]
        %v3338 = vld [vmem:[%s3319 + $0x90] sm:$0xff]
        %v3339 = vld [vmem:[%s3319 + $0x98] sm:$0xff]
        %v3340 = vld [vmem:[%s3319 + $0xa0] sm:$0xff]
        %v3341 = vld [vmem:[%s3319 + $0xa8] sm:$0xff]
        %v3342 = vld [vmem:[%s3319 + $0xb0] sm:$0xff]
        %v3343 = vld [vmem:[%s3319 + $0xb8] sm:$0xff]
        %v3344 = vld [vmem:[%s3319 + $0xc0] sm:$0xff]
        %v3345 = vld [vmem:[%s3319 + $0xc8] sm:$0xff]
        %v3346 = vld [vmem:[%s3319 + $0xd0] sm:$0xff]
        %v3347 = vld [vmem:[%s3319 + $0xd8] sm:$0xff]
        %v3348 = vld [vmem:[%s3319 + $0xe0] sm:$0xff]
        %v3349 = vld [vmem:[%s3319 + $0xe8] sm:$0xff]
        %v3350 = vld [vmem:[%s3319 + $0xf0] sm:$0xff]
        %v3351 = vld [vmem:[%s3319 + $0xf8] sm:$0xff]
        %v3352 = vld [vmem:[%s3319 + $0x100] sm:$0xff]
        %v3353 = vld [vmem:[%s3319 + $0x108] sm:$0xff]
        %v3354 = vld [vmem:[%s3319 + $0x110] sm:$0xff]
        %v3355 = vld [vmem:[%s3319 + $0x118] sm:$0xff]
        %v3356 = vld [vmem:[%s3319 + $0x120] sm:$0xff]
        %v3357 = vld [vmem:[%s3319 + $0x128] sm:$0xff]
        %v3358 = vld [vmem:[%s3319 + $0x130] sm:$0xff]
        %v3359 = vld [vmem:[%s3319 + $0x138] sm:$0xff]
        %v3360 = vld [vmem:[%s3319 + $0x140] sm:$0xff]
        %v3361 = vld [vmem:[%s3319 + $0x148] sm:$0xff]
        %v3362 = vld [vmem:[%s3319 + $0x150] sm:$0xff]
        %v3363 = vld [vmem:[%s3319 + $0x158] sm:$0xff]
        %v3364 = vld [vmem:[%s3319 + $0x160] sm:$0xff]
        %v3365 = vld [vmem:[%s3319 + $0x168] sm:$0xff]
        %v3366 = vld [vmem:[%s3319 + $0x170] sm:$0xff]
        %v3367 = vld [vmem:[%s3319 + $0x178] sm:$0xff]
        %v3371 = vrot.slane %v1922, 1
        %v3372 = vrot.slane %v1923, 1
        %v3373 = vrot.slane %v1924, 1
        %v3425 = vunpack.c.l.b16 %v3320
        %v3426 = vunpack.c.h.b16 %v3320
        %v3427 = vunpack.c.l.b16 %v3321
        %v3428 = vunpack.c.h.b16 %v3321
        %v3429 = vunpack.c.l.b16 %v3322
        %v3430 = vunpack.c.h.b16 %v3322
        %v3431 = vunpack.c.l.b16 %v3323
        %v3432 = vunpack.c.h.b16 %v3323
        %v3433 = vunpack.c.l.b16 %v3324
        %v3434 = vunpack.c.h.b16 %v3324
        %v3435 = vunpack.c.l.b16 %v3325
        %v3436 = vunpack.c.h.b16 %v3325
        %v3437 = vunpack.c.l.b16 %v3326
        %v3438 = vunpack.c.h.b16 %v3326
        %v3439 = vunpack.c.l.b16 %v3327
        %v3440 = vunpack.c.h.b16 %v3327
        %v3441 = vunpack.c.l.b16 %v3328
        %v3442 = vunpack.c.h.b16 %v3328
        %v3443 = vunpack.c.l.b16 %v3329
        %v3444 = vunpack.c.h.b16 %v3329
        %v3445 = vunpack.c.l.b16 %v3330
        %v3446 = vunpack.c.h.b16 %v3330
        %v3447 = vunpack.c.l.b16 %v3331
        %v3448 = vunpack.c.h.b16 %v3331
        %v3449 = vunpack.c.l.b16 %v3332
        %v3450 = vunpack.c.h.b16 %v3332
        %v3451 = vunpack.c.l.b16 %v3333
        %v3452 = vunpack.c.h.b16 %v3333
        %v3453 = vunpack.c.l.b16 %v3334
        %v3454 = vunpack.c.h.b16 %v3334
        %v3455 = vunpack.c.l.b16 %v3335
        %v3456 = vunpack.c.h.b16 %v3335
        %v3457 = vunpack.c.l.b16 %v3336
        %v3458 = vunpack.c.h.b16 %v3336
        %v3459 = vunpack.c.l.b16 %v3337
        %v3460 = vunpack.c.h.b16 %v3337
        %v3461 = vunpack.c.l.b16 %v3338
        %v3462 = vunpack.c.h.b16 %v3338
        %v3463 = vunpack.c.l.b16 %v3339
        %v3464 = vunpack.c.h.b16 %v3339
        %v3465 = vunpack.c.l.b16 %v3340
        %v3466 = vunpack.c.h.b16 %v3340
        %v3467 = vunpack.c.l.b16 %v3341
        %v3468 = vunpack.c.h.b16 %v3341
        %v3469 = vunpack.c.l.b16 %v3342
        %v3470 = vunpack.c.h.b16 %v3342
        %v3471 = vunpack.c.l.b16 %v3343
        %v3472 = vunpack.c.h.b16 %v3343
        %v3473 = vunpack.c.l.b16 %v3344
        %v3474 = vunpack.c.h.b16 %v3344
        %v3475 = vunpack.c.l.b16 %v3345
        %v3476 = vunpack.c.h.b16 %v3345
        %v3477 = vunpack.c.l.b16 %v3346
        %v3478 = vunpack.c.h.b16 %v3346
        %v3479 = vunpack.c.l.b16 %v3347
        %v3480 = vunpack.c.h.b16 %v3347
        %v3481 = vunpack.c.l.b16 %v3348
        %v3482 = vunpack.c.h.b16 %v3348
        %v3483 = vunpack.c.l.b16 %v3349
        %v3484 = vunpack.c.h.b16 %v3349
        %v3485 = vunpack.c.l.b16 %v3350
        %v3486 = vunpack.c.h.b16 %v3350
        %v3487 = vunpack.c.l.b16 %v3351
        %v3488 = vunpack.c.h.b16 %v3351
        %v3489 = vunpack.c.l.b16 %v3352
        %v3490 = vunpack.c.h.b16 %v3352
        %v3491 = vunpack.c.l.b16 %v3353
        %v3492 = vunpack.c.h.b16 %v3353
        %v3493 = vunpack.c.l.b16 %v3354
        %v3494 = vunpack.c.h.b16 %v3354
        %v3495 = vunpack.c.l.b16 %v3355
        %v3496 = vunpack.c.h.b16 %v3355
        %v3497 = vunpack.c.l.b16 %v3356
        %v3498 = vunpack.c.h.b16 %v3356
        %v3499 = vunpack.c.l.b16 %v3357
        %v3500 = vunpack.c.h.b16 %v3357
        %v3501 = vunpack.c.l.b16 %v3358
        %v3502 = vunpack.c.h.b16 %v3358
        %v3503 = vunpack.c.l.b16 %v3359
        %v3504 = vunpack.c.h.b16 %v3359
        %v3505 = vunpack.c.l.b16 %v3360
        %v3506 = vunpack.c.h.b16 %v3360
        %v3507 = vunpack.c.l.b16 %v3361
        %v3508 = vunpack.c.h.b16 %v3361
        %v3509 = vunpack.c.l.b16 %v3362
        %v3510 = vunpack.c.h.b16 %v3362
        %v3511 = vunpack.c.l.b16 %v3363
        %v3512 = vunpack.c.h.b16 %v3363
        %v3513 = vunpack.c.l.b16 %v3364
        %v3514 = vunpack.c.h.b16 %v3364
        %v3515 = vunpack.c.l.b16 %v3365
        %v3516 = vunpack.c.h.b16 %v3365
        %v3517 = vunpack.c.l.b16 %v3366
        %v3518 = vunpack.c.h.b16 %v3366
        %v3519 = vunpack.c.l.b16 %v3367
        %v3520 = vunpack.c.h.b16 %v3367
        %v3521 = vpack.c.b16 %v3427, %v3425
        %v3522 = vpack.c.b16 %v3428, %v3426
        %v3523 = vpack.c.b16 %v3431, %v3429
        %v3524 = vpack.c.b16 %v3432, %v3430
        %v3525 = vpack.c.b16 %v3435, %v3433
        %v3526 = vpack.c.b16 %v3436, %v3434
        %v3527 = vpack.c.b16 %v3439, %v3437
        %v3528 = vpack.c.b16 %v3440, %v3438
        %v3529 = vpack.c.b16 %v3443, %v3441
        %v3530 = vpack.c.b16 %v3444, %v3442
        %v3531 = vpack.c.b16 %v3447, %v3445
        %v3532 = vpack.c.b16 %v3448, %v3446
        %v3533 = vpack.c.b16 %v3451, %v3449
        %v3534 = vpack.c.b16 %v3452, %v3450
        %v3535 = vpack.c.b16 %v3455, %v3453
        %v3536 = vpack.c.b16 %v3456, %v3454
        %v3537 = vpack.c.b16 %v3459, %v3457
        %v3538 = vpack.c.b16 %v3460, %v3458
        %v3539 = vpack.c.b16 %v3463, %v3461
        %v3540 = vpack.c.b16 %v3464, %v3462
        %v3541 = vpack.c.b16 %v3467, %v3465
        %v3542 = vpack.c.b16 %v3468, %v3466
        %v3543 = vpack.c.b16 %v3471, %v3469
        %v3544 = vpack.c.b16 %v3472, %v3470
        %v3545 = vpack.c.b16 %v3475, %v3473
        %v3546 = vpack.c.b16 %v3476, %v3474
        %v3547 = vpack.c.b16 %v3479, %v3477
        %v3548 = vpack.c.b16 %v3480, %v3478
        %v3549 = vpack.c.b16 %v3483, %v3481
        %v3550 = vpack.c.b16 %v3484, %v3482
        %v3551 = vpack.c.b16 %v3487, %v3485
        %v3552 = vpack.c.b16 %v3488, %v3486
        %v3553 = vpack.c.b16 %v3491, %v3489
        %v3554 = vpack.c.b16 %v3492, %v3490
        %v3555 = vpack.c.b16 %v3495, %v3493
        %v3556 = vpack.c.b16 %v3496, %v3494
        %v3557 = vpack.c.b16 %v3499, %v3497
        %v3558 = vpack.c.b16 %v3500, %v3498
        %v3559 = vpack.c.b16 %v3503, %v3501
        %v3560 = vpack.c.b16 %v3504, %v3502
        %v3561 = vpack.c.b16 %v3507, %v3505
        %v3562 = vpack.c.b16 %v3508, %v3506
        %v3563 = vpack.c.b16 %v3511, %v3509
        %v3564 = vpack.c.b16 %v3512, %v3510
        %v3565 = vpack.c.b16 %v3515, %v3513
        %v3566 = vpack.c.b16 %v3516, %v3514
        %v3567 = vpack.c.b16 %v3519, %v3517
        %v3568 = vpack.c.b16 %v3520, %v3518
        %3617 = vmatpush.bf16.msra.mxu0 %v3535
        %3618 = vmatpush.bf16.msra.mxu0 %v3533
        %3619 = vmatpush.bf16.msra.mxu0 %v3531
        %3620 = vmatpush.bf16.msra.mxu0 %v3529
        %3621 = vmatpush.bf16.msra.mxu0 %v3527
        %3622 = vmatpush.bf16.msra.mxu0 %v3525
        %3623 = vmatpush.bf16.msra.mxu0 %v3523
        %3624 = vmatpush.bf16.msra.mxu0 %v3521
        %3625 = vmatmul.bf16.gmra.mxu0 %v3371
        %v3626 = vpop.f32.mrf.mxu0
        %v3627 = vadd.f32 0.0, %v3626
        %v3628 = vpop.f32.mrf.mxu0
        %3629 = vdwg.mxu0
        %3630 = vmatpush.bf16.msra.mxu0 %v3551
        %3631 = vmatpush.bf16.msra.mxu0 %v3549
        %3632 = vmatpush.bf16.msra.mxu0 %v3547
        %3633 = vmatpush.bf16.msra.mxu0 %v3545
        %3634 = vmatpush.bf16.msra.mxu0 %v3543
        %3635 = vmatpush.bf16.msra.mxu0 %v3541
        %3636 = vmatpush.bf16.msra.mxu0 %v3539
        %3637 = vmatpush.bf16.msra.mxu0 %v3537
        %3638 = vmatmul.bf16.gmra.mxu0 %v3372
        %v3639 = vpop.f32.mrf.mxu0
        %v3640 = vadd.f32 %v3627, %v3639
        %v3641 = vpop.f32.mrf.mxu0
        %3642 = vdwg.mxu0
        %3643 = vmatpush.bf16.msra.mxu0 %v3567
        %3644 = vmatpush.bf16.msra.mxu0 %v3565
        %3645 = vmatpush.bf16.msra.mxu0 %v3563
        %3646 = vmatpush.bf16.msra.mxu0 %v3561
        %3647 = vmatpush.bf16.msra.mxu0 %v3559
        %3648 = vmatpush.bf16.msra.mxu0 %v3557
        %3649 = vmatpush.bf16.msra.mxu0 %v3555
        %3650 = vmatpush.bf16.msra.mxu0 %v3553
        %3651 = vmatmul.bf16.gmra.mxu0 %v3373
        %v3652 = vpop.f32.mrf.mxu0
        %v3653 = vadd.f32 %v3640, %v3652
        %v3654 = vpop.f32.mrf.mxu0
        %3655 = vdwg.mxu0
        %3656 = vmatpush.bf16.msra.mxu0 %v3536
        %3657 = vmatpush.bf16.msra.mxu0 %v3534
        %3658 = vmatpush.bf16.msra.mxu0 %v3532
        %3659 = vmatpush.bf16.msra.mxu0 %v3530
        %3660 = vmatpush.bf16.msra.mxu0 %v3528
        %3661 = vmatpush.bf16.msra.mxu0 %v3526
        %3662 = vmatpush.bf16.msra.mxu0 %v3524
        %3663 = vmatpush.bf16.msra.mxu0 %v3522
        %3664 = vmatmul.bf16.gmra.mxu0 %v3371
        %v3665 = vpop.f32.mrf.mxu0
        %v3666 = vadd.f32 0.0, %v3665
        %v3667 = vpop.f32.mrf.mxu0
        %3668 = vdwg.mxu0
        %3669 = vmatpush.bf16.msra.mxu0 %v3552
        %3670 = vmatpush.bf16.msra.mxu0 %v3550
        %3671 = vmatpush.bf16.msra.mxu0 %v3548
        %3672 = vmatpush.bf16.msra.mxu0 %v3546
        %3673 = vmatpush.bf16.msra.mxu0 %v3544
        %3674 = vmatpush.bf16.msra.mxu0 %v3542
        %3675 = vmatpush.bf16.msra.mxu0 %v3540
        %3676 = vmatpush.bf16.msra.mxu0 %v3538
        %3677 = vmatmul.bf16.gmra.mxu0 %v3372
        %v3678 = vpop.f32.mrf.mxu0
        %v3679 = vadd.f32 %v3666, %v3678
        %v3680 = vpop.f32.mrf.mxu0
        %3681 = vdwg.mxu0
        %3682 = vmatpush.bf16.msra.mxu0 %v3568
        %3683 = vmatpush.bf16.msra.mxu0 %v3566
        %3684 = vmatpush.bf16.msra.mxu0 %v3564
        %3685 = vmatpush.bf16.msra.mxu0 %v3562
        %3686 = vmatpush.bf16.msra.mxu0 %v3560
        %3687 = vmatpush.bf16.msra.mxu0 %v3558
        %3688 = vmatpush.bf16.msra.mxu0 %v3556
        %3689 = vmatpush.bf16.msra.mxu0 %v3554
        %3690 = vmatmul.bf16.gmra.mxu0 %v3373
        %v3691 = vpop.f32.mrf.mxu0
        %v3692 = vadd.f32 %v3679, %v3691
        %v3693 = vpop.f32.mrf.mxu0
        %3694 = vdwg.mxu0
        %s3695 = scalar_lea.vmem [#allocation4], 2688
        %v3696 = vld [vmem:[%s3695] sm:$0xff]
        %v3697 = vld [vmem:[%s3695 + $0x8] sm:$0xff]
        %v3698 = vld [vmem:[%s3695 + $0x10] sm:$0xff]
        %v3699 = vld [vmem:[%s3695 + $0x18] sm:$0xff]
        %v3700 = vld [vmem:[%s3695 + $0x20] sm:$0xff]
        %v3701 = vld [vmem:[%s3695 + $0x28] sm:$0xff]
        %v3702 = vld [vmem:[%s3695 + $0x30] sm:$0xff]
        %v3703 = vld [vmem:[%s3695 + $0x38] sm:$0xff]
        %v3704 = vld [vmem:[%s3695 + $0x40] sm:$0xff]
        %v3705 = vld [vmem:[%s3695 + $0x48] sm:$0xff]
        %v3706 = vld [vmem:[%s3695 + $0x50] sm:$0xff]
        %v3707 = vld [vmem:[%s3695 + $0x58] sm:$0xff]
        %v3708 = vld [vmem:[%s3695 + $0x60] sm:$0xff]
        %v3709 = vld [vmem:[%s3695 + $0x68] sm:$0xff]
        %v3710 = vld [vmem:[%s3695 + $0x70] sm:$0xff]
        %v3711 = vld [vmem:[%s3695 + $0x78] sm:$0xff]
        %v3712 = vld [vmem:[%s3695 + $0x80] sm:$0xff]
        %v3713 = vld [vmem:[%s3695 + $0x88] sm:$0xff]
        %v3714 = vld [vmem:[%s3695 + $0x90] sm:$0xff]
        %v3715 = vld [vmem:[%s3695 + $0x98] sm:$0xff]
        %v3716 = vld [vmem:[%s3695 + $0xa0] sm:$0xff]
        %v3717 = vld [vmem:[%s3695 + $0xa8] sm:$0xff]
        %v3718 = vld [vmem:[%s3695 + $0xb0] sm:$0xff]
        %v3719 = vld [vmem:[%s3695 + $0xb8] sm:$0xff]
        %v3720 = vld [vmem:[%s3695 + $0xc0] sm:$0xff]
        %v3721 = vld [vmem:[%s3695 + $0xc8] sm:$0xff]
        %v3722 = vld [vmem:[%s3695 + $0xd0] sm:$0xff]
        %v3723 = vld [vmem:[%s3695 + $0xd8] sm:$0xff]
        %v3724 = vld [vmem:[%s3695 + $0xe0] sm:$0xff]
        %v3725 = vld [vmem:[%s3695 + $0xe8] sm:$0xff]
        %v3726 = vld [vmem:[%s3695 + $0xf0] sm:$0xff]
        %v3727 = vld [vmem:[%s3695 + $0xf8] sm:$0xff]
        %v3728 = vld [vmem:[%s3695 + $0x100] sm:$0xff]
        %v3729 = vld [vmem:[%s3695 + $0x108] sm:$0xff]
        %v3730 = vld [vmem:[%s3695 + $0x110] sm:$0xff]
        %v3731 = vld [vmem:[%s3695 + $0x118] sm:$0xff]
        %v3732 = vld [vmem:[%s3695 + $0x120] sm:$0xff]
        %v3733 = vld [vmem:[%s3695 + $0x128] sm:$0xff]
        %v3734 = vld [vmem:[%s3695 + $0x130] sm:$0xff]
        %v3735 = vld [vmem:[%s3695 + $0x138] sm:$0xff]
        %v3736 = vld [vmem:[%s3695 + $0x140] sm:$0xff]
        %v3737 = vld [vmem:[%s3695 + $0x148] sm:$0xff]
        %v3738 = vld [vmem:[%s3695 + $0x150] sm:$0xff]
        %v3739 = vld [vmem:[%s3695 + $0x158] sm:$0xff]
        %v3740 = vld [vmem:[%s3695 + $0x160] sm:$0xff]
        %v3741 = vld [vmem:[%s3695 + $0x168] sm:$0xff]
        %v3742 = vld [vmem:[%s3695 + $0x170] sm:$0xff]
        %v3743 = vld [vmem:[%s3695 + $0x178] sm:$0xff]
        %v3792 = vunpack.c.l.b16 %v3696
        %v3793 = vunpack.c.h.b16 %v3696
        %v3794 = vunpack.c.l.b16 %v3697
        %v3795 = vunpack.c.h.b16 %v3697
        %v3796 = vunpack.c.l.b16 %v3698
        %v3797 = vunpack.c.h.b16 %v3698
        %v3798 = vunpack.c.l.b16 %v3699
        %v3799 = vunpack.c.h.b16 %v3699
        %v3800 = vunpack.c.l.b16 %v3700
        %v3801 = vunpack.c.h.b16 %v3700
        %v3802 = vunpack.c.l.b16 %v3701
        %v3803 = vunpack.c.h.b16 %v3701
        %v3804 = vunpack.c.l.b16 %v3702
        %v3805 = vunpack.c.h.b16 %v3702
        %v3806 = vunpack.c.l.b16 %v3703
        %v3807 = vunpack.c.h.b16 %v3703
        %v3808 = vunpack.c.l.b16 %v3704
        %v3809 = vunpack.c.h.b16 %v3704
        %v3810 = vunpack.c.l.b16 %v3705
        %v3811 = vunpack.c.h.b16 %v3705
        %v3812 = vunpack.c.l.b16 %v3706
        %v3813 = vunpack.c.h.b16 %v3706
        %v3814 = vunpack.c.l.b16 %v3707
        %v3815 = vunpack.c.h.b16 %v3707
        %v3816 = vunpack.c.l.b16 %v3708
        %v3817 = vunpack.c.h.b16 %v3708
        %v3818 = vunpack.c.l.b16 %v3709
        %v3819 = vunpack.c.h.b16 %v3709
        %v3820 = vunpack.c.l.b16 %v3710
        %v3821 = vunpack.c.h.b16 %v3710
        %v3822 = vunpack.c.l.b16 %v3711
        %v3823 = vunpack.c.h.b16 %v3711
        %v3824 = vunpack.c.l.b16 %v3712
        %v3825 = vunpack.c.h.b16 %v3712
        %v3826 = vunpack.c.l.b16 %v3713
        %v3827 = vunpack.c.h.b16 %v3713
        %v3828 = vunpack.c.l.b16 %v3714
        %v3829 = vunpack.c.h.b16 %v3714
        %v3830 = vunpack.c.l.b16 %v3715
        %v3831 = vunpack.c.h.b16 %v3715
        %v3832 = vunpack.c.l.b16 %v3716
        %v3833 = vunpack.c.h.b16 %v3716
        %v3834 = vunpack.c.l.b16 %v3717
        %v3835 = vunpack.c.h.b16 %v3717
        %v3836 = vunpack.c.l.b16 %v3718
        %v3837 = vunpack.c.h.b16 %v3718
        %v3838 = vunpack.c.l.b16 %v3719
        %v3839 = vunpack.c.h.b16 %v3719
        %v3840 = vunpack.c.l.b16 %v3720
        %v3841 = vunpack.c.h.b16 %v3720
        %v3842 = vunpack.c.l.b16 %v3721
        %v3843 = vunpack.c.h.b16 %v3721
        %v3844 = vunpack.c.l.b16 %v3722
        %v3845 = vunpack.c.h.b16 %v3722
        %v3846 = vunpack.c.l.b16 %v3723
        %v3847 = vunpack.c.h.b16 %v3723
        %v3848 = vunpack.c.l.b16 %v3724
        %v3849 = vunpack.c.h.b16 %v3724
        %v3850 = vunpack.c.l.b16 %v3725
        %v3851 = vunpack.c.h.b16 %v3725
        %v3852 = vunpack.c.l.b16 %v3726
        %v3853 = vunpack.c.h.b16 %v3726
        %v3854 = vunpack.c.l.b16 %v3727
        %v3855 = vunpack.c.h.b16 %v3727
        %v3856 = vunpack.c.l.b16 %v3728
        %v3857 = vunpack.c.h.b16 %v3728
        %v3858 = vunpack.c.l.b16 %v3729
        %v3859 = vunpack.c.h.b16 %v3729
        %v3860 = vunpack.c.l.b16 %v3730
        %v3861 = vunpack.c.h.b16 %v3730
        %v3862 = vunpack.c.l.b16 %v3731
        %v3863 = vunpack.c.h.b16 %v3731
        %v3864 = vunpack.c.l.b16 %v3732
        %v3865 = vunpack.c.h.b16 %v3732
        %v3866 = vunpack.c.l.b16 %v3733
        %v3867 = vunpack.c.h.b16 %v3733
        %v3868 = vunpack.c.l.b16 %v3734
        %v3869 = vunpack.c.h.b16 %v3734
        %v3870 = vunpack.c.l.b16 %v3735
        %v3871 = vunpack.c.h.b16 %v3735
        %v3872 = vunpack.c.l.b16 %v3736
        %v3873 = vunpack.c.h.b16 %v3736
        %v3874 = vunpack.c.l.b16 %v3737
        %v3875 = vunpack.c.h.b16 %v3737
        %v3876 = vunpack.c.l.b16 %v3738
        %v3877 = vunpack.c.h.b16 %v3738
        %v3878 = vunpack.c.l.b16 %v3739
        %v3879 = vunpack.c.h.b16 %v3739
        %v3880 = vunpack.c.l.b16 %v3740
        %v3881 = vunpack.c.h.b16 %v3740
        %v3882 = vunpack.c.l.b16 %v3741
        %v3883 = vunpack.c.h.b16 %v3741
        %v3884 = vunpack.c.l.b16 %v3742
        %v3885 = vunpack.c.h.b16 %v3742
        %v3886 = vunpack.c.l.b16 %v3743
        %v3887 = vunpack.c.h.b16 %v3743
        %v3888 = vpack.c.b16 %v3794, %v3792
        %v3889 = vpack.c.b16 %v3795, %v3793
        %v3890 = vpack.c.b16 %v3798, %v3796
        %v3891 = vpack.c.b16 %v3799, %v3797
        %v3892 = vpack.c.b16 %v3802, %v3800
        %v3893 = vpack.c.b16 %v3803, %v3801
        %v3894 = vpack.c.b16 %v3806, %v3804
        %v3895 = vpack.c.b16 %v3807, %v3805
        %v3896 = vpack.c.b16 %v3810, %v3808
        %v3897 = vpack.c.b16 %v3811, %v3809
        %v3898 = vpack.c.b16 %v3814, %v3812
        %v3899 = vpack.c.b16 %v3815, %v3813
        %v3900 = vpack.c.b16 %v3818, %v3816
        %v3901 = vpack.c.b16 %v3819, %v3817
        %v3902 = vpack.c.b16 %v3822, %v3820
        %v3903 = vpack.c.b16 %v3823, %v3821
        %v3904 = vpack.c.b16 %v3826, %v3824
        %v3905 = vpack.c.b16 %v3827, %v3825
        %v3906 = vpack.c.b16 %v3830, %v3828
        %v3907 = vpack.c.b16 %v3831, %v3829
        %v3908 = vpack.c.b16 %v3834, %v3832
        %v3909 = vpack.c.b16 %v3835, %v3833
        %v3910 = vpack.c.b16 %v3838, %v3836
        %v3911 = vpack.c.b16 %v3839, %v3837
        %v3912 = vpack.c.b16 %v3842, %v3840
        %v3913 = vpack.c.b16 %v3843, %v3841
        %v3914 = vpack.c.b16 %v3846, %v3844
        %v3915 = vpack.c.b16 %v3847, %v3845
        %v3916 = vpack.c.b16 %v3850, %v3848
        %v3917 = vpack.c.b16 %v3851, %v3849
        %v3918 = vpack.c.b16 %v3854, %v3852
        %v3919 = vpack.c.b16 %v3855, %v3853
        %v3920 = vpack.c.b16 %v3858, %v3856
        %v3921 = vpack.c.b16 %v3859, %v3857
        %v3922 = vpack.c.b16 %v3862, %v3860
        %v3923 = vpack.c.b16 %v3863, %v3861
        %v3924 = vpack.c.b16 %v3866, %v3864
        %v3925 = vpack.c.b16 %v3867, %v3865
        %v3926 = vpack.c.b16 %v3870, %v3868
        %v3927 = vpack.c.b16 %v3871, %v3869
        %v3928 = vpack.c.b16 %v3874, %v3872
        %v3929 = vpack.c.b16 %v3875, %v3873
        %v3930 = vpack.c.b16 %v3878, %v3876
        %v3931 = vpack.c.b16 %v3879, %v3877
        %v3932 = vpack.c.b16 %v3882, %v3880
        %v3933 = vpack.c.b16 %v3883, %v3881
        %v3934 = vpack.c.b16 %v3886, %v3884
        %v3935 = vpack.c.b16 %v3887, %v3885
        %3984 = vmatpush.bf16.msra.mxu0 %v3902
        %3985 = vmatpush.bf16.msra.mxu0 %v3900
        %3986 = vmatpush.bf16.msra.mxu0 %v3898
        %3987 = vmatpush.bf16.msra.mxu0 %v3896
        %3988 = vmatpush.bf16.msra.mxu0 %v3894
        %3989 = vmatpush.bf16.msra.mxu0 %v3892
        %3990 = vmatpush.bf16.msra.mxu0 %v3890
        %3991 = vmatpush.bf16.msra.mxu0 %v3888
        %3992 = vmatmul.bf16.gmra.mxu0 %v3371
        %v3993 = vpop.f32.mrf.mxu0
        %v3994 = vadd.f32 0.0, %v3993
        %v3995 = vpop.f32.mrf.mxu0
        %3996 = vdwg.mxu0
        %3997 = vmatpush.bf16.msra.mxu0 %v3918
        %3998 = vmatpush.bf16.msra.mxu0 %v3916
        %3999 = vmatpush.bf16.msra.mxu0 %v3914
        %4000 = vmatpush.bf16.msra.mxu0 %v3912
        %4001 = vmatpush.bf16.msra.mxu0 %v3910
        %4002 = vmatpush.bf16.msra.mxu0 %v3908
        %4003 = vmatpush.bf16.msra.mxu0 %v3906
        %4004 = vmatpush.bf16.msra.mxu0 %v3904
        %4005 = vmatmul.bf16.gmra.mxu0 %v3372
        %v4006 = vpop.f32.mrf.mxu0
        %v4007 = vadd.f32 %v3994, %v4006
        %v4008 = vpop.f32.mrf.mxu0
        %4009 = vdwg.mxu0
        %4010 = vmatpush.bf16.msra.mxu0 %v3934
        %4011 = vmatpush.bf16.msra.mxu0 %v3932
        %4012 = vmatpush.bf16.msra.mxu0 %v3930
        %4013 = vmatpush.bf16.msra.mxu0 %v3928
        %4014 = vmatpush.bf16.msra.mxu0 %v3926
        %4015 = vmatpush.bf16.msra.mxu0 %v3924
        %4016 = vmatpush.bf16.msra.mxu0 %v3922
        %4017 = vmatpush.bf16.msra.mxu0 %v3920
        %4018 = vmatmul.bf16.gmra.mxu0 %v3373
        %v4019 = vpop.f32.mrf.mxu0
        %v4020 = vadd.f32 %v4007, %v4019
        %v4021 = vpop.f32.mrf.mxu0
        %4022 = vdwg.mxu0
        %4023 = vmatpush.bf16.msra.mxu0 %v3903
        %4024 = vmatpush.bf16.msra.mxu0 %v3901
        %4025 = vmatpush.bf16.msra.mxu0 %v3899
        %4026 = vmatpush.bf16.msra.mxu0 %v3897
        %4027 = vmatpush.bf16.msra.mxu0 %v3895
        %4028 = vmatpush.bf16.msra.mxu0 %v3893
        %4029 = vmatpush.bf16.msra.mxu0 %v3891
        %4030 = vmatpush.bf16.msra.mxu0 %v3889
        %4031 = vmatmul.bf16.gmra.mxu0 %v3371
        %v4032 = vpop.f32.mrf.mxu0
        %v4033 = vadd.f32 0.0, %v4032
        %v4034 = vpop.f32.mrf.mxu0
        %4035 = vdwg.mxu0
        %4036 = vmatpush.bf16.msra.mxu0 %v3919
        %4037 = vmatpush.bf16.msra.mxu0 %v3917
        %4038 = vmatpush.bf16.msra.mxu0 %v3915
        %4039 = vmatpush.bf16.msra.mxu0 %v3913
        %4040 = vmatpush.bf16.msra.mxu0 %v3911
        %4041 = vmatpush.bf16.msra.mxu0 %v3909
        %4042 = vmatpush.bf16.msra.mxu0 %v3907
        %4043 = vmatpush.bf16.msra.mxu0 %v3905
        %4044 = vmatmul.bf16.gmra.mxu0 %v3372
        %v4045 = vpop.f32.mrf.mxu0
        %v4046 = vadd.f32 %v4033, %v4045
        %v4047 = vpop.f32.mrf.mxu0
        %4048 = vdwg.mxu0
        %4049 = vmatpush.bf16.msra.mxu0 %v3935
        %4050 = vmatpush.bf16.msra.mxu0 %v3933
        %4051 = vmatpush.bf16.msra.mxu0 %v3931
        %4052 = vmatpush.bf16.msra.mxu0 %v3929
        %4053 = vmatpush.bf16.msra.mxu0 %v3927
        %4054 = vmatpush.bf16.msra.mxu0 %v3925
        %4055 = vmatpush.bf16.msra.mxu0 %v3923
        %4056 = vmatpush.bf16.msra.mxu0 %v3921
        %4057 = vmatmul.bf16.gmra.mxu0 %v3373
        %v4058 = vpop.f32.mrf.mxu0
        %v4059 = vadd.f32 %v4046, %v4058
        %v4060 = vpop.f32.mrf.mxu0
        %4061 = vdwg.mxu0
        %v4062 = vadd.f32 %v2959, %v3653
        %v4063 = vadd.f32 %v2998, %v3692
        %v4064 = vadd.f32 %v3277, %v4020
        %v4065 = vadd.f32 %v3316, %v4059
        %s4066 = scalar_lea.vmem [#allocation4], 1152
        %v4067 = vld [vmem:[%s4066] sm:$0xff]
        %v4068 = vld [vmem:[%s4066 + $0x8] sm:$0xff]
        %v4069 = vld [vmem:[%s4066 + $0x10] sm:$0xff]
        %v4070 = vld [vmem:[%s4066 + $0x18] sm:$0xff]
        %v4071 = vld [vmem:[%s4066 + $0x20] sm:$0xff]
        %v4072 = vld [vmem:[%s4066 + $0x28] sm:$0xff]
        %v4073 = vld [vmem:[%s4066 + $0x30] sm:$0xff]
        %v4074 = vld [vmem:[%s4066 + $0x38] sm:$0xff]
        %v4075 = vld [vmem:[%s4066 + $0x40] sm:$0xff]
        %v4076 = vld [vmem:[%s4066 + $0x48] sm:$0xff]
        %v4077 = vld [vmem:[%s4066 + $0x50] sm:$0xff]
        %v4078 = vld [vmem:[%s4066 + $0x58] sm:$0xff]
        %v4079 = vld [vmem:[%s4066 + $0x60] sm:$0xff]
        %v4080 = vld [vmem:[%s4066 + $0x68] sm:$0xff]
        %v4081 = vld [vmem:[%s4066 + $0x70] sm:$0xff]
        %v4082 = vld [vmem:[%s4066 + $0x78] sm:$0xff]
        %v4083 = vld [vmem:[%s4066 + $0x80] sm:$0xff]
        %v4084 = vld [vmem:[%s4066 + $0x88] sm:$0xff]
        %v4085 = vld [vmem:[%s4066 + $0x90] sm:$0xff]
        %v4086 = vld [vmem:[%s4066 + $0x98] sm:$0xff]
        %v4087 = vld [vmem:[%s4066 + $0xa0] sm:$0xff]
        %v4088 = vld [vmem:[%s4066 + $0xa8] sm:$0xff]
        %v4089 = vld [vmem:[%s4066 + $0xb0] sm:$0xff]
        %v4090 = vld [vmem:[%s4066 + $0xb8] sm:$0xff]
        %v4091 = vld [vmem:[%s4066 + $0xc0] sm:$0xff]
        %v4092 = vld [vmem:[%s4066 + $0xc8] sm:$0xff]
        %v4093 = vld [vmem:[%s4066 + $0xd0] sm:$0xff]
        %v4094 = vld [vmem:[%s4066 + $0xd8] sm:$0xff]
        %v4095 = vld [vmem:[%s4066 + $0xe0] sm:$0xff]
        %v4096 = vld [vmem:[%s4066 + $0xe8] sm:$0xff]
        %v4097 = vld [vmem:[%s4066 + $0xf0] sm:$0xff]
        %v4098 = vld [vmem:[%s4066 + $0xf8] sm:$0xff]
        %v4099 = vld [vmem:[%s4066 + $0x100] sm:$0xff]
        %v4100 = vld [vmem:[%s4066 + $0x108] sm:$0xff]
        %v4101 = vld [vmem:[%s4066 + $0x110] sm:$0xff]
        %v4102 = vld [vmem:[%s4066 + $0x118] sm:$0xff]
        %v4103 = vld [vmem:[%s4066 + $0x120] sm:$0xff]
        %v4104 = vld [vmem:[%s4066 + $0x128] sm:$0xff]
        %v4105 = vld [vmem:[%s4066 + $0x130] sm:$0xff]
        %v4106 = vld [vmem:[%s4066 + $0x138] sm:$0xff]
        %v4107 = vld [vmem:[%s4066 + $0x140] sm:$0xff]
        %v4108 = vld [vmem:[%s4066 + $0x148] sm:$0xff]
        %v4109 = vld [vmem:[%s4066 + $0x150] sm:$0xff]
        %v4110 = vld [vmem:[%s4066 + $0x158] sm:$0xff]
        %v4111 = vld [vmem:[%s4066 + $0x160] sm:$0xff]
        %v4112 = vld [vmem:[%s4066 + $0x168] sm:$0xff]
        %v4113 = vld [vmem:[%s4066 + $0x170] sm:$0xff]
        %v4114 = vld [vmem:[%s4066 + $0x178] sm:$0xff]
        %v4115 = vrot.slane %v1975, 1
        %v4116 = vrot.slane %v1977, 2
        %v4117 = vor.u32 %v4115, %v4116
        %v4118 = vrot.slane %v1982, 1
        %v4119 = vrot.slane %v1984, 2
        %v4120 = vor.u32 %v4118, %v4119
        %v4121 = vrot.slane %v1989, 1
        %v4122 = vrot.slane %v1991, 2
        %v4123 = vor.u32 %v4121, %v4122
        %v4175 = vunpack.c.l.b16 %v4067
        %v4176 = vunpack.c.h.b16 %v4067
        %v4177 = vunpack.c.l.b16 %v4068
        %v4178 = vunpack.c.h.b16 %v4068
        %v4179 = vunpack.c.l.b16 %v4069
        %v4180 = vunpack.c.h.b16 %v4069
        %v4181 = vunpack.c.l.b16 %v4070
        %v4182 = vunpack.c.h.b16 %v4070
        %v4183 = vunpack.c.l.b16 %v4071
        %v4184 = vunpack.c.h.b16 %v4071
        %v4185 = vunpack.c.l.b16 %v4072
        %v4186 = vunpack.c.h.b16 %v4072
        %v4187 = vunpack.c.l.b16 %v4073
        %v4188 = vunpack.c.h.b16 %v4073
        %v4189 = vunpack.c.l.b16 %v4074
        %v4190 = vunpack.c.h.b16 %v4074
        %v4191 = vunpack.c.l.b16 %v4075
        %v4192 = vunpack.c.h.b16 %v4075
        %v4193 = vunpack.c.l.b16 %v4076
        %v4194 = vunpack.c.h.b16 %v4076
        %v4195 = vunpack.c.l.b16 %v4077
        %v4196 = vunpack.c.h.b16 %v4077
        %v4197 = vunpack.c.l.b16 %v4078
        %v4198 = vunpack.c.h.b16 %v4078
        %v4199 = vunpack.c.l.b16 %v4079
        %v4200 = vunpack.c.h.b16 %v4079
        %v4201 = vunpack.c.l.b16 %v4080
        %v4202 = vunpack.c.h.b16 %v4080
        %v4203 = vunpack.c.l.b16 %v4081
        %v4204 = vunpack.c.h.b16 %v4081
        %v4205 = vunpack.c.l.b16 %v4082
        %v4206 = vunpack.c.h.b16 %v4082
        %v4207 = vunpack.c.l.b16 %v4083
        %v4208 = vunpack.c.h.b16 %v4083
        %v4209 = vunpack.c.l.b16 %v4084
        %v4210 = vunpack.c.h.b16 %v4084
        %v4211 = vunpack.c.l.b16 %v4085
        %v4212 = vunpack.c.h.b16 %v4085
        %v4213 = vunpack.c.l.b16 %v4086
        %v4214 = vunpack.c.h.b16 %v4086
        %v4215 = vunpack.c.l.b16 %v4087
        %v4216 = vunpack.c.h.b16 %v4087
        %v4217 = vunpack.c.l.b16 %v4088
        %v4218 = vunpack.c.h.b16 %v4088
        %v4219 = vunpack.c.l.b16 %v4089
        %v4220 = vunpack.c.h.b16 %v4089
        %v4221 = vunpack.c.l.b16 %v4090
        %v4222 = vunpack.c.h.b16 %v4090
        %v4223 = vunpack.c.l.b16 %v4091
        %v4224 = vunpack.c.h.b16 %v4091
        %v4225 = vunpack.c.l.b16 %v4092
        %v4226 = vunpack.c.h.b16 %v4092
        %v4227 = vunpack.c.l.b16 %v4093
        %v4228 = vunpack.c.h.b16 %v4093
        %v4229 = vunpack.c.l.b16 %v4094
        %v4230 = vunpack.c.h.b16 %v4094
        %v4231 = vunpack.c.l.b16 %v4095
        %v4232 = vunpack.c.h.b16 %v4095
        %v4233 = vunpack.c.l.b16 %v4096
        %v4234 = vunpack.c.h.b16 %v4096
        %v4235 = vunpack.c.l.b16 %v4097
        %v4236 = vunpack.c.h.b16 %v4097
        %v4237 = vunpack.c.l.b16 %v4098
        %v4238 = vunpack.c.h.b16 %v4098
        %v4239 = vunpack.c.l.b16 %v4099
        %v4240 = vunpack.c.h.b16 %v4099
        %v4241 = vunpack.c.l.b16 %v4100
        %v4242 = vunpack.c.h.b16 %v4100
        %v4243 = vunpack.c.l.b16 %v4101
        %v4244 = vunpack.c.h.b16 %v4101
        %v4245 = vunpack.c.l.b16 %v4102
        %v4246 = vunpack.c.h.b16 %v4102
        %v4247 = vunpack.c.l.b16 %v4103
        %v4248 = vunpack.c.h.b16 %v4103
        %v4249 = vunpack.c.l.b16 %v4104
        %v4250 = vunpack.c.h.b16 %v4104
        %v4251 = vunpack.c.l.b16 %v4105
        %v4252 = vunpack.c.h.b16 %v4105
        %v4253 = vunpack.c.l.b16 %v4106
        %v4254 = vunpack.c.h.b16 %v4106
        %v4255 = vunpack.c.l.b16 %v4107
        %v4256 = vunpack.c.h.b16 %v4107
        %v4257 = vunpack.c.l.b16 %v4108
        %v4258 = vunpack.c.h.b16 %v4108
        %v4259 = vunpack.c.l.b16 %v4109
        %v4260 = vunpack.c.h.b16 %v4109
        %v4261 = vunpack.c.l.b16 %v4110
        %v4262 = vunpack.c.h.b16 %v4110
        %v4263 = vunpack.c.l.b16 %v4111
        %v4264 = vunpack.c.h.b16 %v4111
        %v4265 = vunpack.c.l.b16 %v4112
        %v4266 = vunpack.c.h.b16 %v4112
        %v4267 = vunpack.c.l.b16 %v4113
        %v4268 = vunpack.c.h.b16 %v4113
        %v4269 = vunpack.c.l.b16 %v4114
        %v4270 = vunpack.c.h.b16 %v4114
        %v4271 = vpack.c.b16 %v4177, %v4175
        %v4272 = vpack.c.b16 %v4178, %v4176
        %v4273 = vpack.c.b16 %v4181, %v4179
        %v4274 = vpack.c.b16 %v4182, %v4180
        %v4275 = vpack.c.b16 %v4185, %v4183
        %v4276 = vpack.c.b16 %v4186, %v4184
        %v4277 = vpack.c.b16 %v4189, %v4187
        %v4278 = vpack.c.b16 %v4190, %v4188
        %v4279 = vpack.c.b16 %v4193, %v4191
        %v4280 = vpack.c.b16 %v4194, %v4192
        %v4281 = vpack.c.b16 %v4197, %v4195
        %v4282 = vpack.c.b16 %v4198, %v4196
        %v4283 = vpack.c.b16 %v4201, %v4199
        %v4284 = vpack.c.b16 %v4202, %v4200
        %v4285 = vpack.c.b16 %v4205, %v4203
        %v4286 = vpack.c.b16 %v4206, %v4204
        %v4287 = vpack.c.b16 %v4209, %v4207
        %v4288 = vpack.c.b16 %v4210, %v4208
        %v4289 = vpack.c.b16 %v4213, %v4211
        %v4290 = vpack.c.b16 %v4214, %v4212
        %v4291 = vpack.c.b16 %v4217, %v4215
        %v4292 = vpack.c.b16 %v4218, %v4216
        %v4293 = vpack.c.b16 %v4221, %v4219
        %v4294 = vpack.c.b16 %v4222, %v4220
        %v4295 = vpack.c.b16 %v4225, %v4223
        %v4296 = vpack.c.b16 %v4226, %v4224
        %v4297 = vpack.c.b16 %v4229, %v4227
        %v4298 = vpack.c.b16 %v4230, %v4228
        %v4299 = vpack.c.b16 %v4233, %v4231
        %v4300 = vpack.c.b16 %v4234, %v4232
        %v4301 = vpack.c.b16 %v4237, %v4235
        %v4302 = vpack.c.b16 %v4238, %v4236
        %v4303 = vpack.c.b16 %v4241, %v4239
        %v4304 = vpack.c.b16 %v4242, %v4240
        %v4305 = vpack.c.b16 %v4245, %v4243
        %v4306 = vpack.c.b16 %v4246, %v4244
        %v4307 = vpack.c.b16 %v4249, %v4247
        %v4308 = vpack.c.b16 %v4250, %v4248
        %v4309 = vpack.c.b16 %v4253, %v4251
        %v4310 = vpack.c.b16 %v4254, %v4252
        %v4311 = vpack.c.b16 %v4257, %v4255
        %v4312 = vpack.c.b16 %v4258, %v4256
        %v4313 = vpack.c.b16 %v4261, %v4259
        %v4314 = vpack.c.b16 %v4262, %v4260
        %v4315 = vpack.c.b16 %v4265, %v4263
        %v4316 = vpack.c.b16 %v4266, %v4264
        %v4317 = vpack.c.b16 %v4269, %v4267
        %v4318 = vpack.c.b16 %v4270, %v4268
        %4367 = vmatpush.bf16.msra.mxu0 %v4285
        %4368 = vmatpush.bf16.msra.mxu0 %v4283
        %4369 = vmatpush.bf16.msra.mxu0 %v4281
        %4370 = vmatpush.bf16.msra.mxu0 %v4279
        %4371 = vmatpush.bf16.msra.mxu0 %v4277
        %4372 = vmatpush.bf16.msra.mxu0 %v4275
        %4373 = vmatpush.bf16.msra.mxu0 %v4273
        %4374 = vmatpush.bf16.msra.mxu0 %v4271
        %4375 = vmatmul.bf16.gmra.mxu0 %v4117
        %v4376 = vpop.f32.mrf.mxu0
        %v4377 = vadd.f32 0.0, %v4376
        %v4378 = vpop.f32.mrf.mxu0
        %4379 = vdwg.mxu0
        %4380 = vmatpush.bf16.msra.mxu0 %v4301
        %4381 = vmatpush.bf16.msra.mxu0 %v4299
        %4382 = vmatpush.bf16.msra.mxu0 %v4297
        %4383 = vmatpush.bf16.msra.mxu0 %v4295
        %4384 = vmatpush.bf16.msra.mxu0 %v4293
        %4385 = vmatpush.bf16.msra.mxu0 %v4291
        %4386 = vmatpush.bf16.msra.mxu0 %v4289
        %4387 = vmatpush.bf16.msra.mxu0 %v4287
        %4388 = vmatmul.bf16.gmra.mxu0 %v4120
        %v4389 = vpop.f32.mrf.mxu0
        %v4390 = vadd.f32 %v4377, %v4389
        %v4391 = vpop.f32.mrf.mxu0
        %4392 = vdwg.mxu0
        %4393 = vmatpush.bf16.msra.mxu0 %v4317
        %4394 = vmatpush.bf16.msra.mxu0 %v4315
        %4395 = vmatpush.bf16.msra.mxu0 %v4313
        %4396 = vmatpush.bf16.msra.mxu0 %v4311
        %4397 = vmatpush.bf16.msra.mxu0 %v4309
        %4398 = vmatpush.bf16.msra.mxu0 %v4307
        %4399 = vmatpush.bf16.msra.mxu0 %v4305
        %4400 = vmatpush.bf16.msra.mxu0 %v4303
        %4401 = vmatmul.bf16.gmra.mxu0 %v4123
        %v4402 = vpop.f32.mrf.mxu0
        %v4403 = vadd.f32 %v4390, %v4402
        %v4404 = vpop.f32.mrf.mxu0
        %4405 = vdwg.mxu0
        %4406 = vmatpush.bf16.msra.mxu0 %v4286
        %4407 = vmatpush.bf16.msra.mxu0 %v4284
        %4408 = vmatpush.bf16.msra.mxu0 %v4282
        %4409 = vmatpush.bf16.msra.mxu0 %v4280
        %4410 = vmatpush.bf16.msra.mxu0 %v4278
        %4411 = vmatpush.bf16.msra.mxu0 %v4276
        %4412 = vmatpush.bf16.msra.mxu0 %v4274
        %4413 = vmatpush.bf16.msra.mxu0 %v4272
        %4414 = vmatmul.bf16.gmra.mxu0 %v4117
        %v4415 = vpop.f32.mrf.mxu0
        %v4416 = vadd.f32 0.0, %v4415
        %v4417 = vpop.f32.mrf.mxu0
        %4418 = vdwg.mxu0
        %4419 = vmatpush.bf16.msra.mxu0 %v4302
        %4420 = vmatpush.bf16.msra.mxu0 %v4300
        %4421 = vmatpush.bf16.msra.mxu0 %v4298
        %4422 = vmatpush.bf16.msra.mxu0 %v4296
        %4423 = vmatpush.bf16.msra.mxu0 %v4294
        %4424 = vmatpush.bf16.msra.mxu0 %v4292
        %4425 = vmatpush.bf16.msra.mxu0 %v4290
        %4426 = vmatpush.bf16.msra.mxu0 %v4288
        %4427 = vmatmul.bf16.gmra.mxu0 %v4120
        %v4428 = vpop.f32.mrf.mxu0
        %v4429 = vadd.f32 %v4416, %v4428
        %v4430 = vpop.f32.mrf.mxu0
        %4431 = vdwg.mxu0
        %4432 = vmatpush.bf16.msra.mxu0 %v4318
        %4433 = vmatpush.bf16.msra.mxu0 %v4316
        %4434 = vmatpush.bf16.msra.mxu0 %v4314
        %4435 = vmatpush.bf16.msra.mxu0 %v4312
        %4436 = vmatpush.bf16.msra.mxu0 %v4310
        %4437 = vmatpush.bf16.msra.mxu0 %v4308
        %4438 = vmatpush.bf16.msra.mxu0 %v4306
        %4439 = vmatpush.bf16.msra.mxu0 %v4304
        %4440 = vmatmul.bf16.gmra.mxu0 %v4123
        %v4441 = vpop.f32.mrf.mxu0
        %v4442 = vadd.f32 %v4429, %v4441
        %v4443 = vpop.f32.mrf.mxu0
        %4444 = vdwg.mxu0
        %s4445 = scalar_lea.vmem [#allocation4], 3072
        %v4446 = vld [vmem:[%s4445] sm:$0xff]
        %v4447 = vld [vmem:[%s4445 + $0x8] sm:$0xff]
        %v4448 = vld [vmem:[%s4445 + $0x10] sm:$0xff]
        %v4449 = vld [vmem:[%s4445 + $0x18] sm:$0xff]
        %v4450 = vld [vmem:[%s4445 + $0x20] sm:$0xff]
        %v4451 = vld [vmem:[%s4445 + $0x28] sm:$0xff]
        %v4452 = vld [vmem:[%s4445 + $0x30] sm:$0xff]
        %v4453 = vld [vmem:[%s4445 + $0x38] sm:$0xff]
        %v4454 = vld [vmem:[%s4445 + $0x40] sm:$0xff]
        %v4455 = vld [vmem:[%s4445 + $0x48] sm:$0xff]
        %v4456 = vld [vmem:[%s4445 + $0x50] sm:$0xff]
        %v4457 = vld [vmem:[%s4445 + $0x58] sm:$0xff]
        %v4458 = vld [vmem:[%s4445 + $0x60] sm:$0xff]
        %v4459 = vld [vmem:[%s4445 + $0x68] sm:$0xff]
        %v4460 = vld [vmem:[%s4445 + $0x70] sm:$0xff]
        %v4461 = vld [vmem:[%s4445 + $0x78] sm:$0xff]
        %v4462 = vld [vmem:[%s4445 + $0x80] sm:$0xff]
        %v4463 = vld [vmem:[%s4445 + $0x88] sm:$0xff]
        %v4464 = vld [vmem:[%s4445 + $0x90] sm:$0xff]
        %v4465 = vld [vmem:[%s4445 + $0x98] sm:$0xff]
        %v4466 = vld [vmem:[%s4445 + $0xa0] sm:$0xff]
        %v4467 = vld [vmem:[%s4445 + $0xa8] sm:$0xff]
        %v4468 = vld [vmem:[%s4445 + $0xb0] sm:$0xff]
        %v4469 = vld [vmem:[%s4445 + $0xb8] sm:$0xff]
        %v4470 = vld [vmem:[%s4445 + $0xc0] sm:$0xff]
        %v4471 = vld [vmem:[%s4445 + $0xc8] sm:$0xff]
        %v4472 = vld [vmem:[%s4445 + $0xd0] sm:$0xff]
        %v4473 = vld [vmem:[%s4445 + $0xd8] sm:$0xff]
        %v4474 = vld [vmem:[%s4445 + $0xe0] sm:$0xff]
        %v4475 = vld [vmem:[%s4445 + $0xe8] sm:$0xff]
        %v4476 = vld [vmem:[%s4445 + $0xf0] sm:$0xff]
        %v4477 = vld [vmem:[%s4445 + $0xf8] sm:$0xff]
        %v4478 = vld [vmem:[%s4445 + $0x100] sm:$0xff]
        %v4479 = vld [vmem:[%s4445 + $0x108] sm:$0xff]
        %v4480 = vld [vmem:[%s4445 + $0x110] sm:$0xff]
        %v4481 = vld [vmem:[%s4445 + $0x118] sm:$0xff]
        %v4482 = vld [vmem:[%s4445 + $0x120] sm:$0xff]
        %v4483 = vld [vmem:[%s4445 + $0x128] sm:$0xff]
        %v4484 = vld [vmem:[%s4445 + $0x130] sm:$0xff]
        %v4485 = vld [vmem:[%s4445 + $0x138] sm:$0xff]
        %v4486 = vld [vmem:[%s4445 + $0x140] sm:$0xff]
        %v4487 = vld [vmem:[%s4445 + $0x148] sm:$0xff]
        %v4488 = vld [vmem:[%s4445 + $0x150] sm:$0xff]
        %v4489 = vld [vmem:[%s4445 + $0x158] sm:$0xff]
        %v4490 = vld [vmem:[%s4445 + $0x160] sm:$0xff]
        %v4491 = vld [vmem:[%s4445 + $0x168] sm:$0xff]
        %v4492 = vld [vmem:[%s4445 + $0x170] sm:$0xff]
        %v4493 = vld [vmem:[%s4445 + $0x178] sm:$0xff]
        %v4542 = vunpack.c.l.b16 %v4446
        %v4543 = vunpack.c.h.b16 %v4446
        %v4544 = vunpack.c.l.b16 %v4447
        %v4545 = vunpack.c.h.b16 %v4447
        %v4546 = vunpack.c.l.b16 %v4448
        %v4547 = vunpack.c.h.b16 %v4448
        %v4548 = vunpack.c.l.b16 %v4449
        %v4549 = vunpack.c.h.b16 %v4449
        %v4550 = vunpack.c.l.b16 %v4450
        %v4551 = vunpack.c.h.b16 %v4450
        %v4552 = vunpack.c.l.b16 %v4451
        %v4553 = vunpack.c.h.b16 %v4451
        %v4554 = vunpack.c.l.b16 %v4452
        %v4555 = vunpack.c.h.b16 %v4452
        %v4556 = vunpack.c.l.b16 %v4453
        %v4557 = vunpack.c.h.b16 %v4453
        %v4558 = vunpack.c.l.b16 %v4454
        %v4559 = vunpack.c.h.b16 %v4454
        %v4560 = vunpack.c.l.b16 %v4455
        %v4561 = vunpack.c.h.b16 %v4455
        %v4562 = vunpack.c.l.b16 %v4456
        %v4563 = vunpack.c.h.b16 %v4456
        %v4564 = vunpack.c.l.b16 %v4457
        %v4565 = vunpack.c.h.b16 %v4457
        %v4566 = vunpack.c.l.b16 %v4458
        %v4567 = vunpack.c.h.b16 %v4458
        %v4568 = vunpack.c.l.b16 %v4459
        %v4569 = vunpack.c.h.b16 %v4459
        %v4570 = vunpack.c.l.b16 %v4460
        %v4571 = vunpack.c.h.b16 %v4460
        %v4572 = vunpack.c.l.b16 %v4461
        %v4573 = vunpack.c.h.b16 %v4461
        %v4574 = vunpack.c.l.b16 %v4462
        %v4575 = vunpack.c.h.b16 %v4462
        %v4576 = vunpack.c.l.b16 %v4463
        %v4577 = vunpack.c.h.b16 %v4463
        %v4578 = vunpack.c.l.b16 %v4464
        %v4579 = vunpack.c.h.b16 %v4464
        %v4580 = vunpack.c.l.b16 %v4465
        %v4581 = vunpack.c.h.b16 %v4465
        %v4582 = vunpack.c.l.b16 %v4466
        %v4583 = vunpack.c.h.b16 %v4466
        %v4584 = vunpack.c.l.b16 %v4467
        %v4585 = vunpack.c.h.b16 %v4467
        %v4586 = vunpack.c.l.b16 %v4468
        %v4587 = vunpack.c.h.b16 %v4468
        %v4588 = vunpack.c.l.b16 %v4469
        %v4589 = vunpack.c.h.b16 %v4469
        %v4590 = vunpack.c.l.b16 %v4470
        %v4591 = vunpack.c.h.b16 %v4470
        %v4592 = vunpack.c.l.b16 %v4471
        %v4593 = vunpack.c.h.b16 %v4471
        %v4594 = vunpack.c.l.b16 %v4472
        %v4595 = vunpack.c.h.b16 %v4472
        %v4596 = vunpack.c.l.b16 %v4473
        %v4597 = vunpack.c.h.b16 %v4473
        %v4598 = vunpack.c.l.b16 %v4474
        %v4599 = vunpack.c.h.b16 %v4474
        %v4600 = vunpack.c.l.b16 %v4475
        %v4601 = vunpack.c.h.b16 %v4475
        %v4602 = vunpack.c.l.b16 %v4476
        %v4603 = vunpack.c.h.b16 %v4476
        %v4604 = vunpack.c.l.b16 %v4477
        %v4605 = vunpack.c.h.b16 %v4477
        %v4606 = vunpack.c.l.b16 %v4478
        %v4607 = vunpack.c.h.b16 %v4478
        %v4608 = vunpack.c.l.b16 %v4479
        %v4609 = vunpack.c.h.b16 %v4479
        %v4610 = vunpack.c.l.b16 %v4480
        %v4611 = vunpack.c.h.b16 %v4480
        %v4612 = vunpack.c.l.b16 %v4481
        %v4613 = vunpack.c.h.b16 %v4481
        %v4614 = vunpack.c.l.b16 %v4482
        %v4615 = vunpack.c.h.b16 %v4482
        %v4616 = vunpack.c.l.b16 %v4483
        %v4617 = vunpack.c.h.b16 %v4483
        %v4618 = vunpack.c.l.b16 %v4484
        %v4619 = vunpack.c.h.b16 %v4484
        %v4620 = vunpack.c.l.b16 %v4485
        %v4621 = vunpack.c.h.b16 %v4485
        %v4622 = vunpack.c.l.b16 %v4486
        %v4623 = vunpack.c.h.b16 %v4486
        %v4624 = vunpack.c.l.b16 %v4487
        %v4625 = vunpack.c.h.b16 %v4487
        %v4626 = vunpack.c.l.b16 %v4488
        %v4627 = vunpack.c.h.b16 %v4488
        %v4628 = vunpack.c.l.b16 %v4489
        %v4629 = vunpack.c.h.b16 %v4489
        %v4630 = vunpack.c.l.b16 %v4490
        %v4631 = vunpack.c.h.b16 %v4490
        %v4632 = vunpack.c.l.b16 %v4491
        %v4633 = vunpack.c.h.b16 %v4491
        %v4634 = vunpack.c.l.b16 %v4492
        %v4635 = vunpack.c.h.b16 %v4492
        %v4636 = vunpack.c.l.b16 %v4493
        %v4637 = vunpack.c.h.b16 %v4493
        %v4638 = vpack.c.b16 %v4544, %v4542
        %v4639 = vpack.c.b16 %v4545, %v4543
        %v4640 = vpack.c.b16 %v4548, %v4546
        %v4641 = vpack.c.b16 %v4549, %v4547
        %v4642 = vpack.c.b16 %v4552, %v4550
        %v4643 = vpack.c.b16 %v4553, %v4551
        %v4644 = vpack.c.b16 %v4556, %v4554
        %v4645 = vpack.c.b16 %v4557, %v4555
        %v4646 = vpack.c.b16 %v4560, %v4558
        %v4647 = vpack.c.b16 %v4561, %v4559
        %v4648 = vpack.c.b16 %v4564, %v4562
        %v4649 = vpack.c.b16 %v4565, %v4563
        %v4650 = vpack.c.b16 %v4568, %v4566
        %v4651 = vpack.c.b16 %v4569, %v4567
        %v4652 = vpack.c.b16 %v4572, %v4570
        %v4653 = vpack.c.b16 %v4573, %v4571
        %v4654 = vpack.c.b16 %v4576, %v4574
        %v4655 = vpack.c.b16 %v4577, %v4575
        %v4656 = vpack.c.b16 %v4580, %v4578
        %v4657 = vpack.c.b16 %v4581, %v4579
        %v4658 = vpack.c.b16 %v4584, %v4582
        %v4659 = vpack.c.b16 %v4585, %v4583
        %v4660 = vpack.c.b16 %v4588, %v4586
        %v4661 = vpack.c.b16 %v4589, %v4587
        %v4662 = vpack.c.b16 %v4592, %v4590
        %v4663 = vpack.c.b16 %v4593, %v4591
        %v4664 = vpack.c.b16 %v4596, %v4594
        %v4665 = vpack.c.b16 %v4597, %v4595
        %v4666 = vpack.c.b16 %v4600, %v4598
        %v4667 = vpack.c.b16 %v4601, %v4599
        %v4668 = vpack.c.b16 %v4604, %v4602
        %v4669 = vpack.c.b16 %v4605, %v4603
        %v4670 = vpack.c.b16 %v4608, %v4606
        %v4671 = vpack.c.b16 %v4609, %v4607
        %v4672 = vpack.c.b16 %v4612, %v4610
        %v4673 = vpack.c.b16 %v4613, %v4611
        %v4674 = vpack.c.b16 %v4616, %v4614
        %v4675 = vpack.c.b16 %v4617, %v4615
        %v4676 = vpack.c.b16 %v4620, %v4618
        %v4677 = vpack.c.b16 %v4621, %v4619
        %v4678 = vpack.c.b16 %v4624, %v4622
        %v4679 = vpack.c.b16 %v4625, %v4623
        %v4680 = vpack.c.b16 %v4628, %v4626
        %v4681 = vpack.c.b16 %v4629, %v4627
        %v4682 = vpack.c.b16 %v4632, %v4630
        %v4683 = vpack.c.b16 %v4633, %v4631
        %v4684 = vpack.c.b16 %v4636, %v4634
        %v4685 = vpack.c.b16 %v4637, %v4635
        %4734 = vmatpush.bf16.msra.mxu0 %v4652
        %4735 = vmatpush.bf16.msra.mxu0 %v4650
        %4736 = vmatpush.bf16.msra.mxu0 %v4648
        %4737 = vmatpush.bf16.msra.mxu0 %v4646
        %4738 = vmatpush.bf16.msra.mxu0 %v4644
        %4739 = vmatpush.bf16.msra.mxu0 %v4642
        %4740 = vmatpush.bf16.msra.mxu0 %v4640
        %4741 = vmatpush.bf16.msra.mxu0 %v4638
        %4742 = vmatmul.bf16.gmra.mxu0 %v4117
        %v4743 = vpop.f32.mrf.mxu0
        %v4744 = vadd.f32 0.0, %v4743
        %v4745 = vpop.f32.mrf.mxu0
        %4746 = vdwg.mxu0
        %4747 = vmatpush.bf16.msra.mxu0 %v4668
        %4748 = vmatpush.bf16.msra.mxu0 %v4666
        %4749 = vmatpush.bf16.msra.mxu0 %v4664
        %4750 = vmatpush.bf16.msra.mxu0 %v4662
        %4751 = vmatpush.bf16.msra.mxu0 %v4660
        %4752 = vmatpush.bf16.msra.mxu0 %v4658
        %4753 = vmatpush.bf16.msra.mxu0 %v4656
        %4754 = vmatpush.bf16.msra.mxu0 %v4654
        %4755 = vmatmul.bf16.gmra.mxu0 %v4120
        %v4756 = vpop.f32.mrf.mxu0
        %v4757 = vadd.f32 %v4744, %v4756
        %v4758 = vpop.f32.mrf.mxu0
        %4759 = vdwg.mxu0
        %4760 = vmatpush.bf16.msra.mxu0 %v4684
        %4761 = vmatpush.bf16.msra.mxu0 %v4682
        %4762 = vmatpush.bf16.msra.mxu0 %v4680
        %4763 = vmatpush.bf16.msra.mxu0 %v4678
        %4764 = vmatpush.bf16.msra.mxu0 %v4676
        %4765 = vmatpush.bf16.msra.mxu0 %v4674
        %4766 = vmatpush.bf16.msra.mxu0 %v4672
        %4767 = vmatpush.bf16.msra.mxu0 %v4670
        %4768 = vmatmul.bf16.gmra.mxu0 %v4123
        %v4769 = vpop.f32.mrf.mxu0
        %v4770 = vadd.f32 %v4757, %v4769
        %v4771 = vpop.f32.mrf.mxu0
        %4772 = vdwg.mxu0
        %4773 = vmatpush.bf16.msra.mxu0 %v4653
        %4774 = vmatpush.bf16.msra.mxu0 %v4651
        %4775 = vmatpush.bf16.msra.mxu0 %v4649
        %4776 = vmatpush.bf16.msra.mxu0 %v4647
        %4777 = vmatpush.bf16.msra.mxu0 %v4645
        %4778 = vmatpush.bf16.msra.mxu0 %v4643
        %4779 = vmatpush.bf16.msra.mxu0 %v4641
        %4780 = vmatpush.bf16.msra.mxu0 %v4639
        %4781 = vmatmul.bf16.gmra.mxu0 %v4117
        %v4782 = vpop.f32.mrf.mxu0
        %v4783 = vadd.f32 0.0, %v4782
        %v4784 = vpop.f32.mrf.mxu0
        %4785 = vdwg.mxu0
        %4786 = vmatpush.bf16.msra.mxu0 %v4669
        %4787 = vmatpush.bf16.msra.mxu0 %v4667
        %4788 = vmatpush.bf16.msra.mxu0 %v4665
        %4789 = vmatpush.bf16.msra.mxu0 %v4663
        %4790 = vmatpush.bf16.msra.mxu0 %v4661
        %4791 = vmatpush.bf16.msra.mxu0 %v4659
        %4792 = vmatpush.bf16.msra.mxu0 %v4657
        %4793 = vmatpush.bf16.msra.mxu0 %v4655
        %4794 = vmatmul.bf16.gmra.mxu0 %v4120
        %v4795 = vpop.f32.mrf.mxu0
        %v4796 = vadd.f32 %v4783, %v4795
        %v4797 = vpop.f32.mrf.mxu0
        %4798 = vdwg.mxu0
        %4799 = vmatpush.bf16.msra.mxu0 %v4685
        %4800 = vmatpush.bf16.msra.mxu0 %v4683
        %4801 = vmatpush.bf16.msra.mxu0 %v4681
        %4802 = vmatpush.bf16.msra.mxu0 %v4679
        %4803 = vmatpush.bf16.msra.mxu0 %v4677
        %4804 = vmatpush.bf16.msra.mxu0 %v4675
        %4805 = vmatpush.bf16.msra.mxu0 %v4673
        %4806 = vmatpush.bf16.msra.mxu0 %v4671
        %4807 = vmatmul.bf16.gmra.mxu0 %v4123
        %v4808 = vpop.f32.mrf.mxu0
        %v4809 = vadd.f32 %v4796, %v4808
        %v4810 = vpop.f32.mrf.mxu0
        %4811 = vdwg.mxu0
        %v4812 = vadd.f32 %v4062, %v4403
        %v4813 = vadd.f32 %v4063, %v4442
        %v4814 = vadd.f32 %v4064, %v4770
        %v4815 = vadd.f32 %v4065, %v4809
        %s4816 = scalar_lea.vmem [#allocation4], 1536
        %v4817 = vld [vmem:[%s4816] sm:$0xff]
        %v4818 = vld [vmem:[%s4816 + $0x8] sm:$0xff]
        %v4819 = vld [vmem:[%s4816 + $0x10] sm:$0xff]
        %v4820 = vld [vmem:[%s4816 + $0x18] sm:$0xff]
        %v4821 = vld [vmem:[%s4816 + $0x20] sm:$0xff]
        %v4822 = vld [vmem:[%s4816 + $0x28] sm:$0xff]
        %v4823 = vld [vmem:[%s4816 + $0x30] sm:$0xff]
        %v4824 = vld [vmem:[%s4816 + $0x38] sm:$0xff]
        %v4825 = vld [vmem:[%s4816 + $0x40] sm:$0xff]
        %v4826 = vld [vmem:[%s4816 + $0x48] sm:$0xff]
        %v4827 = vld [vmem:[%s4816 + $0x50] sm:$0xff]
        %v4828 = vld [vmem:[%s4816 + $0x58] sm:$0xff]
        %v4829 = vld [vmem:[%s4816 + $0x60] sm:$0xff]
        %v4830 = vld [vmem:[%s4816 + $0x68] sm:$0xff]
        %v4831 = vld [vmem:[%s4816 + $0x70] sm:$0xff]
        %v4832 = vld [vmem:[%s4816 + $0x78] sm:$0xff]
        %v4833 = vld [vmem:[%s4816 + $0x80] sm:$0xff]
        %v4834 = vld [vmem:[%s4816 + $0x88] sm:$0xff]
        %v4835 = vld [vmem:[%s4816 + $0x90] sm:$0xff]
        %v4836 = vld [vmem:[%s4816 + $0x98] sm:$0xff]
        %v4837 = vld [vmem:[%s4816 + $0xa0] sm:$0xff]
        %v4838 = vld [vmem:[%s4816 + $0xa8] sm:$0xff]
        %v4839 = vld [vmem:[%s4816 + $0xb0] sm:$0xff]
        %v4840 = vld [vmem:[%s4816 + $0xb8] sm:$0xff]
        %v4841 = vld [vmem:[%s4816 + $0xc0] sm:$0xff]
        %v4842 = vld [vmem:[%s4816 + $0xc8] sm:$0xff]
        %v4843 = vld [vmem:[%s4816 + $0xd0] sm:$0xff]
        %v4844 = vld [vmem:[%s4816 + $0xd8] sm:$0xff]
        %v4845 = vld [vmem:[%s4816 + $0xe0] sm:$0xff]
        %v4846 = vld [vmem:[%s4816 + $0xe8] sm:$0xff]
        %v4847 = vld [vmem:[%s4816 + $0xf0] sm:$0xff]
        %v4848 = vld [vmem:[%s4816 + $0xf8] sm:$0xff]
        %v4849 = vld [vmem:[%s4816 + $0x100] sm:$0xff]
        %v4850 = vld [vmem:[%s4816 + $0x108] sm:$0xff]
        %v4851 = vld [vmem:[%s4816 + $0x110] sm:$0xff]
        %v4852 = vld [vmem:[%s4816 + $0x118] sm:$0xff]
        %v4853 = vld [vmem:[%s4816 + $0x120] sm:$0xff]
        %v4854 = vld [vmem:[%s4816 + $0x128] sm:$0xff]
        %v4855 = vld [vmem:[%s4816 + $0x130] sm:$0xff]
        %v4856 = vld [vmem:[%s4816 + $0x138] sm:$0xff]
        %v4857 = vld [vmem:[%s4816 + $0x140] sm:$0xff]
        %v4858 = vld [vmem:[%s4816 + $0x148] sm:$0xff]
        %v4859 = vld [vmem:[%s4816 + $0x150] sm:$0xff]
        %v4860 = vld [vmem:[%s4816 + $0x158] sm:$0xff]
        %v4861 = vld [vmem:[%s4816 + $0x160] sm:$0xff]
        %v4862 = vld [vmem:[%s4816 + $0x168] sm:$0xff]
        %v4863 = vld [vmem:[%s4816 + $0x170] sm:$0xff]
        %v4864 = vld [vmem:[%s4816 + $0x178] sm:$0xff]
        %v4865 = vrot.slane %v1922, 2
        %v4866 = vrot.slane %v1923, 2
        %v4867 = vrot.slane %v1924, 2
        %v4919 = vunpack.c.l.b16 %v4817
        %v4920 = vunpack.c.h.b16 %v4817
        %v4921 = vunpack.c.l.b16 %v4818
        %v4922 = vunpack.c.h.b16 %v4818
        %v4923 = vunpack.c.l.b16 %v4819
        %v4924 = vunpack.c.h.b16 %v4819
        %v4925 = vunpack.c.l.b16 %v4820
        %v4926 = vunpack.c.h.b16 %v4820
        %v4927 = vunpack.c.l.b16 %v4821
        %v4928 = vunpack.c.h.b16 %v4821
        %v4929 = vunpack.c.l.b16 %v4822
        %v4930 = vunpack.c.h.b16 %v4822
        %v4931 = vunpack.c.l.b16 %v4823
        %v4932 = vunpack.c.h.b16 %v4823
        %v4933 = vunpack.c.l.b16 %v4824
        %v4934 = vunpack.c.h.b16 %v4824
        %v4935 = vunpack.c.l.b16 %v4825
        %v4936 = vunpack.c.h.b16 %v4825
        %v4937 = vunpack.c.l.b16 %v4826
        %v4938 = vunpack.c.h.b16 %v4826
        %v4939 = vunpack.c.l.b16 %v4827
        %v4940 = vunpack.c.h.b16 %v4827
        %v4941 = vunpack.c.l.b16 %v4828
        %v4942 = vunpack.c.h.b16 %v4828
        %v4943 = vunpack.c.l.b16 %v4829
        %v4944 = vunpack.c.h.b16 %v4829
        %v4945 = vunpack.c.l.b16 %v4830
        %v4946 = vunpack.c.h.b16 %v4830
        %v4947 = vunpack.c.l.b16 %v4831
        %v4948 = vunpack.c.h.b16 %v4831
        %v4949 = vunpack.c.l.b16 %v4832
        %v4950 = vunpack.c.h.b16 %v4832
        %v4951 = vunpack.c.l.b16 %v4833
        %v4952 = vunpack.c.h.b16 %v4833
        %v4953 = vunpack.c.l.b16 %v4834
        %v4954 = vunpack.c.h.b16 %v4834
        %v4955 = vunpack.c.l.b16 %v4835
        %v4956 = vunpack.c.h.b16 %v4835
        %v4957 = vunpack.c.l.b16 %v4836
        %v4958 = vunpack.c.h.b16 %v4836
        %v4959 = vunpack.c.l.b16 %v4837
        %v4960 = vunpack.c.h.b16 %v4837
        %v4961 = vunpack.c.l.b16 %v4838
        %v4962 = vunpack.c.h.b16 %v4838
        %v4963 = vunpack.c.l.b16 %v4839
        %v4964 = vunpack.c.h.b16 %v4839
        %v4965 = vunpack.c.l.b16 %v4840
        %v4966 = vunpack.c.h.b16 %v4840
        %v4967 = vunpack.c.l.b16 %v4841
        %v4968 = vunpack.c.h.b16 %v4841
        %v4969 = vunpack.c.l.b16 %v4842
        %v4970 = vunpack.c.h.b16 %v4842
        %v4971 = vunpack.c.l.b16 %v4843
        %v4972 = vunpack.c.h.b16 %v4843
        %v4973 = vunpack.c.l.b16 %v4844
        %v4974 = vunpack.c.h.b16 %v4844
        %v4975 = vunpack.c.l.b16 %v4845
        %v4976 = vunpack.c.h.b16 %v4845
        %v4977 = vunpack.c.l.b16 %v4846
        %v4978 = vunpack.c.h.b16 %v4846
        %v4979 = vunpack.c.l.b16 %v4847
        %v4980 = vunpack.c.h.b16 %v4847
        %v4981 = vunpack.c.l.b16 %v4848
        %v4982 = vunpack.c.h.b16 %v4848
        %v4983 = vunpack.c.l.b16 %v4849
        %v4984 = vunpack.c.h.b16 %v4849
        %v4985 = vunpack.c.l.b16 %v4850
        %v4986 = vunpack.c.h.b16 %v4850
        %v4987 = vunpack.c.l.b16 %v4851
        %v4988 = vunpack.c.h.b16 %v4851
        %v4989 = vunpack.c.l.b16 %v4852
        %v4990 = vunpack.c.h.b16 %v4852
        %v4991 = vunpack.c.l.b16 %v4853
        %v4992 = vunpack.c.h.b16 %v4853
        %v4993 = vunpack.c.l.b16 %v4854
        %v4994 = vunpack.c.h.b16 %v4854
        %v4995 = vunpack.c.l.b16 %v4855
        %v4996 = vunpack.c.h.b16 %v4855
        %v4997 = vunpack.c.l.b16 %v4856
        %v4998 = vunpack.c.h.b16 %v4856
        %v4999 = vunpack.c.l.b16 %v4857
        %v5000 = vunpack.c.h.b16 %v4857
        %v5001 = vunpack.c.l.b16 %v4858
        %v5002 = vunpack.c.h.b16 %v4858
        %v5003 = vunpack.c.l.b16 %v4859
        %v5004 = vunpack.c.h.b16 %v4859
        %v5005 = vunpack.c.l.b16 %v4860
        %v5006 = vunpack.c.h.b16 %v4860
        %v5007 = vunpack.c.l.b16 %v4861
        %v5008 = vunpack.c.h.b16 %v4861
        %v5009 = vunpack.c.l.b16 %v4862
        %v5010 = vunpack.c.h.b16 %v4862
        %v5011 = vunpack.c.l.b16 %v4863
        %v5012 = vunpack.c.h.b16 %v4863
        %v5013 = vunpack.c.l.b16 %v4864
        %v5014 = vunpack.c.h.b16 %v4864
        %v5015 = vpack.c.b16 %v4921, %v4919
        %v5016 = vpack.c.b16 %v4922, %v4920
        %v5017 = vpack.c.b16 %v4925, %v4923
        %v5018 = vpack.c.b16 %v4926, %v4924
        %v5019 = vpack.c.b16 %v4929, %v4927
        %v5020 = vpack.c.b16 %v4930, %v4928
        %v5021 = vpack.c.b16 %v4933, %v4931
        %v5022 = vpack.c.b16 %v4934, %v4932
        %v5023 = vpack.c.b16 %v4937, %v4935
        %v5024 = vpack.c.b16 %v4938, %v4936
        %v5025 = vpack.c.b16 %v4941, %v4939
        %v5026 = vpack.c.b16 %v4942, %v4940
        %v5027 = vpack.c.b16 %v4945, %v4943
        %v5028 = vpack.c.b16 %v4946, %v4944
        %v5029 = vpack.c.b16 %v4949, %v4947
        %v5030 = vpack.c.b16 %v4950, %v4948
        %v5031 = vpack.c.b16 %v4953, %v4951
        %v5032 = vpack.c.b16 %v4954, %v4952
        %v5033 = vpack.c.b16 %v4957, %v4955
        %v5034 = vpack.c.b16 %v4958, %v4956
        %v5035 = vpack.c.b16 %v4961, %v4959
        %v5036 = vpack.c.b16 %v4962, %v4960
        %v5037 = vpack.c.b16 %v4965, %v4963
        %v5038 = vpack.c.b16 %v4966, %v4964
        %v5039 = vpack.c.b16 %v4969, %v4967
        %v5040 = vpack.c.b16 %v4970, %v4968
        %v5041 = vpack.c.b16 %v4973, %v4971
        %v5042 = vpack.c.b16 %v4974, %v4972
        %v5043 = vpack.c.b16 %v4977, %v4975
        %v5044 = vpack.c.b16 %v4978, %v4976
        %v5045 = vpack.c.b16 %v4981, %v4979
        %v5046 = vpack.c.b16 %v4982, %v4980
        %v5047 = vpack.c.b16 %v4985, %v4983
        %v5048 = vpack.c.b16 %v4986, %v4984
        %v5049 = vpack.c.b16 %v4989, %v4987
        %v5050 = vpack.c.b16 %v4990, %v4988
        %v5051 = vpack.c.b16 %v4993, %v4991
        %v5052 = vpack.c.b16 %v4994, %v4992
        %v5053 = vpack.c.b16 %v4997, %v4995
        %v5054 = vpack.c.b16 %v4998, %v4996
        %v5055 = vpack.c.b16 %v5001, %v4999
        %v5056 = vpack.c.b16 %v5002, %v5000
        %v5057 = vpack.c.b16 %v5005, %v5003
        %v5058 = vpack.c.b16 %v5006, %v5004
        %v5059 = vpack.c.b16 %v5009, %v5007
        %v5060 = vpack.c.b16 %v5010, %v5008
        %v5061 = vpack.c.b16 %v5013, %v5011
        %v5062 = vpack.c.b16 %v5014, %v5012
        %5111 = vmatpush.bf16.msra.mxu0 %v5029
        %5112 = vmatpush.bf16.msra.mxu0 %v5027
        %5113 = vmatpush.bf16.msra.mxu0 %v5025
        %5114 = vmatpush.bf16.msra.mxu0 %v5023
        %5115 = vmatpush.bf16.msra.mxu0 %v5021
        %5116 = vmatpush.bf16.msra.mxu0 %v5019
        %5117 = vmatpush.bf16.msra.mxu0 %v5017
        %5118 = vmatpush.bf16.msra.mxu0 %v5015
        %5119 = vmatmul.bf16.gmra.mxu0 %v4865
        %v5120 = vpop.f32.mrf.mxu0
        %v5121 = vadd.f32 0.0, %v5120
        %v5122 = vpop.f32.mrf.mxu0
        %5123 = vdwg.mxu0
        %5124 = vmatpush.bf16.msra.mxu0 %v5045
        %5125 = vmatpush.bf16.msra.mxu0 %v5043
        %5126 = vmatpush.bf16.msra.mxu0 %v5041
        %5127 = vmatpush.bf16.msra.mxu0 %v5039
        %5128 = vmatpush.bf16.msra.mxu0 %v5037
        %5129 = vmatpush.bf16.msra.mxu0 %v5035
        %5130 = vmatpush.bf16.msra.mxu0 %v5033
        %5131 = vmatpush.bf16.msra.mxu0 %v5031
        %5132 = vmatmul.bf16.gmra.mxu0 %v4866
        %v5133 = vpop.f32.mrf.mxu0
        %v5134 = vadd.f32 %v5121, %v5133
        %v5135 = vpop.f32.mrf.mxu0
        %5136 = vdwg.mxu0
        %5137 = vmatpush.bf16.msra.mxu0 %v5061
        %5138 = vmatpush.bf16.msra.mxu0 %v5059
        %5139 = vmatpush.bf16.msra.mxu0 %v5057
        %5140 = vmatpush.bf16.msra.mxu0 %v5055
        %5141 = vmatpush.bf16.msra.mxu0 %v5053
        %5142 = vmatpush.bf16.msra.mxu0 %v5051
        %5143 = vmatpush.bf16.msra.mxu0 %v5049
        %5144 = vmatpush.bf16.msra.mxu0 %v5047
        %5145 = vmatmul.bf16.gmra.mxu0 %v4867
        %v5146 = vpop.f32.mrf.mxu0
        %v5147 = vadd.f32 %v5134, %v5146
        %v5148 = vpop.f32.mrf.mxu0
        %5149 = vdwg.mxu0
        %5150 = vmatpush.bf16.msra.mxu0 %v5030
        %5151 = vmatpush.bf16.msra.mxu0 %v5028
        %5152 = vmatpush.bf16.msra.mxu0 %v5026
        %5153 = vmatpush.bf16.msra.mxu0 %v5024
        %5154 = vmatpush.bf16.msra.mxu0 %v5022
        %5155 = vmatpush.bf16.msra.mxu0 %v5020
        %5156 = vmatpush.bf16.msra.mxu0 %v5018
        %5157 = vmatpush.bf16.msra.mxu0 %v5016
        %5158 = vmatmul.bf16.gmra.mxu0 %v4865
        %v5159 = vpop.f32.mrf.mxu0
        %v5160 = vadd.f32 0.0, %v5159
        %v5161 = vpop.f32.mrf.mxu0
        %5162 = vdwg.mxu0
        %5163 = vmatpush.bf16.msra.mxu0 %v5046
        %5164 = vmatpush.bf16.msra.mxu0 %v5044
        %5165 = vmatpush.bf16.msra.mxu0 %v5042
        %5166 = vmatpush.bf16.msra.mxu0 %v5040
        %5167 = vmatpush.bf16.msra.mxu0 %v5038
        %5168 = vmatpush.bf16.msra.mxu0 %v5036
        %5169 = vmatpush.bf16.msra.mxu0 %v5034
        %5170 = vmatpush.bf16.msra.mxu0 %v5032
        %5171 = vmatmul.bf16.gmra.mxu0 %v4866
        %v5172 = vpop.f32.mrf.mxu0
        %v5173 = vadd.f32 %v5160, %v5172
        %v5174 = vpop.f32.mrf.mxu0
        %5175 = vdwg.mxu0
        %5176 = vmatpush.bf16.msra.mxu0 %v5062
        %5177 = vmatpush.bf16.msra.mxu0 %v5060
        %5178 = vmatpush.bf16.msra.mxu0 %v5058
        %5179 = vmatpush.bf16.msra.mxu0 %v5056
        %5180 = vmatpush.bf16.msra.mxu0 %v5054
        %5181 = vmatpush.bf16.msra.mxu0 %v5052
        %5182 = vmatpush.bf16.msra.mxu0 %v5050
        %5183 = vmatpush.bf16.msra.mxu0 %v5048
        %5184 = vmatmul.bf16.gmra.mxu0 %v4867
        %v5185 = vpop.f32.mrf.mxu0
        %v5186 = vadd.f32 %v5173, %v5185
        %v5187 = vpop.f32.mrf.mxu0
        %5188 = vdwg.mxu0
        %s5189 = scalar_lea.vmem [#allocation4], 3456
        %v5190 = vld [vmem:[%s5189] sm:$0xff]
        %v5191 = vld [vmem:[%s5189 + $0x8] sm:$0xff]
        %v5192 = vld [vmem:[%s5189 + $0x10] sm:$0xff]
        %v5193 = vld [vmem:[%s5189 + $0x18] sm:$0xff]
        %v5194 = vld [vmem:[%s5189 + $0x20] sm:$0xff]
        %v5195 = vld [vmem:[%s5189 + $0x28] sm:$0xff]
        %v5196 = vld [vmem:[%s5189 + $0x30] sm:$0xff]
        %v5197 = vld [vmem:[%s5189 + $0x38] sm:$0xff]
        %v5198 = vld [vmem:[%s5189 + $0x40] sm:$0xff]
        %v5199 = vld [vmem:[%s5189 + $0x48] sm:$0xff]
        %v5200 = vld [vmem:[%s5189 + $0x50] sm:$0xff]
        %v5201 = vld [vmem:[%s5189 + $0x58] sm:$0xff]
        %v5202 = vld [vmem:[%s5189 + $0x60] sm:$0xff]
        %v5203 = vld [vmem:[%s5189 + $0x68] sm:$0xff]
        %v5204 = vld [vmem:[%s5189 + $0x70] sm:$0xff]
        %v5205 = vld [vmem:[%s5189 + $0x78] sm:$0xff]
        %v5206 = vld [vmem:[%s5189 + $0x80] sm:$0xff]
        %v5207 = vld [vmem:[%s5189 + $0x88] sm:$0xff]
        %v5208 = vld [vmem:[%s5189 + $0x90] sm:$0xff]
        %v5209 = vld [vmem:[%s5189 + $0x98] sm:$0xff]
        %v5210 = vld [vmem:[%s5189 + $0xa0] sm:$0xff]
        %v5211 = vld [vmem:[%s5189 + $0xa8] sm:$0xff]
        %v5212 = vld [vmem:[%s5189 + $0xb0] sm:$0xff]
        %v5213 = vld [vmem:[%s5189 + $0xb8] sm:$0xff]
        %v5214 = vld [vmem:[%s5189 + $0xc0] sm:$0xff]
        %v5215 = vld [vmem:[%s5189 + $0xc8] sm:$0xff]
        %v5216 = vld [vmem:[%s5189 + $0xd0] sm:$0xff]
        %v5217 = vld [vmem:[%s5189 + $0xd8] sm:$0xff]
        %v5218 = vld [vmem:[%s5189 + $0xe0] sm:$0xff]
        %v5219 = vld [vmem:[%s5189 + $0xe8] sm:$0xff]
        %v5220 = vld [vmem:[%s5189 + $0xf0] sm:$0xff]
        %v5221 = vld [vmem:[%s5189 + $0xf8] sm:$0xff]
        %v5222 = vld [vmem:[%s5189 + $0x100] sm:$0xff]
        %v5223 = vld [vmem:[%s5189 + $0x108] sm:$0xff]
        %v5224 = vld [vmem:[%s5189 + $0x110] sm:$0xff]
        %v5225 = vld [vmem:[%s5189 + $0x118] sm:$0xff]
        %v5226 = vld [vmem:[%s5189 + $0x120] sm:$0xff]
        %v5227 = vld [vmem:[%s5189 + $0x128] sm:$0xff]
        %v5228 = vld [vmem:[%s5189 + $0x130] sm:$0xff]
        %v5229 = vld [vmem:[%s5189 + $0x138] sm:$0xff]
        %v5230 = vld [vmem:[%s5189 + $0x140] sm:$0xff]
        %v5231 = vld [vmem:[%s5189 + $0x148] sm:$0xff]
        %v5232 = vld [vmem:[%s5189 + $0x150] sm:$0xff]
        %v5233 = vld [vmem:[%s5189 + $0x158] sm:$0xff]
        %v5234 = vld [vmem:[%s5189 + $0x160] sm:$0xff]
        %v5235 = vld [vmem:[%s5189 + $0x168] sm:$0xff]
        %v5236 = vld [vmem:[%s5189 + $0x170] sm:$0xff]
        %v5237 = vld [vmem:[%s5189 + $0x178] sm:$0xff]
        %v5286 = vunpack.c.l.b16 %v5190
        %v5287 = vunpack.c.h.b16 %v5190
        %v5288 = vunpack.c.l.b16 %v5191
        %v5289 = vunpack.c.h.b16 %v5191
        %v5290 = vunpack.c.l.b16 %v5192
        %v5291 = vunpack.c.h.b16 %v5192
        %v5292 = vunpack.c.l.b16 %v5193
        %v5293 = vunpack.c.h.b16 %v5193
        %v5294 = vunpack.c.l.b16 %v5194
        %v5295 = vunpack.c.h.b16 %v5194
        %v5296 = vunpack.c.l.b16 %v5195
        %v5297 = vunpack.c.h.b16 %v5195
        %v5298 = vunpack.c.l.b16 %v5196
        %v5299 = vunpack.c.h.b16 %v5196
        %v5300 = vunpack.c.l.b16 %v5197
        %v5301 = vunpack.c.h.b16 %v5197
        %v5302 = vunpack.c.l.b16 %v5198
        %v5303 = vunpack.c.h.b16 %v5198
        %v5304 = vunpack.c.l.b16 %v5199
        %v5305 = vunpack.c.h.b16 %v5199
        %v5306 = vunpack.c.l.b16 %v5200
        %v5307 = vunpack.c.h.b16 %v5200
        %v5308 = vunpack.c.l.b16 %v5201
        %v5309 = vunpack.c.h.b16 %v5201
        %v5310 = vunpack.c.l.b16 %v5202
        %v5311 = vunpack.c.h.b16 %v5202
        %v5312 = vunpack.c.l.b16 %v5203
        %v5313 = vunpack.c.h.b16 %v5203
        %v5314 = vunpack.c.l.b16 %v5204
        %v5315 = vunpack.c.h.b16 %v5204
        %v5316 = vunpack.c.l.b16 %v5205
        %v5317 = vunpack.c.h.b16 %v5205
        %v5318 = vunpack.c.l.b16 %v5206
        %v5319 = vunpack.c.h.b16 %v5206
        %v5320 = vunpack.c.l.b16 %v5207
        %v5321 = vunpack.c.h.b16 %v5207
        %v5322 = vunpack.c.l.b16 %v5208
        %v5323 = vunpack.c.h.b16 %v5208
        %v5324 = vunpack.c.l.b16 %v5209
        %v5325 = vunpack.c.h.b16 %v5209
        %v5326 = vunpack.c.l.b16 %v5210
        %v5327 = vunpack.c.h.b16 %v5210
        %v5328 = vunpack.c.l.b16 %v5211
        %v5329 = vunpack.c.h.b16 %v5211
        %v5330 = vunpack.c.l.b16 %v5212
        %v5331 = vunpack.c.h.b16 %v5212
        %v5332 = vunpack.c.l.b16 %v5213
        %v5333 = vunpack.c.h.b16 %v5213
        %v5334 = vunpack.c.l.b16 %v5214
        %v5335 = vunpack.c.h.b16 %v5214
        %v5336 = vunpack.c.l.b16 %v5215
        %v5337 = vunpack.c.h.b16 %v5215
        %v5338 = vunpack.c.l.b16 %v5216
        %v5339 = vunpack.c.h.b16 %v5216
        %v5340 = vunpack.c.l.b16 %v5217
        %v5341 = vunpack.c.h.b16 %v5217
        %v5342 = vunpack.c.l.b16 %v5218
        %v5343 = vunpack.c.h.b16 %v5218
        %v5344 = vunpack.c.l.b16 %v5219
        %v5345 = vunpack.c.h.b16 %v5219
        %v5346 = vunpack.c.l.b16 %v5220
        %v5347 = vunpack.c.h.b16 %v5220
        %v5348 = vunpack.c.l.b16 %v5221
        %v5349 = vunpack.c.h.b16 %v5221
        %v5350 = vunpack.c.l.b16 %v5222
        %v5351 = vunpack.c.h.b16 %v5222
        %v5352 = vunpack.c.l.b16 %v5223
        %v5353 = vunpack.c.h.b16 %v5223
        %v5354 = vunpack.c.l.b16 %v5224
        %v5355 = vunpack.c.h.b16 %v5224
        %v5356 = vunpack.c.l.b16 %v5225
        %v5357 = vunpack.c.h.b16 %v5225
        %v5358 = vunpack.c.l.b16 %v5226
        %v5359 = vunpack.c.h.b16 %v5226
        %v5360 = vunpack.c.l.b16 %v5227
        %v5361 = vunpack.c.h.b16 %v5227
        %v5362 = vunpack.c.l.b16 %v5228
        %v5363 = vunpack.c.h.b16 %v5228
        %v5364 = vunpack.c.l.b16 %v5229
        %v5365 = vunpack.c.h.b16 %v5229
        %v5366 = vunpack.c.l.b16 %v5230
        %v5367 = vunpack.c.h.b16 %v5230
        %v5368 = vunpack.c.l.b16 %v5231
        %v5369 = vunpack.c.h.b16 %v5231
        %v5370 = vunpack.c.l.b16 %v5232
        %v5371 = vunpack.c.h.b16 %v5232
        %v5372 = vunpack.c.l.b16 %v5233
        %v5373 = vunpack.c.h.b16 %v5233
        %v5374 = vunpack.c.l.b16 %v5234
        %v5375 = vunpack.c.h.b16 %v5234
        %v5376 = vunpack.c.l.b16 %v5235
        %v5377 = vunpack.c.h.b16 %v5235
        %v5378 = vunpack.c.l.b16 %v5236
        %v5379 = vunpack.c.h.b16 %v5236
        %v5380 = vunpack.c.l.b16 %v5237
        %v5381 = vunpack.c.h.b16 %v5237
        %v5382 = vpack.c.b16 %v5288, %v5286
        %v5383 = vpack.c.b16 %v5289, %v5287
        %v5384 = vpack.c.b16 %v5292, %v5290
        %v5385 = vpack.c.b16 %v5293, %v5291
        %v5386 = vpack.c.b16 %v5296, %v5294
        %v5387 = vpack.c.b16 %v5297, %v5295
        %v5388 = vpack.c.b16 %v5300, %v5298
        %v5389 = vpack.c.b16 %v5301, %v5299
        %v5390 = vpack.c.b16 %v5304, %v5302
        %v5391 = vpack.c.b16 %v5305, %v5303
        %v5392 = vpack.c.b16 %v5308, %v5306
        %v5393 = vpack.c.b16 %v5309, %v5307
        %v5394 = vpack.c.b16 %v5312, %v5310
        %v5395 = vpack.c.b16 %v5313, %v5311
        %v5396 = vpack.c.b16 %v5316, %v5314
        %v5397 = vpack.c.b16 %v5317, %v5315
        %v5398 = vpack.c.b16 %v5320, %v5318
        %v5399 = vpack.c.b16 %v5321, %v5319
        %v5400 = vpack.c.b16 %v5324, %v5322
        %v5401 = vpack.c.b16 %v5325, %v5323
        %v5402 = vpack.c.b16 %v5328, %v5326
        %v5403 = vpack.c.b16 %v5329, %v5327
        %v5404 = vpack.c.b16 %v5332, %v5330
        %v5405 = vpack.c.b16 %v5333, %v5331
        %v5406 = vpack.c.b16 %v5336, %v5334
        %v5407 = vpack.c.b16 %v5337, %v5335
        %v5408 = vpack.c.b16 %v5340, %v5338
        %v5409 = vpack.c.b16 %v5341, %v5339
        %v5410 = vpack.c.b16 %v5344, %v5342
        %v5411 = vpack.c.b16 %v5345, %v5343
        %v5412 = vpack.c.b16 %v5348, %v5346
        %v5413 = vpack.c.b16 %v5349, %v5347
        %v5414 = vpack.c.b16 %v5352, %v5350
        %v5415 = vpack.c.b16 %v5353, %v5351
        %v5416 = vpack.c.b16 %v5356, %v5354
        %v5417 = vpack.c.b16 %v5357, %v5355
        %v5418 = vpack.c.b16 %v5360, %v5358
        %v5419 = vpack.c.b16 %v5361, %v5359
        %v5420 = vpack.c.b16 %v5364, %v5362
        %v5421 = vpack.c.b16 %v5365, %v5363
        %v5422 = vpack.c.b16 %v5368, %v5366
        %v5423 = vpack.c.b16 %v5369, %v5367
        %v5424 = vpack.c.b16 %v5372, %v5370
        %v5425 = vpack.c.b16 %v5373, %v5371
        %v5426 = vpack.c.b16 %v5376, %v5374
        %v5427 = vpack.c.b16 %v5377, %v5375
        %v5428 = vpack.c.b16 %v5380, %v5378
        %v5429 = vpack.c.b16 %v5381, %v5379
        %5478 = vmatpush.bf16.msra.mxu0 %v5396
        %5479 = vmatpush.bf16.msra.mxu0 %v5394
        %5480 = vmatpush.bf16.msra.mxu0 %v5392
        %5481 = vmatpush.bf16.msra.mxu0 %v5390
        %5482 = vmatpush.bf16.msra.mxu0 %v5388
        %5483 = vmatpush.bf16.msra.mxu0 %v5386
        %5484 = vmatpush.bf16.msra.mxu0 %v5384
        %5485 = vmatpush.bf16.msra.mxu0 %v5382
        %5486 = vmatmul.bf16.gmra.mxu0 %v4865
        %v5487 = vpop.f32.mrf.mxu0
        %v5488 = vadd.f32 0.0, %v5487
        %v5489 = vpop.f32.mrf.mxu0
        %5490 = vdwg.mxu0
        %5491 = vmatpush.bf16.msra.mxu0 %v5412
        %5492 = vmatpush.bf16.msra.mxu0 %v5410
        %5493 = vmatpush.bf16.msra.mxu0 %v5408
        %5494 = vmatpush.bf16.msra.mxu0 %v5406
        %5495 = vmatpush.bf16.msra.mxu0 %v5404
        %5496 = vmatpush.bf16.msra.mxu0 %v5402
        %5497 = vmatpush.bf16.msra.mxu0 %v5400
        %5498 = vmatpush.bf16.msra.mxu0 %v5398
        %5499 = vmatmul.bf16.gmra.mxu0 %v4866
        %v5500 = vpop.f32.mrf.mxu0
        %v5501 = vadd.f32 %v5488, %v5500
        %v5502 = vpop.f32.mrf.mxu0
        %5503 = vdwg.mxu0
        %5504 = vmatpush.bf16.msra.mxu0 %v5428
        %5505 = vmatpush.bf16.msra.mxu0 %v5426
        %5506 = vmatpush.bf16.msra.mxu0 %v5424
        %5507 = vmatpush.bf16.msra.mxu0 %v5422
        %5508 = vmatpush.bf16.msra.mxu0 %v5420
        %5509 = vmatpush.bf16.msra.mxu0 %v5418
        %5510 = vmatpush.bf16.msra.mxu0 %v5416
        %5511 = vmatpush.bf16.msra.mxu0 %v5414
        %5512 = vmatmul.bf16.gmra.mxu0 %v4867
        %v5513 = vpop.f32.mrf.mxu0
        %v5514 = vadd.f32 %v5501, %v5513
        %v5515 = vpop.f32.mrf.mxu0
        %5516 = vdwg.mxu0
        %5517 = vmatpush.bf16.msra.mxu0 %v5397
        %5518 = vmatpush.bf16.msra.mxu0 %v5395
        %5519 = vmatpush.bf16.msra.mxu0 %v5393
        %5520 = vmatpush.bf16.msra.mxu0 %v5391
        %5521 = vmatpush.bf16.msra.mxu0 %v5389
        %5522 = vmatpush.bf16.msra.mxu0 %v5387
        %5523 = vmatpush.bf16.msra.mxu0 %v5385
        %5524 = vmatpush.bf16.msra.mxu0 %v5383
        %5525 = vmatmul.bf16.gmra.mxu0 %v4865
        %v5526 = vpop.f32.mrf.mxu0
        %v5527 = vadd.f32 0.0, %v5526
        %v5528 = vpop.f32.mrf.mxu0
        %5529 = vdwg.mxu0
        %5530 = vmatpush.bf16.msra.mxu0 %v5413
        %5531 = vmatpush.bf16.msra.mxu0 %v5411
        %5532 = vmatpush.bf16.msra.mxu0 %v5409
        %5533 = vmatpush.bf16.msra.mxu0 %v5407
        %5534 = vmatpush.bf16.msra.mxu0 %v5405
        %5535 = vmatpush.bf16.msra.mxu0 %v5403
        %5536 = vmatpush.bf16.msra.mxu0 %v5401
        %5537 = vmatpush.bf16.msra.mxu0 %v5399
        %5538 = vmatmul.bf16.gmra.mxu0 %v4866
        %v5539 = vpop.f32.mrf.mxu0
        %v5540 = vadd.f32 %v5527, %v5539
        %v5541 = vpop.f32.mrf.mxu0
        %5542 = vdwg.mxu0
        %5543 = vmatpush.bf16.msra.mxu0 %v5429
        %5544 = vmatpush.bf16.msra.mxu0 %v5427
        %5545 = vmatpush.bf16.msra.mxu0 %v5425
        %5546 = vmatpush.bf16.msra.mxu0 %v5423
        %5547 = vmatpush.bf16.msra.mxu0 %v5421
        %5548 = vmatpush.bf16.msra.mxu0 %v5419
        %5549 = vmatpush.bf16.msra.mxu0 %v5417
        %5550 = vmatpush.bf16.msra.mxu0 %v5415
        %5551 = vmatmul.bf16.gmra.mxu0 %v4867
        %v5552 = vpop.f32.mrf.mxu0
        %v5553 = vadd.f32 %v5540, %v5552
        %v5554 = vpop.f32.mrf.mxu0
        %5555 = vdwg.mxu0
        %v5556 = vadd.f32 %v4812, %v5147
        %v5557 = vadd.f32 %v4813, %v5186
        %v5558 = vadd.f32 %v4814, %v5514
        %v5559 = vadd.f32 %v4815, %v5553
        %v5560 = vmax.f32 %v5556, %v5558
        %v5561 = vmax.f32 %v5557, %v5559
        %v5562 = vld [vmem:[#allocation6] sm:$0xf]
        %vm5563 = vcmask 64512
        %v5565 = vsel %vm5563, %v5562, 0
        %5567 = vmatpush.msra.mxu0 0.0
        %5568 = vmatpush.msra.mxu0 0.0
        %5569 = vmatpush.msra.mxu0 0.0
        %5570 = vmatpush.msra.mxu0 0.0
        %5571 = vmatpush.msra.mxu0 0.0
        %5572 = vmatpush.msra.mxu0 0.0
        %5573 = vmatpush.msra.mxu0 0.0
        %5574 = vmatpush.msra.mxu0 0.0
        %5575 = vmatpush.msra.mxu0 0.0
        %5576 = vmatpush.msra.mxu0 0.0
        %5577 = vmatpush.msra.mxu0 0.0
        %5578 = vmatpush.msra.mxu0 0.0
        %5579 = vmatpush.msra.mxu0 0.0
        %5580 = vmatpush.msra.mxu0 0.0
        %5581 = vmatpush.msra.mxu0 0.0
        %5582 = vmatpush.msra.mxu0 %v5560
        %5583 = vmatmul.f32.gmra.mxu0 %v5565
        %v5584 = vpop.f32.mrf.mxu0
        %v5585 = vadd.f32 0.0, %v5584
        %5586 = vdwg.mxu0
        %5587 = vmatpush.msra.mxu0 0.0
        %5588 = vmatpush.msra.mxu0 0.0
        %5589 = vmatpush.msra.mxu0 0.0
        %5590 = vmatpush.msra.mxu0 0.0
        %5591 = vmatpush.msra.mxu0 0.0
        %5592 = vmatpush.msra.mxu0 0.0
        %5593 = vmatpush.msra.mxu0 0.0
        %5594 = vmatpush.msra.mxu0 0.0
        %5595 = vmatpush.msra.mxu0 0.0
        %5596 = vmatpush.msra.mxu0 0.0
        %5597 = vmatpush.msra.mxu0 0.0
        %5598 = vmatpush.msra.mxu0 0.0
        %5599 = vmatpush.msra.mxu0 0.0
        %5600 = vmatpush.msra.mxu0 0.0
        %5601 = vmatpush.msra.mxu0 0.0
        %5602 = vmatpush.msra.mxu0 %v5561
        %5603 = vmatmul.f32.gmra.mxu0 %v5565
        %v5604 = vpop.f32.mrf.mxu0
        %v5605 = vadd.f32 0.0, %v5604
        %5606 = vdwg.mxu0
        %s5607 = scalar_lea.vmem [#allocation6], 4
        %v5608 = vld [vmem:[%s5607] sm:$0xf]
        %v5610 = vsel %vm5563, %v5608, 0
        %5612 = vmatpush.msra.mxu0 0.0
        %5613 = vmatpush.msra.mxu0 0.0
        %5614 = vmatpush.msra.mxu0 0.0
        %5615 = vmatpush.msra.mxu0 0.0
        %5616 = vmatpush.msra.mxu0 0.0
        %5617 = vmatpush.msra.mxu0 0.0
        %5618 = vmatpush.msra.mxu0 0.0
        %5619 = vmatpush.msra.mxu0 0.0
        %5620 = vmatpush.msra.mxu0 0.0
        %5621 = vmatpush.msra.mxu0 0.0
        %5622 = vmatpush.msra.mxu0 0.0
        %5623 = vmatpush.msra.mxu0 0.0
        %5624 = vmatpush.msra.mxu0 0.0
        %5625 = vmatpush.msra.mxu0 0.0
        %5626 = vmatpush.msra.mxu0 0.0
        %5627 = vmatpush.msra.mxu0 %v5560
        %5628 = vmatmul.f32.gmra.mxu0 %v5610
        %v5629 = vpop.f32.mrf.mxu0
        %v5630 = vadd.f32 0.0, %v5629
        %5631 = vdwg.mxu0
        %5632 = vmatpush.msra.mxu0 0.0
        %5633 = vmatpush.msra.mxu0 0.0
        %5634 = vmatpush.msra.mxu0 0.0
        %5635 = vmatpush.msra.mxu0 0.0
        %5636 = vmatpush.msra.mxu0 0.0
        %5637 = vmatpush.msra.mxu0 0.0
        %5638 = vmatpush.msra.mxu0 0.0
        %5639 = vmatpush.msra.mxu0 0.0
        %5640 = vmatpush.msra.mxu0 0.0
        %5641 = vmatpush.msra.mxu0 0.0
        %5642 = vmatpush.msra.mxu0 0.0
        %5643 = vmatpush.msra.mxu0 0.0
        %5644 = vmatpush.msra.mxu0 0.0
        %5645 = vmatpush.msra.mxu0 0.0
        %5646 = vmatpush.msra.mxu0 0.0
        %5647 = vmatpush.msra.mxu0 %v5561
        %5648 = vmatmul.f32.gmra.mxu0 %v5610
        %v5649 = vpop.f32.mrf.mxu0
        %v5650 = vadd.f32 0.0, %v5649
        %5651 = vdwg.mxu0
        %v5652 = vmax.f32 %v5585, %v5630
        %v5653 = vmax.f32 %v5605, %v5650
        %v5654 = vld [vmem:[#allocation7] sm:$0x3]
        %v5656 = vperm.slane %v5654, 0
        %v5657 = vperm.slane %v5654, 1
        %v5660 = vadd.f32 %v5652, %v5656
        %v5661 = vadd.f32 %v5653, %v5657
        %v5662 = vmax.f32 %v5660, 0.0
        %v5663 = vmax.f32 %v5661, 0.0
        %v5664 = vpack.c.bf16 %v5662, %v5662
        %v5665 = vpack.c.bf16 %v5663, %v5663
        %v5666 = vld [vmem:[#allocation9] sm:$0xff]
        %v5667 = vld [vmem:[#allocation9 + $0x8] sm:$0xff]
        %v5668 = vld [vmem:[#allocation9 + $0x10] sm:$0xff]
        %v5669 = vld [vmem:[#allocation9 + $0x18] sm:$0xff]
        %v5670 = vld [vmem:[#allocation9 + $0x20] sm:$0xff]
        %v5671 = vld [vmem:[#allocation9 + $0x28] sm:$0xff]
        %v5672 = vld [vmem:[#allocation9 + $0x30] sm:$0xff]
        %v5673 = vld [vmem:[#allocation9 + $0x38] sm:$0xff]
        %v5674 = vld [vmem:[#allocation9 + $0x40] sm:$0xff]
        %v5675 = vld [vmem:[#allocation9 + $0x48] sm:$0xff]
        %v5676 = vld [vmem:[#allocation9 + $0x50] sm:$0xff]
        %v5677 = vld [vmem:[#allocation9 + $0x58] sm:$0xff]
        %v5678 = vld [vmem:[#allocation9 + $0x60] sm:$0xff]
        %v5679 = vld [vmem:[#allocation9 + $0x68] sm:$0xff]
        %v5680 = vld [vmem:[#allocation9 + $0x70] sm:$0xff]
        %v5681 = vld [vmem:[#allocation9 + $0x78] sm:$0xff]
        %v5682 = vld [vmem:[#allocation9 + $0x80] sm:$0xff]
        %v5683 = vld [vmem:[#allocation9 + $0x88] sm:$0xff]
        %v5684 = vld [vmem:[#allocation9 + $0x90] sm:$0xff]
        %v5685 = vld [vmem:[#allocation9 + $0x98] sm:$0xff]
        %v5686 = vld [vmem:[#allocation9 + $0xa0] sm:$0xff]
        %v5687 = vld [vmem:[#allocation9 + $0xa8] sm:$0xff]
        %v5688 = vld [vmem:[#allocation9 + $0xb0] sm:$0xff]
        %v5689 = vld [vmem:[#allocation9 + $0xb8] sm:$0xff]
        %v5690 = vld [vmem:[#allocation9 + $0xc0] sm:$0xff]
        %v5691 = vld [vmem:[#allocation9 + $0xc8] sm:$0xff]
        %v5692 = vld [vmem:[#allocation9 + $0xd0] sm:$0xff]
        %v5693 = vld [vmem:[#allocation9 + $0xd8] sm:$0xff]
        %v5694 = vld [vmem:[#allocation9 + $0xe0] sm:$0xff]
        %v5695 = vld [vmem:[#allocation9 + $0xe8] sm:$0xff]
        %v5696 = vld [vmem:[#allocation9 + $0xf0] sm:$0xff]
        %v5697 = vld [vmem:[#allocation9 + $0xf8] sm:$0xff]
        %v5698 = vld [vmem:[#allocation9 + $0x100] sm:$0xff]
        %v5699 = vld [vmem:[#allocation9 + $0x108] sm:$0xff]
        %v5700 = vld [vmem:[#allocation9 + $0x110] sm:$0xff]
        %v5701 = vld [vmem:[#allocation9 + $0x118] sm:$0xff]
        %v5702 = vld [vmem:[#allocation9 + $0x120] sm:$0xff]
        %v5703 = vld [vmem:[#allocation9 + $0x128] sm:$0xff]
        %v5704 = vld [vmem:[#allocation9 + $0x130] sm:$0xff]
        %v5705 = vld [vmem:[#allocation9 + $0x138] sm:$0xff]
        %v5706 = vld [vmem:[#allocation9 + $0x140] sm:$0xff]
        %v5707 = vld [vmem:[#allocation9 + $0x148] sm:$0xff]
        %v5708 = vld [vmem:[#allocation9 + $0x150] sm:$0xff]
        %v5709 = vld [vmem:[#allocation9 + $0x158] sm:$0xff]
        %v5710 = vld [vmem:[#allocation9 + $0x160] sm:$0xff]
        %v5711 = vld [vmem:[#allocation9 + $0x168] sm:$0xff]
        %v5712 = vld [vmem:[#allocation9 + $0x170] sm:$0xff]
        %v5713 = vld [vmem:[#allocation9 + $0x178] sm:$0xff]
        %v5714 = vld [vmem:[#allocation9 + $0x180] sm:$0xff]
        %v5715 = vld [vmem:[#allocation9 + $0x188] sm:$0xff]
        %v5716 = vld [vmem:[#allocation9 + $0x190] sm:$0xff]
        %v5717 = vld [vmem:[#allocation9 + $0x198] sm:$0xff]
        %v5718 = vld [vmem:[#allocation9 + $0x1a0] sm:$0xff]
        %v5719 = vld [vmem:[#allocation9 + $0x1a8] sm:$0xff]
        %v5720 = vld [vmem:[#allocation9 + $0x1b0] sm:$0xff]
        %v5721 = vld [vmem:[#allocation9 + $0x1b8] sm:$0xff]
        %v5722 = vld [vmem:[#allocation9 + $0x1c0] sm:$0xff]
        %v5723 = vld [vmem:[#allocation9 + $0x1c8] sm:$0xff]
        %v5724 = vld [vmem:[#allocation9 + $0x1d0] sm:$0xff]
        %v5725 = vld [vmem:[#allocation9 + $0x1d8] sm:$0xff]
        %v5726 = vld [vmem:[#allocation9 + $0x1e0] sm:$0xff]
        %v5727 = vld [vmem:[#allocation9 + $0x1e8] sm:$0xff]
        %v5728 = vld [vmem:[#allocation9 + $0x1f0] sm:$0xff]
        %v5729 = vld [vmem:[#allocation9 + $0x1f8] sm:$0xff]
        %s5730 = scalar_lea.vmem [#allocation9], 512
        %v5731 = vld [vmem:[%s5730] sm:$0xff]
        %v5732 = vld [vmem:[%s5730 + $0x8] sm:$0xff]
        %v5733 = vld [vmem:[%s5730 + $0x10] sm:$0xff]
        %v5734 = vld [vmem:[%s5730 + $0x18] sm:$0xff]
        %v5735 = vld [vmem:[%s5730 + $0x20] sm:$0xff]
        %v5736 = vld [vmem:[%s5730 + $0x28] sm:$0xff]
        %v5737 = vld [vmem:[%s5730 + $0x30] sm:$0xff]
        %v5738 = vld [vmem:[%s5730 + $0x38] sm:$0xff]
        %v5739 = vld [vmem:[%s5730 + $0x40] sm:$0xff]
        %v5740 = vld [vmem:[%s5730 + $0x48] sm:$0xff]
        %v5741 = vld [vmem:[%s5730 + $0x50] sm:$0xff]
        %v5742 = vld [vmem:[%s5730 + $0x58] sm:$0xff]
        %v5743 = vld [vmem:[%s5730 + $0x60] sm:$0xff]
        %v5744 = vld [vmem:[%s5730 + $0x68] sm:$0xff]
        %v5745 = vld [vmem:[%s5730 + $0x70] sm:$0xff]
        %v5746 = vld [vmem:[%s5730 + $0x78] sm:$0xff]
        %v5747 = vld [vmem:[%s5730 + $0x80] sm:$0xff]
        %v5748 = vld [vmem:[%s5730 + $0x88] sm:$0xff]
        %v5749 = vld [vmem:[%s5730 + $0x90] sm:$0xff]
        %v5750 = vld [vmem:[%s5730 + $0x98] sm:$0xff]
        %v5751 = vld [vmem:[%s5730 + $0xa0] sm:$0xff]
        %v5752 = vld [vmem:[%s5730 + $0xa8] sm:$0xff]
        %v5753 = vld [vmem:[%s5730 + $0xb0] sm:$0xff]
        %v5754 = vld [vmem:[%s5730 + $0xb8] sm:$0xff]
        %v5755 = vld [vmem:[%s5730 + $0xc0] sm:$0xff]
        %v5756 = vld [vmem:[%s5730 + $0xc8] sm:$0xff]
        %v5757 = vld [vmem:[%s5730 + $0xd0] sm:$0xff]
        %v5758 = vld [vmem:[%s5730 + $0xd8] sm:$0xff]
        %v5759 = vld [vmem:[%s5730 + $0xe0] sm:$0xff]
        %v5760 = vld [vmem:[%s5730 + $0xe8] sm:$0xff]
        %v5761 = vld [vmem:[%s5730 + $0xf0] sm:$0xff]
        %v5762 = vld [vmem:[%s5730 + $0xf8] sm:$0xff]
        %v5763 = vld [vmem:[%s5730 + $0x100] sm:$0xff]
        %v5764 = vld [vmem:[%s5730 + $0x108] sm:$0xff]
        %v5765 = vld [vmem:[%s5730 + $0x110] sm:$0xff]
        %v5766 = vld [vmem:[%s5730 + $0x118] sm:$0xff]
        %v5767 = vld [vmem:[%s5730 + $0x120] sm:$0xff]
        %v5768 = vld [vmem:[%s5730 + $0x128] sm:$0xff]
        %v5769 = vld [vmem:[%s5730 + $0x130] sm:$0xff]
        %v5770 = vld [vmem:[%s5730 + $0x138] sm:$0xff]
        %v5771 = vld [vmem:[%s5730 + $0x140] sm:$0xff]
        %v5772 = vld [vmem:[%s5730 + $0x148] sm:$0xff]
        %v5773 = vld [vmem:[%s5730 + $0x150] sm:$0xff]
        %v5774 = vld [vmem:[%s5730 + $0x158] sm:$0xff]
        %v5775 = vld [vmem:[%s5730 + $0x160] sm:$0xff]
        %v5776 = vld [vmem:[%s5730 + $0x168] sm:$0xff]
        %v5777 = vld [vmem:[%s5730 + $0x170] sm:$0xff]
        %v5778 = vld [vmem:[%s5730 + $0x178] sm:$0xff]
        %v5779 = vld [vmem:[%s5730 + $0x180] sm:$0xff]
        %v5780 = vld [vmem:[%s5730 + $0x188] sm:$0xff]
        %v5781 = vld [vmem:[%s5730 + $0x190] sm:$0xff]
        %v5782 = vld [vmem:[%s5730 + $0x198] sm:$0xff]
        %v5783 = vld [vmem:[%s5730 + $0x1a0] sm:$0xff]
        %v5784 = vld [vmem:[%s5730 + $0x1a8] sm:$0xff]
        %v5785 = vld [vmem:[%s5730 + $0x1b0] sm:$0xff]
        %v5786 = vld [vmem:[%s5730 + $0x1b8] sm:$0xff]
        %v5787 = vld [vmem:[%s5730 + $0x1c0] sm:$0xff]
        %v5788 = vld [vmem:[%s5730 + $0x1c8] sm:$0xff]
        %v5789 = vld [vmem:[%s5730 + $0x1d0] sm:$0xff]
        %v5790 = vld [vmem:[%s5730 + $0x1d8] sm:$0xff]
        %v5791 = vld [vmem:[%s5730 + $0x1e0] sm:$0xff]
        %v5792 = vld [vmem:[%s5730 + $0x1e8] sm:$0xff]
        %v5793 = vld [vmem:[%s5730 + $0x1f0] sm:$0xff]
        %v5794 = vld [vmem:[%s5730 + $0x1f8] sm:$0xff]
        %v5796 = vshrl.u32 %v5664, 16
        %v5799 = vshrl.u32 %v5665, 16
        %v5867 = vunpack.c.l.b16 %v5731
        %v5868 = vunpack.c.h.b16 %v5731
        %v5869 = vunpack.c.l.b16 %v5732
        %v5870 = vunpack.c.h.b16 %v5732
        %v5871 = vunpack.c.l.b16 %v5733
        %v5872 = vunpack.c.h.b16 %v5733
        %v5873 = vunpack.c.l.b16 %v5734
        %v5874 = vunpack.c.h.b16 %v5734
        %v5875 = vunpack.c.l.b16 %v5735
        %v5876 = vunpack.c.h.b16 %v5735
        %v5877 = vunpack.c.l.b16 %v5736
        %v5878 = vunpack.c.h.b16 %v5736
        %v5879 = vunpack.c.l.b16 %v5737
        %v5880 = vunpack.c.h.b16 %v5737
        %v5881 = vunpack.c.l.b16 %v5738
        %v5882 = vunpack.c.h.b16 %v5738
        %v5883 = vunpack.c.l.b16 %v5739
        %v5884 = vunpack.c.h.b16 %v5739
        %v5885 = vunpack.c.l.b16 %v5740
        %v5886 = vunpack.c.h.b16 %v5740
        %v5887 = vunpack.c.l.b16 %v5741
        %v5888 = vunpack.c.h.b16 %v5741
        %v5889 = vunpack.c.l.b16 %v5742
        %v5890 = vunpack.c.h.b16 %v5742
        %v5891 = vunpack.c.l.b16 %v5743
        %v5892 = vunpack.c.h.b16 %v5743
        %v5893 = vunpack.c.l.b16 %v5744
        %v5894 = vunpack.c.h.b16 %v5744
        %v5895 = vunpack.c.l.b16 %v5745
        %v5896 = vunpack.c.h.b16 %v5745
        %v5897 = vunpack.c.l.b16 %v5746
        %v5898 = vunpack.c.h.b16 %v5746
        %v5899 = vunpack.c.l.b16 %v5747
        %v5900 = vunpack.c.h.b16 %v5747
        %v5901 = vunpack.c.l.b16 %v5748
        %v5902 = vunpack.c.h.b16 %v5748
        %v5903 = vunpack.c.l.b16 %v5749
        %v5904 = vunpack.c.h.b16 %v5749
        %v5905 = vunpack.c.l.b16 %v5750
        %v5906 = vunpack.c.h.b16 %v5750
        %v5907 = vunpack.c.l.b16 %v5751
        %v5908 = vunpack.c.h.b16 %v5751
        %v5909 = vunpack.c.l.b16 %v5752
        %v5910 = vunpack.c.h.b16 %v5752
        %v5911 = vunpack.c.l.b16 %v5753
        %v5912 = vunpack.c.h.b16 %v5753
        %v5913 = vunpack.c.l.b16 %v5754
        %v5914 = vunpack.c.h.b16 %v5754
        %v5915 = vunpack.c.l.b16 %v5755
        %v5916 = vunpack.c.h.b16 %v5755
        %v5917 = vunpack.c.l.b16 %v5756
        %v5918 = vunpack.c.h.b16 %v5756
        %v5919 = vunpack.c.l.b16 %v5757
        %v5920 = vunpack.c.h.b16 %v5757
        %v5921 = vunpack.c.l.b16 %v5758
        %v5922 = vunpack.c.h.b16 %v5758
        %v5923 = vunpack.c.l.b16 %v5759
        %v5924 = vunpack.c.h.b16 %v5759
        %v5925 = vunpack.c.l.b16 %v5760
        %v5926 = vunpack.c.h.b16 %v5760
        %v5927 = vunpack.c.l.b16 %v5761
        %v5928 = vunpack.c.h.b16 %v5761
        %v5929 = vunpack.c.l.b16 %v5762
        %v5930 = vunpack.c.h.b16 %v5762
        %v5931 = vunpack.c.l.b16 %v5763
        %v5932 = vunpack.c.h.b16 %v5763
        %v5933 = vunpack.c.l.b16 %v5764
        %v5934 = vunpack.c.h.b16 %v5764
        %v5935 = vunpack.c.l.b16 %v5765
        %v5936 = vunpack.c.h.b16 %v5765
        %v5937 = vunpack.c.l.b16 %v5766
        %v5938 = vunpack.c.h.b16 %v5766
        %v5939 = vunpack.c.l.b16 %v5767
        %v5940 = vunpack.c.h.b16 %v5767
        %v5941 = vunpack.c.l.b16 %v5768
        %v5942 = vunpack.c.h.b16 %v5768
        %v5943 = vunpack.c.l.b16 %v5769
        %v5944 = vunpack.c.h.b16 %v5769
        %v5945 = vunpack.c.l.b16 %v5770
        %v5946 = vunpack.c.h.b16 %v5770
        %v5947 = vunpack.c.l.b16 %v5771
        %v5948 = vunpack.c.h.b16 %v5771
        %v5949 = vunpack.c.l.b16 %v5772
        %v5950 = vunpack.c.h.b16 %v5772
        %v5951 = vunpack.c.l.b16 %v5773
        %v5952 = vunpack.c.h.b16 %v5773
        %v5953 = vunpack.c.l.b16 %v5774
        %v5954 = vunpack.c.h.b16 %v5774
        %v5955 = vunpack.c.l.b16 %v5775
        %v5956 = vunpack.c.h.b16 %v5775
        %v5957 = vunpack.c.l.b16 %v5776
        %v5958 = vunpack.c.h.b16 %v5776
        %v5959 = vunpack.c.l.b16 %v5777
        %v5960 = vunpack.c.h.b16 %v5777
        %v5961 = vunpack.c.l.b16 %v5778
        %v5962 = vunpack.c.h.b16 %v5778
        %v5963 = vunpack.c.l.b16 %v5779
        %v5964 = vunpack.c.h.b16 %v5779
        %v5965 = vunpack.c.l.b16 %v5780
        %v5966 = vunpack.c.h.b16 %v5780
        %v5967 = vunpack.c.l.b16 %v5781
        %v5968 = vunpack.c.h.b16 %v5781
        %v5969 = vunpack.c.l.b16 %v5782
        %v5970 = vunpack.c.h.b16 %v5782
        %v5971 = vunpack.c.l.b16 %v5783
        %v5972 = vunpack.c.h.b16 %v5783
        %v5973 = vunpack.c.l.b16 %v5784
        %v5974 = vunpack.c.h.b16 %v5784
        %v5975 = vunpack.c.l.b16 %v5785
        %v5976 = vunpack.c.h.b16 %v5785
        %v5977 = vunpack.c.l.b16 %v5786
        %v5978 = vunpack.c.h.b16 %v5786
        %v5979 = vunpack.c.l.b16 %v5787
        %v5980 = vunpack.c.h.b16 %v5787
        %v5981 = vunpack.c.l.b16 %v5788
        %v5982 = vunpack.c.h.b16 %v5788
        %v5983 = vunpack.c.l.b16 %v5789
        %v5984 = vunpack.c.h.b16 %v5789
        %v5985 = vunpack.c.l.b16 %v5790
        %v5986 = vunpack.c.h.b16 %v5790
        %v5987 = vunpack.c.l.b16 %v5791
        %v5988 = vunpack.c.h.b16 %v5791
        %v5989 = vunpack.c.l.b16 %v5792
        %v5990 = vunpack.c.h.b16 %v5792
        %v5991 = vunpack.c.l.b16 %v5793
        %v5992 = vunpack.c.h.b16 %v5793
        %v5993 = vunpack.c.l.b16 %v5794
        %v5994 = vunpack.c.h.b16 %v5794
        %v5995 = vpack.c.b16 %v5871, %v5867
        %v5996 = vpack.c.b16 %v5872, %v5868
        %v5997 = vpack.c.b16 %v5873, %v5869
        %v5998 = vpack.c.b16 %v5874, %v5870
        %v5999 = vpack.c.b16 %v5879, %v5875
        %v6000 = vpack.c.b16 %v5880, %v5876
        %v6001 = vpack.c.b16 %v5881, %v5877
        %v6002 = vpack.c.b16 %v5882, %v5878
        %v6003 = vpack.c.b16 %v5887, %v5883
        %v6004 = vpack.c.b16 %v5888, %v5884
        %v6005 = vpack.c.b16 %v5889, %v5885
        %v6006 = vpack.c.b16 %v5890, %v5886
        %v6007 = vpack.c.b16 %v5895, %v5891
        %v6008 = vpack.c.b16 %v5896, %v5892
        %v6009 = vpack.c.b16 %v5897, %v5893
        %v6010 = vpack.c.b16 %v5898, %v5894
        %v6011 = vpack.c.b16 %v5903, %v5899
        %v6012 = vpack.c.b16 %v5904, %v5900
        %v6013 = vpack.c.b16 %v5905, %v5901
        %v6014 = vpack.c.b16 %v5906, %v5902
        %v6015 = vpack.c.b16 %v5911, %v5907
        %v6016 = vpack.c.b16 %v5912, %v5908
        %v6017 = vpack.c.b16 %v5913, %v5909
        %v6018 = vpack.c.b16 %v5914, %v5910
        %v6019 = vpack.c.b16 %v5919, %v5915
        %v6020 = vpack.c.b16 %v5920, %v5916
        %v6021 = vpack.c.b16 %v5921, %v5917
        %v6022 = vpack.c.b16 %v5922, %v5918
        %v6023 = vpack.c.b16 %v5927, %v5923
        %v6024 = vpack.c.b16 %v5928, %v5924
        %v6025 = vpack.c.b16 %v5929, %v5925
        %v6026 = vpack.c.b16 %v5930, %v5926
        %v6027 = vpack.c.b16 %v5935, %v5931
        %v6028 = vpack.c.b16 %v5936, %v5932
        %v6029 = vpack.c.b16 %v5937, %v5933
        %v6030 = vpack.c.b16 %v5938, %v5934
        %v6031 = vpack.c.b16 %v5943, %v5939
        %v6032 = vpack.c.b16 %v5944, %v5940
        %v6033 = vpack.c.b16 %v5945, %v5941
        %v6034 = vpack.c.b16 %v5946, %v5942
        %v6035 = vpack.c.b16 %v5951, %v5947
        %v6036 = vpack.c.b16 %v5952, %v5948
        %v6037 = vpack.c.b16 %v5953, %v5949
        %v6038 = vpack.c.b16 %v5954, %v5950
        %v6039 = vpack.c.b16 %v5959, %v5955
        %v6040 = vpack.c.b16 %v5960, %v5956
        %v6041 = vpack.c.b16 %v5961, %v5957
        %v6042 = vpack.c.b16 %v5962, %v5958
        %v6043 = vpack.c.b16 %v5967, %v5963
        %v6044 = vpack.c.b16 %v5968, %v5964
        %v6045 = vpack.c.b16 %v5969, %v5965
        %v6046 = vpack.c.b16 %v5970, %v5966
        %v6047 = vpack.c.b16 %v5975, %v5971
        %v6048 = vpack.c.b16 %v5976, %v5972
        %v6049 = vpack.c.b16 %v5977, %v5973
        %v6050 = vpack.c.b16 %v5978, %v5974
        %v6051 = vpack.c.b16 %v5983, %v5979
        %v6052 = vpack.c.b16 %v5984, %v5980
        %v6053 = vpack.c.b16 %v5985, %v5981
        %v6054 = vpack.c.b16 %v5986, %v5982
        %v6055 = vpack.c.b16 %v5991, %v5987
        %v6056 = vpack.c.b16 %v5992, %v5988
        %v6057 = vpack.c.b16 %v5993, %v5989
        %v6058 = vpack.c.b16 %v5994, %v5990
        %6123 = vmatpush.bf16.msra.mxu0 %v6023
        %6124 = vmatpush.bf16.msra.mxu0 %v6019
        %6125 = vmatpush.bf16.msra.mxu0 %v6015
        %6126 = vmatpush.bf16.msra.mxu0 %v6011
        %6127 = vmatpush.bf16.msra.mxu0 %v6007
        %6128 = vmatpush.bf16.msra.mxu0 %v6003
        %6129 = vmatpush.bf16.msra.mxu0 %v5999
        %6130 = vmatpush.bf16.msra.mxu0 %v5995
        %6131 = vmatmul.bf16.gmra.mxu0 %v5796
        %v6132 = vpop.f32.mrf.mxu0
        %v6133 = vadd.f32 0.0, %v6132
        %v6134 = vpop.f32.mrf.mxu0
        %6135 = vdwg.mxu0
        %6136 = vmatpush.bf16.msra.mxu0 %v6055
        %6137 = vmatpush.bf16.msra.mxu0 %v6051
        %6138 = vmatpush.bf16.msra.mxu0 %v6047
        %6139 = vmatpush.bf16.msra.mxu0 %v6043
        %6140 = vmatpush.bf16.msra.mxu0 %v6039
        %6141 = vmatpush.bf16.msra.mxu0 %v6035
        %6142 = vmatpush.bf16.msra.mxu0 %v6031
        %6143 = vmatpush.bf16.msra.mxu0 %v6027
        %6144 = vmatmul.bf16.gmra.mxu0 %v5799
        %v6145 = vpop.f32.mrf.mxu0
        %v6146 = vadd.f32 %v6133, %v6145
        %v6147 = vpop.f32.mrf.mxu0
        %6148 = vdwg.mxu0
        %6149 = vmatpush.bf16.msra.mxu0 %v6024
        %6150 = vmatpush.bf16.msra.mxu0 %v6020
        %6151 = vmatpush.bf16.msra.mxu0 %v6016
        %6152 = vmatpush.bf16.msra.mxu0 %v6012
        %6153 = vmatpush.bf16.msra.mxu0 %v6008
        %6154 = vmatpush.bf16.msra.mxu0 %v6004
        %6155 = vmatpush.bf16.msra.mxu0 %v6000
        %6156 = vmatpush.bf16.msra.mxu0 %v5996
        %6157 = vmatmul.bf16.gmra.mxu0 %v5796
        %v6158 = vpop.f32.mrf.mxu0
        %v6159 = vadd.f32 0.0, %v6158
        %v6160 = vpop.f32.mrf.mxu0
        %6161 = vdwg.mxu0
        %6162 = vmatpush.bf16.msra.mxu0 %v6056
        %6163 = vmatpush.bf16.msra.mxu0 %v6052
        %6164 = vmatpush.bf16.msra.mxu0 %v6048
        %6165 = vmatpush.bf16.msra.mxu0 %v6044
        %6166 = vmatpush.bf16.msra.mxu0 %v6040
        %6167 = vmatpush.bf16.msra.mxu0 %v6036
        %6168 = vmatpush.bf16.msra.mxu0 %v6032
        %6169 = vmatpush.bf16.msra.mxu0 %v6028
        %6170 = vmatmul.bf16.gmra.mxu0 %v5799
        %v6171 = vpop.f32.mrf.mxu0
        %v6172 = vadd.f32 %v6159, %v6171
        %v6173 = vpop.f32.mrf.mxu0
        %6174 = vdwg.mxu0
        %6175 = vmatpush.bf16.msra.mxu0 %v6025
        %6176 = vmatpush.bf16.msra.mxu0 %v6021
        %6177 = vmatpush.bf16.msra.mxu0 %v6017
        %6178 = vmatpush.bf16.msra.mxu0 %v6013
        %6179 = vmatpush.bf16.msra.mxu0 %v6009
        %6180 = vmatpush.bf16.msra.mxu0 %v6005
        %6181 = vmatpush.bf16.msra.mxu0 %v6001
        %6182 = vmatpush.bf16.msra.mxu0 %v5997
        %6183 = vmatmul.bf16.gmra.mxu0 %v5796
        %v6184 = vpop.f32.mrf.mxu0
        %v6185 = vadd.f32 0.0, %v6184
        %v6186 = vpop.f32.mrf.mxu0
        %6187 = vdwg.mxu0
        %6188 = vmatpush.bf16.msra.mxu0 %v6057
        %6189 = vmatpush.bf16.msra.mxu0 %v6053
        %6190 = vmatpush.bf16.msra.mxu0 %v6049
        %6191 = vmatpush.bf16.msra.mxu0 %v6045
        %6192 = vmatpush.bf16.msra.mxu0 %v6041
        %6193 = vmatpush.bf16.msra.mxu0 %v6037
        %6194 = vmatpush.bf16.msra.mxu0 %v6033
        %6195 = vmatpush.bf16.msra.mxu0 %v6029
        %6196 = vmatmul.bf16.gmra.mxu0 %v5799
        %v6197 = vpop.f32.mrf.mxu0
        %v6198 = vadd.f32 %v6185, %v6197
        %v6199 = vpop.f32.mrf.mxu0
        %6200 = vdwg.mxu0
        %6201 = vmatpush.bf16.msra.mxu0 %v6026
        %6202 = vmatpush.bf16.msra.mxu0 %v6022
        %6203 = vmatpush.bf16.msra.mxu0 %v6018
        %6204 = vmatpush.bf16.msra.mxu0 %v6014
        %6205 = vmatpush.bf16.msra.mxu0 %v6010
        %6206 = vmatpush.bf16.msra.mxu0 %v6006
        %6207 = vmatpush.bf16.msra.mxu0 %v6002
        %6208 = vmatpush.bf16.msra.mxu0 %v5998
        %6209 = vmatmul.bf16.gmra.mxu0 %v5796
        %v6210 = vpop.f32.mrf.mxu0
        %v6211 = vadd.f32 0.0, %v6210
        %v6212 = vpop.f32.mrf.mxu0
        %6213 = vdwg.mxu0
        %6214 = vmatpush.bf16.msra.mxu0 %v6058
        %6215 = vmatpush.bf16.msra.mxu0 %v6054
        %6216 = vmatpush.bf16.msra.mxu0 %v6050
        %6217 = vmatpush.bf16.msra.mxu0 %v6046
        %6218 = vmatpush.bf16.msra.mxu0 %v6042
        %6219 = vmatpush.bf16.msra.mxu0 %v6038
        %6220 = vmatpush.bf16.msra.mxu0 %v6034
        %6221 = vmatpush.bf16.msra.mxu0 %v6030
        %6222 = vmatmul.bf16.gmra.mxu0 %v5799
        %v6223 = vpop.f32.mrf.mxu0
        %v6224 = vadd.f32 %v6211, %v6223
        %v6225 = vpop.f32.mrf.mxu0
        %6226 = vdwg.mxu0
        %v6291 = vunpack.c.l.b16 %v5666
        %v6292 = vunpack.c.h.b16 %v5666
        %v6293 = vunpack.c.l.b16 %v5667
        %v6294 = vunpack.c.h.b16 %v5667
        %v6295 = vunpack.c.l.b16 %v5668
        %v6296 = vunpack.c.h.b16 %v5668
        %v6297 = vunpack.c.l.b16 %v5669
        %v6298 = vunpack.c.h.b16 %v5669
        %v6299 = vunpack.c.l.b16 %v5670
        %v6300 = vunpack.c.h.b16 %v5670
        %v6301 = vunpack.c.l.b16 %v5671
        %v6302 = vunpack.c.h.b16 %v5671
        %v6303 = vunpack.c.l.b16 %v5672
        %v6304 = vunpack.c.h.b16 %v5672
        %v6305 = vunpack.c.l.b16 %v5673
        %v6306 = vunpack.c.h.b16 %v5673
        %v6307 = vunpack.c.l.b16 %v5674
        %v6308 = vunpack.c.h.b16 %v5674
        %v6309 = vunpack.c.l.b16 %v5675
        %v6310 = vunpack.c.h.b16 %v5675
        %v6311 = vunpack.c.l.b16 %v5676
        %v6312 = vunpack.c.h.b16 %v5676
        %v6313 = vunpack.c.l.b16 %v5677
        %v6314 = vunpack.c.h.b16 %v5677
        %v6315 = vunpack.c.l.b16 %v5678
        %v6316 = vunpack.c.h.b16 %v5678
        %v6317 = vunpack.c.l.b16 %v5679
        %v6318 = vunpack.c.h.b16 %v5679
        %v6319 = vunpack.c.l.b16 %v5680
        %v6320 = vunpack.c.h.b16 %v5680
        %v6321 = vunpack.c.l.b16 %v5681
        %v6322 = vunpack.c.h.b16 %v5681
        %v6323 = vunpack.c.l.b16 %v5682
        %v6324 = vunpack.c.h.b16 %v5682
        %v6325 = vunpack.c.l.b16 %v5683
        %v6326 = vunpack.c.h.b16 %v5683
        %v6327 = vunpack.c.l.b16 %v5684
        %v6328 = vunpack.c.h.b16 %v5684
        %v6329 = vunpack.c.l.b16 %v5685
        %v6330 = vunpack.c.h.b16 %v5685
        %v6331 = vunpack.c.l.b16 %v5686
        %v6332 = vunpack.c.h.b16 %v5686
        %v6333 = vunpack.c.l.b16 %v5687
        %v6334 = vunpack.c.h.b16 %v5687
        %v6335 = vunpack.c.l.b16 %v5688
        %v6336 = vunpack.c.h.b16 %v5688
        %v6337 = vunpack.c.l.b16 %v5689
        %v6338 = vunpack.c.h.b16 %v5689
        %v6339 = vunpack.c.l.b16 %v5690
        %v6340 = vunpack.c.h.b16 %v5690
        %v6341 = vunpack.c.l.b16 %v5691
        %v6342 = vunpack.c.h.b16 %v5691
        %v6343 = vunpack.c.l.b16 %v5692
        %v6344 = vunpack.c.h.b16 %v5692
        %v6345 = vunpack.c.l.b16 %v5693
        %v6346 = vunpack.c.h.b16 %v5693
        %v6347 = vunpack.c.l.b16 %v5694
        %v6348 = vunpack.c.h.b16 %v5694
        %v6349 = vunpack.c.l.b16 %v5695
        %v6350 = vunpack.c.h.b16 %v5695
        %v6351 = vunpack.c.l.b16 %v5696
        %v6352 = vunpack.c.h.b16 %v5696
        %v6353 = vunpack.c.l.b16 %v5697
        %v6354 = vunpack.c.h.b16 %v5697
        %v6355 = vunpack.c.l.b16 %v5698
        %v6356 = vunpack.c.h.b16 %v5698
        %v6357 = vunpack.c.l.b16 %v5699
        %v6358 = vunpack.c.h.b16 %v5699
        %v6359 = vunpack.c.l.b16 %v5700
        %v6360 = vunpack.c.h.b16 %v5700
        %v6361 = vunpack.c.l.b16 %v5701
        %v6362 = vunpack.c.h.b16 %v5701
        %v6363 = vunpack.c.l.b16 %v5702
        %v6364 = vunpack.c.h.b16 %v5702
        %v6365 = vunpack.c.l.b16 %v5703
        %v6366 = vunpack.c.h.b16 %v5703
        %v6367 = vunpack.c.l.b16 %v5704
        %v6368 = vunpack.c.h.b16 %v5704
        %v6369 = vunpack.c.l.b16 %v5705
        %v6370 = vunpack.c.h.b16 %v5705
        %v6371 = vunpack.c.l.b16 %v5706
        %v6372 = vunpack.c.h.b16 %v5706
        %v6373 = vunpack.c.l.b16 %v5707
        %v6374 = vunpack.c.h.b16 %v5707
        %v6375 = vunpack.c.l.b16 %v5708
        %v6376 = vunpack.c.h.b16 %v5708
        %v6377 = vunpack.c.l.b16 %v5709
        %v6378 = vunpack.c.h.b16 %v5709
        %v6379 = vunpack.c.l.b16 %v5710
        %v6380 = vunpack.c.h.b16 %v5710
        %v6381 = vunpack.c.l.b16 %v5711
        %v6382 = vunpack.c.h.b16 %v5711
        %v6383 = vunpack.c.l.b16 %v5712
        %v6384 = vunpack.c.h.b16 %v5712
        %v6385 = vunpack.c.l.b16 %v5713
        %v6386 = vunpack.c.h.b16 %v5713
        %v6387 = vunpack.c.l.b16 %v5714
        %v6388 = vunpack.c.h.b16 %v5714
        %v6389 = vunpack.c.l.b16 %v5715
        %v6390 = vunpack.c.h.b16 %v5715
        %v6391 = vunpack.c.l.b16 %v5716
        %v6392 = vunpack.c.h.b16 %v5716
        %v6393 = vunpack.c.l.b16 %v5717
        %v6394 = vunpack.c.h.b16 %v5717
        %v6395 = vunpack.c.l.b16 %v5718
        %v6396 = vunpack.c.h.b16 %v5718
        %v6397 = vunpack.c.l.b16 %v5719
        %v6398 = vunpack.c.h.b16 %v5719
        %v6399 = vunpack.c.l.b16 %v5720
        %v6400 = vunpack.c.h.b16 %v5720
        %v6401 = vunpack.c.l.b16 %v5721
        %v6402 = vunpack.c.h.b16 %v5721
        %v6403 = vunpack.c.l.b16 %v5722
        %v6404 = vunpack.c.h.b16 %v5722
        %v6405 = vunpack.c.l.b16 %v5723
        %v6406 = vunpack.c.h.b16 %v5723
        %v6407 = vunpack.c.l.b16 %v5724
        %v6408 = vunpack.c.h.b16 %v5724
        %v6409 = vunpack.c.l.b16 %v5725
        %v6410 = vunpack.c.h.b16 %v5725
        %v6411 = vunpack.c.l.b16 %v5726
        %v6412 = vunpack.c.h.b16 %v5726
        %v6413 = vunpack.c.l.b16 %v5727
        %v6414 = vunpack.c.h.b16 %v5727
        %v6415 = vunpack.c.l.b16 %v5728
        %v6416 = vunpack.c.h.b16 %v5728
        %v6417 = vunpack.c.l.b16 %v5729
        %v6418 = vunpack.c.h.b16 %v5729
        %v6419 = vpack.c.b16 %v6295, %v6291
        %v6420 = vpack.c.b16 %v6296, %v6292
        %v6421 = vpack.c.b16 %v6297, %v6293
        %v6422 = vpack.c.b16 %v6298, %v6294
        %v6423 = vpack.c.b16 %v6303, %v6299
        %v6424 = vpack.c.b16 %v6304, %v6300
        %v6425 = vpack.c.b16 %v6305, %v6301
        %v6426 = vpack.c.b16 %v6306, %v6302
        %v6427 = vpack.c.b16 %v6311, %v6307
        %v6428 = vpack.c.b16 %v6312, %v6308
        %v6429 = vpack.c.b16 %v6313, %v6309
        %v6430 = vpack.c.b16 %v6314, %v6310
        %v6431 = vpack.c.b16 %v6319, %v6315
        %v6432 = vpack.c.b16 %v6320, %v6316
        %v6433 = vpack.c.b16 %v6321, %v6317
        %v6434 = vpack.c.b16 %v6322, %v6318
        %v6435 = vpack.c.b16 %v6327, %v6323
        %v6436 = vpack.c.b16 %v6328, %v6324
        %v6437 = vpack.c.b16 %v6329, %v6325
        %v6438 = vpack.c.b16 %v6330, %v6326
        %v6439 = vpack.c.b16 %v6335, %v6331
        %v6440 = vpack.c.b16 %v6336, %v6332
        %v6441 = vpack.c.b16 %v6337, %v6333
        %v6442 = vpack.c.b16 %v6338, %v6334
        %v6443 = vpack.c.b16 %v6343, %v6339
        %v6444 = vpack.c.b16 %v6344, %v6340
        %v6445 = vpack.c.b16 %v6345, %v6341
        %v6446 = vpack.c.b16 %v6346, %v6342
        %v6447 = vpack.c.b16 %v6351, %v6347
        %v6448 = vpack.c.b16 %v6352, %v6348
        %v6449 = vpack.c.b16 %v6353, %v6349
        %v6450 = vpack.c.b16 %v6354, %v6350
        %v6451 = vpack.c.b16 %v6359, %v6355
        %v6452 = vpack.c.b16 %v6360, %v6356
        %v6453 = vpack.c.b16 %v6361, %v6357
        %v6454 = vpack.c.b16 %v6362, %v6358
        %v6455 = vpack.c.b16 %v6367, %v6363
        %v6456 = vpack.c.b16 %v6368, %v6364
        %v6457 = vpack.c.b16 %v6369, %v6365
        %v6458 = vpack.c.b16 %v6370, %v6366
        %v6459 = vpack.c.b16 %v6375, %v6371
        %v6460 = vpack.c.b16 %v6376, %v6372
        %v6461 = vpack.c.b16 %v6377, %v6373
        %v6462 = vpack.c.b16 %v6378, %v6374
        %v6463 = vpack.c.b16 %v6383, %v6379
        %v6464 = vpack.c.b16 %v6384, %v6380
        %v6465 = vpack.c.b16 %v6385, %v6381
        %v6466 = vpack.c.b16 %v6386, %v6382
        %v6467 = vpack.c.b16 %v6391, %v6387
        %v6468 = vpack.c.b16 %v6392, %v6388
        %v6469 = vpack.c.b16 %v6393, %v6389
        %v6470 = vpack.c.b16 %v6394, %v6390
        %v6471 = vpack.c.b16 %v6399, %v6395
        %v6472 = vpack.c.b16 %v6400, %v6396
        %v6473 = vpack.c.b16 %v6401, %v6397
        %v6474 = vpack.c.b16 %v6402, %v6398
        %v6475 = vpack.c.b16 %v6407, %v6403
        %v6476 = vpack.c.b16 %v6408, %v6404
        %v6477 = vpack.c.b16 %v6409, %v6405
        %v6478 = vpack.c.b16 %v6410, %v6406
        %v6479 = vpack.c.b16 %v6415, %v6411
        %v6480 = vpack.c.b16 %v6416, %v6412
        %v6481 = vpack.c.b16 %v6417, %v6413
        %v6482 = vpack.c.b16 %v6418, %v6414
        %6547 = vmatpush.bf16.msra.mxu0 %v6447
        %6548 = vmatpush.bf16.msra.mxu0 %v6443
        %6549 = vmatpush.bf16.msra.mxu0 %v6439
        %6550 = vmatpush.bf16.msra.mxu0 %v6435
        %6551 = vmatpush.bf16.msra.mxu0 %v6431
        %6552 = vmatpush.bf16.msra.mxu0 %v6427
        %6553 = vmatpush.bf16.msra.mxu0 %v6423
        %6554 = vmatpush.bf16.msra.mxu0 %v6419
        %6555 = vmatmul.bf16.gmra.mxu0 %v5664
        %v6556 = vpop.f32.mrf.mxu0
        %v6557 = vadd.f32 %v6146, %v6556
        %v6558 = vpop.f32.mrf.mxu0
        %6559 = vdwg.mxu0
        %6560 = vmatpush.bf16.msra.mxu0 %v6479
        %6561 = vmatpush.bf16.msra.mxu0 %v6475
        %6562 = vmatpush.bf16.msra.mxu0 %v6471
        %6563 = vmatpush.bf16.msra.mxu0 %v6467
        %6564 = vmatpush.bf16.msra.mxu0 %v6463
        %6565 = vmatpush.bf16.msra.mxu0 %v6459
        %6566 = vmatpush.bf16.msra.mxu0 %v6455
        %6567 = vmatpush.bf16.msra.mxu0 %v6451
        %6568 = vmatmul.bf16.gmra.mxu0 %v5665
        %v6569 = vpop.f32.mrf.mxu0
        %v6570 = vadd.f32 %v6557, %v6569
        %v6571 = vpop.f32.mrf.mxu0
        %6572 = vdwg.mxu0
        %6573 = vmatpush.bf16.msra.mxu0 %v6448
        %6574 = vmatpush.bf16.msra.mxu0 %v6444
        %6575 = vmatpush.bf16.msra.mxu0 %v6440
        %6576 = vmatpush.bf16.msra.mxu0 %v6436
        %6577 = vmatpush.bf16.msra.mxu0 %v6432
        %6578 = vmatpush.bf16.msra.mxu0 %v6428
        %6579 = vmatpush.bf16.msra.mxu0 %v6424
        %6580 = vmatpush.bf16.msra.mxu0 %v6420
        %6581 = vmatmul.bf16.gmra.mxu0 %v5664
        %v6582 = vpop.f32.mrf.mxu0
        %v6583 = vadd.f32 %v6172, %v6582
        %v6584 = vpop.f32.mrf.mxu0
        %6585 = vdwg.mxu0
        %6586 = vmatpush.bf16.msra.mxu0 %v6480
        %6587 = vmatpush.bf16.msra.mxu0 %v6476
        %6588 = vmatpush.bf16.msra.mxu0 %v6472
        %6589 = vmatpush.bf16.msra.mxu0 %v6468
        %6590 = vmatpush.bf16.msra.mxu0 %v6464
        %6591 = vmatpush.bf16.msra.mxu0 %v6460
        %6592 = vmatpush.bf16.msra.mxu0 %v6456
        %6593 = vmatpush.bf16.msra.mxu0 %v6452
        %6594 = vmatmul.bf16.gmra.mxu0 %v5665
        %v6595 = vpop.f32.mrf.mxu0
        %v6596 = vadd.f32 %v6583, %v6595
        %v6597 = vpop.f32.mrf.mxu0
        %6598 = vdwg.mxu0
        %6599 = vmatpush.bf16.msra.mxu0 %v6449
        %6600 = vmatpush.bf16.msra.mxu0 %v6445
        %6601 = vmatpush.bf16.msra.mxu0 %v6441
        %6602 = vmatpush.bf16.msra.mxu0 %v6437
        %6603 = vmatpush.bf16.msra.mxu0 %v6433
        %6604 = vmatpush.bf16.msra.mxu0 %v6429
        %6605 = vmatpush.bf16.msra.mxu0 %v6425
        %6606 = vmatpush.bf16.msra.mxu0 %v6421
        %6607 = vmatmul.bf16.gmra.mxu0 %v5664
        %v6608 = vpop.f32.mrf.mxu0
        %v6609 = vadd.f32 %v6198, %v6608
        %v6610 = vpop.f32.mrf.mxu0
        %6611 = vdwg.mxu0
        %6612 = vmatpush.bf16.msra.mxu0 %v6481
        %6613 = vmatpush.bf16.msra.mxu0 %v6477
        %6614 = vmatpush.bf16.msra.mxu0 %v6473
        %6615 = vmatpush.bf16.msra.mxu0 %v6469
        %6616 = vmatpush.bf16.msra.mxu0 %v6465
        %6617 = vmatpush.bf16.msra.mxu0 %v6461
        %6618 = vmatpush.bf16.msra.mxu0 %v6457
        %6619 = vmatpush.bf16.msra.mxu0 %v6453
        %6620 = vmatmul.bf16.gmra.mxu0 %v5665
        %v6621 = vpop.f32.mrf.mxu0
        %v6622 = vadd.f32 %v6609, %v6621
        %v6623 = vpop.f32.mrf.mxu0
        %6624 = vdwg.mxu0
        %6625 = vmatpush.bf16.msra.mxu0 %v6450
        %6626 = vmatpush.bf16.msra.mxu0 %v6446
        %6627 = vmatpush.bf16.msra.mxu0 %v6442
        %6628 = vmatpush.bf16.msra.mxu0 %v6438
        %6629 = vmatpush.bf16.msra.mxu0 %v6434
        %6630 = vmatpush.bf16.msra.mxu0 %v6430
        %6631 = vmatpush.bf16.msra.mxu0 %v6426
        %6632 = vmatpush.bf16.msra.mxu0 %v6422
        %6633 = vmatmul.bf16.gmra.mxu0 %v5664
        %v6634 = vpop.f32.mrf.mxu0
        %v6635 = vadd.f32 %v6224, %v6634
        %v6636 = vpop.f32.mrf.mxu0
        %6637 = vdwg.mxu0
        %6638 = vmatpush.bf16.msra.mxu0 %v6482
        %6639 = vmatpush.bf16.msra.mxu0 %v6478
        %6640 = vmatpush.bf16.msra.mxu0 %v6474
        %6641 = vmatpush.bf16.msra.mxu0 %v6470
        %6642 = vmatpush.bf16.msra.mxu0 %v6466
        %6643 = vmatpush.bf16.msra.mxu0 %v6462
        %6644 = vmatpush.bf16.msra.mxu0 %v6458
        %6645 = vmatpush.bf16.msra.mxu0 %v6454
        %6646 = vmatmul.bf16.gmra.mxu0 %v5665
        %v6647 = vpop.f32.mrf.mxu0
        %v6648 = vadd.f32 %v6635, %v6647
        %v6649 = vpop.f32.mrf.mxu0
        %6650 = vdwg.mxu0
        %s6651 = scalar_lea.vmem [#allocation9], 1024
        %v6652 = vld [vmem:[%s6651] sm:$0xff]
        %v6653 = vld [vmem:[%s6651 + $0x8] sm:$0xff]
        %v6654 = vld [vmem:[%s6651 + $0x10] sm:$0xff]
        %v6655 = vld [vmem:[%s6651 + $0x18] sm:$0xff]
        %v6656 = vld [vmem:[%s6651 + $0x20] sm:$0xff]
        %v6657 = vld [vmem:[%s6651 + $0x28] sm:$0xff]
        %v6658 = vld [vmem:[%s6651 + $0x30] sm:$0xff]
        %v6659 = vld [vmem:[%s6651 + $0x38] sm:$0xff]
        %v6660 = vld [vmem:[%s6651 + $0x40] sm:$0xff]
        %v6661 = vld [vmem:[%s6651 + $0x48] sm:$0xff]
        %v6662 = vld [vmem:[%s6651 + $0x50] sm:$0xff]
        %v6663 = vld [vmem:[%s6651 + $0x58] sm:$0xff]
        %v6664 = vld [vmem:[%s6651 + $0x60] sm:$0xff]
        %v6665 = vld [vmem:[%s6651 + $0x68] sm:$0xff]
        %v6666 = vld [vmem:[%s6651 + $0x70] sm:$0xff]
        %v6667 = vld [vmem:[%s6651 + $0x78] sm:$0xff]
        %v6668 = vld [vmem:[%s6651 + $0x80] sm:$0xff]
        %v6669 = vld [vmem:[%s6651 + $0x88] sm:$0xff]
        %v6670 = vld [vmem:[%s6651 + $0x90] sm:$0xff]
        %v6671 = vld [vmem:[%s6651 + $0x98] sm:$0xff]
        %v6672 = vld [vmem:[%s6651 + $0xa0] sm:$0xff]
        %v6673 = vld [vmem:[%s6651 + $0xa8] sm:$0xff]
        %v6674 = vld [vmem:[%s6651 + $0xb0] sm:$0xff]
        %v6675 = vld [vmem:[%s6651 + $0xb8] sm:$0xff]
        %v6676 = vld [vmem:[%s6651 + $0xc0] sm:$0xff]
        %v6677 = vld [vmem:[%s6651 + $0xc8] sm:$0xff]
        %v6678 = vld [vmem:[%s6651 + $0xd0] sm:$0xff]
        %v6679 = vld [vmem:[%s6651 + $0xd8] sm:$0xff]
        %v6680 = vld [vmem:[%s6651 + $0xe0] sm:$0xff]
        %v6681 = vld [vmem:[%s6651 + $0xe8] sm:$0xff]
        %v6682 = vld [vmem:[%s6651 + $0xf0] sm:$0xff]
        %v6683 = vld [vmem:[%s6651 + $0xf8] sm:$0xff]
        %v6684 = vld [vmem:[%s6651 + $0x100] sm:$0xff]
        %v6685 = vld [vmem:[%s6651 + $0x108] sm:$0xff]
        %v6686 = vld [vmem:[%s6651 + $0x110] sm:$0xff]
        %v6687 = vld [vmem:[%s6651 + $0x118] sm:$0xff]
        %v6688 = vld [vmem:[%s6651 + $0x120] sm:$0xff]
        %v6689 = vld [vmem:[%s6651 + $0x128] sm:$0xff]
        %v6690 = vld [vmem:[%s6651 + $0x130] sm:$0xff]
        %v6691 = vld [vmem:[%s6651 + $0x138] sm:$0xff]
        %v6692 = vld [vmem:[%s6651 + $0x140] sm:$0xff]
        %v6693 = vld [vmem:[%s6651 + $0x148] sm:$0xff]
        %v6694 = vld [vmem:[%s6651 + $0x150] sm:$0xff]
        %v6695 = vld [vmem:[%s6651 + $0x158] sm:$0xff]
        %v6696 = vld [vmem:[%s6651 + $0x160] sm:$0xff]
        %v6697 = vld [vmem:[%s6651 + $0x168] sm:$0xff]
        %v6698 = vld [vmem:[%s6651 + $0x170] sm:$0xff]
        %v6699 = vld [vmem:[%s6651 + $0x178] sm:$0xff]
        %v6700 = vld [vmem:[%s6651 + $0x180] sm:$0xff]
        %v6701 = vld [vmem:[%s6651 + $0x188] sm:$0xff]
        %v6702 = vld [vmem:[%s6651 + $0x190] sm:$0xff]
        %v6703 = vld [vmem:[%s6651 + $0x198] sm:$0xff]
        %v6704 = vld [vmem:[%s6651 + $0x1a0] sm:$0xff]
        %v6705 = vld [vmem:[%s6651 + $0x1a8] sm:$0xff]
        %v6706 = vld [vmem:[%s6651 + $0x1b0] sm:$0xff]
        %v6707 = vld [vmem:[%s6651 + $0x1b8] sm:$0xff]
        %v6708 = vld [vmem:[%s6651 + $0x1c0] sm:$0xff]
        %v6709 = vld [vmem:[%s6651 + $0x1c8] sm:$0xff]
        %v6710 = vld [vmem:[%s6651 + $0x1d0] sm:$0xff]
        %v6711 = vld [vmem:[%s6651 + $0x1d8] sm:$0xff]
        %v6712 = vld [vmem:[%s6651 + $0x1e0] sm:$0xff]
        %v6713 = vld [vmem:[%s6651 + $0x1e8] sm:$0xff]
        %v6714 = vld [vmem:[%s6651 + $0x1f0] sm:$0xff]
        %v6715 = vld [vmem:[%s6651 + $0x1f8] sm:$0xff]
        %v6718 = vrot.slane %v5664, 1
        %v6719 = vrot.slane %v5665, 1
        %v6786 = vunpack.c.l.b16 %v6652
        %v6787 = vunpack.c.h.b16 %v6652
        %v6788 = vunpack.c.l.b16 %v6653
        %v6789 = vunpack.c.h.b16 %v6653
        %v6790 = vunpack.c.l.b16 %v6654
        %v6791 = vunpack.c.h.b16 %v6654
        %v6792 = vunpack.c.l.b16 %v6655
        %v6793 = vunpack.c.h.b16 %v6655
        %v6794 = vunpack.c.l.b16 %v6656
        %v6795 = vunpack.c.h.b16 %v6656
        %v6796 = vunpack.c.l.b16 %v6657
        %v6797 = vunpack.c.h.b16 %v6657
        %v6798 = vunpack.c.l.b16 %v6658
        %v6799 = vunpack.c.h.b16 %v6658
        %v6800 = vunpack.c.l.b16 %v6659
        %v6801 = vunpack.c.h.b16 %v6659
        %v6802 = vunpack.c.l.b16 %v6660
        %v6803 = vunpack.c.h.b16 %v6660
        %v6804 = vunpack.c.l.b16 %v6661
        %v6805 = vunpack.c.h.b16 %v6661
        %v6806 = vunpack.c.l.b16 %v6662
        %v6807 = vunpack.c.h.b16 %v6662
        %v6808 = vunpack.c.l.b16 %v6663
        %v6809 = vunpack.c.h.b16 %v6663
        %v6810 = vunpack.c.l.b16 %v6664
        %v6811 = vunpack.c.h.b16 %v6664
        %v6812 = vunpack.c.l.b16 %v6665
        %v6813 = vunpack.c.h.b16 %v6665
        %v6814 = vunpack.c.l.b16 %v6666
        %v6815 = vunpack.c.h.b16 %v6666
        %v6816 = vunpack.c.l.b16 %v6667
        %v6817 = vunpack.c.h.b16 %v6667
        %v6818 = vunpack.c.l.b16 %v6668
        %v6819 = vunpack.c.h.b16 %v6668
        %v6820 = vunpack.c.l.b16 %v6669
        %v6821 = vunpack.c.h.b16 %v6669
        %v6822 = vunpack.c.l.b16 %v6670
        %v6823 = vunpack.c.h.b16 %v6670
        %v6824 = vunpack.c.l.b16 %v6671
        %v6825 = vunpack.c.h.b16 %v6671
        %v6826 = vunpack.c.l.b16 %v6672
        %v6827 = vunpack.c.h.b16 %v6672
        %v6828 = vunpack.c.l.b16 %v6673
        %v6829 = vunpack.c.h.b16 %v6673
        %v6830 = vunpack.c.l.b16 %v6674
        %v6831 = vunpack.c.h.b16 %v6674
        %v6832 = vunpack.c.l.b16 %v6675
        %v6833 = vunpack.c.h.b16 %v6675
        %v6834 = vunpack.c.l.b16 %v6676
        %v6835 = vunpack.c.h.b16 %v6676
        %v6836 = vunpack.c.l.b16 %v6677
        %v6837 = vunpack.c.h.b16 %v6677
        %v6838 = vunpack.c.l.b16 %v6678
        %v6839 = vunpack.c.h.b16 %v6678
        %v6840 = vunpack.c.l.b16 %v6679
        %v6841 = vunpack.c.h.b16 %v6679
        %v6842 = vunpack.c.l.b16 %v6680
        %v6843 = vunpack.c.h.b16 %v6680
        %v6844 = vunpack.c.l.b16 %v6681
        %v6845 = vunpack.c.h.b16 %v6681
        %v6846 = vunpack.c.l.b16 %v6682
        %v6847 = vunpack.c.h.b16 %v6682
        %v6848 = vunpack.c.l.b16 %v6683
        %v6849 = vunpack.c.h.b16 %v6683
        %v6850 = vunpack.c.l.b16 %v6684
        %v6851 = vunpack.c.h.b16 %v6684
        %v6852 = vunpack.c.l.b16 %v6685
        %v6853 = vunpack.c.h.b16 %v6685
        %v6854 = vunpack.c.l.b16 %v6686
        %v6855 = vunpack.c.h.b16 %v6686
        %v6856 = vunpack.c.l.b16 %v6687
        %v6857 = vunpack.c.h.b16 %v6687
        %v6858 = vunpack.c.l.b16 %v6688
        %v6859 = vunpack.c.h.b16 %v6688
        %v6860 = vunpack.c.l.b16 %v6689
        %v6861 = vunpack.c.h.b16 %v6689
        %v6862 = vunpack.c.l.b16 %v6690
        %v6863 = vunpack.c.h.b16 %v6690
        %v6864 = vunpack.c.l.b16 %v6691
        %v6865 = vunpack.c.h.b16 %v6691
        %v6866 = vunpack.c.l.b16 %v6692
        %v6867 = vunpack.c.h.b16 %v6692
        %v6868 = vunpack.c.l.b16 %v6693
        %v6869 = vunpack.c.h.b16 %v6693
        %v6870 = vunpack.c.l.b16 %v6694
        %v6871 = vunpack.c.h.b16 %v6694
        %v6872 = vunpack.c.l.b16 %v6695
        %v6873 = vunpack.c.h.b16 %v6695
        %v6874 = vunpack.c.l.b16 %v6696
        %v6875 = vunpack.c.h.b16 %v6696
        %v6876 = vunpack.c.l.b16 %v6697
        %v6877 = vunpack.c.h.b16 %v6697
        %v6878 = vunpack.c.l.b16 %v6698
        %v6879 = vunpack.c.h.b16 %v6698
        %v6880 = vunpack.c.l.b16 %v6699
        %v6881 = vunpack.c.h.b16 %v6699
        %v6882 = vunpack.c.l.b16 %v6700
        %v6883 = vunpack.c.h.b16 %v6700
        %v6884 = vunpack.c.l.b16 %v6701
        %v6885 = vunpack.c.h.b16 %v6701
        %v6886 = vunpack.c.l.b16 %v6702
        %v6887 = vunpack.c.h.b16 %v6702
        %v6888 = vunpack.c.l.b16 %v6703
        %v6889 = vunpack.c.h.b16 %v6703
        %v6890 = vunpack.c.l.b16 %v6704
        %v6891 = vunpack.c.h.b16 %v6704
        %v6892 = vunpack.c.l.b16 %v6705
        %v6893 = vunpack.c.h.b16 %v6705
        %v6894 = vunpack.c.l.b16 %v6706
        %v6895 = vunpack.c.h.b16 %v6706
        %v6896 = vunpack.c.l.b16 %v6707
        %v6897 = vunpack.c.h.b16 %v6707
        %v6898 = vunpack.c.l.b16 %v6708
        %v6899 = vunpack.c.h.b16 %v6708
        %v6900 = vunpack.c.l.b16 %v6709
        %v6901 = vunpack.c.h.b16 %v6709
        %v6902 = vunpack.c.l.b16 %v6710
        %v6903 = vunpack.c.h.b16 %v6710
        %v6904 = vunpack.c.l.b16 %v6711
        %v6905 = vunpack.c.h.b16 %v6711
        %v6906 = vunpack.c.l.b16 %v6712
        %v6907 = vunpack.c.h.b16 %v6712
        %v6908 = vunpack.c.l.b16 %v6713
        %v6909 = vunpack.c.h.b16 %v6713
        %v6910 = vunpack.c.l.b16 %v6714
        %v6911 = vunpack.c.h.b16 %v6714
        %v6912 = vunpack.c.l.b16 %v6715
        %v6913 = vunpack.c.h.b16 %v6715
        %v6914 = vpack.c.b16 %v6790, %v6786
        %v6915 = vpack.c.b16 %v6791, %v6787
        %v6916 = vpack.c.b16 %v6792, %v6788
        %v6917 = vpack.c.b16 %v6793, %v6789
        %v6918 = vpack.c.b16 %v6798, %v6794
        %v6919 = vpack.c.b16 %v6799, %v6795
        %v6920 = vpack.c.b16 %v6800, %v6796
        %v6921 = vpack.c.b16 %v6801, %v6797
        %v6922 = vpack.c.b16 %v6806, %v6802
        %v6923 = vpack.c.b16 %v6807, %v6803
        %v6924 = vpack.c.b16 %v6808, %v6804
        %v6925 = vpack.c.b16 %v6809, %v6805
        %v6926 = vpack.c.b16 %v6814, %v6810
        %v6927 = vpack.c.b16 %v6815, %v6811
        %v6928 = vpack.c.b16 %v6816, %v6812
        %v6929 = vpack.c.b16 %v6817, %v6813
        %v6930 = vpack.c.b16 %v6822, %v6818
        %v6931 = vpack.c.b16 %v6823, %v6819
        %v6932 = vpack.c.b16 %v6824, %v6820
        %v6933 = vpack.c.b16 %v6825, %v6821
        %v6934 = vpack.c.b16 %v6830, %v6826
        %v6935 = vpack.c.b16 %v6831, %v6827
        %v6936 = vpack.c.b16 %v6832, %v6828
        %v6937 = vpack.c.b16 %v6833, %v6829
        %v6938 = vpack.c.b16 %v6838, %v6834
        %v6939 = vpack.c.b16 %v6839, %v6835
        %v6940 = vpack.c.b16 %v6840, %v6836
        %v6941 = vpack.c.b16 %v6841, %v6837
        %v6942 = vpack.c.b16 %v6846, %v6842
        %v6943 = vpack.c.b16 %v6847, %v6843
        %v6944 = vpack.c.b16 %v6848, %v6844
        %v6945 = vpack.c.b16 %v6849, %v6845
        %v6946 = vpack.c.b16 %v6854, %v6850
        %v6947 = vpack.c.b16 %v6855, %v6851
        %v6948 = vpack.c.b16 %v6856, %v6852
        %v6949 = vpack.c.b16 %v6857, %v6853
        %v6950 = vpack.c.b16 %v6862, %v6858
        %v6951 = vpack.c.b16 %v6863, %v6859
        %v6952 = vpack.c.b16 %v6864, %v6860
        %v6953 = vpack.c.b16 %v6865, %v6861
        %v6954 = vpack.c.b16 %v6870, %v6866
        %v6955 = vpack.c.b16 %v6871, %v6867
        %v6956 = vpack.c.b16 %v6872, %v6868
        %v6957 = vpack.c.b16 %v6873, %v6869
        %v6958 = vpack.c.b16 %v6878, %v6874
        %v6959 = vpack.c.b16 %v6879, %v6875
        %v6960 = vpack.c.b16 %v6880, %v6876
        %v6961 = vpack.c.b16 %v6881, %v6877
        %v6962 = vpack.c.b16 %v6886, %v6882
        %v6963 = vpack.c.b16 %v6887, %v6883
        %v6964 = vpack.c.b16 %v6888, %v6884
        %v6965 = vpack.c.b16 %v6889, %v6885
        %v6966 = vpack.c.b16 %v6894, %v6890
        %v6967 = vpack.c.b16 %v6895, %v6891
        %v6968 = vpack.c.b16 %v6896, %v6892
        %v6969 = vpack.c.b16 %v6897, %v6893
        %v6970 = vpack.c.b16 %v6902, %v6898
        %v6971 = vpack.c.b16 %v6903, %v6899
        %v6972 = vpack.c.b16 %v6904, %v6900
        %v6973 = vpack.c.b16 %v6905, %v6901
        %v6974 = vpack.c.b16 %v6910, %v6906
        %v6975 = vpack.c.b16 %v6911, %v6907
        %v6976 = vpack.c.b16 %v6912, %v6908
        %v6977 = vpack.c.b16 %v6913, %v6909
        %7042 = vmatpush.bf16.msra.mxu0 %v6942
        %7043 = vmatpush.bf16.msra.mxu0 %v6938
        %7044 = vmatpush.bf16.msra.mxu0 %v6934
        %7045 = vmatpush.bf16.msra.mxu0 %v6930
        %7046 = vmatpush.bf16.msra.mxu0 %v6926
        %7047 = vmatpush.bf16.msra.mxu0 %v6922
        %7048 = vmatpush.bf16.msra.mxu0 %v6918
        %7049 = vmatpush.bf16.msra.mxu0 %v6914
        %7050 = vmatmul.bf16.gmra.mxu0 %v6718
        %v7051 = vpop.f32.mrf.mxu0
        %v7052 = vadd.f32 0.0, %v7051
        %v7053 = vpop.f32.mrf.mxu0
        %7054 = vdwg.mxu0
        %7055 = vmatpush.bf16.msra.mxu0 %v6974
        %7056 = vmatpush.bf16.msra.mxu0 %v6970
        %7057 = vmatpush.bf16.msra.mxu0 %v6966
        %7058 = vmatpush.bf16.msra.mxu0 %v6962
        %7059 = vmatpush.bf16.msra.mxu0 %v6958
        %7060 = vmatpush.bf16.msra.mxu0 %v6954
        %7061 = vmatpush.bf16.msra.mxu0 %v6950
        %7062 = vmatpush.bf16.msra.mxu0 %v6946
        %7063 = vmatmul.bf16.gmra.mxu0 %v6719
        %v7064 = vpop.f32.mrf.mxu0
        %v7065 = vadd.f32 %v7052, %v7064
        %v7066 = vpop.f32.mrf.mxu0
        %7067 = vdwg.mxu0
        %7068 = vmatpush.bf16.msra.mxu0 %v6943
        %7069 = vmatpush.bf16.msra.mxu0 %v6939
        %7070 = vmatpush.bf16.msra.mxu0 %v6935
        %7071 = vmatpush.bf16.msra.mxu0 %v6931
        %7072 = vmatpush.bf16.msra.mxu0 %v6927
        %7073 = vmatpush.bf16.msra.mxu0 %v6923
        %7074 = vmatpush.bf16.msra.mxu0 %v6919
        %7075 = vmatpush.bf16.msra.mxu0 %v6915
        %7076 = vmatmul.bf16.gmra.mxu0 %v6718
        %v7077 = vpop.f32.mrf.mxu0
        %v7078 = vadd.f32 0.0, %v7077
        %v7079 = vpop.f32.mrf.mxu0
        %7080 = vdwg.mxu0
        %7081 = vmatpush.bf16.msra.mxu0 %v6975
        %7082 = vmatpush.bf16.msra.mxu0 %v6971
        %7083 = vmatpush.bf16.msra.mxu0 %v6967
        %7084 = vmatpush.bf16.msra.mxu0 %v6963
        %7085 = vmatpush.bf16.msra.mxu0 %v6959
        %7086 = vmatpush.bf16.msra.mxu0 %v6955
        %7087 = vmatpush.bf16.msra.mxu0 %v6951
        %7088 = vmatpush.bf16.msra.mxu0 %v6947
        %7089 = vmatmul.bf16.gmra.mxu0 %v6719
        %v7090 = vpop.f32.mrf.mxu0
        %v7091 = vadd.f32 %v7078, %v7090
        %v7092 = vpop.f32.mrf.mxu0
        %7093 = vdwg.mxu0
        %7094 = vmatpush.bf16.msra.mxu0 %v6944
        %7095 = vmatpush.bf16.msra.mxu0 %v6940
        %7096 = vmatpush.bf16.msra.mxu0 %v6936
        %7097 = vmatpush.bf16.msra.mxu0 %v6932
        %7098 = vmatpush.bf16.msra.mxu0 %v6928
        %7099 = vmatpush.bf16.msra.mxu0 %v6924
        %7100 = vmatpush.bf16.msra.mxu0 %v6920
        %7101 = vmatpush.bf16.msra.mxu0 %v6916
        %7102 = vmatmul.bf16.gmra.mxu0 %v6718
        %v7103 = vpop.f32.mrf.mxu0
        %v7104 = vadd.f32 0.0, %v7103
        %v7105 = vpop.f32.mrf.mxu0
        %7106 = vdwg.mxu0
        %7107 = vmatpush.bf16.msra.mxu0 %v6976
        %7108 = vmatpush.bf16.msra.mxu0 %v6972
        %7109 = vmatpush.bf16.msra.mxu0 %v6968
        %7110 = vmatpush.bf16.msra.mxu0 %v6964
        %7111 = vmatpush.bf16.msra.mxu0 %v6960
        %7112 = vmatpush.bf16.msra.mxu0 %v6956
        %7113 = vmatpush.bf16.msra.mxu0 %v6952
        %7114 = vmatpush.bf16.msra.mxu0 %v6948
        %7115 = vmatmul.bf16.gmra.mxu0 %v6719
        %v7116 = vpop.f32.mrf.mxu0
        %v7117 = vadd.f32 %v7104, %v7116
        %v7118 = vpop.f32.mrf.mxu0
        %7119 = vdwg.mxu0
        %7120 = vmatpush.bf16.msra.mxu0 %v6945
        %7121 = vmatpush.bf16.msra.mxu0 %v6941
        %7122 = vmatpush.bf16.msra.mxu0 %v6937
        %7123 = vmatpush.bf16.msra.mxu0 %v6933
        %7124 = vmatpush.bf16.msra.mxu0 %v6929
        %7125 = vmatpush.bf16.msra.mxu0 %v6925
        %7126 = vmatpush.bf16.msra.mxu0 %v6921
        %7127 = vmatpush.bf16.msra.mxu0 %v6917
        %7128 = vmatmul.bf16.gmra.mxu0 %v6718
        %v7129 = vpop.f32.mrf.mxu0
        %v7130 = vadd.f32 0.0, %v7129
        %v7131 = vpop.f32.mrf.mxu0
        %7132 = vdwg.mxu0
        %7133 = vmatpush.bf16.msra.mxu0 %v6977
        %7134 = vmatpush.bf16.msra.mxu0 %v6973
        %7135 = vmatpush.bf16.msra.mxu0 %v6969
        %7136 = vmatpush.bf16.msra.mxu0 %v6965
        %7137 = vmatpush.bf16.msra.mxu0 %v6961
        %7138 = vmatpush.bf16.msra.mxu0 %v6957
        %7139 = vmatpush.bf16.msra.mxu0 %v6953
        %7140 = vmatpush.bf16.msra.mxu0 %v6949
        %7141 = vmatmul.bf16.gmra.mxu0 %v6719
        %v7142 = vpop.f32.mrf.mxu0
        %v7143 = vadd.f32 %v7130, %v7142
        %v7144 = vpop.f32.mrf.mxu0
        %7145 = vdwg.mxu0
        %v7146 = vadd.f32 %v6570, %v7065
        %v7147 = vadd.f32 %v6596, %v7091
        %v7148 = vadd.f32 %v6622, %v7117
        %v7149 = vadd.f32 %v6648, %v7143
        %s7150 = scalar_lea.vmem [#allocation9], 1536
        %v7151 = vld [vmem:[%s7150] sm:$0xff]
        %v7152 = vld [vmem:[%s7150 + $0x8] sm:$0xff]
        %v7153 = vld [vmem:[%s7150 + $0x10] sm:$0xff]
        %v7154 = vld [vmem:[%s7150 + $0x18] sm:$0xff]
        %v7155 = vld [vmem:[%s7150 + $0x20] sm:$0xff]
        %v7156 = vld [vmem:[%s7150 + $0x28] sm:$0xff]
        %v7157 = vld [vmem:[%s7150 + $0x30] sm:$0xff]
        %v7158 = vld [vmem:[%s7150 + $0x38] sm:$0xff]
        %v7159 = vld [vmem:[%s7150 + $0x40] sm:$0xff]
        %v7160 = vld [vmem:[%s7150 + $0x48] sm:$0xff]
        %v7161 = vld [vmem:[%s7150 + $0x50] sm:$0xff]
        %v7162 = vld [vmem:[%s7150 + $0x58] sm:$0xff]
        %v7163 = vld [vmem:[%s7150 + $0x60] sm:$0xff]
        %v7164 = vld [vmem:[%s7150 + $0x68] sm:$0xff]
        %v7165 = vld [vmem:[%s7150 + $0x70] sm:$0xff]
        %v7166 = vld [vmem:[%s7150 + $0x78] sm:$0xff]
        %v7167 = vld [vmem:[%s7150 + $0x80] sm:$0xff]
        %v7168 = vld [vmem:[%s7150 + $0x88] sm:$0xff]
        %v7169 = vld [vmem:[%s7150 + $0x90] sm:$0xff]
        %v7170 = vld [vmem:[%s7150 + $0x98] sm:$0xff]
        %v7171 = vld [vmem:[%s7150 + $0xa0] sm:$0xff]
        %v7172 = vld [vmem:[%s7150 + $0xa8] sm:$0xff]
        %v7173 = vld [vmem:[%s7150 + $0xb0] sm:$0xff]
        %v7174 = vld [vmem:[%s7150 + $0xb8] sm:$0xff]
        %v7175 = vld [vmem:[%s7150 + $0xc0] sm:$0xff]
        %v7176 = vld [vmem:[%s7150 + $0xc8] sm:$0xff]
        %v7177 = vld [vmem:[%s7150 + $0xd0] sm:$0xff]
        %v7178 = vld [vmem:[%s7150 + $0xd8] sm:$0xff]
        %v7179 = vld [vmem:[%s7150 + $0xe0] sm:$0xff]
        %v7180 = vld [vmem:[%s7150 + $0xe8] sm:$0xff]
        %v7181 = vld [vmem:[%s7150 + $0xf0] sm:$0xff]
        %v7182 = vld [vmem:[%s7150 + $0xf8] sm:$0xff]
        %v7183 = vld [vmem:[%s7150 + $0x100] sm:$0xff]
        %v7184 = vld [vmem:[%s7150 + $0x108] sm:$0xff]
        %v7185 = vld [vmem:[%s7150 + $0x110] sm:$0xff]
        %v7186 = vld [vmem:[%s7150 + $0x118] sm:$0xff]
        %v7187 = vld [vmem:[%s7150 + $0x120] sm:$0xff]
        %v7188 = vld [vmem:[%s7150 + $0x128] sm:$0xff]
        %v7189 = vld [vmem:[%s7150 + $0x130] sm:$0xff]
        %v7190 = vld [vmem:[%s7150 + $0x138] sm:$0xff]
        %v7191 = vld [vmem:[%s7150 + $0x140] sm:$0xff]
        %v7192 = vld [vmem:[%s7150 + $0x148] sm:$0xff]
        %v7193 = vld [vmem:[%s7150 + $0x150] sm:$0xff]
        %v7194 = vld [vmem:[%s7150 + $0x158] sm:$0xff]
        %v7195 = vld [vmem:[%s7150 + $0x160] sm:$0xff]
        %v7196 = vld [vmem:[%s7150 + $0x168] sm:$0xff]
        %v7197 = vld [vmem:[%s7150 + $0x170] sm:$0xff]
        %v7198 = vld [vmem:[%s7150 + $0x178] sm:$0xff]
        %v7199 = vld [vmem:[%s7150 + $0x180] sm:$0xff]
        %v7200 = vld [vmem:[%s7150 + $0x188] sm:$0xff]
        %v7201 = vld [vmem:[%s7150 + $0x190] sm:$0xff]
        %v7202 = vld [vmem:[%s7150 + $0x198] sm:$0xff]
        %v7203 = vld [vmem:[%s7150 + $0x1a0] sm:$0xff]
        %v7204 = vld [vmem:[%s7150 + $0x1a8] sm:$0xff]
        %v7205 = vld [vmem:[%s7150 + $0x1b0] sm:$0xff]
        %v7206 = vld [vmem:[%s7150 + $0x1b8] sm:$0xff]
        %v7207 = vld [vmem:[%s7150 + $0x1c0] sm:$0xff]
        %v7208 = vld [vmem:[%s7150 + $0x1c8] sm:$0xff]
        %v7209 = vld [vmem:[%s7150 + $0x1d0] sm:$0xff]
        %v7210 = vld [vmem:[%s7150 + $0x1d8] sm:$0xff]
        %v7211 = vld [vmem:[%s7150 + $0x1e0] sm:$0xff]
        %v7212 = vld [vmem:[%s7150 + $0x1e8] sm:$0xff]
        %v7213 = vld [vmem:[%s7150 + $0x1f0] sm:$0xff]
        %v7214 = vld [vmem:[%s7150 + $0x1f8] sm:$0xff]
        %v7215 = vrot.slane %v5796, 1
        %v7216 = vrot.slane %v5799, 1
        %v7283 = vunpack.c.l.b16 %v7151
        %v7284 = vunpack.c.h.b16 %v7151
        %v7285 = vunpack.c.l.b16 %v7152
        %v7286 = vunpack.c.h.b16 %v7152
        %v7287 = vunpack.c.l.b16 %v7153
        %v7288 = vunpack.c.h.b16 %v7153
        %v7289 = vunpack.c.l.b16 %v7154
        %v7290 = vunpack.c.h.b16 %v7154
        %v7291 = vunpack.c.l.b16 %v7155
        %v7292 = vunpack.c.h.b16 %v7155
        %v7293 = vunpack.c.l.b16 %v7156
        %v7294 = vunpack.c.h.b16 %v7156
        %v7295 = vunpack.c.l.b16 %v7157
        %v7296 = vunpack.c.h.b16 %v7157
        %v7297 = vunpack.c.l.b16 %v7158
        %v7298 = vunpack.c.h.b16 %v7158
        %v7299 = vunpack.c.l.b16 %v7159
        %v7300 = vunpack.c.h.b16 %v7159
        %v7301 = vunpack.c.l.b16 %v7160
        %v7302 = vunpack.c.h.b16 %v7160
        %v7303 = vunpack.c.l.b16 %v7161
        %v7304 = vunpack.c.h.b16 %v7161
        %v7305 = vunpack.c.l.b16 %v7162
        %v7306 = vunpack.c.h.b16 %v7162
        %v7307 = vunpack.c.l.b16 %v7163
        %v7308 = vunpack.c.h.b16 %v7163
        %v7309 = vunpack.c.l.b16 %v7164
        %v7310 = vunpack.c.h.b16 %v7164
        %v7311 = vunpack.c.l.b16 %v7165
        %v7312 = vunpack.c.h.b16 %v7165
        %v7313 = vunpack.c.l.b16 %v7166
        %v7314 = vunpack.c.h.b16 %v7166
        %v7315 = vunpack.c.l.b16 %v7167
        %v7316 = vunpack.c.h.b16 %v7167
        %v7317 = vunpack.c.l.b16 %v7168
        %v7318 = vunpack.c.h.b16 %v7168
        %v7319 = vunpack.c.l.b16 %v7169
        %v7320 = vunpack.c.h.b16 %v7169
        %v7321 = vunpack.c.l.b16 %v7170
        %v7322 = vunpack.c.h.b16 %v7170
        %v7323 = vunpack.c.l.b16 %v7171
        %v7324 = vunpack.c.h.b16 %v7171
        %v7325 = vunpack.c.l.b16 %v7172
        %v7326 = vunpack.c.h.b16 %v7172
        %v7327 = vunpack.c.l.b16 %v7173
        %v7328 = vunpack.c.h.b16 %v7173
        %v7329 = vunpack.c.l.b16 %v7174
        %v7330 = vunpack.c.h.b16 %v7174
        %v7331 = vunpack.c.l.b16 %v7175
        %v7332 = vunpack.c.h.b16 %v7175
        %v7333 = vunpack.c.l.b16 %v7176
        %v7334 = vunpack.c.h.b16 %v7176
        %v7335 = vunpack.c.l.b16 %v7177
        %v7336 = vunpack.c.h.b16 %v7177
        %v7337 = vunpack.c.l.b16 %v7178
        %v7338 = vunpack.c.h.b16 %v7178
        %v7339 = vunpack.c.l.b16 %v7179
        %v7340 = vunpack.c.h.b16 %v7179
        %v7341 = vunpack.c.l.b16 %v7180
        %v7342 = vunpack.c.h.b16 %v7180
        %v7343 = vunpack.c.l.b16 %v7181
        %v7344 = vunpack.c.h.b16 %v7181
        %v7345 = vunpack.c.l.b16 %v7182
        %v7346 = vunpack.c.h.b16 %v7182
        %v7347 = vunpack.c.l.b16 %v7183
        %v7348 = vunpack.c.h.b16 %v7183
        %v7349 = vunpack.c.l.b16 %v7184
        %v7350 = vunpack.c.h.b16 %v7184
        %v7351 = vunpack.c.l.b16 %v7185
        %v7352 = vunpack.c.h.b16 %v7185
        %v7353 = vunpack.c.l.b16 %v7186
        %v7354 = vunpack.c.h.b16 %v7186
        %v7355 = vunpack.c.l.b16 %v7187
        %v7356 = vunpack.c.h.b16 %v7187
        %v7357 = vunpack.c.l.b16 %v7188
        %v7358 = vunpack.c.h.b16 %v7188
        %v7359 = vunpack.c.l.b16 %v7189
        %v7360 = vunpack.c.h.b16 %v7189
        %v7361 = vunpack.c.l.b16 %v7190
        %v7362 = vunpack.c.h.b16 %v7190
        %v7363 = vunpack.c.l.b16 %v7191
        %v7364 = vunpack.c.h.b16 %v7191
        %v7365 = vunpack.c.l.b16 %v7192
        %v7366 = vunpack.c.h.b16 %v7192
        %v7367 = vunpack.c.l.b16 %v7193
        %v7368 = vunpack.c.h.b16 %v7193
        %v7369 = vunpack.c.l.b16 %v7194
        %v7370 = vunpack.c.h.b16 %v7194
        %v7371 = vunpack.c.l.b16 %v7195
        %v7372 = vunpack.c.h.b16 %v7195
        %v7373 = vunpack.c.l.b16 %v7196
        %v7374 = vunpack.c.h.b16 %v7196
        %v7375 = vunpack.c.l.b16 %v7197
        %v7376 = vunpack.c.h.b16 %v7197
        %v7377 = vunpack.c.l.b16 %v7198
        %v7378 = vunpack.c.h.b16 %v7198
        %v7379 = vunpack.c.l.b16 %v7199
        %v7380 = vunpack.c.h.b16 %v7199
        %v7381 = vunpack.c.l.b16 %v7200
        %v7382 = vunpack.c.h.b16 %v7200
        %v7383 = vunpack.c.l.b16 %v7201
        %v7384 = vunpack.c.h.b16 %v7201
        %v7385 = vunpack.c.l.b16 %v7202
        %v7386 = vunpack.c.h.b16 %v7202
        %v7387 = vunpack.c.l.b16 %v7203
        %v7388 = vunpack.c.h.b16 %v7203
        %v7389 = vunpack.c.l.b16 %v7204
        %v7390 = vunpack.c.h.b16 %v7204
        %v7391 = vunpack.c.l.b16 %v7205
        %v7392 = vunpack.c.h.b16 %v7205
        %v7393 = vunpack.c.l.b16 %v7206
        %v7394 = vunpack.c.h.b16 %v7206
        %v7395 = vunpack.c.l.b16 %v7207
        %v7396 = vunpack.c.h.b16 %v7207
        %v7397 = vunpack.c.l.b16 %v7208
        %v7398 = vunpack.c.h.b16 %v7208
        %v7399 = vunpack.c.l.b16 %v7209
        %v7400 = vunpack.c.h.b16 %v7209
        %v7401 = vunpack.c.l.b16 %v7210
        %v7402 = vunpack.c.h.b16 %v7210
        %v7403 = vunpack.c.l.b16 %v7211
        %v7404 = vunpack.c.h.b16 %v7211
        %v7405 = vunpack.c.l.b16 %v7212
        %v7406 = vunpack.c.h.b16 %v7212
        %v7407 = vunpack.c.l.b16 %v7213
        %v7408 = vunpack.c.h.b16 %v7213
        %v7409 = vunpack.c.l.b16 %v7214
        %v7410 = vunpack.c.h.b16 %v7214
        %v7411 = vpack.c.b16 %v7287, %v7283
        %v7412 = vpack.c.b16 %v7288, %v7284
        %v7413 = vpack.c.b16 %v7289, %v7285
        %v7414 = vpack.c.b16 %v7290, %v7286
        %v7415 = vpack.c.b16 %v7295, %v7291
        %v7416 = vpack.c.b16 %v7296, %v7292
        %v7417 = vpack.c.b16 %v7297, %v7293
        %v7418 = vpack.c.b16 %v7298, %v7294
        %v7419 = vpack.c.b16 %v7303, %v7299
        %v7420 = vpack.c.b16 %v7304, %v7300
        %v7421 = vpack.c.b16 %v7305, %v7301
        %v7422 = vpack.c.b16 %v7306, %v7302
        %v7423 = vpack.c.b16 %v7311, %v7307
        %v7424 = vpack.c.b16 %v7312, %v7308
        %v7425 = vpack.c.b16 %v7313, %v7309
        %v7426 = vpack.c.b16 %v7314, %v7310
        %v7427 = vpack.c.b16 %v7319, %v7315
        %v7428 = vpack.c.b16 %v7320, %v7316
        %v7429 = vpack.c.b16 %v7321, %v7317
        %v7430 = vpack.c.b16 %v7322, %v7318
        %v7431 = vpack.c.b16 %v7327, %v7323
        %v7432 = vpack.c.b16 %v7328, %v7324
        %v7433 = vpack.c.b16 %v7329, %v7325
        %v7434 = vpack.c.b16 %v7330, %v7326
        %v7435 = vpack.c.b16 %v7335, %v7331
        %v7436 = vpack.c.b16 %v7336, %v7332
        %v7437 = vpack.c.b16 %v7337, %v7333
        %v7438 = vpack.c.b16 %v7338, %v7334
        %v7439 = vpack.c.b16 %v7343, %v7339
        %v7440 = vpack.c.b16 %v7344, %v7340
        %v7441 = vpack.c.b16 %v7345, %v7341
        %v7442 = vpack.c.b16 %v7346, %v7342
        %v7443 = vpack.c.b16 %v7351, %v7347
        %v7444 = vpack.c.b16 %v7352, %v7348
        %v7445 = vpack.c.b16 %v7353, %v7349
        %v7446 = vpack.c.b16 %v7354, %v7350
        %v7447 = vpack.c.b16 %v7359, %v7355
        %v7448 = vpack.c.b16 %v7360, %v7356
        %v7449 = vpack.c.b16 %v7361, %v7357
        %v7450 = vpack.c.b16 %v7362, %v7358
        %v7451 = vpack.c.b16 %v7367, %v7363
        %v7452 = vpack.c.b16 %v7368, %v7364
        %v7453 = vpack.c.b16 %v7369, %v7365
        %v7454 = vpack.c.b16 %v7370, %v7366
        %v7455 = vpack.c.b16 %v7375, %v7371
        %v7456 = vpack.c.b16 %v7376, %v7372
        %v7457 = vpack.c.b16 %v7377, %v7373
        %v7458 = vpack.c.b16 %v7378, %v7374
        %v7459 = vpack.c.b16 %v7383, %v7379
        %v7460 = vpack.c.b16 %v7384, %v7380
        %v7461 = vpack.c.b16 %v7385, %v7381
        %v7462 = vpack.c.b16 %v7386, %v7382
        %v7463 = vpack.c.b16 %v7391, %v7387
        %v7464 = vpack.c.b16 %v7392, %v7388
        %v7465 = vpack.c.b16 %v7393, %v7389
        %v7466 = vpack.c.b16 %v7394, %v7390
        %v7467 = vpack.c.b16 %v7399, %v7395
        %v7468 = vpack.c.b16 %v7400, %v7396
        %v7469 = vpack.c.b16 %v7401, %v7397
        %v7470 = vpack.c.b16 %v7402, %v7398
        %v7471 = vpack.c.b16 %v7407, %v7403
        %v7472 = vpack.c.b16 %v7408, %v7404
        %v7473 = vpack.c.b16 %v7409, %v7405
        %v7474 = vpack.c.b16 %v7410, %v7406
        %7539 = vmatpush.bf16.msra.mxu0 %v7439
        %7540 = vmatpush.bf16.msra.mxu0 %v7435
        %7541 = vmatpush.bf16.msra.mxu0 %v7431
        %7542 = vmatpush.bf16.msra.mxu0 %v7427
        %7543 = vmatpush.bf16.msra.mxu0 %v7423
        %7544 = vmatpush.bf16.msra.mxu0 %v7419
        %7545 = vmatpush.bf16.msra.mxu0 %v7415
        %7546 = vmatpush.bf16.msra.mxu0 %v7411
        %7547 = vmatmul.bf16.gmra.mxu0 %v7215
        %v7548 = vpop.f32.mrf.mxu0
        %v7549 = vadd.f32 0.0, %v7548
        %v7550 = vpop.f32.mrf.mxu0
        %7551 = vdwg.mxu0
        %7552 = vmatpush.bf16.msra.mxu0 %v7471
        %7553 = vmatpush.bf16.msra.mxu0 %v7467
        %7554 = vmatpush.bf16.msra.mxu0 %v7463
        %7555 = vmatpush.bf16.msra.mxu0 %v7459
        %7556 = vmatpush.bf16.msra.mxu0 %v7455
        %7557 = vmatpush.bf16.msra.mxu0 %v7451
        %7558 = vmatpush.bf16.msra.mxu0 %v7447
        %7559 = vmatpush.bf16.msra.mxu0 %v7443
        %7560 = vmatmul.bf16.gmra.mxu0 %v7216
        %v7561 = vpop.f32.mrf.mxu0
        %v7562 = vadd.f32 %v7549, %v7561
        %v7563 = vpop.f32.mrf.mxu0
        %7564 = vdwg.mxu0
        %7565 = vmatpush.bf16.msra.mxu0 %v7440
        %7566 = vmatpush.bf16.msra.mxu0 %v7436
        %7567 = vmatpush.bf16.msra.mxu0 %v7432
        %7568 = vmatpush.bf16.msra.mxu0 %v7428
        %7569 = vmatpush.bf16.msra.mxu0 %v7424
        %7570 = vmatpush.bf16.msra.mxu0 %v7420
        %7571 = vmatpush.bf16.msra.mxu0 %v7416
        %7572 = vmatpush.bf16.msra.mxu0 %v7412
        %7573 = vmatmul.bf16.gmra.mxu0 %v7215
        %v7574 = vpop.f32.mrf.mxu0
        %v7575 = vadd.f32 0.0, %v7574
        %v7576 = vpop.f32.mrf.mxu0
        %7577 = vdwg.mxu0
        %7578 = vmatpush.bf16.msra.mxu0 %v7472
        %7579 = vmatpush.bf16.msra.mxu0 %v7468
        %7580 = vmatpush.bf16.msra.mxu0 %v7464
        %7581 = vmatpush.bf16.msra.mxu0 %v7460
        %7582 = vmatpush.bf16.msra.mxu0 %v7456
        %7583 = vmatpush.bf16.msra.mxu0 %v7452
        %7584 = vmatpush.bf16.msra.mxu0 %v7448
        %7585 = vmatpush.bf16.msra.mxu0 %v7444
        %7586 = vmatmul.bf16.gmra.mxu0 %v7216
        %v7587 = vpop.f32.mrf.mxu0
        %v7588 = vadd.f32 %v7575, %v7587
        %v7589 = vpop.f32.mrf.mxu0
        %7590 = vdwg.mxu0
        %7591 = vmatpush.bf16.msra.mxu0 %v7441
        %7592 = vmatpush.bf16.msra.mxu0 %v7437
        %7593 = vmatpush.bf16.msra.mxu0 %v7433
        %7594 = vmatpush.bf16.msra.mxu0 %v7429
        %7595 = vmatpush.bf16.msra.mxu0 %v7425
        %7596 = vmatpush.bf16.msra.mxu0 %v7421
        %7597 = vmatpush.bf16.msra.mxu0 %v7417
        %7598 = vmatpush.bf16.msra.mxu0 %v7413
        %7599 = vmatmul.bf16.gmra.mxu0 %v7215
        %v7600 = vpop.f32.mrf.mxu0
        %v7601 = vadd.f32 0.0, %v7600
        %v7602 = vpop.f32.mrf.mxu0
        %7603 = vdwg.mxu0
        %7604 = vmatpush.bf16.msra.mxu0 %v7473
        %7605 = vmatpush.bf16.msra.mxu0 %v7469
        %7606 = vmatpush.bf16.msra.mxu0 %v7465
        %7607 = vmatpush.bf16.msra.mxu0 %v7461
        %7608 = vmatpush.bf16.msra.mxu0 %v7457
        %7609 = vmatpush.bf16.msra.mxu0 %v7453
        %7610 = vmatpush.bf16.msra.mxu0 %v7449
        %7611 = vmatpush.bf16.msra.mxu0 %v7445
        %7612 = vmatmul.bf16.gmra.mxu0 %v7216
        %v7613 = vpop.f32.mrf.mxu0
        %v7614 = vadd.f32 %v7601, %v7613
        %v7615 = vpop.f32.mrf.mxu0
        %7616 = vdwg.mxu0
        %7617 = vmatpush.bf16.msra.mxu0 %v7442
        %7618 = vmatpush.bf16.msra.mxu0 %v7438
        %7619 = vmatpush.bf16.msra.mxu0 %v7434
        %7620 = vmatpush.bf16.msra.mxu0 %v7430
        %7621 = vmatpush.bf16.msra.mxu0 %v7426
        %7622 = vmatpush.bf16.msra.mxu0 %v7422
        %7623 = vmatpush.bf16.msra.mxu0 %v7418
        %7624 = vmatpush.bf16.msra.mxu0 %v7414
        %7625 = vmatmul.bf16.gmra.mxu0 %v7215
        %v7626 = vpop.f32.mrf.mxu0
        %v7627 = vadd.f32 0.0, %v7626
        %v7628 = vpop.f32.mrf.mxu0
        %7629 = vdwg.mxu0
        %7630 = vmatpush.bf16.msra.mxu0 %v7474
        %7631 = vmatpush.bf16.msra.mxu0 %v7470
        %7632 = vmatpush.bf16.msra.mxu0 %v7466
        %7633 = vmatpush.bf16.msra.mxu0 %v7462
        %7634 = vmatpush.bf16.msra.mxu0 %v7458
        %7635 = vmatpush.bf16.msra.mxu0 %v7454
        %7636 = vmatpush.bf16.msra.mxu0 %v7450
        %7637 = vmatpush.bf16.msra.mxu0 %v7446
        %7638 = vmatmul.bf16.gmra.mxu0 %v7216
        %v7639 = vpop.f32.mrf.mxu0
        %v7640 = vadd.f32 %v7627, %v7639
        %v7641 = vpop.f32.mrf.mxu0
        %7642 = vdwg.mxu0
        %v7643 = vadd.f32 %v7146, %v7562
        %v7644 = vadd.f32 %v7147, %v7588
        %v7645 = vadd.f32 %v7148, %v7614
        %v7646 = vadd.f32 %v7149, %v7640
        %v7647 = vld [vmem:[#allocation10] sm:$0xf]
        %v7649 = vperm.slane %v7647, 0
        %v7650 = vperm.slane %v7647, 1
        %v7651 = vperm.slane %v7647, 2
        %v7652 = vperm.slane %v7647, 3
        %v7657 = vadd.f32 %v7643, %v7649
        %v7658 = vadd.f32 %v7644, %v7650
        %v7659 = vadd.f32 %v7645, %v7651
        %v7660 = vadd.f32 %v7646, %v7652
        %v7661 = vmax.f32 %v7657, 0.0
        %v7662 = vmax.f32 %v7658, 0.0
        %v7663 = vmax.f32 %v7659, 0.0
        %v7664 = vmax.f32 %v7660, 0.0
        %v7665 = vpack.c.bf16 %v7661, %v7661
        %v7666 = vpack.c.bf16 %v7662, %v7662
        %v7667 = vpack.c.bf16 %v7663, %v7663
        %v7668 = vpack.c.bf16 %v7664, %v7664
        %v7669 = vld [vmem:[#allocation12] sm:$0xf]
        %v7670 = vld [vmem:[#allocation12 + $0x4] sm:$0xf]
        %v7671 = vld [vmem:[#allocation12 + $0x8] sm:$0xf]
        %v7672 = vld [vmem:[#allocation12 + $0xc] sm:$0xf]
        %v7673 = vld [vmem:[#allocation12 + $0x10] sm:$0xf]
        %v7674 = vld [vmem:[#allocation12 + $0x14] sm:$0xf]
        %v7675 = vld [vmem:[#allocation12 + $0x18] sm:$0xf]
        %v7676 = vld [vmem:[#allocation12 + $0x1c] sm:$0xf]
        %v7677 = vld [vmem:[#allocation12 + $0x20] sm:$0xf]
        %v7678 = vld [vmem:[#allocation12 + $0x24] sm:$0xf]
        %v7679 = vld [vmem:[#allocation12 + $0x28] sm:$0xf]
        %v7680 = vld [vmem:[#allocation12 + $0x2c] sm:$0xf]
        %v7681 = vld [vmem:[#allocation12 + $0x30] sm:$0xf]
        %v7682 = vld [vmem:[#allocation12 + $0x34] sm:$0xf]
        %v7683 = vld [vmem:[#allocation12 + $0x38] sm:$0xf]
        %v7684 = vld [vmem:[#allocation12 + $0x3c] sm:$0xf]
        %v7685 = vld [vmem:[#allocation12 + $0x40] sm:$0xf]
        %v7686 = vld [vmem:[#allocation12 + $0x44] sm:$0xf]
        %v7687 = vld [vmem:[#allocation12 + $0x48] sm:$0xf]
        %v7688 = vld [vmem:[#allocation12 + $0x4c] sm:$0xf]
        %v7689 = vld [vmem:[#allocation12 + $0x50] sm:$0xf]
        %v7690 = vld [vmem:[#allocation12 + $0x54] sm:$0xf]
        %v7691 = vld [vmem:[#allocation12 + $0x58] sm:$0xf]
        %v7692 = vld [vmem:[#allocation12 + $0x5c] sm:$0xf]
        %v7693 = vld [vmem:[#allocation12 + $0x60] sm:$0xf]
        %v7694 = vld [vmem:[#allocation12 + $0x64] sm:$0xf]
        %v7695 = vld [vmem:[#allocation12 + $0x68] sm:$0xf]
        %v7696 = vld [vmem:[#allocation12 + $0x6c] sm:$0xf]
        %v7697 = vld [vmem:[#allocation12 + $0x70] sm:$0xf]
        %v7698 = vld [vmem:[#allocation12 + $0x74] sm:$0xf]
        %v7699 = vld [vmem:[#allocation12 + $0x78] sm:$0xf]
        %v7700 = vld [vmem:[#allocation12 + $0x7c] sm:$0xf]
        %v7701 = vld [vmem:[#allocation12 + $0x80] sm:$0xf]
        %v7702 = vld [vmem:[#allocation12 + $0x84] sm:$0xf]
        %v7703 = vld [vmem:[#allocation12 + $0x88] sm:$0xf]
        %v7704 = vld [vmem:[#allocation12 + $0x8c] sm:$0xf]
        %v7705 = vld [vmem:[#allocation12 + $0x90] sm:$0xf]
        %v7706 = vld [vmem:[#allocation12 + $0x94] sm:$0xf]
        %v7707 = vld [vmem:[#allocation12 + $0x98] sm:$0xf]
        %v7708 = vld [vmem:[#allocation12 + $0x9c] sm:$0xf]
        %v7709 = vld [vmem:[#allocation12 + $0xa0] sm:$0xf]
        %v7710 = vld [vmem:[#allocation12 + $0xa4] sm:$0xf]
        %v7711 = vld [vmem:[#allocation12 + $0xa8] sm:$0xf]
        %v7712 = vld [vmem:[#allocation12 + $0xac] sm:$0xf]
        %v7713 = vld [vmem:[#allocation12 + $0xb0] sm:$0xf]
        %v7714 = vld [vmem:[#allocation12 + $0xb4] sm:$0xf]
        %v7715 = vld [vmem:[#allocation12 + $0xb8] sm:$0xf]
        %v7716 = vld [vmem:[#allocation12 + $0xbc] sm:$0xf]
        %v7717 = vld [vmem:[#allocation12 + $0xc0] sm:$0xf]
        %v7718 = vld [vmem:[#allocation12 + $0xc4] sm:$0xf]
        %v7719 = vld [vmem:[#allocation12 + $0xc8] sm:$0xf]
        %v7720 = vld [vmem:[#allocation12 + $0xcc] sm:$0xf]
        %v7721 = vld [vmem:[#allocation12 + $0xd0] sm:$0xf]
        %v7722 = vld [vmem:[#allocation12 + $0xd4] sm:$0xf]
        %v7723 = vld [vmem:[#allocation12 + $0xd8] sm:$0xf]
        %v7724 = vld [vmem:[#allocation12 + $0xdc] sm:$0xf]
        %v7725 = vld [vmem:[#allocation12 + $0xe0] sm:$0xf]
        %v7726 = vld [vmem:[#allocation12 + $0xe4] sm:$0xf]
        %v7727 = vld [vmem:[#allocation12 + $0xe8] sm:$0xf]
        %v7728 = vld [vmem:[#allocation12 + $0xec] sm:$0xf]
        %v7729 = vld [vmem:[#allocation12 + $0xf0] sm:$0xf]
        %v7730 = vld [vmem:[#allocation12 + $0xf4] sm:$0xf]
        %v7731 = vld [vmem:[#allocation12 + $0xf8] sm:$0xf]
        %v7732 = vld [vmem:[#allocation12 + $0xfc] sm:$0xf]
        %v7733 = vld [vmem:[#allocation13] sm:$0x1]
        %v7798 = vunpack.c.l.b16 %v7669
        %v7799 = vunpack.c.l.b16 %v7670
        %v7800 = vunpack.c.l.b16 %v7671
        %v7801 = vunpack.c.l.b16 %v7672
        %v7802 = vunpack.c.l.b16 %v7673
        %v7803 = vunpack.c.l.b16 %v7674
        %v7804 = vunpack.c.l.b16 %v7675
        %v7805 = vunpack.c.l.b16 %v7676
        %v7806 = vunpack.c.l.b16 %v7677
        %v7807 = vunpack.c.l.b16 %v7678
        %v7808 = vunpack.c.l.b16 %v7679
        %v7809 = vunpack.c.l.b16 %v7680
        %v7810 = vunpack.c.l.b16 %v7681
        %v7811 = vunpack.c.l.b16 %v7682
        %v7812 = vunpack.c.l.b16 %v7683
        %v7813 = vunpack.c.l.b16 %v7684
        %v7814 = vunpack.c.l.b16 %v7685
        %v7815 = vunpack.c.l.b16 %v7686
        %v7816 = vunpack.c.l.b16 %v7687
        %v7817 = vunpack.c.l.b16 %v7688
        %v7818 = vunpack.c.l.b16 %v7689
        %v7819 = vunpack.c.l.b16 %v7690
        %v7820 = vunpack.c.l.b16 %v7691
        %v7821 = vunpack.c.l.b16 %v7692
        %v7822 = vunpack.c.l.b16 %v7693
        %v7823 = vunpack.c.l.b16 %v7694
        %v7824 = vunpack.c.l.b16 %v7695
        %v7825 = vunpack.c.l.b16 %v7696
        %v7826 = vunpack.c.l.b16 %v7697
        %v7827 = vunpack.c.l.b16 %v7698
        %v7828 = vunpack.c.l.b16 %v7699
        %v7829 = vunpack.c.l.b16 %v7700
        %v7830 = vunpack.c.l.b16 %v7701
        %v7831 = vunpack.c.l.b16 %v7702
        %v7832 = vunpack.c.l.b16 %v7703
        %v7833 = vunpack.c.l.b16 %v7704
        %v7834 = vunpack.c.l.b16 %v7705
        %v7835 = vunpack.c.l.b16 %v7706
        %v7836 = vunpack.c.l.b16 %v7707
        %v7837 = vunpack.c.l.b16 %v7708
        %v7838 = vunpack.c.l.b16 %v7709
        %v7839 = vunpack.c.l.b16 %v7710
        %v7840 = vunpack.c.l.b16 %v7711
        %v7841 = vunpack.c.l.b16 %v7712
        %v7842 = vunpack.c.l.b16 %v7713
        %v7843 = vunpack.c.l.b16 %v7714
        %v7844 = vunpack.c.l.b16 %v7715
        %v7845 = vunpack.c.l.b16 %v7716
        %v7846 = vunpack.c.l.b16 %v7717
        %v7847 = vunpack.c.l.b16 %v7718
        %v7848 = vunpack.c.l.b16 %v7719
        %v7849 = vunpack.c.l.b16 %v7720
        %v7850 = vunpack.c.l.b16 %v7721
        %v7851 = vunpack.c.l.b16 %v7722
        %v7852 = vunpack.c.l.b16 %v7723
        %v7853 = vunpack.c.l.b16 %v7724
        %v7854 = vunpack.c.l.b16 %v7725
        %v7855 = vunpack.c.l.b16 %v7726
        %v7856 = vunpack.c.l.b16 %v7727
        %v7857 = vunpack.c.l.b16 %v7728
        %v7858 = vunpack.c.l.b16 %v7729
        %v7859 = vunpack.c.l.b16 %v7730
        %v7860 = vunpack.c.l.b16 %v7731
        %v7861 = vunpack.c.l.b16 %v7732
        %v7862 = vpack.c.b16 %v7799, %v7798
        %v7863 = vpack.c.b16 %v7801, %v7800
        %v7864 = vpack.c.b16 %v7803, %v7802
        %v7865 = vpack.c.b16 %v7805, %v7804
        %v7866 = vpack.c.b16 %v7807, %v7806
        %v7867 = vpack.c.b16 %v7809, %v7808
        %v7868 = vpack.c.b16 %v7811, %v7810
        %v7869 = vpack.c.b16 %v7813, %v7812
        %v7870 = vpack.c.b16 %v7815, %v7814
        %v7871 = vpack.c.b16 %v7817, %v7816
        %v7872 = vpack.c.b16 %v7819, %v7818
        %v7873 = vpack.c.b16 %v7821, %v7820
        %v7874 = vpack.c.b16 %v7823, %v7822
        %v7875 = vpack.c.b16 %v7825, %v7824
        %v7876 = vpack.c.b16 %v7827, %v7826
        %v7877 = vpack.c.b16 %v7829, %v7828
        %v7878 = vpack.c.b16 %v7831, %v7830
        %v7879 = vpack.c.b16 %v7833, %v7832
        %v7880 = vpack.c.b16 %v7835, %v7834
        %v7881 = vpack.c.b16 %v7837, %v7836
        %v7882 = vpack.c.b16 %v7839, %v7838
        %v7883 = vpack.c.b16 %v7841, %v7840
        %v7884 = vpack.c.b16 %v7843, %v7842
        %v7885 = vpack.c.b16 %v7845, %v7844
        %v7886 = vpack.c.b16 %v7847, %v7846
        %v7887 = vpack.c.b16 %v7849, %v7848
        %v7888 = vpack.c.b16 %v7851, %v7850
        %v7889 = vpack.c.b16 %v7853, %v7852
        %v7890 = vpack.c.b16 %v7855, %v7854
        %v7891 = vpack.c.b16 %v7857, %v7856
        %v7892 = vpack.c.b16 %v7859, %v7858
        %v7893 = vpack.c.b16 %v7861, %v7860
        %7926 = vmatpush.bf16.msra.mxu0 %v7869
        %7927 = vmatpush.bf16.msra.mxu0 %v7868
        %7928 = vmatpush.bf16.msra.mxu0 %v7867
        %7929 = vmatpush.bf16.msra.mxu0 %v7866
        %7930 = vmatpush.bf16.msra.mxu0 %v7865
        %7931 = vmatpush.bf16.msra.mxu0 %v7864
        %7932 = vmatpush.bf16.msra.mxu0 %v7863
        %7933 = vmatpush.bf16.msra.mxu0 %v7862
        %7934 = vmatmul.bf16.gmra.mxu0 %v7665
        %v7935 = vpop.f32.mrf.mxu0
        %v7936 = vadd.f32 %v7733, %v7935
        %v7937 = vpop.f32.mrf.mxu0
        %7938 = vdwg.mxu0
        %7939 = vmatpush.bf16.msra.mxu0 %v7877
        %7940 = vmatpush.bf16.msra.mxu0 %v7876
        %7941 = vmatpush.bf16.msra.mxu0 %v7875
        %7942 = vmatpush.bf16.msra.mxu0 %v7874
        %7943 = vmatpush.bf16.msra.mxu0 %v7873
        %7944 = vmatpush.bf16.msra.mxu0 %v7872
        %7945 = vmatpush.bf16.msra.mxu0 %v7871
        %7946 = vmatpush.bf16.msra.mxu0 %v7870
        %7947 = vmatmul.bf16.gmra.mxu0 %v7666
        %v7948 = vpop.f32.mrf.mxu0
        %v7949 = vadd.f32 %v7936, %v7948
        %v7950 = vpop.f32.mrf.mxu0
        %7951 = vdwg.mxu0
        %7952 = vmatpush.bf16.msra.mxu0 %v7885
        %7953 = vmatpush.bf16.msra.mxu0 %v7884
        %7954 = vmatpush.bf16.msra.mxu0 %v7883
        %7955 = vmatpush.bf16.msra.mxu0 %v7882
        %7956 = vmatpush.bf16.msra.mxu0 %v7881
        %7957 = vmatpush.bf16.msra.mxu0 %v7880
        %7958 = vmatpush.bf16.msra.mxu0 %v7879
        %7959 = vmatpush.bf16.msra.mxu0 %v7878
        %7960 = vmatmul.bf16.gmra.mxu0 %v7667
        %v7961 = vpop.f32.mrf.mxu0
        %v7962 = vadd.f32 %v7949, %v7961
        %v7963 = vpop.f32.mrf.mxu0
        %7964 = vdwg.mxu0
        %7965 = vmatpush.bf16.msra.mxu0 %v7893
        %7966 = vmatpush.bf16.msra.mxu0 %v7892
        %7967 = vmatpush.bf16.msra.mxu0 %v7891
        %7968 = vmatpush.bf16.msra.mxu0 %v7890
        %7969 = vmatpush.bf16.msra.mxu0 %v7889
        %7970 = vmatpush.bf16.msra.mxu0 %v7888
        %7971 = vmatpush.bf16.msra.mxu0 %v7887
        %7972 = vmatpush.bf16.msra.mxu0 %v7886
        %7973 = vmatmul.bf16.gmra.mxu0 %v7668
        %v7974 = vpop.f32.mrf.mxu0
        %v7975 = vadd.f32 %v7962, %v7974
        %v7976 = vpop.f32.mrf.mxu0
        %7977 = vdwg.mxu0
        %v7978 = vperm.slane %v7975, 0
        %7979 = vst [vmem:[%s509] sm:$0xff] %v7978
        %p7980 = scmp.lt.s32.totalorder %s27, 1
        %s7981 = scalar_select %p7980, %s27, 1
        %s7982 = smul.addr %s7981, 8
        %s7983 = scalar_lea.vmem %s11, %s7982
        // Predicated region
        $region97: #{cnn_mnist_forward.1} parent=63 // pred_check
          %p7984 = pneg %p281
        $region98: #{cnn_mnist_forward.1} parent=63 // pred_check_branch
          %7986 = sbr.rel (%p7984) target = $region100
        $region99: #{cnn_mnist_forward.1} parent=63 // pred_region
          _
        $region100: #{cnn_mnist_forward.1} parent=63 // pred_fallthru
          _
      $region64: #{cnn_mnist_forward.1} parent=5 // pred_fallthru
        _
      %p7987 = scmp.le.s32.totalorder 2, %s22
      // Predicated region
      $region101: #{cnn_mnist_forward.1} parent=5 // pred_check
        %p7988 = pneg %p7987
      $region102: #{cnn_mnist_forward.1} parent=5 // pred_check_branch
        %7990 = sbr.rel (%p7988) target = $region104
      $region103: #{cnn_mnist_forward.1} parent=5 // pred_region
        %s7991 = ssub.s32 %s22, 2
        // Predicated region
        $region105: #{cnn_mnist_forward.1} parent=103 // pred_check
          %p7992 = pneg %p287
        $region106: #{cnn_mnist_forward.1} parent=103 // pred_check_branch
          %7994 = sbr.rel (%p7992) target = $region108
        $region107: #{cnn_mnist_forward.1} parent=103 // pred_region
          %p7995 = scmp.lt.s32.totalorder %s28, 1
          %s7996 = scalar_select %p7995, %s28, 1
          %s7997 = smul.addr %s7996, 8
          %s7998 = scalar_lea.vmem %s11, %s7997
        $region108: #{cnn_mnist_forward.1} parent=103 // pred_fallthru
          _
      $region104: #{cnn_mnist_forward.1} parent=5 // pred_fallthru
        _
    $region6: #{cnn_mnist_forward.1} parent=1 // loop_footer
      %s26 = sadd.s32 1, %s22
    $region7: #{cnn_mnist_forward.1} parent=1 // loop_footer_branch
      %21 = sbr.rel target = $region3
    $region8: #{cnn_mnist_forward.1} parent=1 // loop_exit
      _
    %7999 = vsyncpa [#allocation3], 1
    %s8000 = scalar_lea.sflag [#allocation3], 1
    %8001 = vsyncpa %s8000, 1
    %8002 = vsyncpa [#allocation5], 1
    %8003 = vsyncpa [#allocation8], 1
    %8004 = vsyncpa [#allocation11], 1
    %8005 = vsyncpa [#allocation14], 1

</llo_original>
